<compile_context>
chip_gen: v5e
topology: v5e:2x2
jax: 0.10.0
libtpu: 0.0.40
codegen_flags: <defaults>
</compile_context>

<pallas_src>
import functools

import jax
import jax.numpy as jnp
from jax.experimental import pallas as pl
from jax.experimental.pallas import tpu as pltpu

_MIB = 1024 * 1024


# ----------------------------------------------------------------------------
# helpers
# ----------------------------------------------------------------------------
@functools.lru_cache(maxsize=None)
def _vmem_limit_bytes():
    """64 MiB scoped VMEM on 128-MiB parts (v5e/v6e), 32 MiB on v7x."""
    try:
        cap = int(pltpu.get_tpu_info().vmem_capacity_bytes)
    except Exception:
        return 32 * _MIB
    return 64 * _MIB if cap >= 128 * _MIB else 32 * _MIB


def _pick_tile(dim, max_tile):
    """Largest divisor of `dim` <= max_tile preferring multiples of 128/16/8;
    falls back to the full dim (always a legal block).  Divisor-exact tiling
    keeps the fused BN partial sums exact (no ragged last tile)."""
    if dim <= max_tile:
        return dim
    for align in (128, 16, 8):
        start = max_tile - max_tile % align
        for t in range(start, 0, -align):
            if dim % t == 0:
                return t
    # NOTE: pathological (near-prime) M falls back to an untiled block; fine
    # for realistic batch sizes.
    return dim


# ----------------------------------------------------------------------------
# Pallas kernel: per-phase GEMM, resident weight, fused bias + activation,
# fused per-tile BatchNorm partial statistics.
# ----------------------------------------------------------------------------
def _phase_gemm_kernel(a_ref, w_ref, b_ref, o_ref, *stats_refs, activation):
    # Full-K, full-N GEMM for one (phase, row-tile); weight block stays
    # VMEM-resident across all row tiles of a phase.
    y = jnp.dot(a_ref[...], w_ref[...], preferred_element_type=jnp.float32)
    y = y + b_ref[...]
    if activation == "leaky_relu":
        y = jnp.where(y > 0, y, 0.01 * y)          # nn.LeakyReLU() default slope
    elif activation == "sigmoid":
        y = 1.0 / (1.0 + jnp.exp(-y))
    o_ref[...] = y.astype(o_ref.dtype)
    if stats_refs:
        s_ref, = stats_refs
        # Partial BN stats in f32, computed before the bf16 downcast.
        s_ref[...] = jnp.concatenate(
            [jnp.sum(y, axis=0, keepdims=True),
             jnp.sum(y * y, axis=0, keepdims=True)], axis=0)


def phase_gemm(a, w, bias, activation, want_stats):
    """a: (4, M, K) bf16 phase patches; w: (4, K, N) bf16; bias: (N,) f32.
    Returns zp (4, M, N) bf16 with zp[p] = act(a[p] @ w[p] + bias), and, when
    want_stats, per-(phase, tile) partial [sum; sum_sq] of shape (4, Mt, 2, N)
    f32 (single-pass E[x^2]-mean^2 downstream; fine at these magnitudes)."""
    P, M, K = a.shape
    _, _, N = w.shape

    bm = _pick_tile(M, 512)
    mt = M // bm
    grid = (P, mt)                     # phase leading: weight DMA'd 4x total and
                                       # >= 2 programs for v7x megacore at mt == 1
    bias2 = bias.reshape(1, N).astype(jnp.float32)

    if want_stats:
        out_shape = (jax.ShapeDtypeStruct((P, M, N), jnp.bfloat16),
                     jax.ShapeDtypeStruct((P, mt, 2, N), jnp.float32))
        out_specs = [pl.BlockSpec((None, bm, N), lambda p, i: (p, i, 0)),
                     pl.BlockSpec((None, None, 2, N), lambda p, i: (p, i, 0, 0))]
    else:
        out_shape = jax.ShapeDtypeStruct((P, M, N), jnp.bfloat16)
        out_specs = pl.BlockSpec((None, bm, N), lambda p, i: (p, i, 0))

    kernel = functools.partial(_phase_gemm_kernel, activation=activation)
    result = pl.pallas_call(
        kernel,
        out_shape=out_shape,
        grid_spec=pltpu.PrefetchScalarGridSpec(
            num_scalar_prefetch=0,
            grid=grid,
            in_specs=[
                # patches: streamed once, one row tile per grid step
                pl.BlockSpec((None, bm, K), lambda p, i: (p, i, 0)),
                # per-phase weight: single resident block, index only changes
                # with the phase axis -> no re-DMA across row tiles
                pl.BlockSpec((None, K, N), lambda p, i: (p, 0, 0)),
                pl.BlockSpec((1, N), lambda p, i: (0, 0)),
            ],
            out_specs=out_specs,
        ),
        compiler_params=pltpu.CompilerParams(
            dimension_semantics=("parallel", "parallel"),
            vmem_limit_bytes=_vmem_limit_bytes(),
        ),
    )(a, w, bias2)

    if want_stats:
        zp, stats = result
        return zp, stats
    return result, None


# ----------------------------------------------------------------------------
# ConvTranspose2d(k=4, s=2, p=1) via 4-phase (sub-pixel) decomposition
# ----------------------------------------------------------------------------
# Output pixel (2i+dy, 2j+dx) only depends on the 2x2 window of the pad-1 input
# starting at (i+dy, j+dx), using kernel taps ky=(3-dy)-2a, kx=(3-dx)-2b.
def _phase_weights(w_pt, pad_to=None):
    """PyTorch ConvTranspose2d weight (Cin, Cout, 4, 4) -> (4, 4*Cin, Cout) bf16."""
    w = jnp.transpose(w_pt, (2, 3, 0, 1))          # (ky, kx, Cin, Cout)
    phases = []
    for dy in (0, 1):
        for dx in (0, 1):
            taps = [w[(3 - dy) - 2 * a, (3 - dx) - 2 * b]
                    for a in (0, 1) for b in (0, 1)]       # 4 x (Cin, Cout)
            phases.append(jnp.concatenate(taps, axis=0))   # (4*Cin, Cout)
    wp = jnp.stack(phases, axis=0)
    if pad_to is not None and wp.shape[-1] < pad_to:
        wp = jnp.pad(wp, ((0, 0), (0, 0), (0, pad_to - wp.shape[-1])))
    return wp.astype(jnp.bfloat16)


def deconv4x4_s2_p1(x_nhwc, w_phase, bias, activation, want_stats):
    """x_nhwc: (N, H, W, Cin) -> zp (4, N*H*W, Cout) bf16 (+ optional BN stats)."""
    N, H, W, Cin = x_nhwc.shape
    Cout = w_phase.shape[-1]
    if bias is None:
        bias = jnp.zeros((Cout,), jnp.float32)
    xp = jnp.pad(x_nhwc.astype(jnp.bfloat16), ((0, 0), (1, 1), (1, 1), (0, 0)))
    # TODO(synk): the per-phase 2x2-tap patch gather is still wrapper-side XLA
    # glue (~16x the activation in HBM, bf16).  Moving it into the kernel needs
    # either an overlapping-window DMA or an in-kernel (nb,H,W,C)->(nb*H*W,C)
    # reshape across the sublane dim, both risky to lower; kept in the wrapper
    # so the kernel stays on well-supported ops.
    phases = []
    for dy in (0, 1):
        for dx in (0, 1):
            taps = [xp[:, dy + a:dy + a + H, dx + b:dx + b + W, :]
                    for a in (0, 1) for b in (0, 1)]
            phases.append(jnp.concatenate(taps, axis=-1).reshape(N * H * W, 4 * Cin))
    a = jnp.stack(phases, axis=0)                  # (4, N*H*W, 4*Cin) bf16
    return phase_gemm(a, w_phase, bias, activation, want_stats)


def _phases_to_nhwc(z, N, H, W):
    """z: (4, N*H*W, C) phase-separated -> interleaved (N, 2H, 2W, C)."""
    C = z.shape[-1]
    z = z.reshape(2, 2, N, H, W, C)                # (dy, dx, n, i, j, c)
    z = jnp.transpose(z, (2, 3, 0, 4, 1, 5))       # (n, i, dy, j, dx, c)
    return z.reshape(N, 2 * H, 2 * W, C)


# ----------------------------------------------------------------------------
# generator32 forward (input_scale=1, image_size=32)
# ----------------------------------------------------------------------------
def generator32_forward(params, z):
    B = z.shape[0]
    eps = 1e-5

    def bn_affine(stats, count, gamma, beta):
        # Training-mode BatchNorm (biased variance) from the kernel's fused
        # partial sums -> no second HBM pass over the activation.
        # TODO(synk): running_mean/var side effects of nn.BatchNorm2d not modeled.
        total = jnp.sum(stats, axis=(0, 1))                 # (2, C)
        mean = total[0] / count
        var = total[1] / count - mean * mean
        inv = jax.lax.rsqrt(var + eps)
        scale = gamma * inv
        shift = beta - mean * scale
        return scale, shift

    def bn_interleave(zp, stats, count, gamma, beta, h, w):
        # Affine applied to the interleaved activation BEFORE zero padding
        # (exact; folding the shift into the next conv's bias would be wrong
        # at border pixels).  XLA fuses it with the transpose/pad.
        scale, shift = bn_affine(stats, count, gamma, beta)
        x = _phases_to_nhwc(zp, B, h, w).astype(jnp.float32) * scale + shift
        return x.astype(jnp.bfloat16)

    # fc1 (bias=False): (B, latent) @ (latent, 2048).  Kept in XLA: a dedicated
    # pallas_call at this size is pure launch/DMA overhead.
    x = jnp.dot(z, params["fc1_w"], preferred_element_type=jnp.float32)
    # PyTorch: x.resize(B, 512, 2, 2) (NCHW) -> NHWC
    x = x.reshape(B, 512, 2, 2).transpose(0, 2, 3, 1).astype(jnp.bfloat16)

    # conv2 -> LeakyReLU -> bn2 (stats fused in the GEMM epilogue)
    zp, st = deconv4x4_s2_p1(x, params["conv2_wp"], None, "leaky_relu", True)
    x = bn_interleave(zp, st, float(B * 16), params["bn2_g"], params["bn2_b"], 2, 2)

    # conv3 -> LeakyReLU -> bn3
    zp, st = deconv4x4_s2_p1(x, params["conv3_wp"], None, "leaky_relu", True)
    x = bn_interleave(zp, st, float(B * 64), params["bn3_g"], params["bn3_b"], 4, 4)

    # conv4 -> LeakyReLU -> bn4
    zp, st = deconv4x4_s2_p1(x, params["conv4_wp"], None, "leaky_relu", True)
    x = bn_interleave(zp, st, float(B * 256), params["bn4_g"], params["bn4_b"], 8, 8)

    # convL (bias; Cout padded 3 -> 8, bf16 store) -> Sigmoid
    zp, _ = deconv4x4_s2_p1(x, params["convL_wp"], params["convL_b"], "sigmoid", False)
    x = _phases_to_nhwc(zp, B, 16, 16)[..., :3].astype(jnp.float32)  # (B, 32, 32, 3)
    return x.transpose(0, 3, 1, 2)                                   # NCHW


# ----------------------------------------------------------------------------
# parameters
# ----------------------------------------------------------------------------
def init_params(key, latent=100):
    """PyTorch-layout parameters (weights_init distributions)."""
    ks = jax.random.split(key, 12)
    p = {}
    p["fc1_w"] = jax.random.normal(ks[0], (latent, 512 * 2 * 2), jnp.float32) * 0.05
    p["conv2_w"] = jax.random.normal(ks[1], (512, 512, 4, 4), jnp.float32) * 0.05
    p["conv3_w"] = jax.random.normal(ks[2], (512, 256, 4, 4), jnp.float32) * 0.05
    p["conv4_w"] = jax.random.normal(ks[3], (256, 128, 4, 4), jnp.float32) * 0.05
    p["convL_w"] = jax.random.normal(ks[4], (128, 3, 4, 4), jnp.float32) * 0.05
    p["convL_b"] = jax.random.normal(ks[5], (3,), jnp.float32) * 0.05
    p["bn2_g"] = 1.0 + 0.02 * jax.random.normal(ks[6], (512,), jnp.float32)
    p["bn2_b"] = jnp.zeros((512,), jnp.float32)
    p["bn3_g"] = 1.0 + 0.02 * jax.random.normal(ks[7], (256,), jnp.float32)
    p["bn3_b"] = jnp.zeros((256,), jnp.float32)
    p["bn4_g"] = 1.0 + 0.02 * jax.random.normal(ks[8], (128,), jnp.float32)
    p["bn4_b"] = jnp.zeros((128,), jnp.float32)
    return p


def prepare_params(p):
    """PyTorch-layout params -> kernel-ready (phase-decomposed, bf16) params."""
    return {
        "fc1_w": p["fc1_w"].astype(jnp.float32),
        "conv2_wp": _phase_weights(p["conv2_w"]),
        "conv3_wp": _phase_weights(p["conv3_w"]),
        "conv4_wp": _phase_weights(p["conv4_w"]),
        # convL: pad Cout 3 -> 8 only (cheap masked store, ~2.7x instead of
        # ~42x write amplification); sliced back to 3 channels in the wrapper.
        "convL_wp": _phase_weights(p["convL_w"], pad_to=8),
        "convL_b": jnp.pad(p["convL_b"], (0, 5)).astype(jnp.float32),
        "bn2_g": p["bn2_g"], "bn2_b": p["bn2_b"],
        "bn3_g": p["bn3_g"], "bn3_b": p["bn3_b"],
        "bn4_g": p["bn4_g"], "bn4_b": p["bn4_b"],
    }


# ----------------------------------------------------------------------------
# pure-JAX reference (PyTorch semantics, f32) for a runtime self-check
# ----------------------------------------------------------------------------
def _reference_forward(p, z):
    def deconv_ref(x, w, b=None):
        # x: (N, Cin, H, W); w: (Cin, Cout, 4, 4); ConvT(k=4,s=2,p=1) ==
        # conv(lhs_dilation=2, pad=k-1-p=2) with the flipped / IO-swapped kernel.
        wf = jnp.transpose(w[:, :, ::-1, ::-1], (1, 0, 2, 3))
        y = jax.lax.conv_general_dilated(
            x, wf, window_strides=(1, 1), padding=((2, 2), (2, 2)),
            lhs_dilation=(2, 2), rhs_dilation=(1, 1),
            dimension_numbers=("NCHW", "OIHW", "NCHW"))
        if b is not None:
            y = y + b.reshape(1, -1, 1, 1)
        return y

    def bn_ref(x, g, b, eps=1e-5):
        mean = x.mean(axis=(0, 2, 3), keepdims=True)
        var = ((x - mean) ** 2).mean(axis=(0, 2, 3), keepdims=True)
        return ((x - mean) * jax.lax.rsqrt(var + eps) * g.reshape(1, -1, 1, 1)
                + b.reshape(1, -1, 1, 1))

    lrelu = lambda v: jnp.where(v > 0, v, 0.01 * v)
    B = z.shape[0]
    x = jnp.dot(z, p["fc1_w"]).reshape(B, 512, 2, 2)
    x = bn_ref(lrelu(deconv_ref(x, p["conv2_w"])), p["bn2_g"], p["bn2_b"])
    x = bn_ref(lrelu(deconv_ref(x, p["conv3_w"])), p["bn3_g"], p["bn3_b"])
    x = bn_ref(lrelu(deconv_ref(x, p["conv4_w"])), p["bn4_g"], p["bn4_b"])
    x = jax.nn.sigmoid(deconv_ref(x, p["convL_w"], p["convL_b"]))
    return x


if __name__ == "__main__":
    key = jax.random.PRNGKey(0)
    pkey, zkey = jax.random.split(key)

    latent_size = 100
    batch = 2
    params_pt = init_params(pkey, latent=latent_size)
    params = prepare_params(params_pt)
    z = jax.random.normal(zkey, (batch, latent_size), jnp.float32)

    out = jax.jit(generator32_forward)(params, z)
    out = jax.block_until_ready(out)

    assert out.shape == (batch, 3, 32, 32), out.shape
    assert bool(jnp.all(jnp.isfinite(out)))
    assert bool(jnp.all((out >= 0.0) & (out <= 1.0)))   # sigmoid output range

    ref = jax.block_until_ready(jax.jit(_reference_forward)(params_pt, z))
    max_err = float(jnp.max(jnp.abs(out - ref)))
    assert max_err < 5e-2, f"mismatch vs f32 reference: {max_err}"

    print("KERNEL_OK")
</pallas_src>

<mosaic_0001>
module attributes {stable_mosaic.version = 11 : i64} {
  func.func @_phase_gemm_kernel(%arg0: i32, %arg1: i32, %arg2: memref<1x8x2048xbf16, #tpu.memory_space<vmem>>, %arg3: memref<1x2048x512xbf16, #tpu.memory_space<vmem>>, %arg4: memref<1x512xf32, #tpu.memory_space<vmem>>, %arg5: memref<1x8x512xbf16, #tpu.memory_space<vmem>>, %arg6: memref<1x1x2x512xf32, #tpu.memory_space<vmem>>) attributes {dimension_semantics = [#tpu.dimension_semantics<parallel>, #tpu.dimension_semantics<parallel>], iteration_bounds = array<i64: 4, 1>, scalar_prefetch = 0 : i64, scratch_operands = 0 : i64, tpu.core_type = #tpu.core_type<tc>, window_params = [{transform_indices = @transform_0, window_bounds = array<i64: 1, 8, 2048>}, {transform_indices = @transform_1, window_bounds = array<i64: 1, 2048, 512>}, {pipeline_mode = #tpu.pipeline_mode<synchronous>, transform_indices = @transform_2, window_bounds = array<i64: 1, 512>}, {transform_indices = @transform_3, window_bounds = array<i64: 1, 8, 512>}, {transform_indices = @transform_4, window_bounds = array<i64: 1, 1, 2, 512>}]} {
    %c0 = arith.constant 0 : index
    %c0_0 = arith.constant 0 : index
    %c0_1 = arith.constant 0 : index
    %0 = vector.load %arg2[%c0, %c0_0, %c0_1] : memref<1x8x2048xbf16, #tpu.memory_space<vmem>>, vector<1x8x2048xbf16>
    %1 = vector.shape_cast %0 : vector<1x8x2048xbf16> to vector<8x2048xbf16>
    %c0_2 = arith.constant 0 : index
    %c0_3 = arith.constant 0 : index
    %c0_4 = arith.constant 0 : index
    %2 = vector.load %arg3[%c0_2, %c0_3, %c0_4] : memref<1x2048x512xbf16, #tpu.memory_space<vmem>>, vector<1x2048x512xbf16>
    %3 = vector.shape_cast %2 : vector<1x2048x512xbf16> to vector<2048x512xbf16>
    %cst = arith.constant dense<0.000000e+00> : vector<8x512xf32>
    %4 = tpu.matmul %1, %3, %cst {dimension_numbers = #tpu.dot_dimension_numbers<[1], [0], [0], [1], [0, 0, 1, 1], [], []>} : vector<8x2048xbf16>, vector<2048x512xbf16>, vector<8x512xf32> -> vector<8x512xf32>
    %c0_5 = arith.constant 0 : index
    %c0_6 = arith.constant 0 : index
    %5 = vector.load %arg4[%c0_5, %c0_6] : memref<1x512xf32, #tpu.memory_space<vmem>>, vector<1x512xf32>
    %6 = vector.broadcast %5 : vector<1x512xf32> to vector<8x512xf32>
    %7 = arith.addf %4, %6 : vector<8x512xf32>
    %cst_7 = arith.constant 0.000000e+00 : f32
    %8 = vector.broadcast %cst_7 : f32 to vector<8x512xf32>
    %9 = arith.cmpf ogt, %7, %8 : vector<8x512xf32>
    %cst_8 = arith.constant 0.00999999977 : f32
    %10 = vector.broadcast %cst_8 : f32 to vector<8x512xf32>
    %11 = arith.mulf %10, %7 : vector<8x512xf32>
    %12 = arith.select %9, %7, %11 : vector<8x512xi1>, vector<8x512xf32>
    %13 = arith.truncf %12 : vector<8x512xf32> to vector<8x512xbf16>
    %c0_9 = arith.constant 0 : index
    %c0_10 = arith.constant 0 : index
    %c0_11 = arith.constant 0 : index
    %14 = vector.load %arg5[%c0_9, %c0_10, %c0_11] : memref<1x8x512xbf16, #tpu.memory_space<vmem>>, vector<1x8x512xbf16>
    %15 = vector.shape_cast %14 : vector<1x8x512xbf16> to vector<8x512xbf16>
    %16 = vector.shape_cast %13 : vector<8x512xbf16> to vector<1x8x512xbf16>
    tpu.vector_store %arg5[%c0_9, %c0_10, %c0_11], %16 {strides = array<i32>} : memref<1x8x512xbf16, #tpu.memory_space<vmem>>, vector<1x8x512xbf16>,
    %cst_12 = arith.constant dense<0.000000e+00> : vector<512xf32>
    %17 = vector.multi_reduction <add>, %12, %cst_12 [0] : vector<8x512xf32> to vector<512xf32>
    %18 = vector.shape_cast %17 : vector<512xf32> to vector<1x512xf32>
    %19 = arith.mulf %12, %12 : vector<8x512xf32>
    %cst_13 = arith.constant dense<0.000000e+00> : vector<512xf32>
    %20 = vector.multi_reduction <add>, %19, %cst_13 [0] : vector<8x512xf32> to vector<512xf32>
    %21 = vector.shape_cast %20 : vector<512xf32> to vector<1x512xf32>
    %22 = tpu.concatenate %18, %21 in 0 : vector<1x512xf32>, vector<1x512xf32> -> vector<2x512xf32>
    %c0_14 = arith.constant 0 : index
    %c0_15 = arith.constant 0 : index
    %c0_16 = arith.constant 0 : index
    %c0_17 = arith.constant 0 : index
    %23 = vector.load %arg6[%c0_14, %c0_15, %c0_16, %c0_17] : memref<1x1x2x512xf32, #tpu.memory_space<vmem>>, vector<1x1x2x512xf32>
    %24 = vector.shape_cast %23 : vector<1x1x2x512xf32> to vector<2x512xf32>
    %25 = vector.shape_cast %22 : vector<2x512xf32> to vector<1x1x2x512xf32>
    tpu.vector_store %arg6[%c0_14, %c0_15, %c0_16, %c0_17], %25 {strides = array<i32>} : memref<1x1x2x512xf32, #tpu.memory_space<vmem>>, vector<1x1x2x512xf32>,
    return
  }
  func.func @transform_0(%arg0: i32, %arg1: i32) -> (i32, i32, i32) {
    %c0_i32 = arith.constant 0 : i32
    %c0_i32_0 = arith.constant 0 : i32
    return %arg0, %arg1, %c0_i32 : i32, i32, i32
  }
  func.func @transform_1(%arg0: i32, %arg1: i32) -> (i32, i32, i32) {
    %c0_i32 = arith.constant 0 : i32
    %c0_i32_0 = arith.constant 0 : i32
    %c0_i32_1 = arith.constant 0 : i32
    return %arg0, %c0_i32, %c0_i32_0 : i32, i32, i32
  }
  func.func @transform_2(%arg0: i32, %arg1: i32) -> (i32, i32) {
    %c0_i32 = arith.constant 0 : i32
    %c0_i32_0 = arith.constant 0 : i32
    %c0_i32_1 = arith.constant 0 : i32
    return %c0_i32, %c0_i32_0 : i32, i32
  }
  func.func @transform_3(%arg0: i32, %arg1: i32) -> (i32, i32, i32) {
    %c0_i32 = arith.constant 0 : i32
    %c0_i32_0 = arith.constant 0 : i32
    return %arg0, %arg1, %c0_i32 : i32, i32, i32
  }
  func.func @transform_4(%arg0: i32, %arg1: i32) -> (i32, i32, i32, i32) {
    %c0_i32 = arith.constant 0 : i32
    %c0_i32_0 = arith.constant 0 : i32
    %c0_i32_1 = arith.constant 0 : i32
    return %arg0, %arg1, %c0_i32, %c0_i32_0 : i32, i32, i32, i32
  }
}

module attributes {stable_mosaic.version = 11 : i64} {
  func.func @_phase_gemm_kernel(%arg0: i32, %arg1: i32, %arg2: memref<1x32x2048xbf16, #tpu.memory_space<vmem>>, %arg3: memref<1x2048x256xbf16, #tpu.memory_space<vmem>>, %arg4: memref<1x256xf32, #tpu.memory_space<vmem>>, %arg5: memref<1x32x256xbf16, #tpu.memory_space<vmem>>, %arg6: memref<1x1x2x256xf32, #tpu.memory_space<vmem>>) attributes {dimension_semantics = [#tpu.dimension_semantics<parallel>, #tpu.dimension_semantics<parallel>], iteration_bounds = array<i64: 4, 1>, scalar_prefetch = 0 : i64, scratch_operands = 0 : i64, tpu.core_type = #tpu.core_type<tc>, window_params = [{transform_indices = @transform_0, window_bounds = array<i64: 1, 32, 2048>}, {transform_indices = @transform_1, window_bounds = array<i64: 1, 2048, 256>}, {pipeline_mode = #tpu.pipeline_mode<synchronous>, transform_indices = @transform_2, window_bounds = array<i64: 1, 256>}, {transform_indices = @transform_3, window_bounds = array<i64: 1, 32, 256>}, {transform_indices = @transform_4, window_bounds = array<i64: 1, 1, 2, 256>}]} {
    %c0 = arith.constant 0 : index
    %c0_0 = arith.constant 0 : index
    %c0_1 = arith.constant 0 : index
    %0 = vector.load %arg2[%c0, %c0_0, %c0_1] : memref<1x32x2048xbf16, #tpu.memory_space<vmem>>, vector<1x32x2048xbf16>
    %1 = vector.shape_cast %0 : vector<1x32x2048xbf16> to vector<32x2048xbf16>
    %c0_2 = arith.constant 0 : index
    %c0_3 = arith.constant 0 : index
    %c0_4 = arith.constant 0 : index
    %2 = vector.load %arg3[%c0_2, %c0_3, %c0_4] : memref<1x2048x256xbf16, #tpu.memory_space<vmem>>, vector<1x2048x256xbf16>
    %3 = vector.shape_cast %2 : vector<1x2048x256xbf16> to vector<2048x256xbf16>
    %cst = arith.constant dense<0.000000e+00> : vector<32x256xf32>
    %4 = tpu.matmul %1, %3, %cst {dimension_numbers = #tpu.dot_dimension_numbers<[1], [0], [0], [1], [0, 0, 1, 1], [], []>} : vector<32x2048xbf16>, vector<2048x256xbf16>, vector<32x256xf32> -> vector<32x256xf32>
    %c0_5 = arith.constant 0 : index
    %c0_6 = arith.constant 0 : index
    %5 = vector.load %arg4[%c0_5, %c0_6] : memref<1x256xf32, #tpu.memory_space<vmem>>, vector<1x256xf32>
    %6 = vector.broadcast %5 : vector<1x256xf32> to vector<32x256xf32>
    %7 = arith.addf %4, %6 : vector<32x256xf32>
    %cst_7 = arith.constant 0.000000e+00 : f32
    %8 = vector.broadcast %cst_7 : f32 to vector<32x256xf32>
    %9 = arith.cmpf ogt, %7, %8 : vector<32x256xf32>
    %cst_8 = arith.constant 0.00999999977 : f32
    %10 = vector.broadcast %cst_8 : f32 to vector<32x256xf32>
    %11 = arith.mulf %10, %7 : vector<32x256xf32>
    %12 = arith.select %9, %7, %11 : vector<32x256xi1>, vector<32x256xf32>
    %13 = arith.truncf %12 : vector<32x256xf32> to vector<32x256xbf16>
    %c0_9 = arith.constant 0 : index
    %c0_10 = arith.constant 0 : index
    %c0_11 = arith.constant 0 : index
    %14 = vector.load %arg5[%c0_9, %c0_10, %c0_11] : memref<1x32x256xbf16, #tpu.memory_space<vmem>>, vector<1x32x256xbf16>
    %15 = vector.shape_cast %14 : vector<1x32x256xbf16> to vector<32x256xbf16>
    %16 = vector.shape_cast %13 : vector<32x256xbf16> to vector<1x32x256xbf16>
    tpu.vector_store %arg5[%c0_9, %c0_10, %c0_11], %16 {strides = array<i32>} : memref<1x32x256xbf16, #tpu.memory_space<vmem>>, vector<1x32x256xbf16>,
    %cst_12 = arith.constant dense<0.000000e+00> : vector<256xf32>
    %17 = vector.multi_reduction <add>, %12, %cst_12 [0] : vector<32x256xf32> to vector<256xf32>
    %18 = vector.shape_cast %17 : vector<256xf32> to vector<1x256xf32>
    %19 = arith.mulf %12, %12 : vector<32x256xf32>
    %cst_13 = arith.constant dense<0.000000e+00> : vector<256xf32>
    %20 = vector.multi_reduction <add>, %19, %cst_13 [0] : vector<32x256xf32> to vector<256xf32>
    %21 = vector.shape_cast %20 : vector<256xf32> to vector<1x256xf32>
    %22 = tpu.concatenate %18, %21 in 0 : vector<1x256xf32>, vector<1x256xf32> -> vector<2x256xf32>
    %c0_14 = arith.constant 0 : index
    %c0_15 = arith.constant 0 : index
    %c0_16 = arith.constant 0 : index
    %c0_17 = arith.constant 0 : index
    %23 = vector.load %arg6[%c0_14, %c0_15, %c0_16, %c0_17] : memref<1x1x2x256xf32, #tpu.memory_space<vmem>>, vector<1x1x2x256xf32>
    %24 = vector.shape_cast %23 : vector<1x1x2x256xf32> to vector<2x256xf32>
    %25 = vector.shape_cast %22 : vector<2x256xf32> to vector<1x1x2x256xf32>
    tpu.vector_store %arg6[%c0_14, %c0_15, %c0_16, %c0_17], %25 {strides = array<i32>} : memref<1x1x2x256xf32, #tpu.memory_space<vmem>>, vector<1x1x2x256xf32>,
    return
  }
  func.func @transform_0(%arg0: i32, %arg1: i32) -> (i32, i32, i32) {
    %c0_i32 = arith.constant 0 : i32
    %c0_i32_0 = arith.constant 0 : i32
    return %arg0, %arg1, %c0_i32 : i32, i32, i32
  }
  func.func @transform_1(%arg0: i32, %arg1: i32) -> (i32, i32, i32) {
    %c0_i32 = arith.constant 0 : i32
    %c0_i32_0 = arith.constant 0 : i32
    %c0_i32_1 = arith.constant 0 : i32
    return %arg0, %c0_i32, %c0_i32_0 : i32, i32, i32
  }
  func.func @transform_2(%arg0: i32, %arg1: i32) -> (i32, i32) {
    %c0_i32 = arith.constant 0 : i32
    %c0_i32_0 = arith.constant 0 : i32
    %c0_i32_1 = arith.constant 0 : i32
    return %c0_i32, %c0_i32_0 : i32, i32
  }
  func.func @transform_3(%arg0: i32, %arg1: i32) -> (i32, i32, i32) {
    %c0_i32 = arith.constant 0 : i32
    %c0_i32_0 = arith.constant 0 : i32
    return %arg0, %arg1, %c0_i32 : i32, i32, i32
  }
  func.func @transform_4(%arg0: i32, %arg1: i32) -> (i32, i32, i32, i32) {
    %c0_i32 = arith.constant 0 : i32
    %c0_i32_0 = arith.constant 0 : i32
    %c0_i32_1 = arith.constant 0 : i32
    return %arg0, %arg1, %c0_i32, %c0_i32_0 : i32, i32, i32, i32
  }
}

module attributes {stable_mosaic.version = 11 : i64} {
  func.func @_phase_gemm_kernel(%arg0: i32, %arg1: i32, %arg2: memref<1x128x1024xbf16, #tpu.memory_space<vmem>>, %arg3: memref<1x1024x128xbf16, #tpu.memory_space<vmem>>, %arg4: memref<1x128xf32, #tpu.memory_space<vmem>>, %arg5: memref<1x128x128xbf16, #tpu.memory_space<vmem>>, %arg6: memref<1x1x2x128xf32, #tpu.memory_space<vmem>>) attributes {dimension_semantics = [#tpu.dimension_semantics<parallel>, #tpu.dimension_semantics<parallel>], iteration_bounds = array<i64: 4, 1>, scalar_prefetch = 0 : i64, scratch_operands = 0 : i64, tpu.core_type = #tpu.core_type<tc>, window_params = [{transform_indices = @transform_0, window_bounds = array<i64: 1, 128, 1024>}, {transform_indices = @transform_1, window_bounds = array<i64: 1, 1024, 128>}, {pipeline_mode = #tpu.pipeline_mode<synchronous>, transform_indices = @transform_2, window_bounds = array<i64: 1, 128>}, {transform_indices = @transform_3, window_bounds = array<i64: 1, 128, 128>}, {transform_indices = @transform_4, window_bounds = array<i64: 1, 1, 2, 128>}]} {
    %c0 = arith.constant 0 : index
    %c0_0 = arith.constant 0 : index
    %c0_1 = arith.constant 0 : index
    %0 = vector.load %arg2[%c0, %c0_0, %c0_1] : memref<1x128x1024xbf16, #tpu.memory_space<vmem>>, vector<1x128x1024xbf16>
    %1 = vector.shape_cast %0 : vector<1x128x1024xbf16> to vector<128x1024xbf16>
    %c0_2 = arith.constant 0 : index
    %c0_3 = arith.constant 0 : index
    %c0_4 = arith.constant 0 : index
    %2 = vector.load %arg3[%c0_2, %c0_3, %c0_4] : memref<1x1024x128xbf16, #tpu.memory_space<vmem>>, vector<1x1024x128xbf16>
    %3 = vector.shape_cast %2 : vector<1x1024x128xbf16> to vector<1024x128xbf16>
    %cst = arith.constant dense<0.000000e+00> : vector<128x128xf32>
    %4 = tpu.matmul %1, %3, %cst {dimension_numbers = #tpu.dot_dimension_numbers<[1], [0], [0], [1], [0, 0, 1, 1], [], []>} : vector<128x1024xbf16>, vector<1024x128xbf16>, vector<128x128xf32> -> vector<128x128xf32>
    %c0_5 = arith.constant 0 : index
    %c0_6 = arith.constant 0 : index
    %5 = vector.load %arg4[%c0_5, %c0_6] : memref<1x128xf32, #tpu.memory_space<vmem>>, vector<1x128xf32>
    %6 = vector.broadcast %5 : vector<1x128xf32> to vector<128x128xf32>
    %7 = arith.addf %4, %6 : vector<128x128xf32>
    %cst_7 = arith.constant 0.000000e+00 : f32
    %8 = vector.broadcast %cst_7 : f32 to vector<128x128xf32>
    %9 = arith.cmpf ogt, %7, %8 : vector<128x128xf32>
    %cst_8 = arith.constant 0.00999999977 : f32
    %10 = vector.broadcast %cst_8 : f32 to vector<128x128xf32>
    %11 = arith.mulf %10, %7 : vector<128x128xf32>
    %12 = arith.select %9, %7, %11 : vector<128x128xi1>, vector<128x128xf32>
    %13 = arith.truncf %12 : vector<128x128xf32> to vector<128x128xbf16>
    %c0_9 = arith.constant 0 : index
    %c0_10 = arith.constant 0 : index
    %c0_11 = arith.constant 0 : index
    %14 = vector.load %arg5[%c0_9, %c0_10, %c0_11] : memref<1x128x128xbf16, #tpu.memory_space<vmem>>, vector<1x128x128xbf16>
    %15 = vector.shape_cast %14 : vector<1x128x128xbf16> to vector<128x128xbf16>
    %16 = vector.shape_cast %13 : vector<128x128xbf16> to vector<1x128x128xbf16>
    tpu.vector_store %arg5[%c0_9, %c0_10, %c0_11], %16 {strides = array<i32>} : memref<1x128x128xbf16, #tpu.memory_space<vmem>>, vector<1x128x128xbf16>,
    %cst_12 = arith.constant dense<0.000000e+00> : vector<128xf32>
    %17 = vector.multi_reduction <add>, %12, %cst_12 [0] : vector<128x128xf32> to vector<128xf32>
    %18 = vector.shape_cast %17 : vector<128xf32> to vector<1x128xf32>
    %19 = arith.mulf %12, %12 : vector<128x128xf32>
    %cst_13 = arith.constant dense<0.000000e+00> : vector<128xf32>
    %20 = vector.multi_reduction <add>, %19, %cst_13 [0] : vector<128x128xf32> to vector<128xf32>
    %21 = vector.shape_cast %20 : vector<128xf32> to vector<1x128xf32>
    %22 = tpu.concatenate %18, %21 in 0 : vector<1x128xf32>, vector<1x128xf32> -> vector<2x128xf32>
    %c0_14 = arith.constant 0 : index
    %c0_15 = arith.constant 0 : index
    %c0_16 = arith.constant 0 : index
    %c0_17 = arith.constant 0 : index
    %23 = vector.load %arg6[%c0_14, %c0_15, %c0_16, %c0_17] : memref<1x1x2x128xf32, #tpu.memory_space<vmem>>, vector<1x1x2x128xf32>
    %24 = vector.shape_cast %23 : vector<1x1x2x128xf32> to vector<2x128xf32>
    %25 = vector.shape_cast %22 : vector<2x128xf32> to vector<1x1x2x128xf32>
    tpu.vector_store %arg6[%c0_14, %c0_15, %c0_16, %c0_17], %25 {strides = array<i32>} : memref<1x1x2x128xf32, #tpu.memory_space<vmem>>, vector<1x1x2x128xf32>,
    return
  }
  func.func @transform_0(%arg0: i32, %arg1: i32) -> (i32, i32, i32) {
    %c0_i32 = arith.constant 0 : i32
    %c0_i32_0 = arith.constant 0 : i32
    return %arg0, %arg1, %c0_i32 : i32, i32, i32
  }
  func.func @transform_1(%arg0: i32, %arg1: i32) -> (i32, i32, i32) {
    %c0_i32 = arith.constant 0 : i32
    %c0_i32_0 = arith.constant 0 : i32
    %c0_i32_1 = arith.constant 0 : i32
    return %arg0, %c0_i32, %c0_i32_0 : i32, i32, i32
  }
  func.func @transform_2(%arg0: i32, %arg1: i32) -> (i32, i32) {
    %c0_i32 = arith.constant 0 : i32
    %c0_i32_0 = arith.constant 0 : i32
    %c0_i32_1 = arith.constant 0 : i32
    return %c0_i32, %c0_i32_0 : i32, i32
  }
  func.func @transform_3(%arg0: i32, %arg1: i32) -> (i32, i32, i32) {
    %c0_i32 = arith.constant 0 : i32
    %c0_i32_0 = arith.constant 0 : i32
    return %arg0, %arg1, %c0_i32 : i32, i32, i32
  }
  func.func @transform_4(%arg0: i32, %arg1: i32) -> (i32, i32, i32, i32) {
    %c0_i32 = arith.constant 0 : i32
    %c0_i32_0 = arith.constant 0 : i32
    %c0_i32_1 = arith.constant 0 : i32
    return %arg0, %arg1, %c0_i32, %c0_i32_0 : i32, i32, i32, i32
  }
}

module attributes {stable_mosaic.version = 11 : i64} {
  func.func @_phase_gemm_kernel(%arg0: i32, %arg1: i32, %arg2: memref<1x512x512xbf16, #tpu.memory_space<vmem>>, %arg3: memref<1x512x8xbf16, #tpu.memory_space<vmem>>, %arg4: memref<1x8xf32, #tpu.memory_space<vmem>>, %arg5: memref<1x512x8xbf16, #tpu.memory_space<vmem>>) attributes {dimension_semantics = [#tpu.dimension_semantics<parallel>, #tpu.dimension_semantics<parallel>], iteration_bounds = array<i64: 4, 1>, scalar_prefetch = 0 : i64, scratch_operands = 0 : i64, tpu.core_type = #tpu.core_type<tc>, window_params = [{transform_indices = @transform_0, window_bounds = array<i64: 1, 512, 512>}, {transform_indices = @transform_1, window_bounds = array<i64: 1, 512, 8>}, {pipeline_mode = #tpu.pipeline_mode<synchronous>, transform_indices = @transform_2, window_bounds = array<i64: 1, 8>}, {transform_indices = @transform_3, window_bounds = array<i64: 1, 512, 8>}]} {
    %c0 = arith.constant 0 : index
    %c0_0 = arith.constant 0 : index
    %c0_1 = arith.constant 0 : index
    %0 = vector.load %arg2[%c0, %c0_0, %c0_1] : memref<1x512x512xbf16, #tpu.memory_space<vmem>>, vector<1x512x512xbf16>
    %1 = vector.shape_cast %0 : vector<1x512x512xbf16> to vector<512x512xbf16>
    %c0_2 = arith.constant 0 : index
    %c0_3 = arith.constant 0 : index
    %c0_4 = arith.constant 0 : index
    %2 = vector.load %arg3[%c0_2, %c0_3, %c0_4] : memref<1x512x8xbf16, #tpu.memory_space<vmem>>, vector<1x512x8xbf16>
    %3 = vector.shape_cast %2 : vector<1x512x8xbf16> to vector<512x8xbf16>
    %cst = arith.constant dense<0.000000e+00> : vector<512x8xf32>
    %4 = tpu.matmul %1, %3, %cst {dimension_numbers = #tpu.dot_dimension_numbers<[1], [0], [0], [1], [0, 0, 1, 1], [], []>} : vector<512x512xbf16>, vector<512x8xbf16>, vector<512x8xf32> -> vector<512x8xf32>
    %c0_5 = arith.constant 0 : index
    %c0_6 = arith.constant 0 : index
    %5 = vector.load %arg4[%c0_5, %c0_6] : memref<1x8xf32, #tpu.memory_space<vmem>>, vector<1x8xf32>
    %6 = vector.broadcast %5 : vector<1x8xf32> to vector<512x8xf32>
    %7 = arith.addf %4, %6 : vector<512x8xf32>
    %cst_7 = arith.constant 0.000000e+00 : f32
    %8 = vector.broadcast %cst_7 : f32 to vector<512x8xf32>
    %9 = arith.subf %8, %7 : vector<512x8xf32>
    %10 = math.exp %9 : vector<512x8xf32>
    %cst_8 = arith.constant 1.000000e+00 : f32
    %11 = vector.broadcast %cst_8 : f32 to vector<512x8xf32>
    %12 = arith.addf %11, %10 : vector<512x8xf32>
    %cst_9 = arith.constant 1.000000e+00 : f32
    %13 = vector.broadcast %cst_9 : f32 to vector<512x8xf32>
    %14 = arith.divf %13, %12 : vector<512x8xf32>
    %15 = arith.truncf %14 : vector<512x8xf32> to vector<512x8xbf16>
    %c0_10 = arith.constant 0 : index
    %c0_11 = arith.constant 0 : index
    %c0_12 = arith.constant 0 : index
    %16 = vector.load %arg5[%c0_10, %c0_11, %c0_12] : memref<1x512x8xbf16, #tpu.memory_space<vmem>>, vector<1x512x8xbf16>
    %17 = vector.shape_cast %16 : vector<1x512x8xbf16> to vector<512x8xbf16>
    %18 = vector.shape_cast %15 : vector<512x8xbf16> to vector<1x512x8xbf16>
    tpu.vector_store %arg5[%c0_10, %c0_11, %c0_12], %18 {strides = array<i32>} : memref<1x512x8xbf16, #tpu.memory_space<vmem>>, vector<1x512x8xbf16>,
    return
  }
  func.func @transform_0(%arg0: i32, %arg1: i32) -> (i32, i32, i32) {
    %c0_i32 = arith.constant 0 : i32
    %c0_i32_0 = arith.constant 0 : i32
    return %arg0, %arg1, %c0_i32 : i32, i32, i32
  }
  func.func @transform_1(%arg0: i32, %arg1: i32) -> (i32, i32, i32) {
    %c0_i32 = arith.constant 0 : i32
    %c0_i32_0 = arith.constant 0 : i32
    %c0_i32_1 = arith.constant 0 : i32
    return %arg0, %c0_i32, %c0_i32_0 : i32, i32, i32
  }
  func.func @transform_2(%arg0: i32, %arg1: i32) -> (i32, i32) {
    %c0_i32 = arith.constant 0 : i32
    %c0_i32_0 = arith.constant 0 : i32
    %c0_i32_1 = arith.constant 0 : i32
    return %c0_i32, %c0_i32_0 : i32, i32
  }
  func.func @transform_3(%arg0: i32, %arg1: i32) -> (i32, i32, i32) {
    %c0_i32 = arith.constant 0 : i32
    %c0_i32_0 = arith.constant 0 : i32
    return %arg0, %arg1, %c0_i32 : i32, i32, i32
  }
}

</mosaic_0001>

<llo_original>
// kernel: generator32_forward.5
$region0: #{generator32_forward.5}
  #allocation0 [shape = 'u32[]', space=smem, size = 0x4, offset = 0x4, fixed_abs, tag = 'smem constant byte address 0x4 - core index']
  #allocation1 [shape = 'u32[72,128]{1,0:T(1,128)}', space=vmem, size = 0x9000, scoped, tag = 'internal scratch']
  %s0 = inlined_call_operand.vmem [shape: bf16[4,32,2048], index: 0, kind: input, shape index: {}]
  %s1 = inlined_call_operand.vmem [shape: bf16[4,2048,256], index: 1, kind: input, shape index: {}]
  %s2 = inlined_call_operand.vmem [shape: f32[1,256], index: 2, kind: input, shape index: {}]
  %s3 = inlined_call_operand.vmem [shape: bf16[4,32,256], index: 3, kind: output, shape index: {0}]
  %s4 = inlined_call_operand.vmem [shape: f32[4,1,2,256], index: 4, kind: output, shape index: {1}]
  %5 = xla_tuple %s3, %s4
  %s6 = sld [smem:[#allocation0]]
  $region53: #{generator32_forward.5} parent=0
    _
  %s8 = ssub.s32 1, %s6
  %s9 = scalar_select 0, %s8, %s6
  loop: start=0, step=1, limit=6
  $region2: #{generator32_forward.5} parent=0 // loop_pre_header
    _
  $region3: #{generator32_forward.5} parent=0 // loop_header
    %s11 = sphi 0, %s15
    %p12 = scmp.ge.s32.totalorder %s11, 6
    %s18 = sphi 0, %s30
    %s19 = sphi 0, %s26
    %s20 = sphi 0, %s18
    %s21 = sphi 0, %s19
    %s22 = sphi 0, %s20
    %s23 = sphi 0, %s21
    %s35 = sphi 0, %s37
    %s38 = sphi 0, %s35
    %s39 = sphi 0, %s38
    %s55 = sphi 0, %s39
    %s61 = sphi 0, %s63
    %s64 = sphi 0, %s61
    %s65 = sphi 0, %s64
    %s81 = sphi 0, %s65
    %s85 = sphi 0, %s85
    %s87 = sphi 0, %s85
    %s88 = sphi 0, %s87
    %s102 = sphi 0, %s88
    %s110 = sphi 0, %s112
    %s113 = sphi 0, %s110
    %s114 = sphi 0, %s113
    %s130 = sphi 0, %s114
    %s138 = sphi 0, %s140
    %s141 = sphi 0, %s138
    %s142 = sphi 0, %s141
    %s158 = sphi 0, %s142
  $region4: #{generator32_forward.5} parent=0 // loop_header_branch
    %14 = sbr.rel (%p12) target = $region8
  $region5: #{generator32_forward.5} parent=0 // loop_body
    %s16 = ssub.s32 %s11, 1
    %s17 = ssub.s32 %s11, 2
    %s24 = sadd.s32 1, %s19
    %p25 = scmp.ge.s32.totalorder %s24, 1
    %s26 = scalar_select %p25, 0, %s24
    %s27 = sadd.s32 1, %s18
    %s28 = scalar_select %p25, %s27, %s18
    %p29 = scmp.ge.s32.totalorder %s28, 4
    %s30 = scalar_select %p29, 0, %s28
    %s31 = ssub.s32 %s18, %s30
    %s32 = ssub.s32 %s19, %s26
    %s33 = sor.u32 %s31, %s32
    %p34 = scmp.eq.s32.totalorder %s33, 0
    %s36 = sadd.s32 %s35, 1
    %s37 = scalar_select %p34, %s35, %s36
    %p40 = pneg %p34
    %p41 = scmp.eq.s32.totalorder %s11, 3
    %p42 = por %p40, %p41
    %p43 = scmp.ne.s32.totalorder %s35, %s38
    %p44 = scmp.eq.s32.totalorder %s11, 0
    %p45 = por %p43, %p44
    %p46 = scmp.ne.s32.totalorder %s35, %s38
    %p47 = scmp.eq.s32.totalorder %s16, 3
    %p48 = por %p46, %p47
    %p49 = scmp.ne.s32.totalorder %s38, %s39
    %p50 = scmp.eq.s32.totalorder %s16, 0
    %p51 = por %p49, %p50
    %p52 = scmp.ne.s32.totalorder %s38, %s39
    %p53 = scmp.eq.s32.totalorder %s17, 3
    %p54 = por %p52, %p53
    %p56 = scmp.ne.s32.totalorder %s39, %s55
    %p57 = scmp.eq.s32.totalorder %s17, 0
    %p58 = por %p56, %p57
    %s59 = ssub.s32 %s18, %s30
    %p60 = scmp.eq.s32.totalorder %s59, 0
    %s62 = sadd.s32 %s61, 1
    %s63 = scalar_select %p60, %s61, %s62
    %p66 = pneg %p60
    %p67 = scmp.eq.s32.totalorder %s11, 3
    %p68 = por %p66, %p67
    %p69 = scmp.ne.s32.totalorder %s61, %s64
    %p70 = scmp.eq.s32.totalorder %s11, 0
    %p71 = por %p69, %p70
    %p72 = scmp.ne.s32.totalorder %s61, %s64
    %p73 = scmp.eq.s32.totalorder %s16, 3
    %p74 = por %p72, %p73
    %p75 = scmp.ne.s32.totalorder %s64, %s65
    %p76 = scmp.eq.s32.totalorder %s16, 0
    %p77 = por %p75, %p76
    %p78 = scmp.ne.s32.totalorder %s64, %s65
    %p79 = scmp.eq.s32.totalorder %s17, 3
    %p80 = por %p78, %p79
    %p82 = scmp.ne.s32.totalorder %s65, %s81
    %p83 = scmp.eq.s32.totalorder %s17, 0
    %p84 = por %p82, %p83
    %s86 = sadd.s32 %s85, 1
    %p89 = scmp.eq.s32.totalorder %s11, 3
    %p90 = scmp.ne.s32.totalorder %s85, %s87
    %p91 = scmp.eq.s32.totalorder %s11, 0
    %p92 = por %p90, %p91
    %p93 = scmp.ne.s32.totalorder %s85, %s87
    %p94 = scmp.eq.s32.totalorder %s16, 3
    %p95 = por %p93, %p94
    %p96 = scmp.ne.s32.totalorder %s87, %s88
    %p97 = scmp.eq.s32.totalorder %s16, 0
    %p98 = por %p96, %p97
    %p99 = scmp.ne.s32.totalorder %s87, %s88
    %p100 = scmp.eq.s32.totalorder %s17, 3
    %p101 = por %p99, %p100
    %p103 = scmp.ne.s32.totalorder %s88, %s102
    %p104 = scmp.eq.s32.totalorder %s17, 0
    %p105 = por %p103, %p104
    %s106 = ssub.s32 %s18, %s30
    %s107 = ssub.s32 %s19, %s26
    %s108 = sor.u32 %s106, %s107
    %p109 = scmp.eq.s32.totalorder %s108, 0
    %s111 = sadd.s32 %s110, 1
    %s112 = scalar_select %p109, %s110, %s111
    %p115 = pneg %p109
    %p116 = scmp.eq.s32.totalorder %s11, 3
    %p117 = por %p115, %p116
    %p118 = scmp.ne.s32.totalorder %s110, %s113
    %p119 = scmp.eq.s32.totalorder %s11, 0
    %p120 = por %p118, %p119
    %p121 = scmp.ne.s32.totalorder %s110, %s113
    %p122 = scmp.eq.s32.totalorder %s16, 3
    %p123 = por %p121, %p122
    %p124 = scmp.ne.s32.totalorder %s113, %s114
    %p125 = scmp.eq.s32.totalorder %s16, 0
    %p126 = por %p124, %p125
    %p127 = scmp.ne.s32.totalorder %s113, %s114
    %p128 = scmp.eq.s32.totalorder %s17, 3
    %p129 = por %p127, %p128
    %p131 = scmp.ne.s32.totalorder %s114, %s130
    %p132 = scmp.eq.s32.totalorder %s17, 0
    %p133 = por %p131, %p132
    %s134 = ssub.s32 %s18, %s30
    %s135 = ssub.s32 %s19, %s26
    %s136 = sor.u32 %s134, %s135
    %p137 = scmp.eq.s32.totalorder %s136, 0
    %s139 = sadd.s32 %s138, 1
    %s140 = scalar_select %p137, %s138, %s139
    %p143 = pneg %p137
    %p144 = scmp.eq.s32.totalorder %s11, 3
    %p145 = por %p143, %p144
    %p146 = scmp.ne.s32.totalorder %s138, %s141
    %p147 = scmp.eq.s32.totalorder %s11, 0
    %p148 = por %p146, %p147
    %p149 = scmp.ne.s32.totalorder %s138, %s141
    %p150 = scmp.eq.s32.totalorder %s16, 3
    %p151 = por %p149, %p150
    %p152 = scmp.ne.s32.totalorder %s141, %s142
    %p153 = scmp.eq.s32.totalorder %s16, 0
    %p154 = por %p152, %p153
    %p155 = scmp.ne.s32.totalorder %s141, %s142
    %p156 = scmp.eq.s32.totalorder %s17, 3
    %p157 = por %p155, %p156
    %p159 = scmp.ne.s32.totalorder %s142, %s158
    %p160 = scmp.eq.s32.totalorder %s17, 0
    %p161 = por %p159, %p160
    %p162 = scmp.le.s32.totalorder 1, %s11
    %p163 = scmp.lt.s32.totalorder %s11, 5
    %p164 = pnand %p162, %p163
    %p165 = pneg %p164
    // Predicated region
    $region9: #{generator32_forward.5} parent=5 // pred_check
      _
    $region10: #{generator32_forward.5} parent=5 // pred_check_branch
      %167 = sbr.rel (%p164) target = $region12
    $region11: #{generator32_forward.5} parent=5 // pred_region
      %s168 = ssub.s32 %s11, 1
      // Predicated region
      $region13: #{generator32_forward.5} parent=11 // pred_check
        %p169 = pneg %p98
      $region14: #{generator32_forward.5} parent=11 // pred_check_branch
        %171 = sbr.rel (%p169) target = $region16
      $region15: #{generator32_forward.5} parent=11 // pred_region
        _
      $region16: #{generator32_forward.5} parent=11 // pred_fallthru
        _
    $region12: #{generator32_forward.5} parent=5 // pred_fallthru
      _
    %p172 = scmp.lt.s32.totalorder %s11, 4
    // Predicated region
    $region17: #{generator32_forward.5} parent=5 // pred_check
      %p173 = pneg %p172
    $region18: #{generator32_forward.5} parent=5 // pred_check_branch
      %175 = sbr.rel (%p173) target = $region20
    $region19: #{generator32_forward.5} parent=5 // pred_region
      // Predicated region
      $region21: #{generator32_forward.5} parent=19 // pred_check
        %p176 = pneg %p45
      $region22: #{generator32_forward.5} parent=19 // pred_check_branch
        %178 = sbr.rel (%p176) target = $region24
      $region23: #{generator32_forward.5} parent=19 // pred_region
        %s179 = smul.u32 4, %s19
        %p180 = scmp.lt.s32.totalorder %s18, 3
        %s181 = scalar_select %p180, %s18, 3
        %p182 = scmp.lt.s32.totalorder %s179, 3
        %s183 = scalar_select %p182, %s179, 3
        %s184 = smul.addr %s183, 16
        %s185 = smul.addr %s181, 64
        %s186 = sadd.s32 %s184, %s185
        %s187 = smul.addr %s186, 4
        %s188 = scalar_lea.vmem %s0, %s187
        %s189 = smul.u32 4, %s19
      $region24: #{generator32_forward.5} parent=19 // pred_fallthru
        _
      // Predicated region
      $region25: #{generator32_forward.5} parent=19 // pred_check
        %p190 = pneg %p71
      $region26: #{generator32_forward.5} parent=19 // pred_check_branch
        %192 = sbr.rel (%p190) target = $region28
      $region27: #{generator32_forward.5} parent=19 // pred_region
        %p193 = scmp.lt.s32.totalorder %s18, 3
        %s194 = scalar_select %p193, %s18, 3
        %s195 = smul.addr %s194, 512
        %s196 = smul.addr %s195, 4
        %s197 = scalar_lea.vmem %s1, %s196
      $region28: #{generator32_forward.5} parent=19 // pred_fallthru
        _
    $region20: #{generator32_forward.5} parent=5 // pred_fallthru
      _
    %p198 = scmp.le.s32.totalorder 1, %s11
    %p199 = scmp.lt.s32.totalorder %s11, 5
    %p200 = pnand %p198, %p199
    %p201 = pneg %p200
    // Predicated region
    $region29: #{generator32_forward.5} parent=5 // pred_check
      _
    $region30: #{generator32_forward.5} parent=5 // pred_check_branch
      %203 = sbr.rel (%p200) target = $region32
    $region31: #{generator32_forward.5} parent=5 // pred_region
      %s204 = ssub.s32 %s11, 1
      %s205 = smul.u32 4, %s21
      %p206 = scmp.lt.s32.totalorder %s20, 3
      %s207 = scalar_select %p206, %s20, 3
      %p208 = scmp.lt.s32.totalorder %s205, 3
      %s209 = scalar_select %p208, %s205, 3
      %s210 = smul.addr %s209, 16
      %s211 = smul.addr %s207, 64
      %s212 = sadd.s32 %s210, %s211
      %s213 = smul.addr %s212, 4
      %s214 = scalar_lea.vmem %s0, %s213
      %p215 = pneg %p51
      %p216 = pneg %p48
      %p217 = scmp.lt.s32.totalorder %s20, 3
      %s218 = scalar_select %p217, %s20, 3
      %s219 = smul.addr %s218, 512
      %s220 = smul.addr %s219, 4
      %s221 = scalar_lea.vmem %s1, %s220
      %p222 = pneg %p77
      %p223 = pneg %p74
      %p224 = pneg %p98
      %p225 = pneg %p95
      %p226 = pneg %p126
      %p227 = pneg %p123
      %s228 = smul.u32 4, %s21
      %p229 = scmp.lt.s32.totalorder %s20, 3
      %s230 = scalar_select %p229, %s20, 3
      %p231 = scmp.lt.s32.totalorder %s228, 3
      %s232 = scalar_select %p231, %s228, 3
      %s233 = smul.addr %s232, 2
      %s234 = smul.addr %s230, 8
      %s235 = sadd.s32 %s233, %s234
      %s236 = smul.addr %s235, 4
      %s237 = scalar_lea.vmem %s3, %s236
      %p238 = pneg %p154
      %p239 = pneg %p151
      %p240 = scmp.lt.s32.totalorder %s20, 3
      %s241 = scalar_select %p240, %s20, 3
      %p242 = scmp.lt.s32.totalorder %s21, 0
      %s243 = scalar_select %p242, %s21, 0
      %s244 = smul.addr %s243, 2
      %s245 = smul.addr %s241, 2
      %s246 = sadd.s32 %s244, %s245
      %s247 = smul.addr %s246, 2
      %s248 = scalar_lea.vmem %s4, %s247
      %s249 = smul.u32 4, %s21
      %p250 = scmp.lt.s32.totalorder %s20, 3
      %s251 = scalar_select %p250, %s20, 3
      %p252 = scmp.lt.s32.totalorder %s249, 3
      %s253 = scalar_select %p252, %s249, 3
      %s254 = smul.addr %s253, 16
      %s255 = smul.addr %s251, 64
      %s256 = sadd.s32 %s254, %s255
      %s257 = smul.addr %s256, 4
      %s258 = scalar_lea.vmem %s0, %s257
      %s259 = smul.u32 4, %s21
      %p260 = scmp.lt.s32.totalorder %s20, 3
      %s261 = scalar_select %p260, %s20, 3
      %s262 = smul.addr %s261, 512
      %s263 = smul.addr %s262, 4
      %s264 = scalar_lea.vmem %s1, %s263
      %s265 = smul.u32 4, %s21
      %p266 = scmp.lt.s32.totalorder %s20, 3
      %s267 = scalar_select %p266, %s20, 3
      %p268 = scmp.lt.s32.totalorder %s265, 3
      %s269 = scalar_select %p268, %s265, 3
      %s270 = smul.addr %s269, 2
      %s271 = smul.addr %s267, 8
      %s272 = sadd.s32 %s270, %s271
      %s273 = smul.addr %s272, 4
      %s274 = scalar_lea.vmem %s3, %s273
      %s275 = smul.u32 4, %s21
      %p276 = scmp.lt.s32.totalorder %s20, 3
      %s277 = scalar_select %p276, %s20, 3
      %p278 = scmp.lt.s32.totalorder %s21, 0
      %s279 = scalar_select %p278, %s21, 0
      %s280 = smul.addr %s279, 2
      %s281 = smul.addr %s277, 2
      %s282 = sadd.s32 %s280, %s281
      %s283 = smul.addr %s282, 2
      %s284 = scalar_lea.vmem %s4, %s283
      %v285 = vld [vmem:[%s258] sm:$0xff]
      %v286 = vld [vmem:[%s258 + $0x8] sm:$0xff]
      %v287 = vld [vmem:[%s258 + $0x10] sm:$0xff]
      %v288 = vld [vmem:[%s258 + $0x18] sm:$0xff]
      %v289 = vld [vmem:[%s258 + $0x20] sm:$0xff]
      %v290 = vld [vmem:[%s258 + $0x28] sm:$0xff]
      %v291 = vld [vmem:[%s258 + $0x30] sm:$0xff]
      %v292 = vld [vmem:[%s258 + $0x38] sm:$0xff]
      %v293 = vld [vmem:[%s258 + $0x40] sm:$0xff]
      %v294 = vld [vmem:[%s258 + $0x48] sm:$0xff]
      %v295 = vld [vmem:[%s258 + $0x50] sm:$0xff]
      %v296 = vld [vmem:[%s258 + $0x58] sm:$0xff]
      %v297 = vld [vmem:[%s258 + $0x60] sm:$0xff]
      %v298 = vld [vmem:[%s258 + $0x68] sm:$0xff]
      %v299 = vld [vmem:[%s258 + $0x70] sm:$0xff]
      %v300 = vld [vmem:[%s258 + $0x78] sm:$0xff]
      %v301 = vld [vmem:[%s258 + $0x80] sm:$0xff]
      %v302 = vld [vmem:[%s258 + $0x88] sm:$0xff]
      %v303 = vld [vmem:[%s258 + $0x90] sm:$0xff]
      %v304 = vld [vmem:[%s258 + $0x98] sm:$0xff]
      %v305 = vld [vmem:[%s258 + $0xa0] sm:$0xff]
      %v306 = vld [vmem:[%s258 + $0xa8] sm:$0xff]
      %v307 = vld [vmem:[%s258 + $0xb0] sm:$0xff]
      %v308 = vld [vmem:[%s258 + $0xb8] sm:$0xff]
      %v309 = vld [vmem:[%s258 + $0xc0] sm:$0xff]
      %v310 = vld [vmem:[%s258 + $0xc8] sm:$0xff]
      %v311 = vld [vmem:[%s258 + $0xd0] sm:$0xff]
      %v312 = vld [vmem:[%s258 + $0xd8] sm:$0xff]
      %v313 = vld [vmem:[%s258 + $0xe0] sm:$0xff]
      %v314 = vld [vmem:[%s258 + $0xe8] sm:$0xff]
      %v315 = vld [vmem:[%s258 + $0xf0] sm:$0xff]
      %v316 = vld [vmem:[%s258 + $0xf8] sm:$0xff]
      %v317 = vld [vmem:[%s264] sm:$0xff]
      %v318 = vld [vmem:[%s264 + $0x8] sm:$0xff]
      %v319 = vld [vmem:[%s264 + $0x10] sm:$0xff]
      %v320 = vld [vmem:[%s264 + $0x18] sm:$0xff]
      %v321 = vld [vmem:[%s264 + $0x20] sm:$0xff]
      %v322 = vld [vmem:[%s264 + $0x28] sm:$0xff]
      %v323 = vld [vmem:[%s264 + $0x30] sm:$0xff]
      %v324 = vld [vmem:[%s264 + $0x38] sm:$0xff]
      %v325 = vld [vmem:[%s264 + $0x40] sm:$0xff]
      %v326 = vld [vmem:[%s264 + $0x48] sm:$0xff]
      %v327 = vld [vmem:[%s264 + $0x50] sm:$0xff]
      %v328 = vld [vmem:[%s264 + $0x58] sm:$0xff]
      %v329 = vld [vmem:[%s264 + $0x60] sm:$0xff]
      %v330 = vld [vmem:[%s264 + $0x68] sm:$0xff]
      %v331 = vld [vmem:[%s264 + $0x70] sm:$0xff]
      %v332 = vld [vmem:[%s264 + $0x78] sm:$0xff]
      %v333 = vld [vmem:[%s264 + $0x80] sm:$0xff]
      %v334 = vld [vmem:[%s264 + $0x88] sm:$0xff]
      %v335 = vld [vmem:[%s264 + $0x90] sm:$0xff]
      %v336 = vld [vmem:[%s264 + $0x98] sm:$0xff]
      %v337 = vld [vmem:[%s264 + $0xa0] sm:$0xff]
      %v338 = vld [vmem:[%s264 + $0xa8] sm:$0xff]
      %v339 = vld [vmem:[%s264 + $0xb0] sm:$0xff]
      %v340 = vld [vmem:[%s264 + $0xb8] sm:$0xff]
      %v341 = vld [vmem:[%s264 + $0xc0] sm:$0xff]
      %v342 = vld [vmem:[%s264 + $0xc8] sm:$0xff]
      %v343 = vld [vmem:[%s264 + $0xd0] sm:$0xff]
      %v344 = vld [vmem:[%s264 + $0xd8] sm:$0xff]
      %v345 = vld [vmem:[%s264 + $0xe0] sm:$0xff]
      %v346 = vld [vmem:[%s264 + $0xe8] sm:$0xff]
      %v347 = vld [vmem:[%s264 + $0xf0] sm:$0xff]
      %v348 = vld [vmem:[%s264 + $0xf8] sm:$0xff]
      %v349 = vld [vmem:[%s264 + $0x100] sm:$0xff]
      %v350 = vld [vmem:[%s264 + $0x108] sm:$0xff]
      %v351 = vld [vmem:[%s264 + $0x110] sm:$0xff]
      %v352 = vld [vmem:[%s264 + $0x118] sm:$0xff]
      %v353 = vld [vmem:[%s264 + $0x120] sm:$0xff]
      %v354 = vld [vmem:[%s264 + $0x128] sm:$0xff]
      %v355 = vld [vmem:[%s264 + $0x130] sm:$0xff]
      %v356 = vld [vmem:[%s264 + $0x138] sm:$0xff]
      %v357 = vld [vmem:[%s264 + $0x140] sm:$0xff]
      %v358 = vld [vmem:[%s264 + $0x148] sm:$0xff]
      %v359 = vld [vmem:[%s264 + $0x150] sm:$0xff]
      %v360 = vld [vmem:[%s264 + $0x158] sm:$0xff]
      %v361 = vld [vmem:[%s264 + $0x160] sm:$0xff]
      %v362 = vld [vmem:[%s264 + $0x168] sm:$0xff]
      %v363 = vld [vmem:[%s264 + $0x170] sm:$0xff]
      %v364 = vld [vmem:[%s264 + $0x178] sm:$0xff]
      %v365 = vld [vmem:[%s264 + $0x180] sm:$0xff]
      %v366 = vld [vmem:[%s264 + $0x188] sm:$0xff]
      %v367 = vld [vmem:[%s264 + $0x190] sm:$0xff]
      %v368 = vld [vmem:[%s264 + $0x198] sm:$0xff]
      %v369 = vld [vmem:[%s264 + $0x1a0] sm:$0xff]
      %v370 = vld [vmem:[%s264 + $0x1a8] sm:$0xff]
      %v371 = vld [vmem:[%s264 + $0x1b0] sm:$0xff]
      %v372 = vld [vmem:[%s264 + $0x1b8] sm:$0xff]
      %v373 = vld [vmem:[%s264 + $0x1c0] sm:$0xff]
      %v374 = vld [vmem:[%s264 + $0x1c8] sm:$0xff]
      %v375 = vld [vmem:[%s264 + $0x1d0] sm:$0xff]
      %v376 = vld [vmem:[%s264 + $0x1d8] sm:$0xff]
      %v377 = vld [vmem:[%s264 + $0x1e0] sm:$0xff]
      %v378 = vld [vmem:[%s264 + $0x1e8] sm:$0xff]
      %v379 = vld [vmem:[%s264 + $0x1f0] sm:$0xff]
      %v380 = vld [vmem:[%s264 + $0x1f8] sm:$0xff]
      %v381 = vld [vmem:[%s264 + $0x200] sm:$0xff]
      %v382 = vld [vmem:[%s264 + $0x208] sm:$0xff]
      %v383 = vld [vmem:[%s264 + $0x210] sm:$0xff]
      %v384 = vld [vmem:[%s264 + $0x218] sm:$0xff]
      %v385 = vld [vmem:[%s264 + $0x220] sm:$0xff]
      %v386 = vld [vmem:[%s264 + $0x228] sm:$0xff]
      %v387 = vld [vmem:[%s264 + $0x230] sm:$0xff]
      %v388 = vld [vmem:[%s264 + $0x238] sm:$0xff]
      %v389 = vld [vmem:[%s264 + $0x240] sm:$0xff]
      %v390 = vld [vmem:[%s264 + $0x248] sm:$0xff]
      %v391 = vld [vmem:[%s264 + $0x250] sm:$0xff]
      %v392 = vld [vmem:[%s264 + $0x258] sm:$0xff]
      %v393 = vld [vmem:[%s264 + $0x260] sm:$0xff]
      %v394 = vld [vmem:[%s264 + $0x268] sm:$0xff]
      %v395 = vld [vmem:[%s264 + $0x270] sm:$0xff]
      %v396 = vld [vmem:[%s264 + $0x278] sm:$0xff]
      %v397 = vld [vmem:[%s264 + $0x280] sm:$0xff]
      %v398 = vld [vmem:[%s264 + $0x288] sm:$0xff]
      %v399 = vld [vmem:[%s264 + $0x290] sm:$0xff]
      %v400 = vld [vmem:[%s264 + $0x298] sm:$0xff]
      %v401 = vld [vmem:[%s264 + $0x2a0] sm:$0xff]
      %v402 = vld [vmem:[%s264 + $0x2a8] sm:$0xff]
      %v403 = vld [vmem:[%s264 + $0x2b0] sm:$0xff]
      %v404 = vld [vmem:[%s264 + $0x2b8] sm:$0xff]
      %v405 = vld [vmem:[%s264 + $0x2c0] sm:$0xff]
      %v406 = vld [vmem:[%s264 + $0x2c8] sm:$0xff]
      %v407 = vld [vmem:[%s264 + $0x2d0] sm:$0xff]
      %v408 = vld [vmem:[%s264 + $0x2d8] sm:$0xff]
      %v409 = vld [vmem:[%s264 + $0x2e0] sm:$0xff]
      %v410 = vld [vmem:[%s264 + $0x2e8] sm:$0xff]
      %v411 = vld [vmem:[%s264 + $0x2f0] sm:$0xff]
      %v412 = vld [vmem:[%s264 + $0x2f8] sm:$0xff]
      %v413 = vld [vmem:[%s264 + $0x300] sm:$0xff]
      %v414 = vld [vmem:[%s264 + $0x308] sm:$0xff]
      %v415 = vld [vmem:[%s264 + $0x310] sm:$0xff]
      %v416 = vld [vmem:[%s264 + $0x318] sm:$0xff]
      %v417 = vld [vmem:[%s264 + $0x320] sm:$0xff]
      %v418 = vld [vmem:[%s264 + $0x328] sm:$0xff]
      %v419 = vld [vmem:[%s264 + $0x330] sm:$0xff]
      %v420 = vld [vmem:[%s264 + $0x338] sm:$0xff]
      %v421 = vld [vmem:[%s264 + $0x340] sm:$0xff]
      %v422 = vld [vmem:[%s264 + $0x348] sm:$0xff]
      %v423 = vld [vmem:[%s264 + $0x350] sm:$0xff]
      %v424 = vld [vmem:[%s264 + $0x358] sm:$0xff]
      %v425 = vld [vmem:[%s264 + $0x360] sm:$0xff]
      %v426 = vld [vmem:[%s264 + $0x368] sm:$0xff]
      %v427 = vld [vmem:[%s264 + $0x370] sm:$0xff]
      %v428 = vld [vmem:[%s264 + $0x378] sm:$0xff]
      %v429 = vld [vmem:[%s264 + $0x380] sm:$0xff]
      %v430 = vld [vmem:[%s264 + $0x388] sm:$0xff]
      %v431 = vld [vmem:[%s264 + $0x390] sm:$0xff]
      %v432 = vld [vmem:[%s264 + $0x398] sm:$0xff]
      %v433 = vld [vmem:[%s264 + $0x3a0] sm:$0xff]
      %v434 = vld [vmem:[%s264 + $0x3a8] sm:$0xff]
      %v435 = vld [vmem:[%s264 + $0x3b0] sm:$0xff]
      %v436 = vld [vmem:[%s264 + $0x3b8] sm:$0xff]
      %v437 = vld [vmem:[%s264 + $0x3c0] sm:$0xff]
      %v438 = vld [vmem:[%s264 + $0x3c8] sm:$0xff]
      %v439 = vld [vmem:[%s264 + $0x3d0] sm:$0xff]
      %v440 = vld [vmem:[%s264 + $0x3d8] sm:$0xff]
      %v441 = vld [vmem:[%s264 + $0x3e0] sm:$0xff]
      %v442 = vld [vmem:[%s264 + $0x3e8] sm:$0xff]
      %v443 = vld [vmem:[%s264 + $0x3f0] sm:$0xff]
      %v444 = vld [vmem:[%s264 + $0x3f8] sm:$0xff]
      %v445 = vld [vmem:[%s264 + $0x400] sm:$0xff]
      %v446 = vld [vmem:[%s264 + $0x408] sm:$0xff]
      %v447 = vld [vmem:[%s264 + $0x410] sm:$0xff]
      %v448 = vld [vmem:[%s264 + $0x418] sm:$0xff]
      %v449 = vld [vmem:[%s264 + $0x420] sm:$0xff]
      %v450 = vld [vmem:[%s264 + $0x428] sm:$0xff]
      %v451 = vld [vmem:[%s264 + $0x430] sm:$0xff]
      %v452 = vld [vmem:[%s264 + $0x438] sm:$0xff]
      %v453 = vld [vmem:[%s264 + $0x440] sm:$0xff]
      %v454 = vld [vmem:[%s264 + $0x448] sm:$0xff]
      %v455 = vld [vmem:[%s264 + $0x450] sm:$0xff]
      %v456 = vld [vmem:[%s264 + $0x458] sm:$0xff]
      %v457 = vld [vmem:[%s264 + $0x460] sm:$0xff]
      %v458 = vld [vmem:[%s264 + $0x468] sm:$0xff]
      %v459 = vld [vmem:[%s264 + $0x470] sm:$0xff]
      %v460 = vld [vmem:[%s264 + $0x478] sm:$0xff]
      %v461 = vld [vmem:[%s264 + $0x480] sm:$0xff]
      %v462 = vld [vmem:[%s264 + $0x488] sm:$0xff]
      %v463 = vld [vmem:[%s264 + $0x490] sm:$0xff]
      %v464 = vld [vmem:[%s264 + $0x498] sm:$0xff]
      %v465 = vld [vmem:[%s264 + $0x4a0] sm:$0xff]
      %v466 = vld [vmem:[%s264 + $0x4a8] sm:$0xff]
      %v467 = vld [vmem:[%s264 + $0x4b0] sm:$0xff]
      %v468 = vld [vmem:[%s264 + $0x4b8] sm:$0xff]
      %v469 = vld [vmem:[%s264 + $0x4c0] sm:$0xff]
      %v470 = vld [vmem:[%s264 + $0x4c8] sm:$0xff]
      %v471 = vld [vmem:[%s264 + $0x4d0] sm:$0xff]
      %v472 = vld [vmem:[%s264 + $0x4d8] sm:$0xff]
      %v473 = vld [vmem:[%s264 + $0x4e0] sm:$0xff]
      %v474 = vld [vmem:[%s264 + $0x4e8] sm:$0xff]
      %v475 = vld [vmem:[%s264 + $0x4f0] sm:$0xff]
      %v476 = vld [vmem:[%s264 + $0x4f8] sm:$0xff]
      %v477 = vld [vmem:[%s264 + $0x500] sm:$0xff]
      %v478 = vld [vmem:[%s264 + $0x508] sm:$0xff]
      %v479 = vld [vmem:[%s264 + $0x510] sm:$0xff]
      %v480 = vld [vmem:[%s264 + $0x518] sm:$0xff]
      %v481 = vld [vmem:[%s264 + $0x520] sm:$0xff]
      %v482 = vld [vmem:[%s264 + $0x528] sm:$0xff]
      %v483 = vld [vmem:[%s264 + $0x530] sm:$0xff]
      %v484 = vld [vmem:[%s264 + $0x538] sm:$0xff]
      %v485 = vld [vmem:[%s264 + $0x540] sm:$0xff]
      %v486 = vld [vmem:[%s264 + $0x548] sm:$0xff]
      %v487 = vld [vmem:[%s264 + $0x550] sm:$0xff]
      %v488 = vld [vmem:[%s264 + $0x558] sm:$0xff]
      %v489 = vld [vmem:[%s264 + $0x560] sm:$0xff]
      %v490 = vld [vmem:[%s264 + $0x568] sm:$0xff]
      %v491 = vld [vmem:[%s264 + $0x570] sm:$0xff]
      %v492 = vld [vmem:[%s264 + $0x578] sm:$0xff]
      %v493 = vld [vmem:[%s264 + $0x580] sm:$0xff]
      %v494 = vld [vmem:[%s264 + $0x588] sm:$0xff]
      %v495 = vld [vmem:[%s264 + $0x590] sm:$0xff]
      %v496 = vld [vmem:[%s264 + $0x598] sm:$0xff]
      %v497 = vld [vmem:[%s264 + $0x5a0] sm:$0xff]
      %v498 = vld [vmem:[%s264 + $0x5a8] sm:$0xff]
      %v499 = vld [vmem:[%s264 + $0x5b0] sm:$0xff]
      %v500 = vld [vmem:[%s264 + $0x5b8] sm:$0xff]
      %v501 = vld [vmem:[%s264 + $0x5c0] sm:$0xff]
      %v502 = vld [vmem:[%s264 + $0x5c8] sm:$0xff]
      %v503 = vld [vmem:[%s264 + $0x5d0] sm:$0xff]
      %v504 = vld [vmem:[%s264 + $0x5d8] sm:$0xff]
      %v505 = vld [vmem:[%s264 + $0x5e0] sm:$0xff]
      %v506 = vld [vmem:[%s264 + $0x5e8] sm:$0xff]
      %v507 = vld [vmem:[%s264 + $0x5f0] sm:$0xff]
      %v508 = vld [vmem:[%s264 + $0x5f8] sm:$0xff]
      %v509 = vld [vmem:[%s264 + $0x600] sm:$0xff]
      %v510 = vld [vmem:[%s264 + $0x608] sm:$0xff]
      %v511 = vld [vmem:[%s264 + $0x610] sm:$0xff]
      %v512 = vld [vmem:[%s264 + $0x618] sm:$0xff]
      %v513 = vld [vmem:[%s264 + $0x620] sm:$0xff]
      %v514 = vld [vmem:[%s264 + $0x628] sm:$0xff]
      %v515 = vld [vmem:[%s264 + $0x630] sm:$0xff]
      %v516 = vld [vmem:[%s264 + $0x638] sm:$0xff]
      %v517 = vld [vmem:[%s264 + $0x640] sm:$0xff]
      %v518 = vld [vmem:[%s264 + $0x648] sm:$0xff]
      %v519 = vld [vmem:[%s264 + $0x650] sm:$0xff]
      %v520 = vld [vmem:[%s264 + $0x658] sm:$0xff]
      %v521 = vld [vmem:[%s264 + $0x660] sm:$0xff]
      %v522 = vld [vmem:[%s264 + $0x668] sm:$0xff]
      %v523 = vld [vmem:[%s264 + $0x670] sm:$0xff]
      %v524 = vld [vmem:[%s264 + $0x678] sm:$0xff]
      %v525 = vld [vmem:[%s264 + $0x680] sm:$0xff]
      %v526 = vld [vmem:[%s264 + $0x688] sm:$0xff]
      %v527 = vld [vmem:[%s264 + $0x690] sm:$0xff]
      %v528 = vld [vmem:[%s264 + $0x698] sm:$0xff]
      %v529 = vld [vmem:[%s264 + $0x6a0] sm:$0xff]
      %v530 = vld [vmem:[%s264 + $0x6a8] sm:$0xff]
      %v531 = vld [vmem:[%s264 + $0x6b0] sm:$0xff]
      %v532 = vld [vmem:[%s264 + $0x6b8] sm:$0xff]
      %v533 = vld [vmem:[%s264 + $0x6c0] sm:$0xff]
      %v534 = vld [vmem:[%s264 + $0x6c8] sm:$0xff]
      %v535 = vld [vmem:[%s264 + $0x6d0] sm:$0xff]
      %v536 = vld [vmem:[%s264 + $0x6d8] sm:$0xff]
      %v537 = vld [vmem:[%s264 + $0x6e0] sm:$0xff]
      %v538 = vld [vmem:[%s264 + $0x6e8] sm:$0xff]
      %v539 = vld [vmem:[%s264 + $0x6f0] sm:$0xff]
      %v540 = vld [vmem:[%s264 + $0x6f8] sm:$0xff]
      %v541 = vld [vmem:[%s264 + $0x700] sm:$0xff]
      %v542 = vld [vmem:[%s264 + $0x708] sm:$0xff]
      %v543 = vld [vmem:[%s264 + $0x710] sm:$0xff]
      %v544 = vld [vmem:[%s264 + $0x718] sm:$0xff]
      %v545 = vld [vmem:[%s264 + $0x720] sm:$0xff]
      %v546 = vld [vmem:[%s264 + $0x728] sm:$0xff]
      %v547 = vld [vmem:[%s264 + $0x730] sm:$0xff]
      %v548 = vld [vmem:[%s264 + $0x738] sm:$0xff]
      %v549 = vld [vmem:[%s264 + $0x740] sm:$0xff]
      %v550 = vld [vmem:[%s264 + $0x748] sm:$0xff]
      %v551 = vld [vmem:[%s264 + $0x750] sm:$0xff]
      %v552 = vld [vmem:[%s264 + $0x758] sm:$0xff]
      %v553 = vld [vmem:[%s264 + $0x760] sm:$0xff]
      %v554 = vld [vmem:[%s264 + $0x768] sm:$0xff]
      %v555 = vld [vmem:[%s264 + $0x770] sm:$0xff]
      %v556 = vld [vmem:[%s264 + $0x778] sm:$0xff]
      %v557 = vld [vmem:[%s264 + $0x780] sm:$0xff]
      %v558 = vld [vmem:[%s264 + $0x788] sm:$0xff]
      %v559 = vld [vmem:[%s264 + $0x790] sm:$0xff]
      %v560 = vld [vmem:[%s264 + $0x798] sm:$0xff]
      %v561 = vld [vmem:[%s264 + $0x7a0] sm:$0xff]
      %v562 = vld [vmem:[%s264 + $0x7a8] sm:$0xff]
      %v563 = vld [vmem:[%s264 + $0x7b0] sm:$0xff]
      %v564 = vld [vmem:[%s264 + $0x7b8] sm:$0xff]
      %v565 = vld [vmem:[%s264 + $0x7c0] sm:$0xff]
      %v566 = vld [vmem:[%s264 + $0x7c8] sm:$0xff]
      %v567 = vld [vmem:[%s264 + $0x7d0] sm:$0xff]
      %v568 = vld [vmem:[%s264 + $0x7d8] sm:$0xff]
      %v569 = vld [vmem:[%s264 + $0x7e0] sm:$0xff]
      %v570 = vld [vmem:[%s264 + $0x7e8] sm:$0xff]
      %v571 = vld [vmem:[%s264 + $0x7f0] sm:$0xff]
      %v572 = vld [vmem:[%s264 + $0x7f8] sm:$0xff]
      %v573 = vld [vmem:[%s2] sm:$0x3]
      %v575 = vperm.slane %v573, 0
      %v576 = vperm.slane %v573, 1
      %v611 = vunpack.c.l.b16 %v285
      %v612 = vunpack.c.h.b16 %v285
      %v613 = vunpack.c.l.b16 %v286
      %v614 = vunpack.c.h.b16 %v286
      %v615 = vunpack.c.l.b16 %v287
      %v616 = vunpack.c.h.b16 %v287
      %v617 = vunpack.c.l.b16 %v288
      %v618 = vunpack.c.h.b16 %v288
      %v619 = vunpack.c.l.b16 %v289
      %v620 = vunpack.c.h.b16 %v289
      %v621 = vunpack.c.l.b16 %v290
      %v622 = vunpack.c.h.b16 %v290
      %v623 = vunpack.c.l.b16 %v291
      %v624 = vunpack.c.h.b16 %v291
      %v625 = vunpack.c.l.b16 %v292
      %v626 = vunpack.c.h.b16 %v292
      %v627 = vunpack.c.l.b16 %v293
      %v628 = vunpack.c.h.b16 %v293
      %v629 = vunpack.c.l.b16 %v294
      %v630 = vunpack.c.h.b16 %v294
      %v631 = vunpack.c.l.b16 %v295
      %v632 = vunpack.c.h.b16 %v295
      %v633 = vunpack.c.l.b16 %v296
      %v634 = vunpack.c.h.b16 %v296
      %v635 = vunpack.c.l.b16 %v297
      %v636 = vunpack.c.h.b16 %v297
      %v637 = vunpack.c.l.b16 %v298
      %v638 = vunpack.c.h.b16 %v298
      %v639 = vunpack.c.l.b16 %v299
      %v640 = vunpack.c.h.b16 %v299
      %v641 = vunpack.c.l.b16 %v300
      %v642 = vunpack.c.h.b16 %v300
      %v643 = vunpack.c.l.b16 %v301
      %v644 = vunpack.c.h.b16 %v301
      %v645 = vunpack.c.l.b16 %v302
      %v646 = vunpack.c.h.b16 %v302
      %v647 = vunpack.c.l.b16 %v303
      %v648 = vunpack.c.h.b16 %v303
      %v649 = vunpack.c.l.b16 %v304
      %v650 = vunpack.c.h.b16 %v304
      %v651 = vunpack.c.l.b16 %v305
      %v652 = vunpack.c.h.b16 %v305
      %v653 = vunpack.c.l.b16 %v306
      %v654 = vunpack.c.h.b16 %v306
      %v655 = vunpack.c.l.b16 %v307
      %v656 = vunpack.c.h.b16 %v307
      %v657 = vunpack.c.l.b16 %v308
      %v658 = vunpack.c.h.b16 %v308
      %v659 = vunpack.c.l.b16 %v309
      %v660 = vunpack.c.h.b16 %v309
      %v661 = vunpack.c.l.b16 %v310
      %v662 = vunpack.c.h.b16 %v310
      %v663 = vunpack.c.l.b16 %v311
      %v664 = vunpack.c.h.b16 %v311
      %v665 = vunpack.c.l.b16 %v312
      %v666 = vunpack.c.h.b16 %v312
      %v667 = vunpack.c.l.b16 %v313
      %v668 = vunpack.c.h.b16 %v313
      %v669 = vunpack.c.l.b16 %v314
      %v670 = vunpack.c.h.b16 %v314
      %v671 = vunpack.c.l.b16 %v315
      %v672 = vunpack.c.h.b16 %v315
      %v673 = vunpack.c.l.b16 %v316
      %v674 = vunpack.c.h.b16 %v316
      %v675 = vpack.c.b16 %v627, %v611
      %v676 = vpack.c.b16 %v628, %v612
      %v677 = vpack.c.b16 %v629, %v613
      %v678 = vpack.c.b16 %v630, %v614
      %v679 = vpack.c.b16 %v631, %v615
      %v680 = vpack.c.b16 %v632, %v616
      %v681 = vpack.c.b16 %v633, %v617
      %v682 = vpack.c.b16 %v634, %v618
      %v683 = vpack.c.b16 %v635, %v619
      %v684 = vpack.c.b16 %v636, %v620
      %v685 = vpack.c.b16 %v637, %v621
      %v686 = vpack.c.b16 %v638, %v622
      %v687 = vpack.c.b16 %v639, %v623
      %v688 = vpack.c.b16 %v640, %v624
      %v689 = vpack.c.b16 %v641, %v625
      %v690 = vpack.c.b16 %v642, %v626
      %v691 = vpack.c.b16 %v659, %v643
      %v692 = vpack.c.b16 %v660, %v644
      %v693 = vpack.c.b16 %v661, %v645
      %v694 = vpack.c.b16 %v662, %v646
      %v695 = vpack.c.b16 %v663, %v647
      %v696 = vpack.c.b16 %v664, %v648
      %v697 = vpack.c.b16 %v665, %v649
      %v698 = vpack.c.b16 %v666, %v650
      %v699 = vpack.c.b16 %v667, %v651
      %v700 = vpack.c.b16 %v668, %v652
      %v701 = vpack.c.b16 %v669, %v653
      %v702 = vpack.c.b16 %v670, %v654
      %v703 = vpack.c.b16 %v671, %v655
      %v704 = vpack.c.b16 %v672, %v656
      %v705 = vpack.c.b16 %v673, %v657
      %v706 = vpack.c.b16 %v674, %v658
      %v995 = vunpack.c.l.b16 %v317
      %v996 = vunpack.c.h.b16 %v317
      %v997 = vunpack.c.l.b16 %v318
      %v998 = vunpack.c.h.b16 %v318
      %v999 = vunpack.c.l.b16 %v319
      %v1000 = vunpack.c.h.b16 %v319
      %v1001 = vunpack.c.l.b16 %v320
      %v1002 = vunpack.c.h.b16 %v320
      %v1003 = vunpack.c.l.b16 %v321
      %v1004 = vunpack.c.h.b16 %v321
      %v1005 = vunpack.c.l.b16 %v322
      %v1006 = vunpack.c.h.b16 %v322
      %v1007 = vunpack.c.l.b16 %v323
      %v1008 = vunpack.c.h.b16 %v323
      %v1009 = vunpack.c.l.b16 %v324
      %v1010 = vunpack.c.h.b16 %v324
      %v1011 = vunpack.c.l.b16 %v325
      %v1012 = vunpack.c.h.b16 %v325
      %v1013 = vunpack.c.l.b16 %v326
      %v1014 = vunpack.c.h.b16 %v326
      %v1015 = vunpack.c.l.b16 %v327
      %v1016 = vunpack.c.h.b16 %v327
      %v1017 = vunpack.c.l.b16 %v328
      %v1018 = vunpack.c.h.b16 %v328
      %v1019 = vunpack.c.l.b16 %v329
      %v1020 = vunpack.c.h.b16 %v329
      %v1021 = vunpack.c.l.b16 %v330
      %v1022 = vunpack.c.h.b16 %v330
      %v1023 = vunpack.c.l.b16 %v331
      %v1024 = vunpack.c.h.b16 %v331
      %v1025 = vunpack.c.l.b16 %v332
      %v1026 = vunpack.c.h.b16 %v332
      %v1027 = vunpack.c.l.b16 %v333
      %v1028 = vunpack.c.h.b16 %v333
      %v1029 = vunpack.c.l.b16 %v334
      %v1030 = vunpack.c.h.b16 %v334
      %v1031 = vunpack.c.l.b16 %v335
      %v1032 = vunpack.c.h.b16 %v335
      %v1033 = vunpack.c.l.b16 %v336
      %v1034 = vunpack.c.h.b16 %v336
      %v1035 = vunpack.c.l.b16 %v337
      %v1036 = vunpack.c.h.b16 %v337
      %v1037 = vunpack.c.l.b16 %v338
      %v1038 = vunpack.c.h.b16 %v338
      %v1039 = vunpack.c.l.b16 %v339
      %v1040 = vunpack.c.h.b16 %v339
      %v1041 = vunpack.c.l.b16 %v340
      %v1042 = vunpack.c.h.b16 %v340
      %v1043 = vunpack.c.l.b16 %v341
      %v1044 = vunpack.c.h.b16 %v341
      %v1045 = vunpack.c.l.b16 %v342
      %v1046 = vunpack.c.h.b16 %v342
      %v1047 = vunpack.c.l.b16 %v343
      %v1048 = vunpack.c.h.b16 %v343
      %v1049 = vunpack.c.l.b16 %v344
      %v1050 = vunpack.c.h.b16 %v344
      %v1051 = vunpack.c.l.b16 %v345
      %v1052 = vunpack.c.h.b16 %v345
      %v1053 = vunpack.c.l.b16 %v346
      %v1054 = vunpack.c.h.b16 %v346
      %v1055 = vunpack.c.l.b16 %v347
      %v1056 = vunpack.c.h.b16 %v347
      %v1057 = vunpack.c.l.b16 %v348
      %v1058 = vunpack.c.h.b16 %v348
      %v1059 = vunpack.c.l.b16 %v349
      %v1060 = vunpack.c.h.b16 %v349
      %v1061 = vunpack.c.l.b16 %v350
      %v1062 = vunpack.c.h.b16 %v350
      %v1063 = vunpack.c.l.b16 %v351
      %v1064 = vunpack.c.h.b16 %v351
      %v1065 = vunpack.c.l.b16 %v352
      %v1066 = vunpack.c.h.b16 %v352
      %v1067 = vunpack.c.l.b16 %v353
      %v1068 = vunpack.c.h.b16 %v353
      %v1069 = vunpack.c.l.b16 %v354
      %v1070 = vunpack.c.h.b16 %v354
      %v1071 = vunpack.c.l.b16 %v355
      %v1072 = vunpack.c.h.b16 %v355
      %v1073 = vunpack.c.l.b16 %v356
      %v1074 = vunpack.c.h.b16 %v356
      %v1075 = vunpack.c.l.b16 %v357
      %v1076 = vunpack.c.h.b16 %v357
      %v1077 = vunpack.c.l.b16 %v358
      %v1078 = vunpack.c.h.b16 %v358
      %v1079 = vunpack.c.l.b16 %v359
      %v1080 = vunpack.c.h.b16 %v359
      %v1081 = vunpack.c.l.b16 %v360
      %v1082 = vunpack.c.h.b16 %v360
      %v1083 = vunpack.c.l.b16 %v361
      %v1084 = vunpack.c.h.b16 %v361
      %v1085 = vunpack.c.l.b16 %v362
      %v1086 = vunpack.c.h.b16 %v362
      %v1087 = vunpack.c.l.b16 %v363
      %v1088 = vunpack.c.h.b16 %v363
      %v1089 = vunpack.c.l.b16 %v364
      %v1090 = vunpack.c.h.b16 %v364
      %v1091 = vunpack.c.l.b16 %v365
      %v1092 = vunpack.c.h.b16 %v365
      %v1093 = vunpack.c.l.b16 %v366
      %v1094 = vunpack.c.h.b16 %v366
      %v1095 = vunpack.c.l.b16 %v367
      %v1096 = vunpack.c.h.b16 %v367
      %v1097 = vunpack.c.l.b16 %v368
      %v1098 = vunpack.c.h.b16 %v368
      %v1099 = vunpack.c.l.b16 %v369
      %v1100 = vunpack.c.h.b16 %v369
      %v1101 = vunpack.c.l.b16 %v370
      %v1102 = vunpack.c.h.b16 %v370
      %v1103 = vunpack.c.l.b16 %v371
      %v1104 = vunpack.c.h.b16 %v371
      %v1105 = vunpack.c.l.b16 %v372
      %v1106 = vunpack.c.h.b16 %v372
      %v1107 = vunpack.c.l.b16 %v373
      %v1108 = vunpack.c.h.b16 %v373
      %v1109 = vunpack.c.l.b16 %v374
      %v1110 = vunpack.c.h.b16 %v374
      %v1111 = vunpack.c.l.b16 %v375
      %v1112 = vunpack.c.h.b16 %v375
      %v1113 = vunpack.c.l.b16 %v376
      %v1114 = vunpack.c.h.b16 %v376
      %v1115 = vunpack.c.l.b16 %v377
      %v1116 = vunpack.c.h.b16 %v377
      %v1117 = vunpack.c.l.b16 %v378
      %v1118 = vunpack.c.h.b16 %v378
      %v1119 = vunpack.c.l.b16 %v379
      %v1120 = vunpack.c.h.b16 %v379
      %v1121 = vunpack.c.l.b16 %v380
      %v1122 = vunpack.c.h.b16 %v380
      %v1123 = vunpack.c.l.b16 %v381
      %v1124 = vunpack.c.h.b16 %v381
      %v1125 = vunpack.c.l.b16 %v382
      %v1126 = vunpack.c.h.b16 %v382
      %v1127 = vunpack.c.l.b16 %v383
      %v1128 = vunpack.c.h.b16 %v383
      %v1129 = vunpack.c.l.b16 %v384
      %v1130 = vunpack.c.h.b16 %v384
      %v1131 = vunpack.c.l.b16 %v385
      %v1132 = vunpack.c.h.b16 %v385
      %v1133 = vunpack.c.l.b16 %v386
      %v1134 = vunpack.c.h.b16 %v386
      %v1135 = vunpack.c.l.b16 %v387
      %v1136 = vunpack.c.h.b16 %v387
      %v1137 = vunpack.c.l.b16 %v388
      %v1138 = vunpack.c.h.b16 %v388
      %v1139 = vunpack.c.l.b16 %v389
      %v1140 = vunpack.c.h.b16 %v389
      %v1141 = vunpack.c.l.b16 %v390
      %v1142 = vunpack.c.h.b16 %v390
      %v1143 = vunpack.c.l.b16 %v391
      %v1144 = vunpack.c.h.b16 %v391
      %v1145 = vunpack.c.l.b16 %v392
      %v1146 = vunpack.c.h.b16 %v392
      %v1147 = vunpack.c.l.b16 %v393
      %v1148 = vunpack.c.h.b16 %v393
      %v1149 = vunpack.c.l.b16 %v394
      %v1150 = vunpack.c.h.b16 %v394
      %v1151 = vunpack.c.l.b16 %v395
      %v1152 = vunpack.c.h.b16 %v395
      %v1153 = vunpack.c.l.b16 %v396
      %v1154 = vunpack.c.h.b16 %v396
      %v1155 = vunpack.c.l.b16 %v397
      %v1156 = vunpack.c.h.b16 %v397
      %v1157 = vunpack.c.l.b16 %v398
      %v1158 = vunpack.c.h.b16 %v398
      %v1159 = vunpack.c.l.b16 %v399
      %v1160 = vunpack.c.h.b16 %v399
      %v1161 = vunpack.c.l.b16 %v400
      %v1162 = vunpack.c.h.b16 %v400
      %v1163 = vunpack.c.l.b16 %v401
      %v1164 = vunpack.c.h.b16 %v401
      %v1165 = vunpack.c.l.b16 %v402
      %v1166 = vunpack.c.h.b16 %v402
      %v1167 = vunpack.c.l.b16 %v403
      %v1168 = vunpack.c.h.b16 %v403
      %v1169 = vunpack.c.l.b16 %v404
      %v1170 = vunpack.c.h.b16 %v404
      %v1171 = vunpack.c.l.b16 %v405
      %v1172 = vunpack.c.h.b16 %v405
      %v1173 = vunpack.c.l.b16 %v406
      %v1174 = vunpack.c.h.b16 %v406
      %v1175 = vunpack.c.l.b16 %v407
      %v1176 = vunpack.c.h.b16 %v407
      %v1177 = vunpack.c.l.b16 %v408
      %v1178 = vunpack.c.h.b16 %v408
      %v1179 = vunpack.c.l.b16 %v409
      %v1180 = vunpack.c.h.b16 %v409
      %v1181 = vunpack.c.l.b16 %v410
      %v1182 = vunpack.c.h.b16 %v410
      %v1183 = vunpack.c.l.b16 %v411
      %v1184 = vunpack.c.h.b16 %v411
      %v1185 = vunpack.c.l.b16 %v412
      %v1186 = vunpack.c.h.b16 %v412
      %v1187 = vunpack.c.l.b16 %v413
      %v1188 = vunpack.c.h.b16 %v413
      %v1189 = vunpack.c.l.b16 %v414
      %v1190 = vunpack.c.h.b16 %v414
      %v1191 = vunpack.c.l.b16 %v415
      %v1192 = vunpack.c.h.b16 %v415
      %v1193 = vunpack.c.l.b16 %v416
      %v1194 = vunpack.c.h.b16 %v416
      %v1195 = vunpack.c.l.b16 %v417
      %v1196 = vunpack.c.h.b16 %v417
      %v1197 = vunpack.c.l.b16 %v418
      %v1198 = vunpack.c.h.b16 %v418
      %v1199 = vunpack.c.l.b16 %v419
      %v1200 = vunpack.c.h.b16 %v419
      %v1201 = vunpack.c.l.b16 %v420
      %v1202 = vunpack.c.h.b16 %v420
      %v1203 = vunpack.c.l.b16 %v421
      %v1204 = vunpack.c.h.b16 %v421
      %v1205 = vunpack.c.l.b16 %v422
      %v1206 = vunpack.c.h.b16 %v422
      %v1207 = vunpack.c.l.b16 %v423
      %v1208 = vunpack.c.h.b16 %v423
      %v1209 = vunpack.c.l.b16 %v424
      %v1210 = vunpack.c.h.b16 %v424
      %v1211 = vunpack.c.l.b16 %v425
      %v1212 = vunpack.c.h.b16 %v425
      %v1213 = vunpack.c.l.b16 %v426
      %v1214 = vunpack.c.h.b16 %v426
      %v1215 = vunpack.c.l.b16 %v427
      %v1216 = vunpack.c.h.b16 %v427
      %v1217 = vunpack.c.l.b16 %v428
      %v1218 = vunpack.c.h.b16 %v428
      %v1219 = vunpack.c.l.b16 %v429
      %v1220 = vunpack.c.h.b16 %v429
      %v1221 = vunpack.c.l.b16 %v430
      %v1222 = vunpack.c.h.b16 %v430
      %v1223 = vunpack.c.l.b16 %v431
      %v1224 = vunpack.c.h.b16 %v431
      %v1225 = vunpack.c.l.b16 %v432
      %v1226 = vunpack.c.h.b16 %v432
      %v1227 = vunpack.c.l.b16 %v433
      %v1228 = vunpack.c.h.b16 %v433
      %v1229 = vunpack.c.l.b16 %v434
      %v1230 = vunpack.c.h.b16 %v434
      %v1231 = vunpack.c.l.b16 %v435
      %v1232 = vunpack.c.h.b16 %v435
      %v1233 = vunpack.c.l.b16 %v436
      %v1234 = vunpack.c.h.b16 %v436
      %v1235 = vunpack.c.l.b16 %v437
      %v1236 = vunpack.c.h.b16 %v437
      %v1237 = vunpack.c.l.b16 %v438
      %v1238 = vunpack.c.h.b16 %v438
      %v1239 = vunpack.c.l.b16 %v439
      %v1240 = vunpack.c.h.b16 %v439
      %v1241 = vunpack.c.l.b16 %v440
      %v1242 = vunpack.c.h.b16 %v440
      %v1243 = vunpack.c.l.b16 %v441
      %v1244 = vunpack.c.h.b16 %v441
      %v1245 = vunpack.c.l.b16 %v442
      %v1246 = vunpack.c.h.b16 %v442
      %v1247 = vunpack.c.l.b16 %v443
      %v1248 = vunpack.c.h.b16 %v443
      %v1249 = vunpack.c.l.b16 %v444
      %v1250 = vunpack.c.h.b16 %v444
      %v1251 = vunpack.c.l.b16 %v445
      %v1252 = vunpack.c.h.b16 %v445
      %v1253 = vunpack.c.l.b16 %v446
      %v1254 = vunpack.c.h.b16 %v446
      %v1255 = vunpack.c.l.b16 %v447
      %v1256 = vunpack.c.h.b16 %v447
      %v1257 = vunpack.c.l.b16 %v448
      %v1258 = vunpack.c.h.b16 %v448
      %v1259 = vunpack.c.l.b16 %v449
      %v1260 = vunpack.c.h.b16 %v449
      %v1261 = vunpack.c.l.b16 %v450
      %v1262 = vunpack.c.h.b16 %v450
      %v1263 = vunpack.c.l.b16 %v451
      %v1264 = vunpack.c.h.b16 %v451
      %v1265 = vunpack.c.l.b16 %v452
      %v1266 = vunpack.c.h.b16 %v452
      %v1267 = vunpack.c.l.b16 %v453
      %v1268 = vunpack.c.h.b16 %v453
      %v1269 = vunpack.c.l.b16 %v454
      %v1270 = vunpack.c.h.b16 %v454
      %v1271 = vunpack.c.l.b16 %v455
      %v1272 = vunpack.c.h.b16 %v455
      %v1273 = vunpack.c.l.b16 %v456
      %v1274 = vunpack.c.h.b16 %v456
      %v1275 = vunpack.c.l.b16 %v457
      %v1276 = vunpack.c.h.b16 %v457
      %v1277 = vunpack.c.l.b16 %v458
      %v1278 = vunpack.c.h.b16 %v458
      %v1279 = vunpack.c.l.b16 %v459
      %v1280 = vunpack.c.h.b16 %v459
      %v1281 = vunpack.c.l.b16 %v460
      %v1282 = vunpack.c.h.b16 %v460
      %v1283 = vunpack.c.l.b16 %v461
      %v1284 = vunpack.c.h.b16 %v461
      %v1285 = vunpack.c.l.b16 %v462
      %v1286 = vunpack.c.h.b16 %v462
      %v1287 = vunpack.c.l.b16 %v463
      %v1288 = vunpack.c.h.b16 %v463
      %v1289 = vunpack.c.l.b16 %v464
      %v1290 = vunpack.c.h.b16 %v464
      %v1291 = vunpack.c.l.b16 %v465
      %v1292 = vunpack.c.h.b16 %v465
      %v1293 = vunpack.c.l.b16 %v466
      %v1294 = vunpack.c.h.b16 %v466
      %v1295 = vunpack.c.l.b16 %v467
      %v1296 = vunpack.c.h.b16 %v467
      %v1297 = vunpack.c.l.b16 %v468
      %v1298 = vunpack.c.h.b16 %v468
      %v1299 = vunpack.c.l.b16 %v469
      %v1300 = vunpack.c.h.b16 %v469
      %v1301 = vunpack.c.l.b16 %v470
      %v1302 = vunpack.c.h.b16 %v470
      %v1303 = vunpack.c.l.b16 %v471
      %v1304 = vunpack.c.h.b16 %v471
      %v1305 = vunpack.c.l.b16 %v472
      %v1306 = vunpack.c.h.b16 %v472
      %v1307 = vunpack.c.l.b16 %v473
      %v1308 = vunpack.c.h.b16 %v473
      %v1309 = vunpack.c.l.b16 %v474
      %v1310 = vunpack.c.h.b16 %v474
      %v1311 = vunpack.c.l.b16 %v475
      %v1312 = vunpack.c.h.b16 %v475
      %v1313 = vunpack.c.l.b16 %v476
      %v1314 = vunpack.c.h.b16 %v476
      %v1315 = vunpack.c.l.b16 %v477
      %v1316 = vunpack.c.h.b16 %v477
      %v1317 = vunpack.c.l.b16 %v478
      %v1318 = vunpack.c.h.b16 %v478
      %v1319 = vunpack.c.l.b16 %v479
      %v1320 = vunpack.c.h.b16 %v479
      %v1321 = vunpack.c.l.b16 %v480
      %v1322 = vunpack.c.h.b16 %v480
      %v1323 = vunpack.c.l.b16 %v481
      %v1324 = vunpack.c.h.b16 %v481
      %v1325 = vunpack.c.l.b16 %v482
      %v1326 = vunpack.c.h.b16 %v482
      %v1327 = vunpack.c.l.b16 %v483
      %v1328 = vunpack.c.h.b16 %v483
      %v1329 = vunpack.c.l.b16 %v484
      %v1330 = vunpack.c.h.b16 %v484
      %v1331 = vunpack.c.l.b16 %v485
      %v1332 = vunpack.c.h.b16 %v485
      %v1333 = vunpack.c.l.b16 %v486
      %v1334 = vunpack.c.h.b16 %v486
      %v1335 = vunpack.c.l.b16 %v487
      %v1336 = vunpack.c.h.b16 %v487
      %v1337 = vunpack.c.l.b16 %v488
      %v1338 = vunpack.c.h.b16 %v488
      %v1339 = vunpack.c.l.b16 %v489
      %v1340 = vunpack.c.h.b16 %v489
      %v1341 = vunpack.c.l.b16 %v490
      %v1342 = vunpack.c.h.b16 %v490
      %v1343 = vunpack.c.l.b16 %v491
      %v1344 = vunpack.c.h.b16 %v491
      %v1345 = vunpack.c.l.b16 %v492
      %v1346 = vunpack.c.h.b16 %v492
      %v1347 = vunpack.c.l.b16 %v493
      %v1348 = vunpack.c.h.b16 %v493
      %v1349 = vunpack.c.l.b16 %v494
      %v1350 = vunpack.c.h.b16 %v494
      %v1351 = vunpack.c.l.b16 %v495
      %v1352 = vunpack.c.h.b16 %v495
      %v1353 = vunpack.c.l.b16 %v496
      %v1354 = vunpack.c.h.b16 %v496
      %v1355 = vunpack.c.l.b16 %v497
      %v1356 = vunpack.c.h.b16 %v497
      %v1357 = vunpack.c.l.b16 %v498
      %v1358 = vunpack.c.h.b16 %v498
      %v1359 = vunpack.c.l.b16 %v499
      %v1360 = vunpack.c.h.b16 %v499
      %v1361 = vunpack.c.l.b16 %v500
      %v1362 = vunpack.c.h.b16 %v500
      %v1363 = vunpack.c.l.b16 %v501
      %v1364 = vunpack.c.h.b16 %v501
      %v1365 = vunpack.c.l.b16 %v502
      %v1366 = vunpack.c.h.b16 %v502
      %v1367 = vunpack.c.l.b16 %v503
      %v1368 = vunpack.c.h.b16 %v503
      %v1369 = vunpack.c.l.b16 %v504
      %v1370 = vunpack.c.h.b16 %v504
      %v1371 = vunpack.c.l.b16 %v505
      %v1372 = vunpack.c.h.b16 %v505
      %v1373 = vunpack.c.l.b16 %v506
      %v1374 = vunpack.c.h.b16 %v506
      %v1375 = vunpack.c.l.b16 %v507
      %v1376 = vunpack.c.h.b16 %v507
      %v1377 = vunpack.c.l.b16 %v508
      %v1378 = vunpack.c.h.b16 %v508
      %v1379 = vunpack.c.l.b16 %v509
      %v1380 = vunpack.c.h.b16 %v509
      %v1381 = vunpack.c.l.b16 %v510
      %v1382 = vunpack.c.h.b16 %v510
      %v1383 = vunpack.c.l.b16 %v511
      %v1384 = vunpack.c.h.b16 %v511
      %v1385 = vunpack.c.l.b16 %v512
      %v1386 = vunpack.c.h.b16 %v512
      %v1387 = vunpack.c.l.b16 %v513
      %v1388 = vunpack.c.h.b16 %v513
      %v1389 = vunpack.c.l.b16 %v514
      %v1390 = vunpack.c.h.b16 %v514
      %v1391 = vunpack.c.l.b16 %v515
      %v1392 = vunpack.c.h.b16 %v515
      %v1393 = vunpack.c.l.b16 %v516
      %v1394 = vunpack.c.h.b16 %v516
      %v1395 = vunpack.c.l.b16 %v517
      %v1396 = vunpack.c.h.b16 %v517
      %v1397 = vunpack.c.l.b16 %v518
      %v1398 = vunpack.c.h.b16 %v518
      %v1399 = vunpack.c.l.b16 %v519
      %v1400 = vunpack.c.h.b16 %v519
      %v1401 = vunpack.c.l.b16 %v520
      %v1402 = vunpack.c.h.b16 %v520
      %v1403 = vunpack.c.l.b16 %v521
      %v1404 = vunpack.c.h.b16 %v521
      %v1405 = vunpack.c.l.b16 %v522
      %v1406 = vunpack.c.h.b16 %v522
      %v1407 = vunpack.c.l.b16 %v523
      %v1408 = vunpack.c.h.b16 %v523
      %v1409 = vunpack.c.l.b16 %v524
      %v1410 = vunpack.c.h.b16 %v524
      %v1411 = vunpack.c.l.b16 %v525
      %v1412 = vunpack.c.h.b16 %v525
      %v1413 = vunpack.c.l.b16 %v526
      %v1414 = vunpack.c.h.b16 %v526
      %v1415 = vunpack.c.l.b16 %v527
      %v1416 = vunpack.c.h.b16 %v527
      %v1417 = vunpack.c.l.b16 %v528
      %v1418 = vunpack.c.h.b16 %v528
      %v1419 = vunpack.c.l.b16 %v529
      %v1420 = vunpack.c.h.b16 %v529
      %v1421 = vunpack.c.l.b16 %v530
      %v1422 = vunpack.c.h.b16 %v530
      %v1423 = vunpack.c.l.b16 %v531
      %v1424 = vunpack.c.h.b16 %v531
      %v1425 = vunpack.c.l.b16 %v532
      %v1426 = vunpack.c.h.b16 %v532
      %v1427 = vunpack.c.l.b16 %v533
      %v1428 = vunpack.c.h.b16 %v533
      %v1429 = vunpack.c.l.b16 %v534
      %v1430 = vunpack.c.h.b16 %v534
      %v1431 = vunpack.c.l.b16 %v535
      %v1432 = vunpack.c.h.b16 %v535
      %v1433 = vunpack.c.l.b16 %v536
      %v1434 = vunpack.c.h.b16 %v536
      %v1435 = vunpack.c.l.b16 %v537
      %v1436 = vunpack.c.h.b16 %v537
      %v1437 = vunpack.c.l.b16 %v538
      %v1438 = vunpack.c.h.b16 %v538
      %v1439 = vunpack.c.l.b16 %v539
      %v1440 = vunpack.c.h.b16 %v539
      %v1441 = vunpack.c.l.b16 %v540
      %v1442 = vunpack.c.h.b16 %v540
      %v1443 = vunpack.c.l.b16 %v541
      %v1444 = vunpack.c.h.b16 %v541
      %v1445 = vunpack.c.l.b16 %v542
      %v1446 = vunpack.c.h.b16 %v542
      %v1447 = vunpack.c.l.b16 %v543
      %v1448 = vunpack.c.h.b16 %v543
      %v1449 = vunpack.c.l.b16 %v544
      %v1450 = vunpack.c.h.b16 %v544
      %v1451 = vunpack.c.l.b16 %v545
      %v1452 = vunpack.c.h.b16 %v545
      %v1453 = vunpack.c.l.b16 %v546
      %v1454 = vunpack.c.h.b16 %v546
      %v1455 = vunpack.c.l.b16 %v547
      %v1456 = vunpack.c.h.b16 %v547
      %v1457 = vunpack.c.l.b16 %v548
      %v1458 = vunpack.c.h.b16 %v548
      %v1459 = vunpack.c.l.b16 %v549
      %v1460 = vunpack.c.h.b16 %v549
      %v1461 = vunpack.c.l.b16 %v550
      %v1462 = vunpack.c.h.b16 %v550
      %v1463 = vunpack.c.l.b16 %v551
      %v1464 = vunpack.c.h.b16 %v551
      %v1465 = vunpack.c.l.b16 %v552
      %v1466 = vunpack.c.h.b16 %v552
      %v1467 = vunpack.c.l.b16 %v553
      %v1468 = vunpack.c.h.b16 %v553
      %v1469 = vunpack.c.l.b16 %v554
      %v1470 = vunpack.c.h.b16 %v554
      %v1471 = vunpack.c.l.b16 %v555
      %v1472 = vunpack.c.h.b16 %v555
      %v1473 = vunpack.c.l.b16 %v556
      %v1474 = vunpack.c.h.b16 %v556
      %v1475 = vunpack.c.l.b16 %v557
      %v1476 = vunpack.c.h.b16 %v557
      %v1477 = vunpack.c.l.b16 %v558
      %v1478 = vunpack.c.h.b16 %v558
      %v1479 = vunpack.c.l.b16 %v559
      %v1480 = vunpack.c.h.b16 %v559
      %v1481 = vunpack.c.l.b16 %v560
      %v1482 = vunpack.c.h.b16 %v560
      %v1483 = vunpack.c.l.b16 %v561
      %v1484 = vunpack.c.h.b16 %v561
      %v1485 = vunpack.c.l.b16 %v562
      %v1486 = vunpack.c.h.b16 %v562
      %v1487 = vunpack.c.l.b16 %v563
      %v1488 = vunpack.c.h.b16 %v563
      %v1489 = vunpack.c.l.b16 %v564
      %v1490 = vunpack.c.h.b16 %v564
      %v1491 = vunpack.c.l.b16 %v565
      %v1492 = vunpack.c.h.b16 %v565
      %v1493 = vunpack.c.l.b16 %v566
      %v1494 = vunpack.c.h.b16 %v566
      %v1495 = vunpack.c.l.b16 %v567
      %v1496 = vunpack.c.h.b16 %v567
      %v1497 = vunpack.c.l.b16 %v568
      %v1498 = vunpack.c.h.b16 %v568
      %v1499 = vunpack.c.l.b16 %v569
      %v1500 = vunpack.c.h.b16 %v569
      %v1501 = vunpack.c.l.b16 %v570
      %v1502 = vunpack.c.h.b16 %v570
      %v1503 = vunpack.c.l.b16 %v571
      %v1504 = vunpack.c.h.b16 %v571
      %v1505 = vunpack.c.l.b16 %v572
      %v1506 = vunpack.c.h.b16 %v572
      %v1507 = vpack.c.b16 %v997, %v995
      %v1508 = vpack.c.b16 %v998, %v996
      %v1509 = vpack.c.b16 %v1001, %v999
      %v1510 = vpack.c.b16 %v1002, %v1000
      %v1511 = vpack.c.b16 %v1005, %v1003
      %v1512 = vpack.c.b16 %v1006, %v1004
      %v1513 = vpack.c.b16 %v1009, %v1007
      %v1514 = vpack.c.b16 %v1010, %v1008
      %v1515 = vpack.c.b16 %v1013, %v1011
      %v1516 = vpack.c.b16 %v1014, %v1012
      %v1517 = vpack.c.b16 %v1017, %v1015
      %v1518 = vpack.c.b16 %v1018, %v1016
      %v1519 = vpack.c.b16 %v1021, %v1019
      %v1520 = vpack.c.b16 %v1022, %v1020
      %v1521 = vpack.c.b16 %v1025, %v1023
      %v1522 = vpack.c.b16 %v1026, %v1024
      %v1523 = vpack.c.b16 %v1029, %v1027
      %v1524 = vpack.c.b16 %v1030, %v1028
      %v1525 = vpack.c.b16 %v1033, %v1031
      %v1526 = vpack.c.b16 %v1034, %v1032
      %v1527 = vpack.c.b16 %v1037, %v1035
      %v1528 = vpack.c.b16 %v1038, %v1036
      %v1529 = vpack.c.b16 %v1041, %v1039
      %v1530 = vpack.c.b16 %v1042, %v1040
      %v1531 = vpack.c.b16 %v1045, %v1043
      %v1532 = vpack.c.b16 %v1046, %v1044
      %v1533 = vpack.c.b16 %v1049, %v1047
      %v1534 = vpack.c.b16 %v1050, %v1048
      %v1535 = vpack.c.b16 %v1053, %v1051
      %v1536 = vpack.c.b16 %v1054, %v1052
      %v1537 = vpack.c.b16 %v1057, %v1055
      %v1538 = vpack.c.b16 %v1058, %v1056
      %v1539 = vpack.c.b16 %v1061, %v1059
      %v1540 = vpack.c.b16 %v1062, %v1060
      %v1541 = vpack.c.b16 %v1065, %v1063
      %v1542 = vpack.c.b16 %v1066, %v1064
      %v1543 = vpack.c.b16 %v1069, %v1067
      %v1544 = vpack.c.b16 %v1070, %v1068
      %v1545 = vpack.c.b16 %v1073, %v1071
      %v1546 = vpack.c.b16 %v1074, %v1072
      %v1547 = vpack.c.b16 %v1077, %v1075
      %v1548 = vpack.c.b16 %v1078, %v1076
      %v1549 = vpack.c.b16 %v1081, %v1079
      %v1550 = vpack.c.b16 %v1082, %v1080
      %v1551 = vpack.c.b16 %v1085, %v1083
      %v1552 = vpack.c.b16 %v1086, %v1084
      %v1553 = vpack.c.b16 %v1089, %v1087
      %v1554 = vpack.c.b16 %v1090, %v1088
      %v1555 = vpack.c.b16 %v1093, %v1091
      %v1556 = vpack.c.b16 %v1094, %v1092
      %v1557 = vpack.c.b16 %v1097, %v1095
      %v1558 = vpack.c.b16 %v1098, %v1096
      %v1559 = vpack.c.b16 %v1101, %v1099
      %v1560 = vpack.c.b16 %v1102, %v1100
      %v1561 = vpack.c.b16 %v1105, %v1103
      %v1562 = vpack.c.b16 %v1106, %v1104
      %v1563 = vpack.c.b16 %v1109, %v1107
      %v1564 = vpack.c.b16 %v1110, %v1108
      %v1565 = vpack.c.b16 %v1113, %v1111
      %v1566 = vpack.c.b16 %v1114, %v1112
      %v1567 = vpack.c.b16 %v1117, %v1115
      %v1568 = vpack.c.b16 %v1118, %v1116
      %v1569 = vpack.c.b16 %v1121, %v1119
      %v1570 = vpack.c.b16 %v1122, %v1120
      %v1571 = vpack.c.b16 %v1125, %v1123
      %v1572 = vpack.c.b16 %v1126, %v1124
      %v1573 = vpack.c.b16 %v1129, %v1127
      %v1574 = vpack.c.b16 %v1130, %v1128
      %v1575 = vpack.c.b16 %v1133, %v1131
      %v1576 = vpack.c.b16 %v1134, %v1132
      %v1577 = vpack.c.b16 %v1137, %v1135
      %v1578 = vpack.c.b16 %v1138, %v1136
      %v1579 = vpack.c.b16 %v1141, %v1139
      %v1580 = vpack.c.b16 %v1142, %v1140
      %v1581 = vpack.c.b16 %v1145, %v1143
      %v1582 = vpack.c.b16 %v1146, %v1144
      %v1583 = vpack.c.b16 %v1149, %v1147
      %v1584 = vpack.c.b16 %v1150, %v1148
      %v1585 = vpack.c.b16 %v1153, %v1151
      %v1586 = vpack.c.b16 %v1154, %v1152
      %v1587 = vpack.c.b16 %v1157, %v1155
      %v1588 = vpack.c.b16 %v1158, %v1156
      %v1589 = vpack.c.b16 %v1161, %v1159
      %v1590 = vpack.c.b16 %v1162, %v1160
      %v1591 = vpack.c.b16 %v1165, %v1163
      %v1592 = vpack.c.b16 %v1166, %v1164
      %v1593 = vpack.c.b16 %v1169, %v1167
      %v1594 = vpack.c.b16 %v1170, %v1168
      %v1595 = vpack.c.b16 %v1173, %v1171
      %v1596 = vpack.c.b16 %v1174, %v1172
      %v1597 = vpack.c.b16 %v1177, %v1175
      %v1598 = vpack.c.b16 %v1178, %v1176
      %v1599 = vpack.c.b16 %v1181, %v1179
      %v1600 = vpack.c.b16 %v1182, %v1180
      %v1601 = vpack.c.b16 %v1185, %v1183
      %v1602 = vpack.c.b16 %v1186, %v1184
      %v1603 = vpack.c.b16 %v1189, %v1187
      %v1604 = vpack.c.b16 %v1190, %v1188
      %v1605 = vpack.c.b16 %v1193, %v1191
      %v1606 = vpack.c.b16 %v1194, %v1192
      %v1607 = vpack.c.b16 %v1197, %v1195
      %v1608 = vpack.c.b16 %v1198, %v1196
      %v1609 = vpack.c.b16 %v1201, %v1199
      %v1610 = vpack.c.b16 %v1202, %v1200
      %v1611 = vpack.c.b16 %v1205, %v1203
      %v1612 = vpack.c.b16 %v1206, %v1204
      %v1613 = vpack.c.b16 %v1209, %v1207
      %v1614 = vpack.c.b16 %v1210, %v1208
      %v1615 = vpack.c.b16 %v1213, %v1211
      %v1616 = vpack.c.b16 %v1214, %v1212
      %v1617 = vpack.c.b16 %v1217, %v1215
      %v1618 = vpack.c.b16 %v1218, %v1216
      %v1619 = vpack.c.b16 %v1221, %v1219
      %v1620 = vpack.c.b16 %v1222, %v1220
      %v1621 = vpack.c.b16 %v1225, %v1223
      %v1622 = vpack.c.b16 %v1226, %v1224
      %v1623 = vpack.c.b16 %v1229, %v1227
      %v1624 = vpack.c.b16 %v1230, %v1228
      %v1625 = vpack.c.b16 %v1233, %v1231
      %v1626 = vpack.c.b16 %v1234, %v1232
      %v1627 = vpack.c.b16 %v1237, %v1235
      %v1628 = vpack.c.b16 %v1238, %v1236
      %v1629 = vpack.c.b16 %v1241, %v1239
      %v1630 = vpack.c.b16 %v1242, %v1240
      %v1631 = vpack.c.b16 %v1245, %v1243
      %v1632 = vpack.c.b16 %v1246, %v1244
      %v1633 = vpack.c.b16 %v1249, %v1247
      %v1634 = vpack.c.b16 %v1250, %v1248
      %v1635 = vpack.c.b16 %v1253, %v1251
      %v1636 = vpack.c.b16 %v1254, %v1252
      %v1637 = vpack.c.b16 %v1257, %v1255
      %v1638 = vpack.c.b16 %v1258, %v1256
      %v1639 = vpack.c.b16 %v1261, %v1259
      %v1640 = vpack.c.b16 %v1262, %v1260
      %v1641 = vpack.c.b16 %v1265, %v1263
      %v1642 = vpack.c.b16 %v1266, %v1264
      %v1643 = vpack.c.b16 %v1269, %v1267
      %v1644 = vpack.c.b16 %v1270, %v1268
      %v1645 = vpack.c.b16 %v1273, %v1271
      %v1646 = vpack.c.b16 %v1274, %v1272
      %v1647 = vpack.c.b16 %v1277, %v1275
      %v1648 = vpack.c.b16 %v1278, %v1276
      %v1649 = vpack.c.b16 %v1281, %v1279
      %v1650 = vpack.c.b16 %v1282, %v1280
      %v1651 = vpack.c.b16 %v1285, %v1283
      %v1652 = vpack.c.b16 %v1286, %v1284
      %v1653 = vpack.c.b16 %v1289, %v1287
      %v1654 = vpack.c.b16 %v1290, %v1288
      %v1655 = vpack.c.b16 %v1293, %v1291
      %v1656 = vpack.c.b16 %v1294, %v1292
      %v1657 = vpack.c.b16 %v1297, %v1295
      %v1658 = vpack.c.b16 %v1298, %v1296
      %v1659 = vpack.c.b16 %v1301, %v1299
      %v1660 = vpack.c.b16 %v1302, %v1300
      %v1661 = vpack.c.b16 %v1305, %v1303
      %v1662 = vpack.c.b16 %v1306, %v1304
      %v1663 = vpack.c.b16 %v1309, %v1307
      %v1664 = vpack.c.b16 %v1310, %v1308
      %v1665 = vpack.c.b16 %v1313, %v1311
      %v1666 = vpack.c.b16 %v1314, %v1312
      %v1667 = vpack.c.b16 %v1317, %v1315
      %v1668 = vpack.c.b16 %v1318, %v1316
      %v1669 = vpack.c.b16 %v1321, %v1319
      %v1670 = vpack.c.b16 %v1322, %v1320
      %v1671 = vpack.c.b16 %v1325, %v1323
      %v1672 = vpack.c.b16 %v1326, %v1324
      %v1673 = vpack.c.b16 %v1329, %v1327
      %v1674 = vpack.c.b16 %v1330, %v1328
      %v1675 = vpack.c.b16 %v1333, %v1331
      %v1676 = vpack.c.b16 %v1334, %v1332
      %v1677 = vpack.c.b16 %v1337, %v1335
      %v1678 = vpack.c.b16 %v1338, %v1336
      %v1679 = vpack.c.b16 %v1341, %v1339
      %v1680 = vpack.c.b16 %v1342, %v1340
      %v1681 = vpack.c.b16 %v1345, %v1343
      %v1682 = vpack.c.b16 %v1346, %v1344
      %v1683 = vpack.c.b16 %v1349, %v1347
      %v1684 = vpack.c.b16 %v1350, %v1348
      %v1685 = vpack.c.b16 %v1353, %v1351
      %v1686 = vpack.c.b16 %v1354, %v1352
      %v1687 = vpack.c.b16 %v1357, %v1355
      %v1688 = vpack.c.b16 %v1358, %v1356
      %v1689 = vpack.c.b16 %v1361, %v1359
      %v1690 = vpack.c.b16 %v1362, %v1360
      %v1691 = vpack.c.b16 %v1365, %v1363
      %v1692 = vpack.c.b16 %v1366, %v1364
      %v1693 = vpack.c.b16 %v1369, %v1367
      %v1694 = vpack.c.b16 %v1370, %v1368
      %v1695 = vpack.c.b16 %v1373, %v1371
      %v1696 = vpack.c.b16 %v1374, %v1372
      %v1697 = vpack.c.b16 %v1377, %v1375
      %v1698 = vpack.c.b16 %v1378, %v1376
      %v1699 = vpack.c.b16 %v1381, %v1379
      %v1700 = vpack.c.b16 %v1382, %v1380
      %v1701 = vpack.c.b16 %v1385, %v1383
      %v1702 = vpack.c.b16 %v1386, %v1384
      %v1703 = vpack.c.b16 %v1389, %v1387
      %v1704 = vpack.c.b16 %v1390, %v1388
      %v1705 = vpack.c.b16 %v1393, %v1391
      %v1706 = vpack.c.b16 %v1394, %v1392
      %v1707 = vpack.c.b16 %v1397, %v1395
      %v1708 = vpack.c.b16 %v1398, %v1396
      %v1709 = vpack.c.b16 %v1401, %v1399
      %v1710 = vpack.c.b16 %v1402, %v1400
      %v1711 = vpack.c.b16 %v1405, %v1403
      %v1712 = vpack.c.b16 %v1406, %v1404
      %v1713 = vpack.c.b16 %v1409, %v1407
      %v1714 = vpack.c.b16 %v1410, %v1408
      %v1715 = vpack.c.b16 %v1413, %v1411
      %v1716 = vpack.c.b16 %v1414, %v1412
      %v1717 = vpack.c.b16 %v1417, %v1415
      %v1718 = vpack.c.b16 %v1418, %v1416
      %v1719 = vpack.c.b16 %v1421, %v1419
      %v1720 = vpack.c.b16 %v1422, %v1420
      %v1721 = vpack.c.b16 %v1425, %v1423
      %v1722 = vpack.c.b16 %v1426, %v1424
      %v1723 = vpack.c.b16 %v1429, %v1427
      %v1724 = vpack.c.b16 %v1430, %v1428
      %v1725 = vpack.c.b16 %v1433, %v1431
      %v1726 = vpack.c.b16 %v1434, %v1432
      %v1727 = vpack.c.b16 %v1437, %v1435
      %v1728 = vpack.c.b16 %v1438, %v1436
      %v1729 = vpack.c.b16 %v1441, %v1439
      %v1730 = vpack.c.b16 %v1442, %v1440
      %v1731 = vpack.c.b16 %v1445, %v1443
      %v1732 = vpack.c.b16 %v1446, %v1444
      %v1733 = vpack.c.b16 %v1449, %v1447
      %v1734 = vpack.c.b16 %v1450, %v1448
      %v1735 = vpack.c.b16 %v1453, %v1451
      %v1736 = vpack.c.b16 %v1454, %v1452
      %v1737 = vpack.c.b16 %v1457, %v1455
      %v1738 = vpack.c.b16 %v1458, %v1456
      %v1739 = vpack.c.b16 %v1461, %v1459
      %v1740 = vpack.c.b16 %v1462, %v1460
      %v1741 = vpack.c.b16 %v1465, %v1463
      %v1742 = vpack.c.b16 %v1466, %v1464
      %v1743 = vpack.c.b16 %v1469, %v1467
      %v1744 = vpack.c.b16 %v1470, %v1468
      %v1745 = vpack.c.b16 %v1473, %v1471
      %v1746 = vpack.c.b16 %v1474, %v1472
      %v1747 = vpack.c.b16 %v1477, %v1475
      %v1748 = vpack.c.b16 %v1478, %v1476
      %v1749 = vpack.c.b16 %v1481, %v1479
      %v1750 = vpack.c.b16 %v1482, %v1480
      %v1751 = vpack.c.b16 %v1485, %v1483
      %v1752 = vpack.c.b16 %v1486, %v1484
      %v1753 = vpack.c.b16 %v1489, %v1487
      %v1754 = vpack.c.b16 %v1490, %v1488
      %v1755 = vpack.c.b16 %v1493, %v1491
      %v1756 = vpack.c.b16 %v1494, %v1492
      %v1757 = vpack.c.b16 %v1497, %v1495
      %v1758 = vpack.c.b16 %v1498, %v1496
      %v1759 = vpack.c.b16 %v1501, %v1499
      %v1760 = vpack.c.b16 %v1502, %v1500
      %v1761 = vpack.c.b16 %v1505, %v1503
      %v1762 = vpack.c.b16 %v1506, %v1504
      %2019 = vmatpush.bf16.msra.mxu0 %v1521
      %2020 = vmatpush.bf16.msra.mxu0 %v1519
      %2021 = vmatpush.bf16.msra.mxu0 %v1517
      %2022 = vmatpush.bf16.msra.mxu0 %v1515
      %2023 = vmatpush.bf16.msra.mxu0 %v1513
      %2024 = vmatpush.bf16.msra.mxu0 %v1511
      %2025 = vmatpush.bf16.msra.mxu0 %v1509
      %2026 = vmatpush.bf16.msra.mxu0 %v1507
      %2027 = vmatmul.bf16.gmra.mxu0 %v675
      %v2028 = vpop.f32.mrf.mxu0
      %v2029 = vadd.f32 %v575, %v2028
      %v2030 = vpop.f32.mrf.mxu0
      %v2031 = vadd.f32 %v575, %v2030
      %2032 = vmatmul.bf16.gmra.mxu0 %v691
      %v2033 = vpop.f32.mrf.mxu0
      %v2034 = vadd.f32 %v575, %v2033
      %v2035 = vpop.f32.mrf.mxu0
      %v2036 = vadd.f32 %v575, %v2035
      %2037 = vdwg.mxu0
      %2038 = vmatpush.bf16.msra.mxu0 %v1537
      %2039 = vmatpush.bf16.msra.mxu0 %v1535
      %2040 = vmatpush.bf16.msra.mxu0 %v1533
      %2041 = vmatpush.bf16.msra.mxu0 %v1531
      %2042 = vmatpush.bf16.msra.mxu0 %v1529
      %2043 = vmatpush.bf16.msra.mxu0 %v1527
      %2044 = vmatpush.bf16.msra.mxu0 %v1525
      %2045 = vmatpush.bf16.msra.mxu0 %v1523
      %2046 = vmatmul.bf16.gmra.mxu0 %v676
      %v2047 = vpop.f32.mrf.mxu0
      %v2048 = vadd.f32 %v2029, %v2047
      %v2049 = vpop.f32.mrf.mxu0
      %v2050 = vadd.f32 %v2031, %v2049
      %2051 = vmatmul.bf16.gmra.mxu0 %v692
      %v2052 = vpop.f32.mrf.mxu0
      %v2053 = vadd.f32 %v2034, %v2052
      %v2054 = vpop.f32.mrf.mxu0
      %v2055 = vadd.f32 %v2036, %v2054
      %2056 = vdwg.mxu0
      %2057 = vmatpush.bf16.msra.mxu0 %v1553
      %2058 = vmatpush.bf16.msra.mxu0 %v1551
      %2059 = vmatpush.bf16.msra.mxu0 %v1549
      %2060 = vmatpush.bf16.msra.mxu0 %v1547
      %2061 = vmatpush.bf16.msra.mxu0 %v1545
      %2062 = vmatpush.bf16.msra.mxu0 %v1543
      %2063 = vmatpush.bf16.msra.mxu0 %v1541
      %2064 = vmatpush.bf16.msra.mxu0 %v1539
      %2065 = vmatmul.bf16.gmra.mxu0 %v677
      %v2066 = vpop.f32.mrf.mxu0
      %v2067 = vadd.f32 %v2048, %v2066
      %v2068 = vpop.f32.mrf.mxu0
      %v2069 = vadd.f32 %v2050, %v2068
      %2070 = vmatmul.bf16.gmra.mxu0 %v693
      %v2071 = vpop.f32.mrf.mxu0
      %v2072 = vadd.f32 %v2053, %v2071
      %v2073 = vpop.f32.mrf.mxu0
      %v2074 = vadd.f32 %v2055, %v2073
      %2075 = vdwg.mxu0
      %2076 = vmatpush.bf16.msra.mxu0 %v1569
      %2077 = vmatpush.bf16.msra.mxu0 %v1567
      %2078 = vmatpush.bf16.msra.mxu0 %v1565
      %2079 = vmatpush.bf16.msra.mxu0 %v1563
      %2080 = vmatpush.bf16.msra.mxu0 %v1561
      %2081 = vmatpush.bf16.msra.mxu0 %v1559
      %2082 = vmatpush.bf16.msra.mxu0 %v1557
      %2083 = vmatpush.bf16.msra.mxu0 %v1555
      %2084 = vmatmul.bf16.gmra.mxu0 %v678
      %v2085 = vpop.f32.mrf.mxu0
      %v2086 = vadd.f32 %v2067, %v2085
      %v2087 = vpop.f32.mrf.mxu0
      %v2088 = vadd.f32 %v2069, %v2087
      %2089 = vmatmul.bf16.gmra.mxu0 %v694
      %v2090 = vpop.f32.mrf.mxu0
      %v2091 = vadd.f32 %v2072, %v2090
      %v2092 = vpop.f32.mrf.mxu0
      %v2093 = vadd.f32 %v2074, %v2092
      %2094 = vdwg.mxu0
      %2095 = vmatpush.bf16.msra.mxu0 %v1585
      %2096 = vmatpush.bf16.msra.mxu0 %v1583
      %2097 = vmatpush.bf16.msra.mxu0 %v1581
      %2098 = vmatpush.bf16.msra.mxu0 %v1579
      %2099 = vmatpush.bf16.msra.mxu0 %v1577
      %2100 = vmatpush.bf16.msra.mxu0 %v1575
      %2101 = vmatpush.bf16.msra.mxu0 %v1573
      %2102 = vmatpush.bf16.msra.mxu0 %v1571
      %2103 = vmatmul.bf16.gmra.mxu0 %v679
      %v2104 = vpop.f32.mrf.mxu0
      %v2105 = vadd.f32 %v2086, %v2104
      %v2106 = vpop.f32.mrf.mxu0
      %v2107 = vadd.f32 %v2088, %v2106
      %2108 = vmatmul.bf16.gmra.mxu0 %v695
      %v2109 = vpop.f32.mrf.mxu0
      %v2110 = vadd.f32 %v2091, %v2109
      %v2111 = vpop.f32.mrf.mxu0
      %v2112 = vadd.f32 %v2093, %v2111
      %2113 = vdwg.mxu0
      %2114 = vmatpush.bf16.msra.mxu0 %v1601
      %2115 = vmatpush.bf16.msra.mxu0 %v1599
      %2116 = vmatpush.bf16.msra.mxu0 %v1597
      %2117 = vmatpush.bf16.msra.mxu0 %v1595
      %2118 = vmatpush.bf16.msra.mxu0 %v1593
      %2119 = vmatpush.bf16.msra.mxu0 %v1591
      %2120 = vmatpush.bf16.msra.mxu0 %v1589
      %2121 = vmatpush.bf16.msra.mxu0 %v1587
      %2122 = vmatmul.bf16.gmra.mxu0 %v680
      %v2123 = vpop.f32.mrf.mxu0
      %v2124 = vadd.f32 %v2105, %v2123
      %v2125 = vpop.f32.mrf.mxu0
      %v2126 = vadd.f32 %v2107, %v2125
      %2127 = vmatmul.bf16.gmra.mxu0 %v696
      %v2128 = vpop.f32.mrf.mxu0
      %v2129 = vadd.f32 %v2110, %v2128
      %v2130 = vpop.f32.mrf.mxu0
      %v2131 = vadd.f32 %v2112, %v2130
      %2132 = vdwg.mxu0
      %2133 = vmatpush.bf16.msra.mxu0 %v1617
      %2134 = vmatpush.bf16.msra.mxu0 %v1615
      %2135 = vmatpush.bf16.msra.mxu0 %v1613
      %2136 = vmatpush.bf16.msra.mxu0 %v1611
      %2137 = vmatpush.bf16.msra.mxu0 %v1609
      %2138 = vmatpush.bf16.msra.mxu0 %v1607
      %2139 = vmatpush.bf16.msra.mxu0 %v1605
      %2140 = vmatpush.bf16.msra.mxu0 %v1603
      %2141 = vmatmul.bf16.gmra.mxu0 %v681
      %v2142 = vpop.f32.mrf.mxu0
      %v2143 = vadd.f32 %v2124, %v2142
      %v2144 = vpop.f32.mrf.mxu0
      %v2145 = vadd.f32 %v2126, %v2144
      %2146 = vmatmul.bf16.gmra.mxu0 %v697
      %v2147 = vpop.f32.mrf.mxu0
      %v2148 = vadd.f32 %v2129, %v2147
      %v2149 = vpop.f32.mrf.mxu0
      %v2150 = vadd.f32 %v2131, %v2149
      %2151 = vdwg.mxu0
      %2152 = vmatpush.bf16.msra.mxu0 %v1633
      %2153 = vmatpush.bf16.msra.mxu0 %v1631
      %2154 = vmatpush.bf16.msra.mxu0 %v1629
      %2155 = vmatpush.bf16.msra.mxu0 %v1627
      %2156 = vmatpush.bf16.msra.mxu0 %v1625
      %2157 = vmatpush.bf16.msra.mxu0 %v1623
      %2158 = vmatpush.bf16.msra.mxu0 %v1621
      %2159 = vmatpush.bf16.msra.mxu0 %v1619
      %2160 = vmatmul.bf16.gmra.mxu0 %v682
      %v2161 = vpop.f32.mrf.mxu0
      %v2162 = vadd.f32 %v2143, %v2161
      %v2163 = vpop.f32.mrf.mxu0
      %v2164 = vadd.f32 %v2145, %v2163
      %2165 = vmatmul.bf16.gmra.mxu0 %v698
      %v2166 = vpop.f32.mrf.mxu0
      %v2167 = vadd.f32 %v2148, %v2166
      %v2168 = vpop.f32.mrf.mxu0
      %v2169 = vadd.f32 %v2150, %v2168
      %2170 = vdwg.mxu0
      %2171 = vmatpush.bf16.msra.mxu0 %v1649
      %2172 = vmatpush.bf16.msra.mxu0 %v1647
      %2173 = vmatpush.bf16.msra.mxu0 %v1645
      %2174 = vmatpush.bf16.msra.mxu0 %v1643
      %2175 = vmatpush.bf16.msra.mxu0 %v1641
      %2176 = vmatpush.bf16.msra.mxu0 %v1639
      %2177 = vmatpush.bf16.msra.mxu0 %v1637
      %2178 = vmatpush.bf16.msra.mxu0 %v1635
      %2179 = vmatmul.bf16.gmra.mxu0 %v683
      %v2180 = vpop.f32.mrf.mxu0
      %v2181 = vadd.f32 %v2162, %v2180
      %v2182 = vpop.f32.mrf.mxu0
      %v2183 = vadd.f32 %v2164, %v2182
      %2184 = vmatmul.bf16.gmra.mxu0 %v699
      %v2185 = vpop.f32.mrf.mxu0
      %v2186 = vadd.f32 %v2167, %v2185
      %v2187 = vpop.f32.mrf.mxu0
      %v2188 = vadd.f32 %v2169, %v2187
      %2189 = vdwg.mxu0
      %2190 = vmatpush.bf16.msra.mxu0 %v1665
      %2191 = vmatpush.bf16.msra.mxu0 %v1663
      %2192 = vmatpush.bf16.msra.mxu0 %v1661
      %2193 = vmatpush.bf16.msra.mxu0 %v1659
      %2194 = vmatpush.bf16.msra.mxu0 %v1657
      %2195 = vmatpush.bf16.msra.mxu0 %v1655
      %2196 = vmatpush.bf16.msra.mxu0 %v1653
      %2197 = vmatpush.bf16.msra.mxu0 %v1651
      %2198 = vmatmul.bf16.gmra.mxu0 %v684
      %v2199 = vpop.f32.mrf.mxu0
      %v2200 = vadd.f32 %v2181, %v2199
      %v2201 = vpop.f32.mrf.mxu0
      %v2202 = vadd.f32 %v2183, %v2201
      %2203 = vmatmul.bf16.gmra.mxu0 %v700
      %v2204 = vpop.f32.mrf.mxu0
      %v2205 = vadd.f32 %v2186, %v2204
      %v2206 = vpop.f32.mrf.mxu0
      %v2207 = vadd.f32 %v2188, %v2206
      %2208 = vdwg.mxu0
      %2209 = vmatpush.bf16.msra.mxu0 %v1681
      %2210 = vmatpush.bf16.msra.mxu0 %v1679
      %2211 = vmatpush.bf16.msra.mxu0 %v1677
      %2212 = vmatpush.bf16.msra.mxu0 %v1675
      %2213 = vmatpush.bf16.msra.mxu0 %v1673
      %2214 = vmatpush.bf16.msra.mxu0 %v1671
      %2215 = vmatpush.bf16.msra.mxu0 %v1669
      %2216 = vmatpush.bf16.msra.mxu0 %v1667
      %2217 = vmatmul.bf16.gmra.mxu0 %v685
      %v2218 = vpop.f32.mrf.mxu0
      %v2219 = vadd.f32 %v2200, %v2218
      %v2220 = vpop.f32.mrf.mxu0
      %v2221 = vadd.f32 %v2202, %v2220
      %2222 = vmatmul.bf16.gmra.mxu0 %v701
      %v2223 = vpop.f32.mrf.mxu0
      %v2224 = vadd.f32 %v2205, %v2223
      %v2225 = vpop.f32.mrf.mxu0
      %v2226 = vadd.f32 %v2207, %v2225
      %2227 = vdwg.mxu0
      %2228 = vmatpush.bf16.msra.mxu0 %v1697
      %2229 = vmatpush.bf16.msra.mxu0 %v1695
      %2230 = vmatpush.bf16.msra.mxu0 %v1693
      %2231 = vmatpush.bf16.msra.mxu0 %v1691
      %2232 = vmatpush.bf16.msra.mxu0 %v1689
      %2233 = vmatpush.bf16.msra.mxu0 %v1687
      %2234 = vmatpush.bf16.msra.mxu0 %v1685
      %2235 = vmatpush.bf16.msra.mxu0 %v1683
      %2236 = vmatmul.bf16.gmra.mxu0 %v686
      %v2237 = vpop.f32.mrf.mxu0
      %v2238 = vadd.f32 %v2219, %v2237
      %v2239 = vpop.f32.mrf.mxu0
      %v2240 = vadd.f32 %v2221, %v2239
      %2241 = vmatmul.bf16.gmra.mxu0 %v702
      %v2242 = vpop.f32.mrf.mxu0
      %v2243 = vadd.f32 %v2224, %v2242
      %v2244 = vpop.f32.mrf.mxu0
      %v2245 = vadd.f32 %v2226, %v2244
      %2246 = vdwg.mxu0
      %2247 = vmatpush.bf16.msra.mxu0 %v1713
      %2248 = vmatpush.bf16.msra.mxu0 %v1711
      %2249 = vmatpush.bf16.msra.mxu0 %v1709
      %2250 = vmatpush.bf16.msra.mxu0 %v1707
      %2251 = vmatpush.bf16.msra.mxu0 %v1705
      %2252 = vmatpush.bf16.msra.mxu0 %v1703
      %2253 = vmatpush.bf16.msra.mxu0 %v1701
      %2254 = vmatpush.bf16.msra.mxu0 %v1699
      %2255 = vmatmul.bf16.gmra.mxu0 %v687
      %v2256 = vpop.f32.mrf.mxu0
      %v2257 = vadd.f32 %v2238, %v2256
      %v2258 = vpop.f32.mrf.mxu0
      %v2259 = vadd.f32 %v2240, %v2258
      %2260 = vmatmul.bf16.gmra.mxu0 %v703
      %v2261 = vpop.f32.mrf.mxu0
      %v2262 = vadd.f32 %v2243, %v2261
      %v2263 = vpop.f32.mrf.mxu0
      %v2264 = vadd.f32 %v2245, %v2263
      %2265 = vdwg.mxu0
      %2266 = vmatpush.bf16.msra.mxu0 %v1729
      %2267 = vmatpush.bf16.msra.mxu0 %v1727
      %2268 = vmatpush.bf16.msra.mxu0 %v1725
      %2269 = vmatpush.bf16.msra.mxu0 %v1723
      %2270 = vmatpush.bf16.msra.mxu0 %v1721
      %2271 = vmatpush.bf16.msra.mxu0 %v1719
      %2272 = vmatpush.bf16.msra.mxu0 %v1717
      %2273 = vmatpush.bf16.msra.mxu0 %v1715
      %2274 = vmatmul.bf16.gmra.mxu0 %v688
      %v2275 = vpop.f32.mrf.mxu0
      %v2276 = vadd.f32 %v2257, %v2275
      %v2277 = vpop.f32.mrf.mxu0
      %v2278 = vadd.f32 %v2259, %v2277
      %2279 = vmatmul.bf16.gmra.mxu0 %v704
      %v2280 = vpop.f32.mrf.mxu0
      %v2281 = vadd.f32 %v2262, %v2280
      %v2282 = vpop.f32.mrf.mxu0
      %v2283 = vadd.f32 %v2264, %v2282
      %2284 = vdwg.mxu0
      %2285 = vmatpush.bf16.msra.mxu0 %v1745
      %2286 = vmatpush.bf16.msra.mxu0 %v1743
      %2287 = vmatpush.bf16.msra.mxu0 %v1741
      %2288 = vmatpush.bf16.msra.mxu0 %v1739
      %2289 = vmatpush.bf16.msra.mxu0 %v1737
      %2290 = vmatpush.bf16.msra.mxu0 %v1735
      %2291 = vmatpush.bf16.msra.mxu0 %v1733
      %2292 = vmatpush.bf16.msra.mxu0 %v1731
      %2293 = vmatmul.bf16.gmra.mxu0 %v689
      %v2294 = vpop.f32.mrf.mxu0
      %v2295 = vadd.f32 %v2276, %v2294
      %v2296 = vpop.f32.mrf.mxu0
      %v2297 = vadd.f32 %v2278, %v2296
      %2298 = vmatmul.bf16.gmra.mxu0 %v705
      %v2299 = vpop.f32.mrf.mxu0
      %v2300 = vadd.f32 %v2281, %v2299
      %v2301 = vpop.f32.mrf.mxu0
      %v2302 = vadd.f32 %v2283, %v2301
      %2303 = vdwg.mxu0
      %2304 = vmatpush.bf16.msra.mxu0 %v1761
      %2305 = vmatpush.bf16.msra.mxu0 %v1759
      %2306 = vmatpush.bf16.msra.mxu0 %v1757
      %2307 = vmatpush.bf16.msra.mxu0 %v1755
      %2308 = vmatpush.bf16.msra.mxu0 %v1753
      %2309 = vmatpush.bf16.msra.mxu0 %v1751
      %2310 = vmatpush.bf16.msra.mxu0 %v1749
      %2311 = vmatpush.bf16.msra.mxu0 %v1747
      %2312 = vmatmul.bf16.gmra.mxu0 %v690
      %v2313 = vpop.f32.mrf.mxu0
      %v2314 = vadd.f32 %v2295, %v2313
      %v2315 = vpop.f32.mrf.mxu0
      %v2316 = vadd.f32 %v2297, %v2315
      %2317 = vmatmul.bf16.gmra.mxu0 %v706
      %v2318 = vpop.f32.mrf.mxu0
      %v2319 = vadd.f32 %v2300, %v2318
      %v2320 = vpop.f32.mrf.mxu0
      %v2321 = vadd.f32 %v2302, %v2320
      %2322 = vdwg.mxu0
      %2323 = vmatpush.bf16.msra.mxu0 %v1522
      %2324 = vmatpush.bf16.msra.mxu0 %v1520
      %2325 = vmatpush.bf16.msra.mxu0 %v1518
      %2326 = vmatpush.bf16.msra.mxu0 %v1516
      %2327 = vmatpush.bf16.msra.mxu0 %v1514
      %2328 = vmatpush.bf16.msra.mxu0 %v1512
      %2329 = vmatpush.bf16.msra.mxu0 %v1510
      %2330 = vmatpush.bf16.msra.mxu0 %v1508
      %2331 = vmatmul.bf16.gmra.mxu0 %v675
      %v2332 = vpop.f32.mrf.mxu0
      %v2333 = vadd.f32 %v576, %v2332
      %v2334 = vpop.f32.mrf.mxu0
      %v2335 = vadd.f32 %v576, %v2334
      %2336 = vmatmul.bf16.gmra.mxu0 %v691
      %v2337 = vpop.f32.mrf.mxu0
      %v2338 = vadd.f32 %v576, %v2337
      %v2339 = vpop.f32.mrf.mxu0
      %v2340 = vadd.f32 %v576, %v2339
      %2341 = vdwg.mxu0
      %2342 = vmatpush.bf16.msra.mxu0 %v1538
      %2343 = vmatpush.bf16.msra.mxu0 %v1536
      %2344 = vmatpush.bf16.msra.mxu0 %v1534
      %2345 = vmatpush.bf16.msra.mxu0 %v1532
      %2346 = vmatpush.bf16.msra.mxu0 %v1530
      %2347 = vmatpush.bf16.msra.mxu0 %v1528
      %2348 = vmatpush.bf16.msra.mxu0 %v1526
      %2349 = vmatpush.bf16.msra.mxu0 %v1524
      %2350 = vmatmul.bf16.gmra.mxu0 %v676
      %v2351 = vpop.f32.mrf.mxu0
      %v2352 = vadd.f32 %v2333, %v2351
      %v2353 = vpop.f32.mrf.mxu0
      %v2354 = vadd.f32 %v2335, %v2353
      %2355 = vmatmul.bf16.gmra.mxu0 %v692
      %v2356 = vpop.f32.mrf.mxu0
      %v2357 = vadd.f32 %v2338, %v2356
      %v2358 = vpop.f32.mrf.mxu0
      %v2359 = vadd.f32 %v2340, %v2358
      %2360 = vdwg.mxu0
      %2361 = vmatpush.bf16.msra.mxu0 %v1554
      %2362 = vmatpush.bf16.msra.mxu0 %v1552
      %2363 = vmatpush.bf16.msra.mxu0 %v1550
      %2364 = vmatpush.bf16.msra.mxu0 %v1548
      %2365 = vmatpush.bf16.msra.mxu0 %v1546
      %2366 = vmatpush.bf16.msra.mxu0 %v1544
      %2367 = vmatpush.bf16.msra.mxu0 %v1542
      %2368 = vmatpush.bf16.msra.mxu0 %v1540
      %2369 = vmatmul.bf16.gmra.mxu0 %v677
      %v2370 = vpop.f32.mrf.mxu0
      %v2371 = vadd.f32 %v2352, %v2370
      %v2372 = vpop.f32.mrf.mxu0
      %v2373 = vadd.f32 %v2354, %v2372
      %2374 = vmatmul.bf16.gmra.mxu0 %v693
      %v2375 = vpop.f32.mrf.mxu0
      %v2376 = vadd.f32 %v2357, %v2375
      %v2377 = vpop.f32.mrf.mxu0
      %v2378 = vadd.f32 %v2359, %v2377
      %2379 = vdwg.mxu0
      %2380 = vmatpush.bf16.msra.mxu0 %v1570
      %2381 = vmatpush.bf16.msra.mxu0 %v1568
      %2382 = vmatpush.bf16.msra.mxu0 %v1566
      %2383 = vmatpush.bf16.msra.mxu0 %v1564
      %2384 = vmatpush.bf16.msra.mxu0 %v1562
      %2385 = vmatpush.bf16.msra.mxu0 %v1560
      %2386 = vmatpush.bf16.msra.mxu0 %v1558
      %2387 = vmatpush.bf16.msra.mxu0 %v1556
      %2388 = vmatmul.bf16.gmra.mxu0 %v678
      %v2389 = vpop.f32.mrf.mxu0
      %v2390 = vadd.f32 %v2371, %v2389
      %v2391 = vpop.f32.mrf.mxu0
      %v2392 = vadd.f32 %v2373, %v2391
      %2393 = vmatmul.bf16.gmra.mxu0 %v694
      %v2394 = vpop.f32.mrf.mxu0
      %v2395 = vadd.f32 %v2376, %v2394
      %v2396 = vpop.f32.mrf.mxu0
      %v2397 = vadd.f32 %v2378, %v2396
      %2398 = vdwg.mxu0
      %2399 = vmatpush.bf16.msra.mxu0 %v1586
      %2400 = vmatpush.bf16.msra.mxu0 %v1584
      %2401 = vmatpush.bf16.msra.mxu0 %v1582
      %2402 = vmatpush.bf16.msra.mxu0 %v1580
      %2403 = vmatpush.bf16.msra.mxu0 %v1578
      %2404 = vmatpush.bf16.msra.mxu0 %v1576
      %2405 = vmatpush.bf16.msra.mxu0 %v1574
      %2406 = vmatpush.bf16.msra.mxu0 %v1572
      %2407 = vmatmul.bf16.gmra.mxu0 %v679
      %v2408 = vpop.f32.mrf.mxu0
      %v2409 = vadd.f32 %v2390, %v2408
      %v2410 = vpop.f32.mrf.mxu0
      %v2411 = vadd.f32 %v2392, %v2410
      %2412 = vmatmul.bf16.gmra.mxu0 %v695
      %v2413 = vpop.f32.mrf.mxu0
      %v2414 = vadd.f32 %v2395, %v2413
      %v2415 = vpop.f32.mrf.mxu0
      %v2416 = vadd.f32 %v2397, %v2415
      %2417 = vdwg.mxu0
      %2418 = vmatpush.bf16.msra.mxu0 %v1602
      %2419 = vmatpush.bf16.msra.mxu0 %v1600
      %2420 = vmatpush.bf16.msra.mxu0 %v1598
      %2421 = vmatpush.bf16.msra.mxu0 %v1596
      %2422 = vmatpush.bf16.msra.mxu0 %v1594
      %2423 = vmatpush.bf16.msra.mxu0 %v1592
      %2424 = vmatpush.bf16.msra.mxu0 %v1590
      %2425 = vmatpush.bf16.msra.mxu0 %v1588
      %2426 = vmatmul.bf16.gmra.mxu0 %v680
      %v2427 = vpop.f32.mrf.mxu0
      %v2428 = vadd.f32 %v2409, %v2427
      %v2429 = vpop.f32.mrf.mxu0
      %v2430 = vadd.f32 %v2411, %v2429
      %2431 = vmatmul.bf16.gmra.mxu0 %v696
      %v2432 = vpop.f32.mrf.mxu0
      %v2433 = vadd.f32 %v2414, %v2432
      %v2434 = vpop.f32.mrf.mxu0
      %v2435 = vadd.f32 %v2416, %v2434
      %2436 = vdwg.mxu0
      %2437 = vmatpush.bf16.msra.mxu0 %v1618
      %2438 = vmatpush.bf16.msra.mxu0 %v1616
      %2439 = vmatpush.bf16.msra.mxu0 %v1614
      %2440 = vmatpush.bf16.msra.mxu0 %v1612
      %2441 = vmatpush.bf16.msra.mxu0 %v1610
      %2442 = vmatpush.bf16.msra.mxu0 %v1608
      %2443 = vmatpush.bf16.msra.mxu0 %v1606
      %2444 = vmatpush.bf16.msra.mxu0 %v1604
      %2445 = vmatmul.bf16.gmra.mxu0 %v681
      %v2446 = vpop.f32.mrf.mxu0
      %v2447 = vadd.f32 %v2428, %v2446
      %v2448 = vpop.f32.mrf.mxu0
      %v2449 = vadd.f32 %v2430, %v2448
      %2450 = vmatmul.bf16.gmra.mxu0 %v697
      %v2451 = vpop.f32.mrf.mxu0
      %v2452 = vadd.f32 %v2433, %v2451
      %v2453 = vpop.f32.mrf.mxu0
      %v2454 = vadd.f32 %v2435, %v2453
      %2455 = vdwg.mxu0
      %2456 = vmatpush.bf16.msra.mxu0 %v1634
      %2457 = vmatpush.bf16.msra.mxu0 %v1632
      %2458 = vmatpush.bf16.msra.mxu0 %v1630
      %2459 = vmatpush.bf16.msra.mxu0 %v1628
      %2460 = vmatpush.bf16.msra.mxu0 %v1626
      %2461 = vmatpush.bf16.msra.mxu0 %v1624
      %2462 = vmatpush.bf16.msra.mxu0 %v1622
      %2463 = vmatpush.bf16.msra.mxu0 %v1620
      %2464 = vmatmul.bf16.gmra.mxu0 %v682
      %v2465 = vpop.f32.mrf.mxu0
      %v2466 = vadd.f32 %v2447, %v2465
      %v2467 = vpop.f32.mrf.mxu0
      %v2468 = vadd.f32 %v2449, %v2467
      %2469 = vmatmul.bf16.gmra.mxu0 %v698
      %v2470 = vpop.f32.mrf.mxu0
      %v2471 = vadd.f32 %v2452, %v2470
      %v2472 = vpop.f32.mrf.mxu0
      %v2473 = vadd.f32 %v2454, %v2472
      %2474 = vdwg.mxu0
      %2475 = vmatpush.bf16.msra.mxu0 %v1650
      %2476 = vmatpush.bf16.msra.mxu0 %v1648
      %2477 = vmatpush.bf16.msra.mxu0 %v1646
      %2478 = vmatpush.bf16.msra.mxu0 %v1644
      %2479 = vmatpush.bf16.msra.mxu0 %v1642
      %2480 = vmatpush.bf16.msra.mxu0 %v1640
      %2481 = vmatpush.bf16.msra.mxu0 %v1638
      %2482 = vmatpush.bf16.msra.mxu0 %v1636
      %2483 = vmatmul.bf16.gmra.mxu0 %v683
      %v2484 = vpop.f32.mrf.mxu0
      %v2485 = vadd.f32 %v2466, %v2484
      %v2486 = vpop.f32.mrf.mxu0
      %v2487 = vadd.f32 %v2468, %v2486
      %2488 = vmatmul.bf16.gmra.mxu0 %v699
      %v2489 = vpop.f32.mrf.mxu0
      %v2490 = vadd.f32 %v2471, %v2489
      %v2491 = vpop.f32.mrf.mxu0
      %v2492 = vadd.f32 %v2473, %v2491
      %2493 = vdwg.mxu0
      %2494 = vmatpush.bf16.msra.mxu0 %v1666
      %2495 = vmatpush.bf16.msra.mxu0 %v1664
      %2496 = vmatpush.bf16.msra.mxu0 %v1662
      %2497 = vmatpush.bf16.msra.mxu0 %v1660
      %2498 = vmatpush.bf16.msra.mxu0 %v1658
      %2499 = vmatpush.bf16.msra.mxu0 %v1656
      %2500 = vmatpush.bf16.msra.mxu0 %v1654
      %2501 = vmatpush.bf16.msra.mxu0 %v1652
      %2502 = vmatmul.bf16.gmra.mxu0 %v684
      %v2503 = vpop.f32.mrf.mxu0
      %v2504 = vadd.f32 %v2485, %v2503
      %v2505 = vpop.f32.mrf.mxu0
      %v2506 = vadd.f32 %v2487, %v2505
      %2507 = vmatmul.bf16.gmra.mxu0 %v700
      %v2508 = vpop.f32.mrf.mxu0
      %v2509 = vadd.f32 %v2490, %v2508
      %v2510 = vpop.f32.mrf.mxu0
      %v2511 = vadd.f32 %v2492, %v2510
      %2512 = vdwg.mxu0
      %2513 = vmatpush.bf16.msra.mxu0 %v1682
      %2514 = vmatpush.bf16.msra.mxu0 %v1680
      %2515 = vmatpush.bf16.msra.mxu0 %v1678
      %2516 = vmatpush.bf16.msra.mxu0 %v1676
      %2517 = vmatpush.bf16.msra.mxu0 %v1674
      %2518 = vmatpush.bf16.msra.mxu0 %v1672
      %2519 = vmatpush.bf16.msra.mxu0 %v1670
      %2520 = vmatpush.bf16.msra.mxu0 %v1668
      %2521 = vmatmul.bf16.gmra.mxu0 %v685
      %v2522 = vpop.f32.mrf.mxu0
      %v2523 = vadd.f32 %v2504, %v2522
      %v2524 = vpop.f32.mrf.mxu0
      %v2525 = vadd.f32 %v2506, %v2524
      %2526 = vmatmul.bf16.gmra.mxu0 %v701
      %v2527 = vpop.f32.mrf.mxu0
      %v2528 = vadd.f32 %v2509, %v2527
      %v2529 = vpop.f32.mrf.mxu0
      %v2530 = vadd.f32 %v2511, %v2529
      %2531 = vdwg.mxu0
      %2532 = vmatpush.bf16.msra.mxu0 %v1698
      %2533 = vmatpush.bf16.msra.mxu0 %v1696
      %2534 = vmatpush.bf16.msra.mxu0 %v1694
      %2535 = vmatpush.bf16.msra.mxu0 %v1692
      %2536 = vmatpush.bf16.msra.mxu0 %v1690
      %2537 = vmatpush.bf16.msra.mxu0 %v1688
      %2538 = vmatpush.bf16.msra.mxu0 %v1686
      %2539 = vmatpush.bf16.msra.mxu0 %v1684
      %2540 = vmatmul.bf16.gmra.mxu0 %v686
      %v2541 = vpop.f32.mrf.mxu0
      %v2542 = vadd.f32 %v2523, %v2541
      %v2543 = vpop.f32.mrf.mxu0
      %v2544 = vadd.f32 %v2525, %v2543
      %2545 = vmatmul.bf16.gmra.mxu0 %v702
      %v2546 = vpop.f32.mrf.mxu0
      %v2547 = vadd.f32 %v2528, %v2546
      %v2548 = vpop.f32.mrf.mxu0
      %v2549 = vadd.f32 %v2530, %v2548
      %2550 = vdwg.mxu0
      %2551 = vmatpush.bf16.msra.mxu0 %v1714
      %2552 = vmatpush.bf16.msra.mxu0 %v1712
      %2553 = vmatpush.bf16.msra.mxu0 %v1710
      %2554 = vmatpush.bf16.msra.mxu0 %v1708
      %2555 = vmatpush.bf16.msra.mxu0 %v1706
      %2556 = vmatpush.bf16.msra.mxu0 %v1704
      %2557 = vmatpush.bf16.msra.mxu0 %v1702
      %2558 = vmatpush.bf16.msra.mxu0 %v1700
      %2559 = vmatmul.bf16.gmra.mxu0 %v687
      %v2560 = vpop.f32.mrf.mxu0
      %v2561 = vadd.f32 %v2542, %v2560
      %v2562 = vpop.f32.mrf.mxu0
      %v2563 = vadd.f32 %v2544, %v2562
      %2564 = vmatmul.bf16.gmra.mxu0 %v703
      %v2565 = vpop.f32.mrf.mxu0
      %v2566 = vadd.f32 %v2547, %v2565
      %v2567 = vpop.f32.mrf.mxu0
      %v2568 = vadd.f32 %v2549, %v2567
      %2569 = vdwg.mxu0
      %2570 = vmatpush.bf16.msra.mxu0 %v1730
      %2571 = vmatpush.bf16.msra.mxu0 %v1728
      %2572 = vmatpush.bf16.msra.mxu0 %v1726
      %2573 = vmatpush.bf16.msra.mxu0 %v1724
      %2574 = vmatpush.bf16.msra.mxu0 %v1722
      %2575 = vmatpush.bf16.msra.mxu0 %v1720
      %2576 = vmatpush.bf16.msra.mxu0 %v1718
      %2577 = vmatpush.bf16.msra.mxu0 %v1716
      %2578 = vmatmul.bf16.gmra.mxu0 %v688
      %v2579 = vpop.f32.mrf.mxu0
      %v2580 = vadd.f32 %v2561, %v2579
      %v2581 = vpop.f32.mrf.mxu0
      %v2582 = vadd.f32 %v2563, %v2581
      %2583 = vmatmul.bf16.gmra.mxu0 %v704
      %v2584 = vpop.f32.mrf.mxu0
      %v2585 = vadd.f32 %v2566, %v2584
      %v2586 = vpop.f32.mrf.mxu0
      %v2587 = vadd.f32 %v2568, %v2586
      %2588 = vdwg.mxu0
      %2589 = vmatpush.bf16.msra.mxu0 %v1746
      %2590 = vmatpush.bf16.msra.mxu0 %v1744
      %2591 = vmatpush.bf16.msra.mxu0 %v1742
      %2592 = vmatpush.bf16.msra.mxu0 %v1740
      %2593 = vmatpush.bf16.msra.mxu0 %v1738
      %2594 = vmatpush.bf16.msra.mxu0 %v1736
      %2595 = vmatpush.bf16.msra.mxu0 %v1734
      %2596 = vmatpush.bf16.msra.mxu0 %v1732
      %2597 = vmatmul.bf16.gmra.mxu0 %v689
      %v2598 = vpop.f32.mrf.mxu0
      %v2599 = vadd.f32 %v2580, %v2598
      %v2600 = vpop.f32.mrf.mxu0
      %v2601 = vadd.f32 %v2582, %v2600
      %2602 = vmatmul.bf16.gmra.mxu0 %v705
      %v2603 = vpop.f32.mrf.mxu0
      %v2604 = vadd.f32 %v2585, %v2603
      %v2605 = vpop.f32.mrf.mxu0
      %v2606 = vadd.f32 %v2587, %v2605
      %2607 = vdwg.mxu0
      %2608 = vmatpush.bf16.msra.mxu0 %v1762
      %2609 = vmatpush.bf16.msra.mxu0 %v1760
      %2610 = vmatpush.bf16.msra.mxu0 %v1758
      %2611 = vmatpush.bf16.msra.mxu0 %v1756
      %2612 = vmatpush.bf16.msra.mxu0 %v1754
      %2613 = vmatpush.bf16.msra.mxu0 %v1752
      %2614 = vmatpush.bf16.msra.mxu0 %v1750
      %2615 = vmatpush.bf16.msra.mxu0 %v1748
      %2616 = vmatmul.bf16.gmra.mxu0 %v690
      %v2617 = vpop.f32.mrf.mxu0
      %v2618 = vadd.f32 %v2599, %v2617
      %v2619 = vpop.f32.mrf.mxu0
      %v2620 = vadd.f32 %v2601, %v2619
      %2621 = vmatmul.bf16.gmra.mxu0 %v706
      %v2622 = vpop.f32.mrf.mxu0
      %v2623 = vadd.f32 %v2604, %v2622
      %v2624 = vpop.f32.mrf.mxu0
      %v2625 = vadd.f32 %v2606, %v2624
      %2626 = vdwg.mxu0
      %vm2627 = vcmp.gt.f32.partialorder %v2314, 0.0
      %vm2628 = vcmp.gt.f32.partialorder %v2618, 0.0
      %vm2629 = vcmp.gt.f32.partialorder %v2316, 0.0
      %vm2630 = vcmp.gt.f32.partialorder %v2620, 0.0
      %vm2631 = vcmp.gt.f32.partialorder %v2319, 0.0
      %vm2632 = vcmp.gt.f32.partialorder %v2623, 0.0
      %vm2633 = vcmp.gt.f32.partialorder %v2321, 0.0
      %vm2634 = vcmp.gt.f32.partialorder %v2625, 0.0
      %v2635 = vmul.f32 %v2314, 0.01
      %v2636 = vmul.f32 %v2618, 0.01
      %v2637 = vmul.f32 %v2316, 0.01
      %v2638 = vmul.f32 %v2620, 0.01
      %v2639 = vmul.f32 %v2319, 0.01
      %v2640 = vmul.f32 %v2623, 0.01
      %v2641 = vmul.f32 %v2321, 0.01
      %v2642 = vmul.f32 %v2625, 0.01
      %v2643 = vsel %vm2627, %v2314, %v2635
      %v2644 = vsel %vm2628, %v2618, %v2636
      %v2645 = vsel %vm2629, %v2316, %v2637
      %v2646 = vsel %vm2630, %v2620, %v2638
      %v2647 = vsel %vm2631, %v2319, %v2639
      %v2648 = vsel %vm2632, %v2623, %v2640
      %v2649 = vsel %vm2633, %v2321, %v2641
      %v2650 = vsel %vm2634, %v2625, %v2642
      %v2651 = vpack.c.bf16 %v2644, %v2643
      %v2652 = vpack.c.bf16 %v2646, %v2645
      %v2653 = vpack.c.bf16 %v2648, %v2647
      %v2654 = vpack.c.bf16 %v2650, %v2649
      %2655 = vst [vmem:[%s274] sm:$0xff] %v2651
      %2656 = vst [vmem:[%s274 + $0x8] sm:$0xff] %v2652
      %2657 = vst [vmem:[%s274 + $0x10] sm:$0xff] %v2653
      %2658 = vst [vmem:[%s274 + $0x18] sm:$0xff] %v2654
      %v2659 = vadd.f32 %v2643, %v2645
      %v2660 = vadd.f32 %v2659, %v2647
      %v2661 = vadd.f32 %v2660, %v2649
      %v2662 = vrot.slane %v2661, 4
      %v2663 = vadd.f32 %v2661, %v2662
      %v2664 = vrot.slane %v2663, 2
      %v2665 = vadd.f32 %v2663, %v2664
      %v2666 = vrot.slane %v2665, 1
      %v2667 = vadd.f32 %v2665, %v2666
      %v2668 = vadd.f32 %v2644, %v2646
      %v2669 = vadd.f32 %v2668, %v2648
      %v2670 = vadd.f32 %v2669, %v2650
      %v2671 = vrot.slane %v2670, 4
      %v2672 = vadd.f32 %v2670, %v2671
      %v2673 = vrot.slane %v2672, 2
      %v2674 = vadd.f32 %v2672, %v2673
      %v2675 = vrot.slane %v2674, 1
      %v2676 = vadd.f32 %v2674, %v2675
      %v2677 = vmul.f32 %v2643, %v2643
      %v2678 = vmul.f32 %v2644, %v2644
      %v2679 = vmul.f32 %v2645, %v2645
      %v2680 = vmul.f32 %v2646, %v2646
      %v2681 = vmul.f32 %v2647, %v2647
      %v2682 = vmul.f32 %v2648, %v2648
      %v2683 = vmul.f32 %v2649, %v2649
      %v2684 = vmul.f32 %v2650, %v2650
      %v2685 = vadd.f32 %v2677, %v2679
      %v2686 = vadd.f32 %v2685, %v2681
      %v2687 = vadd.f32 %v2686, %v2683
      %v2688 = vrot.slane %v2687, 4
      %v2689 = vadd.f32 %v2687, %v2688
      %v2690 = vrot.slane %v2689, 2
      %v2691 = vadd.f32 %v2689, %v2690
      %v2692 = vrot.slane %v2691, 1
      %v2693 = vadd.f32 %v2691, %v2692
      %v2694 = vadd.f32 %v2678, %v2680
      %v2695 = vadd.f32 %v2694, %v2682
      %v2696 = vadd.f32 %v2695, %v2684
      %v2697 = vrot.slane %v2696, 4
      %v2698 = vadd.f32 %v2696, %v2697
      %v2699 = vrot.slane %v2698, 2
      %v2700 = vadd.f32 %v2698, %v2699
      %v2701 = vrot.slane %v2700, 1
      %v2702 = vadd.f32 %v2700, %v2701
      %vm2703 = vcmask 1040384
      %v2704 = vsel %vm2703, %v2667, %v2693
      %v2705 = vsel %vm2703, %v2676, %v2702
      %v2708 = vrot.slane %v2705, 6
      %vm2709 = vcmask 1041408
      %v2710 = vsel %vm2709, %v2704, %v2708
      %2712 = vst [vmem:[%s284] sm:$0xf] %v2710
      %s2713 = smul.u32 4, %s21
      %p2714 = scmp.lt.s32.totalorder %s20, 3
      %s2715 = scalar_select %p2714, %s20, 3
      %p2716 = scmp.lt.s32.totalorder %s2713, 3
      %s2717 = scalar_select %p2716, %s2713, 3
      %s2718 = smul.addr %s2717, 2
      %s2719 = smul.addr %s2715, 8
      %s2720 = sadd.s32 %s2718, %s2719
      %s2721 = smul.addr %s2720, 4
      %s2722 = scalar_lea.vmem %s3, %s2721
      %p2723 = scmp.lt.s32.totalorder %s20, 3
      %s2724 = scalar_select %p2723, %s20, 3
      %p2725 = scmp.lt.s32.totalorder %s21, 0
      %s2726 = scalar_select %p2725, %s21, 0
      %s2727 = smul.addr %s2726, 2
      %s2728 = smul.addr %s2724, 2
      %s2729 = sadd.s32 %s2727, %s2728
      %s2730 = smul.addr %s2729, 2
      %s2731 = scalar_lea.vmem %s4, %s2730
      // Predicated region
      $region33: #{generator32_forward.5} parent=31 // pred_check
        %p2732 = pneg %p123
      $region34: #{generator32_forward.5} parent=31 // pred_check_branch
        %2734 = sbr.rel (%p2732) target = $region36
      $region35: #{generator32_forward.5} parent=31 // pred_region
        %s2735 = smul.u32 4, %s21
      $region36: #{generator32_forward.5} parent=31 // pred_fallthru
        _
      // Predicated region
      $region37: #{generator32_forward.5} parent=31 // pred_check
        %p2736 = pneg %p151
      $region38: #{generator32_forward.5} parent=31 // pred_check_branch
        %2738 = sbr.rel (%p2736) target = $region40
      $region39: #{generator32_forward.5} parent=31 // pred_region
        _
      $region40: #{generator32_forward.5} parent=31 // pred_fallthru
        _
    $region32: #{generator32_forward.5} parent=5 // pred_fallthru
      _
    %p2739 = scmp.le.s32.totalorder 2, %s11
    // Predicated region
    $region41: #{generator32_forward.5} parent=5 // pred_check
      %p2740 = pneg %p2739
    $region42: #{generator32_forward.5} parent=5 // pred_check_branch
      %2742 = sbr.rel (%p2740) target = $region44
    $region43: #{generator32_forward.5} parent=5 // pred_region
      %s2743 = ssub.s32 %s11, 2
      // Predicated region
      $region45: #{generator32_forward.5} parent=43 // pred_check
        %p2744 = pneg %p129
      $region46: #{generator32_forward.5} parent=43 // pred_check_branch
        %2746 = sbr.rel (%p2744) target = $region48
      $region47: #{generator32_forward.5} parent=43 // pred_region
        %s2747 = smul.u32 4, %s23
        %p2748 = scmp.lt.s32.totalorder %s22, 3
        %s2749 = scalar_select %p2748, %s22, 3
        %p2750 = scmp.lt.s32.totalorder %s2747, 3
        %s2751 = scalar_select %p2750, %s2747, 3
        %s2752 = smul.addr %s2751, 2
        %s2753 = smul.addr %s2749, 8
        %s2754 = sadd.s32 %s2752, %s2753
        %s2755 = smul.addr %s2754, 4
        %s2756 = scalar_lea.vmem %s3, %s2755
      $region48: #{generator32_forward.5} parent=43 // pred_fallthru
        _
      // Predicated region
      $region49: #{generator32_forward.5} parent=43 // pred_check
        %p2757 = pneg %p157
      $region50: #{generator32_forward.5} parent=43 // pred_check_branch
        %2759 = sbr.rel (%p2757) target = $region52
      $region51: #{generator32_forward.5} parent=43 // pred_region
        %p2760 = scmp.lt.s32.totalorder %s22, 3
        %s2761 = scalar_select %p2760, %s22, 3
        %p2762 = scmp.lt.s32.totalorder %s23, 0
        %s2763 = scalar_select %p2762, %s23, 0
        %s2764 = smul.addr %s2763, 2
        %s2765 = smul.addr %s2761, 2
        %s2766 = sadd.s32 %s2764, %s2765
        %s2767 = smul.addr %s2766, 2
        %s2768 = scalar_lea.vmem %s4, %s2767
      $region52: #{generator32_forward.5} parent=43 // pred_fallthru
        _
    $region44: #{generator32_forward.5} parent=5 // pred_fallthru
      _
  $region6: #{generator32_forward.5} parent=0 // loop_footer
    %s15 = sadd.s32 1, %s11
  $region7: #{generator32_forward.5} parent=0 // loop_footer_branch
    %10 = sbr.rel target = $region3
  $region8: #{generator32_forward.5} parent=0 // loop_exit
    _

// kernel: generator32_forward.4
$region0: #{generator32_forward.4}
  #allocation0 [shape = 'u32[]', space=smem, size = 0x4, offset = 0x4, fixed_abs, tag = 'smem constant byte address 0x4 - core index']
  #allocation1 [shape = 'u32[72,128]{1,0:T(1,128)}', space=vmem, size = 0x9000, scoped, tag = 'internal scratch']
  %s0 = inlined_call_operand.vmem [shape: bf16[4,8,2048], index: 0, kind: input, shape index: {}]
  %s1 = inlined_call_operand.vmem [shape: bf16[4,2048,512], index: 1, kind: input, shape index: {}]
  %s2 = inlined_call_operand.vmem [shape: f32[1,512], index: 2, kind: input, shape index: {}]
  %s3 = inlined_call_operand.vmem [shape: bf16[4,8,512], index: 3, kind: output, shape index: {0}]
  %s4 = inlined_call_operand.vmem [shape: f32[4,1,2,512], index: 4, kind: output, shape index: {1}]
  %5 = xla_tuple %s3, %s4
  %s6 = sld [smem:[#allocation0]]
  $region53: #{generator32_forward.4} parent=0
    _
  %s8 = ssub.s32 1, %s6
  %s9 = scalar_select 0, %s8, %s6
  loop: start=0, step=1, limit=6
  $region2: #{generator32_forward.4} parent=0 // loop_pre_header
    _
  $region3: #{generator32_forward.4} parent=0 // loop_header
    %s11 = sphi 0, %s15
    %p12 = scmp.ge.s32.totalorder %s11, 6
    %s18 = sphi 0, %s30
    %s19 = sphi 0, %s26
    %s20 = sphi 0, %s18
    %s21 = sphi 0, %s19
    %s22 = sphi 0, %s20
    %s23 = sphi 0, %s21
    %s35 = sphi 0, %s37
    %s38 = sphi 0, %s35
    %s39 = sphi 0, %s38
    %s55 = sphi 0, %s39
    %s61 = sphi 0, %s63
    %s64 = sphi 0, %s61
    %s65 = sphi 0, %s64
    %s81 = sphi 0, %s65
    %s85 = sphi 0, %s85
    %s87 = sphi 0, %s85
    %s88 = sphi 0, %s87
    %s102 = sphi 0, %s88
    %s110 = sphi 0, %s112
    %s113 = sphi 0, %s110
    %s114 = sphi 0, %s113
    %s130 = sphi 0, %s114
    %s138 = sphi 0, %s140
    %s141 = sphi 0, %s138
    %s142 = sphi 0, %s141
    %s158 = sphi 0, %s142
  $region4: #{generator32_forward.4} parent=0 // loop_header_branch
    %14 = sbr.rel (%p12) target = $region8
  $region5: #{generator32_forward.4} parent=0 // loop_body
    %s16 = ssub.s32 %s11, 1
    %s17 = ssub.s32 %s11, 2
    %s24 = sadd.s32 1, %s19
    %p25 = scmp.ge.s32.totalorder %s24, 1
    %s26 = scalar_select %p25, 0, %s24
    %s27 = sadd.s32 1, %s18
    %s28 = scalar_select %p25, %s27, %s18
    %p29 = scmp.ge.s32.totalorder %s28, 4
    %s30 = scalar_select %p29, 0, %s28
    %s31 = ssub.s32 %s18, %s30
    %s32 = ssub.s32 %s19, %s26
    %s33 = sor.u32 %s31, %s32
    %p34 = scmp.eq.s32.totalorder %s33, 0
    %s36 = sadd.s32 %s35, 1
    %s37 = scalar_select %p34, %s35, %s36
    %p40 = pneg %p34
    %p41 = scmp.eq.s32.totalorder %s11, 3
    %p42 = por %p40, %p41
    %p43 = scmp.ne.s32.totalorder %s35, %s38
    %p44 = scmp.eq.s32.totalorder %s11, 0
    %p45 = por %p43, %p44
    %p46 = scmp.ne.s32.totalorder %s35, %s38
    %p47 = scmp.eq.s32.totalorder %s16, 3
    %p48 = por %p46, %p47
    %p49 = scmp.ne.s32.totalorder %s38, %s39
    %p50 = scmp.eq.s32.totalorder %s16, 0
    %p51 = por %p49, %p50
    %p52 = scmp.ne.s32.totalorder %s38, %s39
    %p53 = scmp.eq.s32.totalorder %s17, 3
    %p54 = por %p52, %p53
    %p56 = scmp.ne.s32.totalorder %s39, %s55
    %p57 = scmp.eq.s32.totalorder %s17, 0
    %p58 = por %p56, %p57
    %s59 = ssub.s32 %s18, %s30
    %p60 = scmp.eq.s32.totalorder %s59, 0
    %s62 = sadd.s32 %s61, 1
    %s63 = scalar_select %p60, %s61, %s62
    %p66 = pneg %p60
    %p67 = scmp.eq.s32.totalorder %s11, 3
    %p68 = por %p66, %p67
    %p69 = scmp.ne.s32.totalorder %s61, %s64
    %p70 = scmp.eq.s32.totalorder %s11, 0
    %p71 = por %p69, %p70
    %p72 = scmp.ne.s32.totalorder %s61, %s64
    %p73 = scmp.eq.s32.totalorder %s16, 3
    %p74 = por %p72, %p73
    %p75 = scmp.ne.s32.totalorder %s64, %s65
    %p76 = scmp.eq.s32.totalorder %s16, 0
    %p77 = por %p75, %p76
    %p78 = scmp.ne.s32.totalorder %s64, %s65
    %p79 = scmp.eq.s32.totalorder %s17, 3
    %p80 = por %p78, %p79
    %p82 = scmp.ne.s32.totalorder %s65, %s81
    %p83 = scmp.eq.s32.totalorder %s17, 0
    %p84 = por %p82, %p83
    %s86 = sadd.s32 %s85, 1
    %p89 = scmp.eq.s32.totalorder %s11, 3
    %p90 = scmp.ne.s32.totalorder %s85, %s87
    %p91 = scmp.eq.s32.totalorder %s11, 0
    %p92 = por %p90, %p91
    %p93 = scmp.ne.s32.totalorder %s85, %s87
    %p94 = scmp.eq.s32.totalorder %s16, 3
    %p95 = por %p93, %p94
    %p96 = scmp.ne.s32.totalorder %s87, %s88
    %p97 = scmp.eq.s32.totalorder %s16, 0
    %p98 = por %p96, %p97
    %p99 = scmp.ne.s32.totalorder %s87, %s88
    %p100 = scmp.eq.s32.totalorder %s17, 3
    %p101 = por %p99, %p100
    %p103 = scmp.ne.s32.totalorder %s88, %s102
    %p104 = scmp.eq.s32.totalorder %s17, 0
    %p105 = por %p103, %p104
    %s106 = ssub.s32 %s18, %s30
    %s107 = ssub.s32 %s19, %s26
    %s108 = sor.u32 %s106, %s107
    %p109 = scmp.eq.s32.totalorder %s108, 0
    %s111 = sadd.s32 %s110, 1
    %s112 = scalar_select %p109, %s110, %s111
    %p115 = pneg %p109
    %p116 = scmp.eq.s32.totalorder %s11, 3
    %p117 = por %p115, %p116
    %p118 = scmp.ne.s32.totalorder %s110, %s113
    %p119 = scmp.eq.s32.totalorder %s11, 0
    %p120 = por %p118, %p119
    %p121 = scmp.ne.s32.totalorder %s110, %s113
    %p122 = scmp.eq.s32.totalorder %s16, 3
    %p123 = por %p121, %p122
    %p124 = scmp.ne.s32.totalorder %s113, %s114
    %p125 = scmp.eq.s32.totalorder %s16, 0
    %p126 = por %p124, %p125
    %p127 = scmp.ne.s32.totalorder %s113, %s114
    %p128 = scmp.eq.s32.totalorder %s17, 3
    %p129 = por %p127, %p128
    %p131 = scmp.ne.s32.totalorder %s114, %s130
    %p132 = scmp.eq.s32.totalorder %s17, 0
    %p133 = por %p131, %p132
    %s134 = ssub.s32 %s18, %s30
    %s135 = ssub.s32 %s19, %s26
    %s136 = sor.u32 %s134, %s135
    %p137 = scmp.eq.s32.totalorder %s136, 0
    %s139 = sadd.s32 %s138, 1
    %s140 = scalar_select %p137, %s138, %s139
    %p143 = pneg %p137
    %p144 = scmp.eq.s32.totalorder %s11, 3
    %p145 = por %p143, %p144
    %p146 = scmp.ne.s32.totalorder %s138, %s141
    %p147 = scmp.eq.s32.totalorder %s11, 0
    %p148 = por %p146, %p147
    %p149 = scmp.ne.s32.totalorder %s138, %s141
    %p150 = scmp.eq.s32.totalorder %s16, 3
    %p151 = por %p149, %p150
    %p152 = scmp.ne.s32.totalorder %s141, %s142
    %p153 = scmp.eq.s32.totalorder %s16, 0
    %p154 = por %p152, %p153
    %p155 = scmp.ne.s32.totalorder %s141, %s142
    %p156 = scmp.eq.s32.totalorder %s17, 3
    %p157 = por %p155, %p156
    %p159 = scmp.ne.s32.totalorder %s142, %s158
    %p160 = scmp.eq.s32.totalorder %s17, 0
    %p161 = por %p159, %p160
    %p162 = scmp.le.s32.totalorder 1, %s11
    %p163 = scmp.lt.s32.totalorder %s11, 5
    %p164 = pnand %p162, %p163
    %p165 = pneg %p164
    // Predicated region
    $region9: #{generator32_forward.4} parent=5 // pred_check
      _
    $region10: #{generator32_forward.4} parent=5 // pred_check_branch
      %167 = sbr.rel (%p164) target = $region12
    $region11: #{generator32_forward.4} parent=5 // pred_region
      %s168 = ssub.s32 %s11, 1
      // Predicated region
      $region13: #{generator32_forward.4} parent=11 // pred_check
        %p169 = pneg %p98
      $region14: #{generator32_forward.4} parent=11 // pred_check_branch
        %171 = sbr.rel (%p169) target = $region16
      $region15: #{generator32_forward.4} parent=11 // pred_region
        _
      $region16: #{generator32_forward.4} parent=11 // pred_fallthru
        _
    $region12: #{generator32_forward.4} parent=5 // pred_fallthru
      _
    %p172 = scmp.lt.s32.totalorder %s11, 4
    // Predicated region
    $region17: #{generator32_forward.4} parent=5 // pred_check
      %p173 = pneg %p172
    $region18: #{generator32_forward.4} parent=5 // pred_check_branch
      %175 = sbr.rel (%p173) target = $region20
    $region19: #{generator32_forward.4} parent=5 // pred_region
      // Predicated region
      $region21: #{generator32_forward.4} parent=19 // pred_check
        %p176 = pneg %p45
      $region22: #{generator32_forward.4} parent=19 // pred_check_branch
        %178 = sbr.rel (%p176) target = $region24
      $region23: #{generator32_forward.4} parent=19 // pred_region
        %p179 = scmp.lt.s32.totalorder %s18, 3
        %s180 = scalar_select %p179, %s18, 3
        %p181 = scmp.lt.s32.totalorder %s19, 0
        %s182 = scalar_select %p181, %s19, 0
        %s183 = smul.addr %s182, 16
        %s184 = smul.addr %s180, 16
        %s185 = sadd.s32 %s183, %s184
        %s186 = smul.addr %s185, 4
        %s187 = scalar_lea.vmem %s0, %s186
      $region24: #{generator32_forward.4} parent=19 // pred_fallthru
        _
      // Predicated region
      $region25: #{generator32_forward.4} parent=19 // pred_check
        %p188 = pneg %p71
      $region26: #{generator32_forward.4} parent=19 // pred_check_branch
        %190 = sbr.rel (%p188) target = $region28
      $region27: #{generator32_forward.4} parent=19 // pred_region
        %p191 = scmp.lt.s32.totalorder %s18, 3
        %s192 = scalar_select %p191, %s18, 3
        %s193 = smul.addr %s192, 1024
        %s194 = smul.addr %s193, 4
        %s195 = scalar_lea.vmem %s1, %s194
      $region28: #{generator32_forward.4} parent=19 // pred_fallthru
        _
    $region20: #{generator32_forward.4} parent=5 // pred_fallthru
      _
    %p196 = scmp.le.s32.totalorder 1, %s11
    %p197 = scmp.lt.s32.totalorder %s11, 5
    %p198 = pnand %p196, %p197
    %p199 = pneg %p198
    // Predicated region
    $region29: #{generator32_forward.4} parent=5 // pred_check
      _
    $region30: #{generator32_forward.4} parent=5 // pred_check_branch
      %201 = sbr.rel (%p198) target = $region32
    $region31: #{generator32_forward.4} parent=5 // pred_region
      %s202 = ssub.s32 %s11, 1
      %p203 = scmp.lt.s32.totalorder %s20, 3
      %s204 = scalar_select %p203, %s20, 3
      %p205 = scmp.lt.s32.totalorder %s21, 0
      %s206 = scalar_select %p205, %s21, 0
      %s207 = smul.addr %s206, 16
      %s208 = smul.addr %s204, 16
      %s209 = sadd.s32 %s207, %s208
      %s210 = smul.addr %s209, 4
      %s211 = scalar_lea.vmem %s0, %s210
      %p212 = pneg %p51
      %p213 = pneg %p48
      %p214 = scmp.lt.s32.totalorder %s20, 3
      %s215 = scalar_select %p214, %s20, 3
      %s216 = smul.addr %s215, 1024
      %s217 = smul.addr %s216, 4
      %s218 = scalar_lea.vmem %s1, %s217
      %p219 = pneg %p77
      %p220 = pneg %p74
      %p221 = pneg %p98
      %p222 = pneg %p95
      %p223 = pneg %p126
      %p224 = pneg %p123
      %p225 = scmp.lt.s32.totalorder %s20, 3
      %s226 = scalar_select %p225, %s20, 3
      %p227 = scmp.lt.s32.totalorder %s21, 0
      %s228 = scalar_select %p227, %s21, 0
      %s229 = smul.addr %s228, 4
      %s230 = smul.addr %s226, 4
      %s231 = sadd.s32 %s229, %s230
      %s232 = smul.addr %s231, 4
      %s233 = scalar_lea.vmem %s3, %s232
      %p234 = pneg %p154
      %p235 = pneg %p151
      %p236 = scmp.lt.s32.totalorder %s20, 3
      %s237 = scalar_select %p236, %s20, 3
      %p238 = scmp.lt.s32.totalorder %s21, 0
      %s239 = scalar_select %p238, %s21, 0
      %s240 = smul.addr %s239, 4
      %s241 = smul.addr %s237, 4
      %s242 = sadd.s32 %s240, %s241
      %s243 = smul.addr %s242, 2
      %s244 = scalar_lea.vmem %s4, %s243
      %p245 = scmp.lt.s32.totalorder %s20, 3
      %s246 = scalar_select %p245, %s20, 3
      %p247 = scmp.lt.s32.totalorder %s21, 0
      %s248 = scalar_select %p247, %s21, 0
      %s249 = smul.addr %s248, 16
      %s250 = smul.addr %s246, 16
      %s251 = sadd.s32 %s249, %s250
      %s252 = smul.addr %s251, 4
      %s253 = scalar_lea.vmem %s0, %s252
      %p254 = scmp.lt.s32.totalorder %s20, 3
      %s255 = scalar_select %p254, %s20, 3
      %s256 = smul.addr %s255, 1024
      %s257 = smul.addr %s256, 4
      %s258 = scalar_lea.vmem %s1, %s257
      %p259 = scmp.lt.s32.totalorder %s20, 3
      %s260 = scalar_select %p259, %s20, 3
      %p261 = scmp.lt.s32.totalorder %s21, 0
      %s262 = scalar_select %p261, %s21, 0
      %s263 = smul.addr %s262, 4
      %s264 = smul.addr %s260, 4
      %s265 = sadd.s32 %s263, %s264
      %s266 = smul.addr %s265, 4
      %s267 = scalar_lea.vmem %s3, %s266
      %p268 = scmp.lt.s32.totalorder %s20, 3
      %s269 = scalar_select %p268, %s20, 3
      %p270 = scmp.lt.s32.totalorder %s21, 0
      %s271 = scalar_select %p270, %s21, 0
      %s272 = smul.addr %s271, 4
      %s273 = smul.addr %s269, 4
      %s274 = sadd.s32 %s272, %s273
      %s275 = smul.addr %s274, 2
      %s276 = scalar_lea.vmem %s4, %s275
      %v277 = vld [vmem:[%s253] sm:$0xff]
      %v278 = vld [vmem:[%s253 + $0x8] sm:$0xff]
      %v279 = vld [vmem:[%s253 + $0x10] sm:$0xff]
      %v280 = vld [vmem:[%s253 + $0x18] sm:$0xff]
      %v281 = vld [vmem:[%s253 + $0x20] sm:$0xff]
      %v282 = vld [vmem:[%s253 + $0x28] sm:$0xff]
      %v283 = vld [vmem:[%s253 + $0x30] sm:$0xff]
      %v284 = vld [vmem:[%s253 + $0x38] sm:$0xff]
      %v285 = vld [vmem:[%s258] sm:$0xff]
      %v286 = vld [vmem:[%s258 + $0x8] sm:$0xff]
      %v287 = vld [vmem:[%s258 + $0x10] sm:$0xff]
      %v288 = vld [vmem:[%s258 + $0x18] sm:$0xff]
      %v289 = vld [vmem:[%s258 + $0x20] sm:$0xff]
      %v290 = vld [vmem:[%s258 + $0x28] sm:$0xff]
      %v291 = vld [vmem:[%s258 + $0x30] sm:$0xff]
      %v292 = vld [vmem:[%s258 + $0x38] sm:$0xff]
      %v293 = vld [vmem:[%s258 + $0x40] sm:$0xff]
      %v294 = vld [vmem:[%s258 + $0x48] sm:$0xff]
      %v295 = vld [vmem:[%s258 + $0x50] sm:$0xff]
      %v296 = vld [vmem:[%s258 + $0x58] sm:$0xff]
      %v297 = vld [vmem:[%s258 + $0x60] sm:$0xff]
      %v298 = vld [vmem:[%s258 + $0x68] sm:$0xff]
      %v299 = vld [vmem:[%s258 + $0x70] sm:$0xff]
      %v300 = vld [vmem:[%s258 + $0x78] sm:$0xff]
      %v301 = vld [vmem:[%s258 + $0x80] sm:$0xff]
      %v302 = vld [vmem:[%s258 + $0x88] sm:$0xff]
      %v303 = vld [vmem:[%s258 + $0x90] sm:$0xff]
      %v304 = vld [vmem:[%s258 + $0x98] sm:$0xff]
      %v305 = vld [vmem:[%s258 + $0xa0] sm:$0xff]
      %v306 = vld [vmem:[%s258 + $0xa8] sm:$0xff]
      %v307 = vld [vmem:[%s258 + $0xb0] sm:$0xff]
      %v308 = vld [vmem:[%s258 + $0xb8] sm:$0xff]
      %v309 = vld [vmem:[%s258 + $0xc0] sm:$0xff]
      %v310 = vld [vmem:[%s258 + $0xc8] sm:$0xff]
      %v311 = vld [vmem:[%s258 + $0xd0] sm:$0xff]
      %v312 = vld [vmem:[%s258 + $0xd8] sm:$0xff]
      %v313 = vld [vmem:[%s258 + $0xe0] sm:$0xff]
      %v314 = vld [vmem:[%s258 + $0xe8] sm:$0xff]
      %v315 = vld [vmem:[%s258 + $0xf0] sm:$0xff]
      %v316 = vld [vmem:[%s258 + $0xf8] sm:$0xff]
      %v317 = vld [vmem:[%s258 + $0x100] sm:$0xff]
      %v318 = vld [vmem:[%s258 + $0x108] sm:$0xff]
      %v319 = vld [vmem:[%s258 + $0x110] sm:$0xff]
      %v320 = vld [vmem:[%s258 + $0x118] sm:$0xff]
      %v321 = vld [vmem:[%s258 + $0x120] sm:$0xff]
      %v322 = vld [vmem:[%s258 + $0x128] sm:$0xff]
      %v323 = vld [vmem:[%s258 + $0x130] sm:$0xff]
      %v324 = vld [vmem:[%s258 + $0x138] sm:$0xff]
      %v325 = vld [vmem:[%s258 + $0x140] sm:$0xff]
      %v326 = vld [vmem:[%s258 + $0x148] sm:$0xff]
      %v327 = vld [vmem:[%s258 + $0x150] sm:$0xff]
      %v328 = vld [vmem:[%s258 + $0x158] sm:$0xff]
      %v329 = vld [vmem:[%s258 + $0x160] sm:$0xff]
      %v330 = vld [vmem:[%s258 + $0x168] sm:$0xff]
      %v331 = vld [vmem:[%s258 + $0x170] sm:$0xff]
      %v332 = vld [vmem:[%s258 + $0x178] sm:$0xff]
      %v333 = vld [vmem:[%s258 + $0x180] sm:$0xff]
      %v334 = vld [vmem:[%s258 + $0x188] sm:$0xff]
      %v335 = vld [vmem:[%s258 + $0x190] sm:$0xff]
      %v336 = vld [vmem:[%s258 + $0x198] sm:$0xff]
      %v337 = vld [vmem:[%s258 + $0x1a0] sm:$0xff]
      %v338 = vld [vmem:[%s258 + $0x1a8] sm:$0xff]
      %v339 = vld [vmem:[%s258 + $0x1b0] sm:$0xff]
      %v340 = vld [vmem:[%s258 + $0x1b8] sm:$0xff]
      %v341 = vld [vmem:[%s258 + $0x1c0] sm:$0xff]
      %v342 = vld [vmem:[%s258 + $0x1c8] sm:$0xff]
      %v343 = vld [vmem:[%s258 + $0x1d0] sm:$0xff]
      %v344 = vld [vmem:[%s258 + $0x1d8] sm:$0xff]
      %v345 = vld [vmem:[%s258 + $0x1e0] sm:$0xff]
      %v346 = vld [vmem:[%s258 + $0x1e8] sm:$0xff]
      %v347 = vld [vmem:[%s258 + $0x1f0] sm:$0xff]
      %v348 = vld [vmem:[%s258 + $0x1f8] sm:$0xff]
      %v349 = vld [vmem:[%s258 + $0x200] sm:$0xff]
      %v350 = vld [vmem:[%s258 + $0x208] sm:$0xff]
      %v351 = vld [vmem:[%s258 + $0x210] sm:$0xff]
      %v352 = vld [vmem:[%s258 + $0x218] sm:$0xff]
      %v353 = vld [vmem:[%s258 + $0x220] sm:$0xff]
      %v354 = vld [vmem:[%s258 + $0x228] sm:$0xff]
      %v355 = vld [vmem:[%s258 + $0x230] sm:$0xff]
      %v356 = vld [vmem:[%s258 + $0x238] sm:$0xff]
      %v357 = vld [vmem:[%s258 + $0x240] sm:$0xff]
      %v358 = vld [vmem:[%s258 + $0x248] sm:$0xff]
      %v359 = vld [vmem:[%s258 + $0x250] sm:$0xff]
      %v360 = vld [vmem:[%s258 + $0x258] sm:$0xff]
      %v361 = vld [vmem:[%s258 + $0x260] sm:$0xff]
      %v362 = vld [vmem:[%s258 + $0x268] sm:$0xff]
      %v363 = vld [vmem:[%s258 + $0x270] sm:$0xff]
      %v364 = vld [vmem:[%s258 + $0x278] sm:$0xff]
      %v365 = vld [vmem:[%s258 + $0x280] sm:$0xff]
      %v366 = vld [vmem:[%s258 + $0x288] sm:$0xff]
      %v367 = vld [vmem:[%s258 + $0x290] sm:$0xff]
      %v368 = vld [vmem:[%s258 + $0x298] sm:$0xff]
      %v369 = vld [vmem:[%s258 + $0x2a0] sm:$0xff]
      %v370 = vld [vmem:[%s258 + $0x2a8] sm:$0xff]
      %v371 = vld [vmem:[%s258 + $0x2b0] sm:$0xff]
      %v372 = vld [vmem:[%s258 + $0x2b8] sm:$0xff]
      %v373 = vld [vmem:[%s258 + $0x2c0] sm:$0xff]
      %v374 = vld [vmem:[%s258 + $0x2c8] sm:$0xff]
      %v375 = vld [vmem:[%s258 + $0x2d0] sm:$0xff]
      %v376 = vld [vmem:[%s258 + $0x2d8] sm:$0xff]
      %v377 = vld [vmem:[%s258 + $0x2e0] sm:$0xff]
      %v378 = vld [vmem:[%s258 + $0x2e8] sm:$0xff]
      %v379 = vld [vmem:[%s258 + $0x2f0] sm:$0xff]
      %v380 = vld [vmem:[%s258 + $0x2f8] sm:$0xff]
      %v381 = vld [vmem:[%s258 + $0x300] sm:$0xff]
      %v382 = vld [vmem:[%s258 + $0x308] sm:$0xff]
      %v383 = vld [vmem:[%s258 + $0x310] sm:$0xff]
      %v384 = vld [vmem:[%s258 + $0x318] sm:$0xff]
      %v385 = vld [vmem:[%s258 + $0x320] sm:$0xff]
      %v386 = vld [vmem:[%s258 + $0x328] sm:$0xff]
      %v387 = vld [vmem:[%s258 + $0x330] sm:$0xff]
      %v388 = vld [vmem:[%s258 + $0x338] sm:$0xff]
      %v389 = vld [vmem:[%s258 + $0x340] sm:$0xff]
      %v390 = vld [vmem:[%s258 + $0x348] sm:$0xff]
      %v391 = vld [vmem:[%s258 + $0x350] sm:$0xff]
      %v392 = vld [vmem:[%s258 + $0x358] sm:$0xff]
      %v393 = vld [vmem:[%s258 + $0x360] sm:$0xff]
      %v394 = vld [vmem:[%s258 + $0x368] sm:$0xff]
      %v395 = vld [vmem:[%s258 + $0x370] sm:$0xff]
      %v396 = vld [vmem:[%s258 + $0x378] sm:$0xff]
      %v397 = vld [vmem:[%s258 + $0x380] sm:$0xff]
      %v398 = vld [vmem:[%s258 + $0x388] sm:$0xff]
      %v399 = vld [vmem:[%s258 + $0x390] sm:$0xff]
      %v400 = vld [vmem:[%s258 + $0x398] sm:$0xff]
      %v401 = vld [vmem:[%s258 + $0x3a0] sm:$0xff]
      %v402 = vld [vmem:[%s258 + $0x3a8] sm:$0xff]
      %v403 = vld [vmem:[%s258 + $0x3b0] sm:$0xff]
      %v404 = vld [vmem:[%s258 + $0x3b8] sm:$0xff]
      %v405 = vld [vmem:[%s258 + $0x3c0] sm:$0xff]
      %v406 = vld [vmem:[%s258 + $0x3c8] sm:$0xff]
      %v407 = vld [vmem:[%s258 + $0x3d0] sm:$0xff]
      %v408 = vld [vmem:[%s258 + $0x3d8] sm:$0xff]
      %v409 = vld [vmem:[%s258 + $0x3e0] sm:$0xff]
      %v410 = vld [vmem:[%s258 + $0x3e8] sm:$0xff]
      %v411 = vld [vmem:[%s258 + $0x3f0] sm:$0xff]
      %v412 = vld [vmem:[%s258 + $0x3f8] sm:$0xff]
      %v413 = vld [vmem:[%s258 + $0x400] sm:$0xff]
      %v414 = vld [vmem:[%s258 + $0x408] sm:$0xff]
      %v415 = vld [vmem:[%s258 + $0x410] sm:$0xff]
      %v416 = vld [vmem:[%s258 + $0x418] sm:$0xff]
      %v417 = vld [vmem:[%s258 + $0x420] sm:$0xff]
      %v418 = vld [vmem:[%s258 + $0x428] sm:$0xff]
      %v419 = vld [vmem:[%s258 + $0x430] sm:$0xff]
      %v420 = vld [vmem:[%s258 + $0x438] sm:$0xff]
      %v421 = vld [vmem:[%s258 + $0x440] sm:$0xff]
      %v422 = vld [vmem:[%s258 + $0x448] sm:$0xff]
      %v423 = vld [vmem:[%s258 + $0x450] sm:$0xff]
      %v424 = vld [vmem:[%s258 + $0x458] sm:$0xff]
      %v425 = vld [vmem:[%s258 + $0x460] sm:$0xff]
      %v426 = vld [vmem:[%s258 + $0x468] sm:$0xff]
      %v427 = vld [vmem:[%s258 + $0x470] sm:$0xff]
      %v428 = vld [vmem:[%s258 + $0x478] sm:$0xff]
      %v429 = vld [vmem:[%s258 + $0x480] sm:$0xff]
      %v430 = vld [vmem:[%s258 + $0x488] sm:$0xff]
      %v431 = vld [vmem:[%s258 + $0x490] sm:$0xff]
      %v432 = vld [vmem:[%s258 + $0x498] sm:$0xff]
      %v433 = vld [vmem:[%s258 + $0x4a0] sm:$0xff]
      %v434 = vld [vmem:[%s258 + $0x4a8] sm:$0xff]
      %v435 = vld [vmem:[%s258 + $0x4b0] sm:$0xff]
      %v436 = vld [vmem:[%s258 + $0x4b8] sm:$0xff]
      %v437 = vld [vmem:[%s258 + $0x4c0] sm:$0xff]
      %v438 = vld [vmem:[%s258 + $0x4c8] sm:$0xff]
      %v439 = vld [vmem:[%s258 + $0x4d0] sm:$0xff]
      %v440 = vld [vmem:[%s258 + $0x4d8] sm:$0xff]
      %v441 = vld [vmem:[%s258 + $0x4e0] sm:$0xff]
      %v442 = vld [vmem:[%s258 + $0x4e8] sm:$0xff]
      %v443 = vld [vmem:[%s258 + $0x4f0] sm:$0xff]
      %v444 = vld [vmem:[%s258 + $0x4f8] sm:$0xff]
      %v445 = vld [vmem:[%s258 + $0x500] sm:$0xff]
      %v446 = vld [vmem:[%s258 + $0x508] sm:$0xff]
      %v447 = vld [vmem:[%s258 + $0x510] sm:$0xff]
      %v448 = vld [vmem:[%s258 + $0x518] sm:$0xff]
      %v449 = vld [vmem:[%s258 + $0x520] sm:$0xff]
      %v450 = vld [vmem:[%s258 + $0x528] sm:$0xff]
      %v451 = vld [vmem:[%s258 + $0x530] sm:$0xff]
      %v452 = vld [vmem:[%s258 + $0x538] sm:$0xff]
      %v453 = vld [vmem:[%s258 + $0x540] sm:$0xff]
      %v454 = vld [vmem:[%s258 + $0x548] sm:$0xff]
      %v455 = vld [vmem:[%s258 + $0x550] sm:$0xff]
      %v456 = vld [vmem:[%s258 + $0x558] sm:$0xff]
      %v457 = vld [vmem:[%s258 + $0x560] sm:$0xff]
      %v458 = vld [vmem:[%s258 + $0x568] sm:$0xff]
      %v459 = vld [vmem:[%s258 + $0x570] sm:$0xff]
      %v460 = vld [vmem:[%s258 + $0x578] sm:$0xff]
      %v461 = vld [vmem:[%s258 + $0x580] sm:$0xff]
      %v462 = vld [vmem:[%s258 + $0x588] sm:$0xff]
      %v463 = vld [vmem:[%s258 + $0x590] sm:$0xff]
      %v464 = vld [vmem:[%s258 + $0x598] sm:$0xff]
      %v465 = vld [vmem:[%s258 + $0x5a0] sm:$0xff]
      %v466 = vld [vmem:[%s258 + $0x5a8] sm:$0xff]
      %v467 = vld [vmem:[%s258 + $0x5b0] sm:$0xff]
      %v468 = vld [vmem:[%s258 + $0x5b8] sm:$0xff]
      %v469 = vld [vmem:[%s258 + $0x5c0] sm:$0xff]
      %v470 = vld [vmem:[%s258 + $0x5c8] sm:$0xff]
      %v471 = vld [vmem:[%s258 + $0x5d0] sm:$0xff]
      %v472 = vld [vmem:[%s258 + $0x5d8] sm:$0xff]
      %v473 = vld [vmem:[%s258 + $0x5e0] sm:$0xff]
      %v474 = vld [vmem:[%s258 + $0x5e8] sm:$0xff]
      %v475 = vld [vmem:[%s258 + $0x5f0] sm:$0xff]
      %v476 = vld [vmem:[%s258 + $0x5f8] sm:$0xff]
      %v477 = vld [vmem:[%s258 + $0x600] sm:$0xff]
      %v478 = vld [vmem:[%s258 + $0x608] sm:$0xff]
      %v479 = vld [vmem:[%s258 + $0x610] sm:$0xff]
      %v480 = vld [vmem:[%s258 + $0x618] sm:$0xff]
      %v481 = vld [vmem:[%s258 + $0x620] sm:$0xff]
      %v482 = vld [vmem:[%s258 + $0x628] sm:$0xff]
      %v483 = vld [vmem:[%s258 + $0x630] sm:$0xff]
      %v484 = vld [vmem:[%s258 + $0x638] sm:$0xff]
      %v485 = vld [vmem:[%s258 + $0x640] sm:$0xff]
      %v486 = vld [vmem:[%s258 + $0x648] sm:$0xff]
      %v487 = vld [vmem:[%s258 + $0x650] sm:$0xff]
      %v488 = vld [vmem:[%s258 + $0x658] sm:$0xff]
      %v489 = vld [vmem:[%s258 + $0x660] sm:$0xff]
      %v490 = vld [vmem:[%s258 + $0x668] sm:$0xff]
      %v491 = vld [vmem:[%s258 + $0x670] sm:$0xff]
      %v492 = vld [vmem:[%s258 + $0x678] sm:$0xff]
      %v493 = vld [vmem:[%s258 + $0x680] sm:$0xff]
      %v494 = vld [vmem:[%s258 + $0x688] sm:$0xff]
      %v495 = vld [vmem:[%s258 + $0x690] sm:$0xff]
      %v496 = vld [vmem:[%s258 + $0x698] sm:$0xff]
      %v497 = vld [vmem:[%s258 + $0x6a0] sm:$0xff]
      %v498 = vld [vmem:[%s258 + $0x6a8] sm:$0xff]
      %v499 = vld [vmem:[%s258 + $0x6b0] sm:$0xff]
      %v500 = vld [vmem:[%s258 + $0x6b8] sm:$0xff]
      %v501 = vld [vmem:[%s258 + $0x6c0] sm:$0xff]
      %v502 = vld [vmem:[%s258 + $0x6c8] sm:$0xff]
      %v503 = vld [vmem:[%s258 + $0x6d0] sm:$0xff]
      %v504 = vld [vmem:[%s258 + $0x6d8] sm:$0xff]
      %v505 = vld [vmem:[%s258 + $0x6e0] sm:$0xff]
      %v506 = vld [vmem:[%s258 + $0x6e8] sm:$0xff]
      %v507 = vld [vmem:[%s258 + $0x6f0] sm:$0xff]
      %v508 = vld [vmem:[%s258 + $0x6f8] sm:$0xff]
      %v509 = vld [vmem:[%s258 + $0x700] sm:$0xff]
      %v510 = vld [vmem:[%s258 + $0x708] sm:$0xff]
      %v511 = vld [vmem:[%s258 + $0x710] sm:$0xff]
      %v512 = vld [vmem:[%s258 + $0x718] sm:$0xff]
      %v513 = vld [vmem:[%s258 + $0x720] sm:$0xff]
      %v514 = vld [vmem:[%s258 + $0x728] sm:$0xff]
      %v515 = vld [vmem:[%s258 + $0x730] sm:$0xff]
      %v516 = vld [vmem:[%s258 + $0x738] sm:$0xff]
      %v517 = vld [vmem:[%s258 + $0x740] sm:$0xff]
      %v518 = vld [vmem:[%s258 + $0x748] sm:$0xff]
      %v519 = vld [vmem:[%s258 + $0x750] sm:$0xff]
      %v520 = vld [vmem:[%s258 + $0x758] sm:$0xff]
      %v521 = vld [vmem:[%s258 + $0x760] sm:$0xff]
      %v522 = vld [vmem:[%s258 + $0x768] sm:$0xff]
      %v523 = vld [vmem:[%s258 + $0x770] sm:$0xff]
      %v524 = vld [vmem:[%s258 + $0x778] sm:$0xff]
      %v525 = vld [vmem:[%s258 + $0x780] sm:$0xff]
      %v526 = vld [vmem:[%s258 + $0x788] sm:$0xff]
      %v527 = vld [vmem:[%s258 + $0x790] sm:$0xff]
      %v528 = vld [vmem:[%s258 + $0x798] sm:$0xff]
      %v529 = vld [vmem:[%s258 + $0x7a0] sm:$0xff]
      %v530 = vld [vmem:[%s258 + $0x7a8] sm:$0xff]
      %v531 = vld [vmem:[%s258 + $0x7b0] sm:$0xff]
      %v532 = vld [vmem:[%s258 + $0x7b8] sm:$0xff]
      %v533 = vld [vmem:[%s258 + $0x7c0] sm:$0xff]
      %v534 = vld [vmem:[%s258 + $0x7c8] sm:$0xff]
      %v535 = vld [vmem:[%s258 + $0x7d0] sm:$0xff]
      %v536 = vld [vmem:[%s258 + $0x7d8] sm:$0xff]
      %v537 = vld [vmem:[%s258 + $0x7e0] sm:$0xff]
      %v538 = vld [vmem:[%s258 + $0x7e8] sm:$0xff]
      %v539 = vld [vmem:[%s258 + $0x7f0] sm:$0xff]
      %v540 = vld [vmem:[%s258 + $0x7f8] sm:$0xff]
      %v541 = vld [vmem:[%s258 + $0x800] sm:$0xff]
      %v542 = vld [vmem:[%s258 + $0x808] sm:$0xff]
      %v543 = vld [vmem:[%s258 + $0x810] sm:$0xff]
      %v544 = vld [vmem:[%s258 + $0x818] sm:$0xff]
      %v545 = vld [vmem:[%s258 + $0x820] sm:$0xff]
      %v546 = vld [vmem:[%s258 + $0x828] sm:$0xff]
      %v547 = vld [vmem:[%s258 + $0x830] sm:$0xff]
      %v548 = vld [vmem:[%s258 + $0x838] sm:$0xff]
      %v549 = vld [vmem:[%s258 + $0x840] sm:$0xff]
      %v550 = vld [vmem:[%s258 + $0x848] sm:$0xff]
      %v551 = vld [vmem:[%s258 + $0x850] sm:$0xff]
      %v552 = vld [vmem:[%s258 + $0x858] sm:$0xff]
      %v553 = vld [vmem:[%s258 + $0x860] sm:$0xff]
      %v554 = vld [vmem:[%s258 + $0x868] sm:$0xff]
      %v555 = vld [vmem:[%s258 + $0x870] sm:$0xff]
      %v556 = vld [vmem:[%s258 + $0x878] sm:$0xff]
      %v557 = vld [vmem:[%s258 + $0x880] sm:$0xff]
      %v558 = vld [vmem:[%s258 + $0x888] sm:$0xff]
      %v559 = vld [vmem:[%s258 + $0x890] sm:$0xff]
      %v560 = vld [vmem:[%s258 + $0x898] sm:$0xff]
      %v561 = vld [vmem:[%s258 + $0x8a0] sm:$0xff]
      %v562 = vld [vmem:[%s258 + $0x8a8] sm:$0xff]
      %v563 = vld [vmem:[%s258 + $0x8b0] sm:$0xff]
      %v564 = vld [vmem:[%s258 + $0x8b8] sm:$0xff]
      %v565 = vld [vmem:[%s258 + $0x8c0] sm:$0xff]
      %v566 = vld [vmem:[%s258 + $0x8c8] sm:$0xff]
      %v567 = vld [vmem:[%s258 + $0x8d0] sm:$0xff]
      %v568 = vld [vmem:[%s258 + $0x8d8] sm:$0xff]
      %v569 = vld [vmem:[%s258 + $0x8e0] sm:$0xff]
      %v570 = vld [vmem:[%s258 + $0x8e8] sm:$0xff]
      %v571 = vld [vmem:[%s258 + $0x8f0] sm:$0xff]
      %v572 = vld [vmem:[%s258 + $0x8f8] sm:$0xff]
      %v573 = vld [vmem:[%s258 + $0x900] sm:$0xff]
      %v574 = vld [vmem:[%s258 + $0x908] sm:$0xff]
      %v575 = vld [vmem:[%s258 + $0x910] sm:$0xff]
      %v576 = vld [vmem:[%s258 + $0x918] sm:$0xff]
      %v577 = vld [vmem:[%s258 + $0x920] sm:$0xff]
      %v578 = vld [vmem:[%s258 + $0x928] sm:$0xff]
      %v579 = vld [vmem:[%s258 + $0x930] sm:$0xff]
      %v580 = vld [vmem:[%s258 + $0x938] sm:$0xff]
      %v581 = vld [vmem:[%s258 + $0x940] sm:$0xff]
      %v582 = vld [vmem:[%s258 + $0x948] sm:$0xff]
      %v583 = vld [vmem:[%s258 + $0x950] sm:$0xff]
      %v584 = vld [vmem:[%s258 + $0x958] sm:$0xff]
      %v585 = vld [vmem:[%s258 + $0x960] sm:$0xff]
      %v586 = vld [vmem:[%s258 + $0x968] sm:$0xff]
      %v587 = vld [vmem:[%s258 + $0x970] sm:$0xff]
      %v588 = vld [vmem:[%s258 + $0x978] sm:$0xff]
      %v589 = vld [vmem:[%s258 + $0x980] sm:$0xff]
      %v590 = vld [vmem:[%s258 + $0x988] sm:$0xff]
      %v591 = vld [vmem:[%s258 + $0x990] sm:$0xff]
      %v592 = vld [vmem:[%s258 + $0x998] sm:$0xff]
      %v593 = vld [vmem:[%s258 + $0x9a0] sm:$0xff]
      %v594 = vld [vmem:[%s258 + $0x9a8] sm:$0xff]
      %v595 = vld [vmem:[%s258 + $0x9b0] sm:$0xff]
      %v596 = vld [vmem:[%s258 + $0x9b8] sm:$0xff]
      %v597 = vld [vmem:[%s258 + $0x9c0] sm:$0xff]
      %v598 = vld [vmem:[%s258 + $0x9c8] sm:$0xff]
      %v599 = vld [vmem:[%s258 + $0x9d0] sm:$0xff]
      %v600 = vld [vmem:[%s258 + $0x9d8] sm:$0xff]
      %v601 = vld [vmem:[%s258 + $0x9e0] sm:$0xff]
      %v602 = vld [vmem:[%s258 + $0x9e8] sm:$0xff]
      %v603 = vld [vmem:[%s258 + $0x9f0] sm:$0xff]
      %v604 = vld [vmem:[%s258 + $0x9f8] sm:$0xff]
      %v605 = vld [vmem:[%s258 + $0xa00] sm:$0xff]
      %v606 = vld [vmem:[%s258 + $0xa08] sm:$0xff]
      %v607 = vld [vmem:[%s258 + $0xa10] sm:$0xff]
      %v608 = vld [vmem:[%s258 + $0xa18] sm:$0xff]
      %v609 = vld [vmem:[%s258 + $0xa20] sm:$0xff]
      %v610 = vld [vmem:[%s258 + $0xa28] sm:$0xff]
      %v611 = vld [vmem:[%s258 + $0xa30] sm:$0xff]
      %v612 = vld [vmem:[%s258 + $0xa38] sm:$0xff]
      %v613 = vld [vmem:[%s258 + $0xa40] sm:$0xff]
      %v614 = vld [vmem:[%s258 + $0xa48] sm:$0xff]
      %v615 = vld [vmem:[%s258 + $0xa50] sm:$0xff]
      %v616 = vld [vmem:[%s258 + $0xa58] sm:$0xff]
      %v617 = vld [vmem:[%s258 + $0xa60] sm:$0xff]
      %v618 = vld [vmem:[%s258 + $0xa68] sm:$0xff]
      %v619 = vld [vmem:[%s258 + $0xa70] sm:$0xff]
      %v620 = vld [vmem:[%s258 + $0xa78] sm:$0xff]
      %v621 = vld [vmem:[%s258 + $0xa80] sm:$0xff]
      %v622 = vld [vmem:[%s258 + $0xa88] sm:$0xff]
      %v623 = vld [vmem:[%s258 + $0xa90] sm:$0xff]
      %v624 = vld [vmem:[%s258 + $0xa98] sm:$0xff]
      %v625 = vld [vmem:[%s258 + $0xaa0] sm:$0xff]
      %v626 = vld [vmem:[%s258 + $0xaa8] sm:$0xff]
      %v627 = vld [vmem:[%s258 + $0xab0] sm:$0xff]
      %v628 = vld [vmem:[%s258 + $0xab8] sm:$0xff]
      %v629 = vld [vmem:[%s258 + $0xac0] sm:$0xff]
      %v630 = vld [vmem:[%s258 + $0xac8] sm:$0xff]
      %v631 = vld [vmem:[%s258 + $0xad0] sm:$0xff]
      %v632 = vld [vmem:[%s258 + $0xad8] sm:$0xff]
      %v633 = vld [vmem:[%s258 + $0xae0] sm:$0xff]
      %v634 = vld [vmem:[%s258 + $0xae8] sm:$0xff]
      %v635 = vld [vmem:[%s258 + $0xaf0] sm:$0xff]
      %v636 = vld [vmem:[%s258 + $0xaf8] sm:$0xff]
      %v637 = vld [vmem:[%s258 + $0xb00] sm:$0xff]
      %v638 = vld [vmem:[%s258 + $0xb08] sm:$0xff]
      %v639 = vld [vmem:[%s258 + $0xb10] sm:$0xff]
      %v640 = vld [vmem:[%s258 + $0xb18] sm:$0xff]
      %v641 = vld [vmem:[%s258 + $0xb20] sm:$0xff]
      %v642 = vld [vmem:[%s258 + $0xb28] sm:$0xff]
      %v643 = vld [vmem:[%s258 + $0xb30] sm:$0xff]
      %v644 = vld [vmem:[%s258 + $0xb38] sm:$0xff]
      %v645 = vld [vmem:[%s258 + $0xb40] sm:$0xff]
      %v646 = vld [vmem:[%s258 + $0xb48] sm:$0xff]
      %v647 = vld [vmem:[%s258 + $0xb50] sm:$0xff]
      %v648 = vld [vmem:[%s258 + $0xb58] sm:$0xff]
      %v649 = vld [vmem:[%s258 + $0xb60] sm:$0xff]
      %v650 = vld [vmem:[%s258 + $0xb68] sm:$0xff]
      %v651 = vld [vmem:[%s258 + $0xb70] sm:$0xff]
      %v652 = vld [vmem:[%s258 + $0xb78] sm:$0xff]
      %v653 = vld [vmem:[%s258 + $0xb80] sm:$0xff]
      %v654 = vld [vmem:[%s258 + $0xb88] sm:$0xff]
      %v655 = vld [vmem:[%s258 + $0xb90] sm:$0xff]
      %v656 = vld [vmem:[%s258 + $0xb98] sm:$0xff]
      %v657 = vld [vmem:[%s258 + $0xba0] sm:$0xff]
      %v658 = vld [vmem:[%s258 + $0xba8] sm:$0xff]
      %v659 = vld [vmem:[%s258 + $0xbb0] sm:$0xff]
      %v660 = vld [vmem:[%s258 + $0xbb8] sm:$0xff]
      %v661 = vld [vmem:[%s258 + $0xbc0] sm:$0xff]
      %v662 = vld [vmem:[%s258 + $0xbc8] sm:$0xff]
      %v663 = vld [vmem:[%s258 + $0xbd0] sm:$0xff]
      %v664 = vld [vmem:[%s258 + $0xbd8] sm:$0xff]
      %v665 = vld [vmem:[%s258 + $0xbe0] sm:$0xff]
      %v666 = vld [vmem:[%s258 + $0xbe8] sm:$0xff]
      %v667 = vld [vmem:[%s258 + $0xbf0] sm:$0xff]
      %v668 = vld [vmem:[%s258 + $0xbf8] sm:$0xff]
      %v669 = vld [vmem:[%s258 + $0xc00] sm:$0xff]
      %v670 = vld [vmem:[%s258 + $0xc08] sm:$0xff]
      %v671 = vld [vmem:[%s258 + $0xc10] sm:$0xff]
      %v672 = vld [vmem:[%s258 + $0xc18] sm:$0xff]
      %v673 = vld [vmem:[%s258 + $0xc20] sm:$0xff]
      %v674 = vld [vmem:[%s258 + $0xc28] sm:$0xff]
      %v675 = vld [vmem:[%s258 + $0xc30] sm:$0xff]
      %v676 = vld [vmem:[%s258 + $0xc38] sm:$0xff]
      %v677 = vld [vmem:[%s258 + $0xc40] sm:$0xff]
      %v678 = vld [vmem:[%s258 + $0xc48] sm:$0xff]
      %v679 = vld [vmem:[%s258 + $0xc50] sm:$0xff]
      %v680 = vld [vmem:[%s258 + $0xc58] sm:$0xff]
      %v681 = vld [vmem:[%s258 + $0xc60] sm:$0xff]
      %v682 = vld [vmem:[%s258 + $0xc68] sm:$0xff]
      %v683 = vld [vmem:[%s258 + $0xc70] sm:$0xff]
      %v684 = vld [vmem:[%s258 + $0xc78] sm:$0xff]
      %v685 = vld [vmem:[%s258 + $0xc80] sm:$0xff]
      %v686 = vld [vmem:[%s258 + $0xc88] sm:$0xff]
      %v687 = vld [vmem:[%s258 + $0xc90] sm:$0xff]
      %v688 = vld [vmem:[%s258 + $0xc98] sm:$0xff]
      %v689 = vld [vmem:[%s258 + $0xca0] sm:$0xff]
      %v690 = vld [vmem:[%s258 + $0xca8] sm:$0xff]
      %v691 = vld [vmem:[%s258 + $0xcb0] sm:$0xff]
      %v692 = vld [vmem:[%s258 + $0xcb8] sm:$0xff]
      %v693 = vld [vmem:[%s258 + $0xcc0] sm:$0xff]
      %v694 = vld [vmem:[%s258 + $0xcc8] sm:$0xff]
      %v695 = vld [vmem:[%s258 + $0xcd0] sm:$0xff]
      %v696 = vld [vmem:[%s258 + $0xcd8] sm:$0xff]
      %v697 = vld [vmem:[%s258 + $0xce0] sm:$0xff]
      %v698 = vld [vmem:[%s258 + $0xce8] sm:$0xff]
      %v699 = vld [vmem:[%s258 + $0xcf0] sm:$0xff]
      %v700 = vld [vmem:[%s258 + $0xcf8] sm:$0xff]
      %v701 = vld [vmem:[%s258 + $0xd00] sm:$0xff]
      %v702 = vld [vmem:[%s258 + $0xd08] sm:$0xff]
      %v703 = vld [vmem:[%s258 + $0xd10] sm:$0xff]
      %v704 = vld [vmem:[%s258 + $0xd18] sm:$0xff]
      %v705 = vld [vmem:[%s258 + $0xd20] sm:$0xff]
      %v706 = vld [vmem:[%s258 + $0xd28] sm:$0xff]
      %v707 = vld [vmem:[%s258 + $0xd30] sm:$0xff]
      %v708 = vld [vmem:[%s258 + $0xd38] sm:$0xff]
      %v709 = vld [vmem:[%s258 + $0xd40] sm:$0xff]
      %v710 = vld [vmem:[%s258 + $0xd48] sm:$0xff]
      %v711 = vld [vmem:[%s258 + $0xd50] sm:$0xff]
      %v712 = vld [vmem:[%s258 + $0xd58] sm:$0xff]
      %v713 = vld [vmem:[%s258 + $0xd60] sm:$0xff]
      %v714 = vld [vmem:[%s258 + $0xd68] sm:$0xff]
      %v715 = vld [vmem:[%s258 + $0xd70] sm:$0xff]
      %v716 = vld [vmem:[%s258 + $0xd78] sm:$0xff]
      %v717 = vld [vmem:[%s258 + $0xd80] sm:$0xff]
      %v718 = vld [vmem:[%s258 + $0xd88] sm:$0xff]
      %v719 = vld [vmem:[%s258 + $0xd90] sm:$0xff]
      %v720 = vld [vmem:[%s258 + $0xd98] sm:$0xff]
      %v721 = vld [vmem:[%s258 + $0xda0] sm:$0xff]
      %v722 = vld [vmem:[%s258 + $0xda8] sm:$0xff]
      %v723 = vld [vmem:[%s258 + $0xdb0] sm:$0xff]
      %v724 = vld [vmem:[%s258 + $0xdb8] sm:$0xff]
      %v725 = vld [vmem:[%s258 + $0xdc0] sm:$0xff]
      %v726 = vld [vmem:[%s258 + $0xdc8] sm:$0xff]
      %v727 = vld [vmem:[%s258 + $0xdd0] sm:$0xff]
      %v728 = vld [vmem:[%s258 + $0xdd8] sm:$0xff]
      %v729 = vld [vmem:[%s258 + $0xde0] sm:$0xff]
      %v730 = vld [vmem:[%s258 + $0xde8] sm:$0xff]
      %v731 = vld [vmem:[%s258 + $0xdf0] sm:$0xff]
      %v732 = vld [vmem:[%s258 + $0xdf8] sm:$0xff]
      %v733 = vld [vmem:[%s258 + $0xe00] sm:$0xff]
      %v734 = vld [vmem:[%s258 + $0xe08] sm:$0xff]
      %v735 = vld [vmem:[%s258 + $0xe10] sm:$0xff]
      %v736 = vld [vmem:[%s258 + $0xe18] sm:$0xff]
      %v737 = vld [vmem:[%s258 + $0xe20] sm:$0xff]
      %v738 = vld [vmem:[%s258 + $0xe28] sm:$0xff]
      %v739 = vld [vmem:[%s258 + $0xe30] sm:$0xff]
      %v740 = vld [vmem:[%s258 + $0xe38] sm:$0xff]
      %v741 = vld [vmem:[%s258 + $0xe40] sm:$0xff]
      %v742 = vld [vmem:[%s258 + $0xe48] sm:$0xff]
      %v743 = vld [vmem:[%s258 + $0xe50] sm:$0xff]
      %v744 = vld [vmem:[%s258 + $0xe58] sm:$0xff]
      %v745 = vld [vmem:[%s258 + $0xe60] sm:$0xff]
      %v746 = vld [vmem:[%s258 + $0xe68] sm:$0xff]
      %v747 = vld [vmem:[%s258 + $0xe70] sm:$0xff]
      %v748 = vld [vmem:[%s258 + $0xe78] sm:$0xff]
      %v749 = vld [vmem:[%s258 + $0xe80] sm:$0xff]
      %v750 = vld [vmem:[%s258 + $0xe88] sm:$0xff]
      %v751 = vld [vmem:[%s258 + $0xe90] sm:$0xff]
      %v752 = vld [vmem:[%s258 + $0xe98] sm:$0xff]
      %v753 = vld [vmem:[%s258 + $0xea0] sm:$0xff]
      %v754 = vld [vmem:[%s258 + $0xea8] sm:$0xff]
      %v755 = vld [vmem:[%s258 + $0xeb0] sm:$0xff]
      %v756 = vld [vmem:[%s258 + $0xeb8] sm:$0xff]
      %v757 = vld [vmem:[%s258 + $0xec0] sm:$0xff]
      %v758 = vld [vmem:[%s258 + $0xec8] sm:$0xff]
      %v759 = vld [vmem:[%s258 + $0xed0] sm:$0xff]
      %v760 = vld [vmem:[%s258 + $0xed8] sm:$0xff]
      %v761 = vld [vmem:[%s258 + $0xee0] sm:$0xff]
      %v762 = vld [vmem:[%s258 + $0xee8] sm:$0xff]
      %v763 = vld [vmem:[%s258 + $0xef0] sm:$0xff]
      %v764 = vld [vmem:[%s258 + $0xef8] sm:$0xff]
      %v765 = vld [vmem:[%s258 + $0xf00] sm:$0xff]
      %v766 = vld [vmem:[%s258 + $0xf08] sm:$0xff]
      %v767 = vld [vmem:[%s258 + $0xf10] sm:$0xff]
      %v768 = vld [vmem:[%s258 + $0xf18] sm:$0xff]
      %v769 = vld [vmem:[%s258 + $0xf20] sm:$0xff]
      %v770 = vld [vmem:[%s258 + $0xf28] sm:$0xff]
      %v771 = vld [vmem:[%s258 + $0xf30] sm:$0xff]
      %v772 = vld [vmem:[%s258 + $0xf38] sm:$0xff]
      %v773 = vld [vmem:[%s258 + $0xf40] sm:$0xff]
      %v774 = vld [vmem:[%s258 + $0xf48] sm:$0xff]
      %v775 = vld [vmem:[%s258 + $0xf50] sm:$0xff]
      %v776 = vld [vmem:[%s258 + $0xf58] sm:$0xff]
      %v777 = vld [vmem:[%s258 + $0xf60] sm:$0xff]
      %v778 = vld [vmem:[%s258 + $0xf68] sm:$0xff]
      %v779 = vld [vmem:[%s258 + $0xf70] sm:$0xff]
      %v780 = vld [vmem:[%s258 + $0xf78] sm:$0xff]
      %v781 = vld [vmem:[%s258 + $0xf80] sm:$0xff]
      %v782 = vld [vmem:[%s258 + $0xf88] sm:$0xff]
      %v783 = vld [vmem:[%s258 + $0xf90] sm:$0xff]
      %v784 = vld [vmem:[%s258 + $0xf98] sm:$0xff]
      %v785 = vld [vmem:[%s258 + $0xfa0] sm:$0xff]
      %v786 = vld [vmem:[%s258 + $0xfa8] sm:$0xff]
      %v787 = vld [vmem:[%s258 + $0xfb0] sm:$0xff]
      %v788 = vld [vmem:[%s258 + $0xfb8] sm:$0xff]
      %v789 = vld [vmem:[%s258 + $0xfc0] sm:$0xff]
      %v790 = vld [vmem:[%s258 + $0xfc8] sm:$0xff]
      %v791 = vld [vmem:[%s258 + $0xfd0] sm:$0xff]
      %v792 = vld [vmem:[%s258 + $0xfd8] sm:$0xff]
      %v793 = vld [vmem:[%s258 + $0xfe0] sm:$0xff]
      %v794 = vld [vmem:[%s258 + $0xfe8] sm:$0xff]
      %v795 = vld [vmem:[%s258 + $0xff0] sm:$0xff]
      %v796 = vld [vmem:[%s258 + $0xff8] sm:$0xff]
      %v797 = vld [vmem:[%s2] sm:$0xf]
      %v799 = vperm.slane %v797, 0
      %v800 = vperm.slane %v797, 1
      %v801 = vperm.slane %v797, 2
      %v802 = vperm.slane %v797, 3
      %v815 = vunpack.c.l.b16 %v277
      %v816 = vunpack.c.h.b16 %v277
      %v817 = vunpack.c.l.b16 %v278
      %v818 = vunpack.c.h.b16 %v278
      %v819 = vunpack.c.l.b16 %v279
      %v820 = vunpack.c.h.b16 %v279
      %v821 = vunpack.c.l.b16 %v280
      %v822 = vunpack.c.h.b16 %v280
      %v823 = vunpack.c.l.b16 %v281
      %v824 = vunpack.c.h.b16 %v281
      %v825 = vunpack.c.l.b16 %v282
      %v826 = vunpack.c.h.b16 %v282
      %v827 = vunpack.c.l.b16 %v283
      %v828 = vunpack.c.h.b16 %v283
      %v829 = vunpack.c.l.b16 %v284
      %v830 = vunpack.c.h.b16 %v284
      %v831 = vpack.c.b16 %v815, %v815
      %v832 = vpack.c.b16 %v816, %v816
      %v833 = vpack.c.b16 %v817, %v817
      %v834 = vpack.c.b16 %v818, %v818
      %v835 = vpack.c.b16 %v819, %v819
      %v836 = vpack.c.b16 %v820, %v820
      %v837 = vpack.c.b16 %v821, %v821
      %v838 = vpack.c.b16 %v822, %v822
      %v839 = vpack.c.b16 %v823, %v823
      %v840 = vpack.c.b16 %v824, %v824
      %v841 = vpack.c.b16 %v825, %v825
      %v842 = vpack.c.b16 %v826, %v826
      %v843 = vpack.c.b16 %v827, %v827
      %v844 = vpack.c.b16 %v828, %v828
      %v845 = vpack.c.b16 %v829, %v829
      %v846 = vpack.c.b16 %v830, %v830
      %v1375 = vunpack.c.l.b16 %v285
      %v1376 = vunpack.c.h.b16 %v285
      %v1377 = vunpack.c.l.b16 %v286
      %v1378 = vunpack.c.h.b16 %v286
      %v1379 = vunpack.c.l.b16 %v287
      %v1380 = vunpack.c.h.b16 %v287
      %v1381 = vunpack.c.l.b16 %v288
      %v1382 = vunpack.c.h.b16 %v288
      %v1383 = vunpack.c.l.b16 %v289
      %v1384 = vunpack.c.h.b16 %v289
      %v1385 = vunpack.c.l.b16 %v290
      %v1386 = vunpack.c.h.b16 %v290
      %v1387 = vunpack.c.l.b16 %v291
      %v1388 = vunpack.c.h.b16 %v291
      %v1389 = vunpack.c.l.b16 %v292
      %v1390 = vunpack.c.h.b16 %v292
      %v1391 = vunpack.c.l.b16 %v293
      %v1392 = vunpack.c.h.b16 %v293
      %v1393 = vunpack.c.l.b16 %v294
      %v1394 = vunpack.c.h.b16 %v294
      %v1395 = vunpack.c.l.b16 %v295
      %v1396 = vunpack.c.h.b16 %v295
      %v1397 = vunpack.c.l.b16 %v296
      %v1398 = vunpack.c.h.b16 %v296
      %v1399 = vunpack.c.l.b16 %v297
      %v1400 = vunpack.c.h.b16 %v297
      %v1401 = vunpack.c.l.b16 %v298
      %v1402 = vunpack.c.h.b16 %v298
      %v1403 = vunpack.c.l.b16 %v299
      %v1404 = vunpack.c.h.b16 %v299
      %v1405 = vunpack.c.l.b16 %v300
      %v1406 = vunpack.c.h.b16 %v300
      %v1407 = vunpack.c.l.b16 %v301
      %v1408 = vunpack.c.h.b16 %v301
      %v1409 = vunpack.c.l.b16 %v302
      %v1410 = vunpack.c.h.b16 %v302
      %v1411 = vunpack.c.l.b16 %v303
      %v1412 = vunpack.c.h.b16 %v303
      %v1413 = vunpack.c.l.b16 %v304
      %v1414 = vunpack.c.h.b16 %v304
      %v1415 = vunpack.c.l.b16 %v305
      %v1416 = vunpack.c.h.b16 %v305
      %v1417 = vunpack.c.l.b16 %v306
      %v1418 = vunpack.c.h.b16 %v306
      %v1419 = vunpack.c.l.b16 %v307
      %v1420 = vunpack.c.h.b16 %v307
      %v1421 = vunpack.c.l.b16 %v308
      %v1422 = vunpack.c.h.b16 %v308
      %v1423 = vunpack.c.l.b16 %v309
      %v1424 = vunpack.c.h.b16 %v309
      %v1425 = vunpack.c.l.b16 %v310
      %v1426 = vunpack.c.h.b16 %v310
      %v1427 = vunpack.c.l.b16 %v311
      %v1428 = vunpack.c.h.b16 %v311
      %v1429 = vunpack.c.l.b16 %v312
      %v1430 = vunpack.c.h.b16 %v312
      %v1431 = vunpack.c.l.b16 %v313
      %v1432 = vunpack.c.h.b16 %v313
      %v1433 = vunpack.c.l.b16 %v314
      %v1434 = vunpack.c.h.b16 %v314
      %v1435 = vunpack.c.l.b16 %v315
      %v1436 = vunpack.c.h.b16 %v315
      %v1437 = vunpack.c.l.b16 %v316
      %v1438 = vunpack.c.h.b16 %v316
      %v1439 = vunpack.c.l.b16 %v317
      %v1440 = vunpack.c.h.b16 %v317
      %v1441 = vunpack.c.l.b16 %v318
      %v1442 = vunpack.c.h.b16 %v318
      %v1443 = vunpack.c.l.b16 %v319
      %v1444 = vunpack.c.h.b16 %v319
      %v1445 = vunpack.c.l.b16 %v320
      %v1446 = vunpack.c.h.b16 %v320
      %v1447 = vunpack.c.l.b16 %v321
      %v1448 = vunpack.c.h.b16 %v321
      %v1449 = vunpack.c.l.b16 %v322
      %v1450 = vunpack.c.h.b16 %v322
      %v1451 = vunpack.c.l.b16 %v323
      %v1452 = vunpack.c.h.b16 %v323
      %v1453 = vunpack.c.l.b16 %v324
      %v1454 = vunpack.c.h.b16 %v324
      %v1455 = vunpack.c.l.b16 %v325
      %v1456 = vunpack.c.h.b16 %v325
      %v1457 = vunpack.c.l.b16 %v326
      %v1458 = vunpack.c.h.b16 %v326
      %v1459 = vunpack.c.l.b16 %v327
      %v1460 = vunpack.c.h.b16 %v327
      %v1461 = vunpack.c.l.b16 %v328
      %v1462 = vunpack.c.h.b16 %v328
      %v1463 = vunpack.c.l.b16 %v329
      %v1464 = vunpack.c.h.b16 %v329
      %v1465 = vunpack.c.l.b16 %v330
      %v1466 = vunpack.c.h.b16 %v330
      %v1467 = vunpack.c.l.b16 %v331
      %v1468 = vunpack.c.h.b16 %v331
      %v1469 = vunpack.c.l.b16 %v332
      %v1470 = vunpack.c.h.b16 %v332
      %v1471 = vunpack.c.l.b16 %v333
      %v1472 = vunpack.c.h.b16 %v333
      %v1473 = vunpack.c.l.b16 %v334
      %v1474 = vunpack.c.h.b16 %v334
      %v1475 = vunpack.c.l.b16 %v335
      %v1476 = vunpack.c.h.b16 %v335
      %v1477 = vunpack.c.l.b16 %v336
      %v1478 = vunpack.c.h.b16 %v336
      %v1479 = vunpack.c.l.b16 %v337
      %v1480 = vunpack.c.h.b16 %v337
      %v1481 = vunpack.c.l.b16 %v338
      %v1482 = vunpack.c.h.b16 %v338
      %v1483 = vunpack.c.l.b16 %v339
      %v1484 = vunpack.c.h.b16 %v339
      %v1485 = vunpack.c.l.b16 %v340
      %v1486 = vunpack.c.h.b16 %v340
      %v1487 = vunpack.c.l.b16 %v341
      %v1488 = vunpack.c.h.b16 %v341
      %v1489 = vunpack.c.l.b16 %v342
      %v1490 = vunpack.c.h.b16 %v342
      %v1491 = vunpack.c.l.b16 %v343
      %v1492 = vunpack.c.h.b16 %v343
      %v1493 = vunpack.c.l.b16 %v344
      %v1494 = vunpack.c.h.b16 %v344
      %v1495 = vunpack.c.l.b16 %v345
      %v1496 = vunpack.c.h.b16 %v345
      %v1497 = vunpack.c.l.b16 %v346
      %v1498 = vunpack.c.h.b16 %v346
      %v1499 = vunpack.c.l.b16 %v347
      %v1500 = vunpack.c.h.b16 %v347
      %v1501 = vunpack.c.l.b16 %v348
      %v1502 = vunpack.c.h.b16 %v348
      %v1503 = vunpack.c.l.b16 %v349
      %v1504 = vunpack.c.h.b16 %v349
      %v1505 = vunpack.c.l.b16 %v350
      %v1506 = vunpack.c.h.b16 %v350
      %v1507 = vunpack.c.l.b16 %v351
      %v1508 = vunpack.c.h.b16 %v351
      %v1509 = vunpack.c.l.b16 %v352
      %v1510 = vunpack.c.h.b16 %v352
      %v1511 = vunpack.c.l.b16 %v353
      %v1512 = vunpack.c.h.b16 %v353
      %v1513 = vunpack.c.l.b16 %v354
      %v1514 = vunpack.c.h.b16 %v354
      %v1515 = vunpack.c.l.b16 %v355
      %v1516 = vunpack.c.h.b16 %v355
      %v1517 = vunpack.c.l.b16 %v356
      %v1518 = vunpack.c.h.b16 %v356
      %v1519 = vunpack.c.l.b16 %v357
      %v1520 = vunpack.c.h.b16 %v357
      %v1521 = vunpack.c.l.b16 %v358
      %v1522 = vunpack.c.h.b16 %v358
      %v1523 = vunpack.c.l.b16 %v359
      %v1524 = vunpack.c.h.b16 %v359
      %v1525 = vunpack.c.l.b16 %v360
      %v1526 = vunpack.c.h.b16 %v360
      %v1527 = vunpack.c.l.b16 %v361
      %v1528 = vunpack.c.h.b16 %v361
      %v1529 = vunpack.c.l.b16 %v362
      %v1530 = vunpack.c.h.b16 %v362
      %v1531 = vunpack.c.l.b16 %v363
      %v1532 = vunpack.c.h.b16 %v363
      %v1533 = vunpack.c.l.b16 %v364
      %v1534 = vunpack.c.h.b16 %v364
      %v1535 = vunpack.c.l.b16 %v365
      %v1536 = vunpack.c.h.b16 %v365
      %v1537 = vunpack.c.l.b16 %v366
      %v1538 = vunpack.c.h.b16 %v366
      %v1539 = vunpack.c.l.b16 %v367
      %v1540 = vunpack.c.h.b16 %v367
      %v1541 = vunpack.c.l.b16 %v368
      %v1542 = vunpack.c.h.b16 %v368
      %v1543 = vunpack.c.l.b16 %v369
      %v1544 = vunpack.c.h.b16 %v369
      %v1545 = vunpack.c.l.b16 %v370
      %v1546 = vunpack.c.h.b16 %v370
      %v1547 = vunpack.c.l.b16 %v371
      %v1548 = vunpack.c.h.b16 %v371
      %v1549 = vunpack.c.l.b16 %v372
      %v1550 = vunpack.c.h.b16 %v372
      %v1551 = vunpack.c.l.b16 %v373
      %v1552 = vunpack.c.h.b16 %v373
      %v1553 = vunpack.c.l.b16 %v374
      %v1554 = vunpack.c.h.b16 %v374
      %v1555 = vunpack.c.l.b16 %v375
      %v1556 = vunpack.c.h.b16 %v375
      %v1557 = vunpack.c.l.b16 %v376
      %v1558 = vunpack.c.h.b16 %v376
      %v1559 = vunpack.c.l.b16 %v377
      %v1560 = vunpack.c.h.b16 %v377
      %v1561 = vunpack.c.l.b16 %v378
      %v1562 = vunpack.c.h.b16 %v378
      %v1563 = vunpack.c.l.b16 %v379
      %v1564 = vunpack.c.h.b16 %v379
      %v1565 = vunpack.c.l.b16 %v380
      %v1566 = vunpack.c.h.b16 %v380
      %v1567 = vunpack.c.l.b16 %v381
      %v1568 = vunpack.c.h.b16 %v381
      %v1569 = vunpack.c.l.b16 %v382
      %v1570 = vunpack.c.h.b16 %v382
      %v1571 = vunpack.c.l.b16 %v383
      %v1572 = vunpack.c.h.b16 %v383
      %v1573 = vunpack.c.l.b16 %v384
      %v1574 = vunpack.c.h.b16 %v384
      %v1575 = vunpack.c.l.b16 %v385
      %v1576 = vunpack.c.h.b16 %v385
      %v1577 = vunpack.c.l.b16 %v386
      %v1578 = vunpack.c.h.b16 %v386
      %v1579 = vunpack.c.l.b16 %v387
      %v1580 = vunpack.c.h.b16 %v387
      %v1581 = vunpack.c.l.b16 %v388
      %v1582 = vunpack.c.h.b16 %v388
      %v1583 = vunpack.c.l.b16 %v389
      %v1584 = vunpack.c.h.b16 %v389
      %v1585 = vunpack.c.l.b16 %v390
      %v1586 = vunpack.c.h.b16 %v390
      %v1587 = vunpack.c.l.b16 %v391
      %v1588 = vunpack.c.h.b16 %v391
      %v1589 = vunpack.c.l.b16 %v392
      %v1590 = vunpack.c.h.b16 %v392
      %v1591 = vunpack.c.l.b16 %v393
      %v1592 = vunpack.c.h.b16 %v393
      %v1593 = vunpack.c.l.b16 %v394
      %v1594 = vunpack.c.h.b16 %v394
      %v1595 = vunpack.c.l.b16 %v395
      %v1596 = vunpack.c.h.b16 %v395
      %v1597 = vunpack.c.l.b16 %v396
      %v1598 = vunpack.c.h.b16 %v396
      %v1599 = vunpack.c.l.b16 %v397
      %v1600 = vunpack.c.h.b16 %v397
      %v1601 = vunpack.c.l.b16 %v398
      %v1602 = vunpack.c.h.b16 %v398
      %v1603 = vunpack.c.l.b16 %v399
      %v1604 = vunpack.c.h.b16 %v399
      %v1605 = vunpack.c.l.b16 %v400
      %v1606 = vunpack.c.h.b16 %v400
      %v1607 = vunpack.c.l.b16 %v401
      %v1608 = vunpack.c.h.b16 %v401
      %v1609 = vunpack.c.l.b16 %v402
      %v1610 = vunpack.c.h.b16 %v402
      %v1611 = vunpack.c.l.b16 %v403
      %v1612 = vunpack.c.h.b16 %v403
      %v1613 = vunpack.c.l.b16 %v404
      %v1614 = vunpack.c.h.b16 %v404
      %v1615 = vunpack.c.l.b16 %v405
      %v1616 = vunpack.c.h.b16 %v405
      %v1617 = vunpack.c.l.b16 %v406
      %v1618 = vunpack.c.h.b16 %v406
      %v1619 = vunpack.c.l.b16 %v407
      %v1620 = vunpack.c.h.b16 %v407
      %v1621 = vunpack.c.l.b16 %v408
      %v1622 = vunpack.c.h.b16 %v408
      %v1623 = vunpack.c.l.b16 %v409
      %v1624 = vunpack.c.h.b16 %v409
      %v1625 = vunpack.c.l.b16 %v410
      %v1626 = vunpack.c.h.b16 %v410
      %v1627 = vunpack.c.l.b16 %v411
      %v1628 = vunpack.c.h.b16 %v411
      %v1629 = vunpack.c.l.b16 %v412
      %v1630 = vunpack.c.h.b16 %v412
      %v1631 = vunpack.c.l.b16 %v413
      %v1632 = vunpack.c.h.b16 %v413
      %v1633 = vunpack.c.l.b16 %v414
      %v1634 = vunpack.c.h.b16 %v414
      %v1635 = vunpack.c.l.b16 %v415
      %v1636 = vunpack.c.h.b16 %v415
      %v1637 = vunpack.c.l.b16 %v416
      %v1638 = vunpack.c.h.b16 %v416
      %v1639 = vunpack.c.l.b16 %v417
      %v1640 = vunpack.c.h.b16 %v417
      %v1641 = vunpack.c.l.b16 %v418
      %v1642 = vunpack.c.h.b16 %v418
      %v1643 = vunpack.c.l.b16 %v419
      %v1644 = vunpack.c.h.b16 %v419
      %v1645 = vunpack.c.l.b16 %v420
      %v1646 = vunpack.c.h.b16 %v420
      %v1647 = vunpack.c.l.b16 %v421
      %v1648 = vunpack.c.h.b16 %v421
      %v1649 = vunpack.c.l.b16 %v422
      %v1650 = vunpack.c.h.b16 %v422
      %v1651 = vunpack.c.l.b16 %v423
      %v1652 = vunpack.c.h.b16 %v423
      %v1653 = vunpack.c.l.b16 %v424
      %v1654 = vunpack.c.h.b16 %v424
      %v1655 = vunpack.c.l.b16 %v425
      %v1656 = vunpack.c.h.b16 %v425
      %v1657 = vunpack.c.l.b16 %v426
      %v1658 = vunpack.c.h.b16 %v426
      %v1659 = vunpack.c.l.b16 %v427
      %v1660 = vunpack.c.h.b16 %v427
      %v1661 = vunpack.c.l.b16 %v428
      %v1662 = vunpack.c.h.b16 %v428
      %v1663 = vunpack.c.l.b16 %v429
      %v1664 = vunpack.c.h.b16 %v429
      %v1665 = vunpack.c.l.b16 %v430
      %v1666 = vunpack.c.h.b16 %v430
      %v1667 = vunpack.c.l.b16 %v431
      %v1668 = vunpack.c.h.b16 %v431
      %v1669 = vunpack.c.l.b16 %v432
      %v1670 = vunpack.c.h.b16 %v432
      %v1671 = vunpack.c.l.b16 %v433
      %v1672 = vunpack.c.h.b16 %v433
      %v1673 = vunpack.c.l.b16 %v434
      %v1674 = vunpack.c.h.b16 %v434
      %v1675 = vunpack.c.l.b16 %v435
      %v1676 = vunpack.c.h.b16 %v435
      %v1677 = vunpack.c.l.b16 %v436
      %v1678 = vunpack.c.h.b16 %v436
      %v1679 = vunpack.c.l.b16 %v437
      %v1680 = vunpack.c.h.b16 %v437
      %v1681 = vunpack.c.l.b16 %v438
      %v1682 = vunpack.c.h.b16 %v438
      %v1683 = vunpack.c.l.b16 %v439
      %v1684 = vunpack.c.h.b16 %v439
      %v1685 = vunpack.c.l.b16 %v440
      %v1686 = vunpack.c.h.b16 %v440
      %v1687 = vunpack.c.l.b16 %v441
      %v1688 = vunpack.c.h.b16 %v441
      %v1689 = vunpack.c.l.b16 %v442
      %v1690 = vunpack.c.h.b16 %v442
      %v1691 = vunpack.c.l.b16 %v443
      %v1692 = vunpack.c.h.b16 %v443
      %v1693 = vunpack.c.l.b16 %v444
      %v1694 = vunpack.c.h.b16 %v444
      %v1695 = vunpack.c.l.b16 %v445
      %v1696 = vunpack.c.h.b16 %v445
      %v1697 = vunpack.c.l.b16 %v446
      %v1698 = vunpack.c.h.b16 %v446
      %v1699 = vunpack.c.l.b16 %v447
      %v1700 = vunpack.c.h.b16 %v447
      %v1701 = vunpack.c.l.b16 %v448
      %v1702 = vunpack.c.h.b16 %v448
      %v1703 = vunpack.c.l.b16 %v449
      %v1704 = vunpack.c.h.b16 %v449
      %v1705 = vunpack.c.l.b16 %v450
      %v1706 = vunpack.c.h.b16 %v450
      %v1707 = vunpack.c.l.b16 %v451
      %v1708 = vunpack.c.h.b16 %v451
      %v1709 = vunpack.c.l.b16 %v452
      %v1710 = vunpack.c.h.b16 %v452
      %v1711 = vunpack.c.l.b16 %v453
      %v1712 = vunpack.c.h.b16 %v453
      %v1713 = vunpack.c.l.b16 %v454
      %v1714 = vunpack.c.h.b16 %v454
      %v1715 = vunpack.c.l.b16 %v455
      %v1716 = vunpack.c.h.b16 %v455
      %v1717 = vunpack.c.l.b16 %v456
      %v1718 = vunpack.c.h.b16 %v456
      %v1719 = vunpack.c.l.b16 %v457
      %v1720 = vunpack.c.h.b16 %v457
      %v1721 = vunpack.c.l.b16 %v458
      %v1722 = vunpack.c.h.b16 %v458
      %v1723 = vunpack.c.l.b16 %v459
      %v1724 = vunpack.c.h.b16 %v459
      %v1725 = vunpack.c.l.b16 %v460
      %v1726 = vunpack.c.h.b16 %v460
      %v1727 = vunpack.c.l.b16 %v461
      %v1728 = vunpack.c.h.b16 %v461
      %v1729 = vunpack.c.l.b16 %v462
      %v1730 = vunpack.c.h.b16 %v462
      %v1731 = vunpack.c.l.b16 %v463
      %v1732 = vunpack.c.h.b16 %v463
      %v1733 = vunpack.c.l.b16 %v464
      %v1734 = vunpack.c.h.b16 %v464
      %v1735 = vunpack.c.l.b16 %v465
      %v1736 = vunpack.c.h.b16 %v465
      %v1737 = vunpack.c.l.b16 %v466
      %v1738 = vunpack.c.h.b16 %v466
      %v1739 = vunpack.c.l.b16 %v467
      %v1740 = vunpack.c.h.b16 %v467
      %v1741 = vunpack.c.l.b16 %v468
      %v1742 = vunpack.c.h.b16 %v468
      %v1743 = vunpack.c.l.b16 %v469
      %v1744 = vunpack.c.h.b16 %v469
      %v1745 = vunpack.c.l.b16 %v470
      %v1746 = vunpack.c.h.b16 %v470
      %v1747 = vunpack.c.l.b16 %v471
      %v1748 = vunpack.c.h.b16 %v471
      %v1749 = vunpack.c.l.b16 %v472
      %v1750 = vunpack.c.h.b16 %v472
      %v1751 = vunpack.c.l.b16 %v473
      %v1752 = vunpack.c.h.b16 %v473
      %v1753 = vunpack.c.l.b16 %v474
      %v1754 = vunpack.c.h.b16 %v474
      %v1755 = vunpack.c.l.b16 %v475
      %v1756 = vunpack.c.h.b16 %v475
      %v1757 = vunpack.c.l.b16 %v476
      %v1758 = vunpack.c.h.b16 %v476
      %v1759 = vunpack.c.l.b16 %v477
      %v1760 = vunpack.c.h.b16 %v477
      %v1761 = vunpack.c.l.b16 %v478
      %v1762 = vunpack.c.h.b16 %v478
      %v1763 = vunpack.c.l.b16 %v479
      %v1764 = vunpack.c.h.b16 %v479
      %v1765 = vunpack.c.l.b16 %v480
      %v1766 = vunpack.c.h.b16 %v480
      %v1767 = vunpack.c.l.b16 %v481
      %v1768 = vunpack.c.h.b16 %v481
      %v1769 = vunpack.c.l.b16 %v482
      %v1770 = vunpack.c.h.b16 %v482
      %v1771 = vunpack.c.l.b16 %v483
      %v1772 = vunpack.c.h.b16 %v483
      %v1773 = vunpack.c.l.b16 %v484
      %v1774 = vunpack.c.h.b16 %v484
      %v1775 = vunpack.c.l.b16 %v485
      %v1776 = vunpack.c.h.b16 %v485
      %v1777 = vunpack.c.l.b16 %v486
      %v1778 = vunpack.c.h.b16 %v486
      %v1779 = vunpack.c.l.b16 %v487
      %v1780 = vunpack.c.h.b16 %v487
      %v1781 = vunpack.c.l.b16 %v488
      %v1782 = vunpack.c.h.b16 %v488
      %v1783 = vunpack.c.l.b16 %v489
      %v1784 = vunpack.c.h.b16 %v489
      %v1785 = vunpack.c.l.b16 %v490
      %v1786 = vunpack.c.h.b16 %v490
      %v1787 = vunpack.c.l.b16 %v491
      %v1788 = vunpack.c.h.b16 %v491
      %v1789 = vunpack.c.l.b16 %v492
      %v1790 = vunpack.c.h.b16 %v492
      %v1791 = vunpack.c.l.b16 %v493
      %v1792 = vunpack.c.h.b16 %v493
      %v1793 = vunpack.c.l.b16 %v494
      %v1794 = vunpack.c.h.b16 %v494
      %v1795 = vunpack.c.l.b16 %v495
      %v1796 = vunpack.c.h.b16 %v495
      %v1797 = vunpack.c.l.b16 %v496
      %v1798 = vunpack.c.h.b16 %v496
      %v1799 = vunpack.c.l.b16 %v497
      %v1800 = vunpack.c.h.b16 %v497
      %v1801 = vunpack.c.l.b16 %v498
      %v1802 = vunpack.c.h.b16 %v498
      %v1803 = vunpack.c.l.b16 %v499
      %v1804 = vunpack.c.h.b16 %v499
      %v1805 = vunpack.c.l.b16 %v500
      %v1806 = vunpack.c.h.b16 %v500
      %v1807 = vunpack.c.l.b16 %v501
      %v1808 = vunpack.c.h.b16 %v501
      %v1809 = vunpack.c.l.b16 %v502
      %v1810 = vunpack.c.h.b16 %v502
      %v1811 = vunpack.c.l.b16 %v503
      %v1812 = vunpack.c.h.b16 %v503
      %v1813 = vunpack.c.l.b16 %v504
      %v1814 = vunpack.c.h.b16 %v504
      %v1815 = vunpack.c.l.b16 %v505
      %v1816 = vunpack.c.h.b16 %v505
      %v1817 = vunpack.c.l.b16 %v506
      %v1818 = vunpack.c.h.b16 %v506
      %v1819 = vunpack.c.l.b16 %v507
      %v1820 = vunpack.c.h.b16 %v507
      %v1821 = vunpack.c.l.b16 %v508
      %v1822 = vunpack.c.h.b16 %v508
      %v1823 = vunpack.c.l.b16 %v509
      %v1824 = vunpack.c.h.b16 %v509
      %v1825 = vunpack.c.l.b16 %v510
      %v1826 = vunpack.c.h.b16 %v510
      %v1827 = vunpack.c.l.b16 %v511
      %v1828 = vunpack.c.h.b16 %v511
      %v1829 = vunpack.c.l.b16 %v512
      %v1830 = vunpack.c.h.b16 %v512
      %v1831 = vunpack.c.l.b16 %v513
      %v1832 = vunpack.c.h.b16 %v513
      %v1833 = vunpack.c.l.b16 %v514
      %v1834 = vunpack.c.h.b16 %v514
      %v1835 = vunpack.c.l.b16 %v515
      %v1836 = vunpack.c.h.b16 %v515
      %v1837 = vunpack.c.l.b16 %v516
      %v1838 = vunpack.c.h.b16 %v516
      %v1839 = vunpack.c.l.b16 %v517
      %v1840 = vunpack.c.h.b16 %v517
      %v1841 = vunpack.c.l.b16 %v518
      %v1842 = vunpack.c.h.b16 %v518
      %v1843 = vunpack.c.l.b16 %v519
      %v1844 = vunpack.c.h.b16 %v519
      %v1845 = vunpack.c.l.b16 %v520
      %v1846 = vunpack.c.h.b16 %v520
      %v1847 = vunpack.c.l.b16 %v521
      %v1848 = vunpack.c.h.b16 %v521
      %v1849 = vunpack.c.l.b16 %v522
      %v1850 = vunpack.c.h.b16 %v522
      %v1851 = vunpack.c.l.b16 %v523
      %v1852 = vunpack.c.h.b16 %v523
      %v1853 = vunpack.c.l.b16 %v524
      %v1854 = vunpack.c.h.b16 %v524
      %v1855 = vunpack.c.l.b16 %v525
      %v1856 = vunpack.c.h.b16 %v525
      %v1857 = vunpack.c.l.b16 %v526
      %v1858 = vunpack.c.h.b16 %v526
      %v1859 = vunpack.c.l.b16 %v527
      %v1860 = vunpack.c.h.b16 %v527
      %v1861 = vunpack.c.l.b16 %v528
      %v1862 = vunpack.c.h.b16 %v528
      %v1863 = vunpack.c.l.b16 %v529
      %v1864 = vunpack.c.h.b16 %v529
      %v1865 = vunpack.c.l.b16 %v530
      %v1866 = vunpack.c.h.b16 %v530
      %v1867 = vunpack.c.l.b16 %v531
      %v1868 = vunpack.c.h.b16 %v531
      %v1869 = vunpack.c.l.b16 %v532
      %v1870 = vunpack.c.h.b16 %v532
      %v1871 = vunpack.c.l.b16 %v533
      %v1872 = vunpack.c.h.b16 %v533
      %v1873 = vunpack.c.l.b16 %v534
      %v1874 = vunpack.c.h.b16 %v534
      %v1875 = vunpack.c.l.b16 %v535
      %v1876 = vunpack.c.h.b16 %v535
      %v1877 = vunpack.c.l.b16 %v536
      %v1878 = vunpack.c.h.b16 %v536
      %v1879 = vunpack.c.l.b16 %v537
      %v1880 = vunpack.c.h.b16 %v537
      %v1881 = vunpack.c.l.b16 %v538
      %v1882 = vunpack.c.h.b16 %v538
      %v1883 = vunpack.c.l.b16 %v539
      %v1884 = vunpack.c.h.b16 %v539
      %v1885 = vunpack.c.l.b16 %v540
      %v1886 = vunpack.c.h.b16 %v540
      %v1887 = vunpack.c.l.b16 %v541
      %v1888 = vunpack.c.h.b16 %v541
      %v1889 = vunpack.c.l.b16 %v542
      %v1890 = vunpack.c.h.b16 %v542
      %v1891 = vunpack.c.l.b16 %v543
      %v1892 = vunpack.c.h.b16 %v543
      %v1893 = vunpack.c.l.b16 %v544
      %v1894 = vunpack.c.h.b16 %v544
      %v1895 = vunpack.c.l.b16 %v545
      %v1896 = vunpack.c.h.b16 %v545
      %v1897 = vunpack.c.l.b16 %v546
      %v1898 = vunpack.c.h.b16 %v546
      %v1899 = vunpack.c.l.b16 %v547
      %v1900 = vunpack.c.h.b16 %v547
      %v1901 = vunpack.c.l.b16 %v548
      %v1902 = vunpack.c.h.b16 %v548
      %v1903 = vunpack.c.l.b16 %v549
      %v1904 = vunpack.c.h.b16 %v549
      %v1905 = vunpack.c.l.b16 %v550
      %v1906 = vunpack.c.h.b16 %v550
      %v1907 = vunpack.c.l.b16 %v551
      %v1908 = vunpack.c.h.b16 %v551
      %v1909 = vunpack.c.l.b16 %v552
      %v1910 = vunpack.c.h.b16 %v552
      %v1911 = vunpack.c.l.b16 %v553
      %v1912 = vunpack.c.h.b16 %v553
      %v1913 = vunpack.c.l.b16 %v554
      %v1914 = vunpack.c.h.b16 %v554
      %v1915 = vunpack.c.l.b16 %v555
      %v1916 = vunpack.c.h.b16 %v555
      %v1917 = vunpack.c.l.b16 %v556
      %v1918 = vunpack.c.h.b16 %v556
      %v1919 = vunpack.c.l.b16 %v557
      %v1920 = vunpack.c.h.b16 %v557
      %v1921 = vunpack.c.l.b16 %v558
      %v1922 = vunpack.c.h.b16 %v558
      %v1923 = vunpack.c.l.b16 %v559
      %v1924 = vunpack.c.h.b16 %v559
      %v1925 = vunpack.c.l.b16 %v560
      %v1926 = vunpack.c.h.b16 %v560
      %v1927 = vunpack.c.l.b16 %v561
      %v1928 = vunpack.c.h.b16 %v561
      %v1929 = vunpack.c.l.b16 %v562
      %v1930 = vunpack.c.h.b16 %v562
      %v1931 = vunpack.c.l.b16 %v563
      %v1932 = vunpack.c.h.b16 %v563
      %v1933 = vunpack.c.l.b16 %v564
      %v1934 = vunpack.c.h.b16 %v564
      %v1935 = vunpack.c.l.b16 %v565
      %v1936 = vunpack.c.h.b16 %v565
      %v1937 = vunpack.c.l.b16 %v566
      %v1938 = vunpack.c.h.b16 %v566
      %v1939 = vunpack.c.l.b16 %v567
      %v1940 = vunpack.c.h.b16 %v567
      %v1941 = vunpack.c.l.b16 %v568
      %v1942 = vunpack.c.h.b16 %v568
      %v1943 = vunpack.c.l.b16 %v569
      %v1944 = vunpack.c.h.b16 %v569
      %v1945 = vunpack.c.l.b16 %v570
      %v1946 = vunpack.c.h.b16 %v570
      %v1947 = vunpack.c.l.b16 %v571
      %v1948 = vunpack.c.h.b16 %v571
      %v1949 = vunpack.c.l.b16 %v572
      %v1950 = vunpack.c.h.b16 %v572
      %v1951 = vunpack.c.l.b16 %v573
      %v1952 = vunpack.c.h.b16 %v573
      %v1953 = vunpack.c.l.b16 %v574
      %v1954 = vunpack.c.h.b16 %v574
      %v1955 = vunpack.c.l.b16 %v575
      %v1956 = vunpack.c.h.b16 %v575
      %v1957 = vunpack.c.l.b16 %v576
      %v1958 = vunpack.c.h.b16 %v576
      %v1959 = vunpack.c.l.b16 %v577
      %v1960 = vunpack.c.h.b16 %v577
      %v1961 = vunpack.c.l.b16 %v578
      %v1962 = vunpack.c.h.b16 %v578
      %v1963 = vunpack.c.l.b16 %v579
      %v1964 = vunpack.c.h.b16 %v579
      %v1965 = vunpack.c.l.b16 %v580
      %v1966 = vunpack.c.h.b16 %v580
      %v1967 = vunpack.c.l.b16 %v581
      %v1968 = vunpack.c.h.b16 %v581
      %v1969 = vunpack.c.l.b16 %v582
      %v1970 = vunpack.c.h.b16 %v582
      %v1971 = vunpack.c.l.b16 %v583
      %v1972 = vunpack.c.h.b16 %v583
      %v1973 = vunpack.c.l.b16 %v584
      %v1974 = vunpack.c.h.b16 %v584
      %v1975 = vunpack.c.l.b16 %v585
      %v1976 = vunpack.c.h.b16 %v585
      %v1977 = vunpack.c.l.b16 %v586
      %v1978 = vunpack.c.h.b16 %v586
      %v1979 = vunpack.c.l.b16 %v587
      %v1980 = vunpack.c.h.b16 %v587
      %v1981 = vunpack.c.l.b16 %v588
      %v1982 = vunpack.c.h.b16 %v588
      %v1983 = vunpack.c.l.b16 %v589
      %v1984 = vunpack.c.h.b16 %v589
      %v1985 = vunpack.c.l.b16 %v590
      %v1986 = vunpack.c.h.b16 %v590
      %v1987 = vunpack.c.l.b16 %v591
      %v1988 = vunpack.c.h.b16 %v591
      %v1989 = vunpack.c.l.b16 %v592
      %v1990 = vunpack.c.h.b16 %v592
      %v1991 = vunpack.c.l.b16 %v593
      %v1992 = vunpack.c.h.b16 %v593
      %v1993 = vunpack.c.l.b16 %v594
      %v1994 = vunpack.c.h.b16 %v594
      %v1995 = vunpack.c.l.b16 %v595
      %v1996 = vunpack.c.h.b16 %v595
      %v1997 = vunpack.c.l.b16 %v596
      %v1998 = vunpack.c.h.b16 %v596
      %v1999 = vunpack.c.l.b16 %v597
      %v2000 = vunpack.c.h.b16 %v597
      %v2001 = vunpack.c.l.b16 %v598
      %v2002 = vunpack.c.h.b16 %v598
      %v2003 = vunpack.c.l.b16 %v599
      %v2004 = vunpack.c.h.b16 %v599
      %v2005 = vunpack.c.l.b16 %v600
      %v2006 = vunpack.c.h.b16 %v600
      %v2007 = vunpack.c.l.b16 %v601
      %v2008 = vunpack.c.h.b16 %v601
      %v2009 = vunpack.c.l.b16 %v602
      %v2010 = vunpack.c.h.b16 %v602
      %v2011 = vunpack.c.l.b16 %v603
      %v2012 = vunpack.c.h.b16 %v603
      %v2013 = vunpack.c.l.b16 %v604
      %v2014 = vunpack.c.h.b16 %v604
      %v2015 = vunpack.c.l.b16 %v605
      %v2016 = vunpack.c.h.b16 %v605
      %v2017 = vunpack.c.l.b16 %v606
      %v2018 = vunpack.c.h.b16 %v606
      %v2019 = vunpack.c.l.b16 %v607
      %v2020 = vunpack.c.h.b16 %v607
      %v2021 = vunpack.c.l.b16 %v608
      %v2022 = vunpack.c.h.b16 %v608
      %v2023 = vunpack.c.l.b16 %v609
      %v2024 = vunpack.c.h.b16 %v609
      %v2025 = vunpack.c.l.b16 %v610
      %v2026 = vunpack.c.h.b16 %v610
      %v2027 = vunpack.c.l.b16 %v611
      %v2028 = vunpack.c.h.b16 %v611
      %v2029 = vunpack.c.l.b16 %v612
      %v2030 = vunpack.c.h.b16 %v612
      %v2031 = vunpack.c.l.b16 %v613
      %v2032 = vunpack.c.h.b16 %v613
      %v2033 = vunpack.c.l.b16 %v614
      %v2034 = vunpack.c.h.b16 %v614
      %v2035 = vunpack.c.l.b16 %v615
      %v2036 = vunpack.c.h.b16 %v615
      %v2037 = vunpack.c.l.b16 %v616
      %v2038 = vunpack.c.h.b16 %v616
      %v2039 = vunpack.c.l.b16 %v617
      %v2040 = vunpack.c.h.b16 %v617
      %v2041 = vunpack.c.l.b16 %v618
      %v2042 = vunpack.c.h.b16 %v618
      %v2043 = vunpack.c.l.b16 %v619
      %v2044 = vunpack.c.h.b16 %v619
      %v2045 = vunpack.c.l.b16 %v620
      %v2046 = vunpack.c.h.b16 %v620
      %v2047 = vunpack.c.l.b16 %v621
      %v2048 = vunpack.c.h.b16 %v621
      %v2049 = vunpack.c.l.b16 %v622
      %v2050 = vunpack.c.h.b16 %v622
      %v2051 = vunpack.c.l.b16 %v623
      %v2052 = vunpack.c.h.b16 %v623
      %v2053 = vunpack.c.l.b16 %v624
      %v2054 = vunpack.c.h.b16 %v624
      %v2055 = vunpack.c.l.b16 %v625
      %v2056 = vunpack.c.h.b16 %v625
      %v2057 = vunpack.c.l.b16 %v626
      %v2058 = vunpack.c.h.b16 %v626
      %v2059 = vunpack.c.l.b16 %v627
      %v2060 = vunpack.c.h.b16 %v627
      %v2061 = vunpack.c.l.b16 %v628
      %v2062 = vunpack.c.h.b16 %v628
      %v2063 = vunpack.c.l.b16 %v629
      %v2064 = vunpack.c.h.b16 %v629
      %v2065 = vunpack.c.l.b16 %v630
      %v2066 = vunpack.c.h.b16 %v630
      %v2067 = vunpack.c.l.b16 %v631
      %v2068 = vunpack.c.h.b16 %v631
      %v2069 = vunpack.c.l.b16 %v632
      %v2070 = vunpack.c.h.b16 %v632
      %v2071 = vunpack.c.l.b16 %v633
      %v2072 = vunpack.c.h.b16 %v633
      %v2073 = vunpack.c.l.b16 %v634
      %v2074 = vunpack.c.h.b16 %v634
      %v2075 = vunpack.c.l.b16 %v635
      %v2076 = vunpack.c.h.b16 %v635
      %v2077 = vunpack.c.l.b16 %v636
      %v2078 = vunpack.c.h.b16 %v636
      %v2079 = vunpack.c.l.b16 %v637
      %v2080 = vunpack.c.h.b16 %v637
      %v2081 = vunpack.c.l.b16 %v638
      %v2082 = vunpack.c.h.b16 %v638
      %v2083 = vunpack.c.l.b16 %v639
      %v2084 = vunpack.c.h.b16 %v639
      %v2085 = vunpack.c.l.b16 %v640
      %v2086 = vunpack.c.h.b16 %v640
      %v2087 = vunpack.c.l.b16 %v641
      %v2088 = vunpack.c.h.b16 %v641
      %v2089 = vunpack.c.l.b16 %v642
      %v2090 = vunpack.c.h.b16 %v642
      %v2091 = vunpack.c.l.b16 %v643
      %v2092 = vunpack.c.h.b16 %v643
      %v2093 = vunpack.c.l.b16 %v644
      %v2094 = vunpack.c.h.b16 %v644
      %v2095 = vunpack.c.l.b16 %v645
      %v2096 = vunpack.c.h.b16 %v645
      %v2097 = vunpack.c.l.b16 %v646
      %v2098 = vunpack.c.h.b16 %v646
      %v2099 = vunpack.c.l.b16 %v647
      %v2100 = vunpack.c.h.b16 %v647
      %v2101 = vunpack.c.l.b16 %v648
      %v2102 = vunpack.c.h.b16 %v648
      %v2103 = vunpack.c.l.b16 %v649
      %v2104 = vunpack.c.h.b16 %v649
      %v2105 = vunpack.c.l.b16 %v650
      %v2106 = vunpack.c.h.b16 %v650
      %v2107 = vunpack.c.l.b16 %v651
      %v2108 = vunpack.c.h.b16 %v651
      %v2109 = vunpack.c.l.b16 %v652
      %v2110 = vunpack.c.h.b16 %v652
      %v2111 = vunpack.c.l.b16 %v653
      %v2112 = vunpack.c.h.b16 %v653
      %v2113 = vunpack.c.l.b16 %v654
      %v2114 = vunpack.c.h.b16 %v654
      %v2115 = vunpack.c.l.b16 %v655
      %v2116 = vunpack.c.h.b16 %v655
      %v2117 = vunpack.c.l.b16 %v656
      %v2118 = vunpack.c.h.b16 %v656
      %v2119 = vunpack.c.l.b16 %v657
      %v2120 = vunpack.c.h.b16 %v657
      %v2121 = vunpack.c.l.b16 %v658
      %v2122 = vunpack.c.h.b16 %v658
      %v2123 = vunpack.c.l.b16 %v659
      %v2124 = vunpack.c.h.b16 %v659
      %v2125 = vunpack.c.l.b16 %v660
      %v2126 = vunpack.c.h.b16 %v660
      %v2127 = vunpack.c.l.b16 %v661
      %v2128 = vunpack.c.h.b16 %v661
      %v2129 = vunpack.c.l.b16 %v662
      %v2130 = vunpack.c.h.b16 %v662
      %v2131 = vunpack.c.l.b16 %v663
      %v2132 = vunpack.c.h.b16 %v663
      %v2133 = vunpack.c.l.b16 %v664
      %v2134 = vunpack.c.h.b16 %v664
      %v2135 = vunpack.c.l.b16 %v665
      %v2136 = vunpack.c.h.b16 %v665
      %v2137 = vunpack.c.l.b16 %v666
      %v2138 = vunpack.c.h.b16 %v666
      %v2139 = vunpack.c.l.b16 %v667
      %v2140 = vunpack.c.h.b16 %v667
      %v2141 = vunpack.c.l.b16 %v668
      %v2142 = vunpack.c.h.b16 %v668
      %v2143 = vunpack.c.l.b16 %v669
      %v2144 = vunpack.c.h.b16 %v669
      %v2145 = vunpack.c.l.b16 %v670
      %v2146 = vunpack.c.h.b16 %v670
      %v2147 = vunpack.c.l.b16 %v671
      %v2148 = vunpack.c.h.b16 %v671
      %v2149 = vunpack.c.l.b16 %v672
      %v2150 = vunpack.c.h.b16 %v672
      %v2151 = vunpack.c.l.b16 %v673
      %v2152 = vunpack.c.h.b16 %v673
      %v2153 = vunpack.c.l.b16 %v674
      %v2154 = vunpack.c.h.b16 %v674
      %v2155 = vunpack.c.l.b16 %v675
      %v2156 = vunpack.c.h.b16 %v675
      %v2157 = vunpack.c.l.b16 %v676
      %v2158 = vunpack.c.h.b16 %v676
      %v2159 = vunpack.c.l.b16 %v677
      %v2160 = vunpack.c.h.b16 %v677
      %v2161 = vunpack.c.l.b16 %v678
      %v2162 = vunpack.c.h.b16 %v678
      %v2163 = vunpack.c.l.b16 %v679
      %v2164 = vunpack.c.h.b16 %v679
      %v2165 = vunpack.c.l.b16 %v680
      %v2166 = vunpack.c.h.b16 %v680
      %v2167 = vunpack.c.l.b16 %v681
      %v2168 = vunpack.c.h.b16 %v681
      %v2169 = vunpack.c.l.b16 %v682
      %v2170 = vunpack.c.h.b16 %v682
      %v2171 = vunpack.c.l.b16 %v683
      %v2172 = vunpack.c.h.b16 %v683
      %v2173 = vunpack.c.l.b16 %v684
      %v2174 = vunpack.c.h.b16 %v684
      %v2175 = vunpack.c.l.b16 %v685
      %v2176 = vunpack.c.h.b16 %v685
      %v2177 = vunpack.c.l.b16 %v686
      %v2178 = vunpack.c.h.b16 %v686
      %v2179 = vunpack.c.l.b16 %v687
      %v2180 = vunpack.c.h.b16 %v687
      %v2181 = vunpack.c.l.b16 %v688
      %v2182 = vunpack.c.h.b16 %v688
      %v2183 = vunpack.c.l.b16 %v689
      %v2184 = vunpack.c.h.b16 %v689
      %v2185 = vunpack.c.l.b16 %v690
      %v2186 = vunpack.c.h.b16 %v690
      %v2187 = vunpack.c.l.b16 %v691
      %v2188 = vunpack.c.h.b16 %v691
      %v2189 = vunpack.c.l.b16 %v692
      %v2190 = vunpack.c.h.b16 %v692
      %v2191 = vunpack.c.l.b16 %v693
      %v2192 = vunpack.c.h.b16 %v693
      %v2193 = vunpack.c.l.b16 %v694
      %v2194 = vunpack.c.h.b16 %v694
      %v2195 = vunpack.c.l.b16 %v695
      %v2196 = vunpack.c.h.b16 %v695
      %v2197 = vunpack.c.l.b16 %v696
      %v2198 = vunpack.c.h.b16 %v696
      %v2199 = vunpack.c.l.b16 %v697
      %v2200 = vunpack.c.h.b16 %v697
      %v2201 = vunpack.c.l.b16 %v698
      %v2202 = vunpack.c.h.b16 %v698
      %v2203 = vunpack.c.l.b16 %v699
      %v2204 = vunpack.c.h.b16 %v699
      %v2205 = vunpack.c.l.b16 %v700
      %v2206 = vunpack.c.h.b16 %v700
      %v2207 = vunpack.c.l.b16 %v701
      %v2208 = vunpack.c.h.b16 %v701
      %v2209 = vunpack.c.l.b16 %v702
      %v2210 = vunpack.c.h.b16 %v702
      %v2211 = vunpack.c.l.b16 %v703
      %v2212 = vunpack.c.h.b16 %v703
      %v2213 = vunpack.c.l.b16 %v704
      %v2214 = vunpack.c.h.b16 %v704
      %v2215 = vunpack.c.l.b16 %v705
      %v2216 = vunpack.c.h.b16 %v705
      %v2217 = vunpack.c.l.b16 %v706
      %v2218 = vunpack.c.h.b16 %v706
      %v2219 = vunpack.c.l.b16 %v707
      %v2220 = vunpack.c.h.b16 %v707
      %v2221 = vunpack.c.l.b16 %v708
      %v2222 = vunpack.c.h.b16 %v708
      %v2223 = vunpack.c.l.b16 %v709
      %v2224 = vunpack.c.h.b16 %v709
      %v2225 = vunpack.c.l.b16 %v710
      %v2226 = vunpack.c.h.b16 %v710
      %v2227 = vunpack.c.l.b16 %v711
      %v2228 = vunpack.c.h.b16 %v711
      %v2229 = vunpack.c.l.b16 %v712
      %v2230 = vunpack.c.h.b16 %v712
      %v2231 = vunpack.c.l.b16 %v713
      %v2232 = vunpack.c.h.b16 %v713
      %v2233 = vunpack.c.l.b16 %v714
      %v2234 = vunpack.c.h.b16 %v714
      %v2235 = vunpack.c.l.b16 %v715
      %v2236 = vunpack.c.h.b16 %v715
      %v2237 = vunpack.c.l.b16 %v716
      %v2238 = vunpack.c.h.b16 %v716
      %v2239 = vunpack.c.l.b16 %v717
      %v2240 = vunpack.c.h.b16 %v717
      %v2241 = vunpack.c.l.b16 %v718
      %v2242 = vunpack.c.h.b16 %v718
      %v2243 = vunpack.c.l.b16 %v719
      %v2244 = vunpack.c.h.b16 %v719
      %v2245 = vunpack.c.l.b16 %v720
      %v2246 = vunpack.c.h.b16 %v720
      %v2247 = vunpack.c.l.b16 %v721
      %v2248 = vunpack.c.h.b16 %v721
      %v2249 = vunpack.c.l.b16 %v722
      %v2250 = vunpack.c.h.b16 %v722
      %v2251 = vunpack.c.l.b16 %v723
      %v2252 = vunpack.c.h.b16 %v723
      %v2253 = vunpack.c.l.b16 %v724
      %v2254 = vunpack.c.h.b16 %v724
      %v2255 = vunpack.c.l.b16 %v725
      %v2256 = vunpack.c.h.b16 %v725
      %v2257 = vunpack.c.l.b16 %v726
      %v2258 = vunpack.c.h.b16 %v726
      %v2259 = vunpack.c.l.b16 %v727
      %v2260 = vunpack.c.h.b16 %v727
      %v2261 = vunpack.c.l.b16 %v728
      %v2262 = vunpack.c.h.b16 %v728
      %v2263 = vunpack.c.l.b16 %v729
      %v2264 = vunpack.c.h.b16 %v729
      %v2265 = vunpack.c.l.b16 %v730
      %v2266 = vunpack.c.h.b16 %v730
      %v2267 = vunpack.c.l.b16 %v731
      %v2268 = vunpack.c.h.b16 %v731
      %v2269 = vunpack.c.l.b16 %v732
      %v2270 = vunpack.c.h.b16 %v732
      %v2271 = vunpack.c.l.b16 %v733
      %v2272 = vunpack.c.h.b16 %v733
      %v2273 = vunpack.c.l.b16 %v734
      %v2274 = vunpack.c.h.b16 %v734
      %v2275 = vunpack.c.l.b16 %v735
      %v2276 = vunpack.c.h.b16 %v735
      %v2277 = vunpack.c.l.b16 %v736
      %v2278 = vunpack.c.h.b16 %v736
      %v2279 = vunpack.c.l.b16 %v737
      %v2280 = vunpack.c.h.b16 %v737
      %v2281 = vunpack.c.l.b16 %v738
      %v2282 = vunpack.c.h.b16 %v738
      %v2283 = vunpack.c.l.b16 %v739
      %v2284 = vunpack.c.h.b16 %v739
      %v2285 = vunpack.c.l.b16 %v740
      %v2286 = vunpack.c.h.b16 %v740
      %v2287 = vunpack.c.l.b16 %v741
      %v2288 = vunpack.c.h.b16 %v741
      %v2289 = vunpack.c.l.b16 %v742
      %v2290 = vunpack.c.h.b16 %v742
      %v2291 = vunpack.c.l.b16 %v743
      %v2292 = vunpack.c.h.b16 %v743
      %v2293 = vunpack.c.l.b16 %v744
      %v2294 = vunpack.c.h.b16 %v744
      %v2295 = vunpack.c.l.b16 %v745
      %v2296 = vunpack.c.h.b16 %v745
      %v2297 = vunpack.c.l.b16 %v746
      %v2298 = vunpack.c.h.b16 %v746
      %v2299 = vunpack.c.l.b16 %v747
      %v2300 = vunpack.c.h.b16 %v747
      %v2301 = vunpack.c.l.b16 %v748
      %v2302 = vunpack.c.h.b16 %v748
      %v2303 = vunpack.c.l.b16 %v749
      %v2304 = vunpack.c.h.b16 %v749
      %v2305 = vunpack.c.l.b16 %v750
      %v2306 = vunpack.c.h.b16 %v750
      %v2307 = vunpack.c.l.b16 %v751
      %v2308 = vunpack.c.h.b16 %v751
      %v2309 = vunpack.c.l.b16 %v752
      %v2310 = vunpack.c.h.b16 %v752
      %v2311 = vunpack.c.l.b16 %v753
      %v2312 = vunpack.c.h.b16 %v753
      %v2313 = vunpack.c.l.b16 %v754
      %v2314 = vunpack.c.h.b16 %v754
      %v2315 = vunpack.c.l.b16 %v755
      %v2316 = vunpack.c.h.b16 %v755
      %v2317 = vunpack.c.l.b16 %v756
      %v2318 = vunpack.c.h.b16 %v756
      %v2319 = vunpack.c.l.b16 %v757
      %v2320 = vunpack.c.h.b16 %v757
      %v2321 = vunpack.c.l.b16 %v758
      %v2322 = vunpack.c.h.b16 %v758
      %v2323 = vunpack.c.l.b16 %v759
      %v2324 = vunpack.c.h.b16 %v759
      %v2325 = vunpack.c.l.b16 %v760
      %v2326 = vunpack.c.h.b16 %v760
      %v2327 = vunpack.c.l.b16 %v761
      %v2328 = vunpack.c.h.b16 %v761
      %v2329 = vunpack.c.l.b16 %v762
      %v2330 = vunpack.c.h.b16 %v762
      %v2331 = vunpack.c.l.b16 %v763
      %v2332 = vunpack.c.h.b16 %v763
      %v2333 = vunpack.c.l.b16 %v764
      %v2334 = vunpack.c.h.b16 %v764
      %v2335 = vunpack.c.l.b16 %v765
      %v2336 = vunpack.c.h.b16 %v765
      %v2337 = vunpack.c.l.b16 %v766
      %v2338 = vunpack.c.h.b16 %v766
      %v2339 = vunpack.c.l.b16 %v767
      %v2340 = vunpack.c.h.b16 %v767
      %v2341 = vunpack.c.l.b16 %v768
      %v2342 = vunpack.c.h.b16 %v768
      %v2343 = vunpack.c.l.b16 %v769
      %v2344 = vunpack.c.h.b16 %v769
      %v2345 = vunpack.c.l.b16 %v770
      %v2346 = vunpack.c.h.b16 %v770
      %v2347 = vunpack.c.l.b16 %v771
      %v2348 = vunpack.c.h.b16 %v771
      %v2349 = vunpack.c.l.b16 %v772
      %v2350 = vunpack.c.h.b16 %v772
      %v2351 = vunpack.c.l.b16 %v773
      %v2352 = vunpack.c.h.b16 %v773
      %v2353 = vunpack.c.l.b16 %v774
      %v2354 = vunpack.c.h.b16 %v774
      %v2355 = vunpack.c.l.b16 %v775
      %v2356 = vunpack.c.h.b16 %v775
      %v2357 = vunpack.c.l.b16 %v776
      %v2358 = vunpack.c.h.b16 %v776
      %v2359 = vunpack.c.l.b16 %v777
      %v2360 = vunpack.c.h.b16 %v777
      %v2361 = vunpack.c.l.b16 %v778
      %v2362 = vunpack.c.h.b16 %v778
      %v2363 = vunpack.c.l.b16 %v779
      %v2364 = vunpack.c.h.b16 %v779
      %v2365 = vunpack.c.l.b16 %v780
      %v2366 = vunpack.c.h.b16 %v780
      %v2367 = vunpack.c.l.b16 %v781
      %v2368 = vunpack.c.h.b16 %v781
      %v2369 = vunpack.c.l.b16 %v782
      %v2370 = vunpack.c.h.b16 %v782
      %v2371 = vunpack.c.l.b16 %v783
      %v2372 = vunpack.c.h.b16 %v783
      %v2373 = vunpack.c.l.b16 %v784
      %v2374 = vunpack.c.h.b16 %v784
      %v2375 = vunpack.c.l.b16 %v785
      %v2376 = vunpack.c.h.b16 %v785
      %v2377 = vunpack.c.l.b16 %v786
      %v2378 = vunpack.c.h.b16 %v786
      %v2379 = vunpack.c.l.b16 %v787
      %v2380 = vunpack.c.h.b16 %v787
      %v2381 = vunpack.c.l.b16 %v788
      %v2382 = vunpack.c.h.b16 %v788
      %v2383 = vunpack.c.l.b16 %v789
      %v2384 = vunpack.c.h.b16 %v789
      %v2385 = vunpack.c.l.b16 %v790
      %v2386 = vunpack.c.h.b16 %v790
      %v2387 = vunpack.c.l.b16 %v791
      %v2388 = vunpack.c.h.b16 %v791
      %v2389 = vunpack.c.l.b16 %v792
      %v2390 = vunpack.c.h.b16 %v792
      %v2391 = vunpack.c.l.b16 %v793
      %v2392 = vunpack.c.h.b16 %v793
      %v2393 = vunpack.c.l.b16 %v794
      %v2394 = vunpack.c.h.b16 %v794
      %v2395 = vunpack.c.l.b16 %v795
      %v2396 = vunpack.c.h.b16 %v795
      %v2397 = vunpack.c.l.b16 %v796
      %v2398 = vunpack.c.h.b16 %v796
      %v2399 = vpack.c.b16 %v1379, %v1375
      %v2400 = vpack.c.b16 %v1380, %v1376
      %v2401 = vpack.c.b16 %v1381, %v1377
      %v2402 = vpack.c.b16 %v1382, %v1378
      %v2403 = vpack.c.b16 %v1387, %v1383
      %v2404 = vpack.c.b16 %v1388, %v1384
      %v2405 = vpack.c.b16 %v1389, %v1385
      %v2406 = vpack.c.b16 %v1390, %v1386
      %v2407 = vpack.c.b16 %v1395, %v1391
      %v2408 = vpack.c.b16 %v1396, %v1392
      %v2409 = vpack.c.b16 %v1397, %v1393
      %v2410 = vpack.c.b16 %v1398, %v1394
      %v2411 = vpack.c.b16 %v1403, %v1399
      %v2412 = vpack.c.b16 %v1404, %v1400
      %v2413 = vpack.c.b16 %v1405, %v1401
      %v2414 = vpack.c.b16 %v1406, %v1402
      %v2415 = vpack.c.b16 %v1411, %v1407
      %v2416 = vpack.c.b16 %v1412, %v1408
      %v2417 = vpack.c.b16 %v1413, %v1409
      %v2418 = vpack.c.b16 %v1414, %v1410
      %v2419 = vpack.c.b16 %v1419, %v1415
      %v2420 = vpack.c.b16 %v1420, %v1416
      %v2421 = vpack.c.b16 %v1421, %v1417
      %v2422 = vpack.c.b16 %v1422, %v1418
      %v2423 = vpack.c.b16 %v1427, %v1423
      %v2424 = vpack.c.b16 %v1428, %v1424
      %v2425 = vpack.c.b16 %v1429, %v1425
      %v2426 = vpack.c.b16 %v1430, %v1426
      %v2427 = vpack.c.b16 %v1435, %v1431
      %v2428 = vpack.c.b16 %v1436, %v1432
      %v2429 = vpack.c.b16 %v1437, %v1433
      %v2430 = vpack.c.b16 %v1438, %v1434
      %v2431 = vpack.c.b16 %v1443, %v1439
      %v2432 = vpack.c.b16 %v1444, %v1440
      %v2433 = vpack.c.b16 %v1445, %v1441
      %v2434 = vpack.c.b16 %v1446, %v1442
      %v2435 = vpack.c.b16 %v1451, %v1447
      %v2436 = vpack.c.b16 %v1452, %v1448
      %v2437 = vpack.c.b16 %v1453, %v1449
      %v2438 = vpack.c.b16 %v1454, %v1450
      %v2439 = vpack.c.b16 %v1459, %v1455
      %v2440 = vpack.c.b16 %v1460, %v1456
      %v2441 = vpack.c.b16 %v1461, %v1457
      %v2442 = vpack.c.b16 %v1462, %v1458
      %v2443 = vpack.c.b16 %v1467, %v1463
      %v2444 = vpack.c.b16 %v1468, %v1464
      %v2445 = vpack.c.b16 %v1469, %v1465
      %v2446 = vpack.c.b16 %v1470, %v1466
      %v2447 = vpack.c.b16 %v1475, %v1471
      %v2448 = vpack.c.b16 %v1476, %v1472
      %v2449 = vpack.c.b16 %v1477, %v1473
      %v2450 = vpack.c.b16 %v1478, %v1474
      %v2451 = vpack.c.b16 %v1483, %v1479
      %v2452 = vpack.c.b16 %v1484, %v1480
      %v2453 = vpack.c.b16 %v1485, %v1481
      %v2454 = vpack.c.b16 %v1486, %v1482
      %v2455 = vpack.c.b16 %v1491, %v1487
      %v2456 = vpack.c.b16 %v1492, %v1488
      %v2457 = vpack.c.b16 %v1493, %v1489
      %v2458 = vpack.c.b16 %v1494, %v1490
      %v2459 = vpack.c.b16 %v1499, %v1495
      %v2460 = vpack.c.b16 %v1500, %v1496
      %v2461 = vpack.c.b16 %v1501, %v1497
      %v2462 = vpack.c.b16 %v1502, %v1498
      %v2463 = vpack.c.b16 %v1507, %v1503
      %v2464 = vpack.c.b16 %v1508, %v1504
      %v2465 = vpack.c.b16 %v1509, %v1505
      %v2466 = vpack.c.b16 %v1510, %v1506
      %v2467 = vpack.c.b16 %v1515, %v1511
      %v2468 = vpack.c.b16 %v1516, %v1512
      %v2469 = vpack.c.b16 %v1517, %v1513
      %v2470 = vpack.c.b16 %v1518, %v1514
      %v2471 = vpack.c.b16 %v1523, %v1519
      %v2472 = vpack.c.b16 %v1524, %v1520
      %v2473 = vpack.c.b16 %v1525, %v1521
      %v2474 = vpack.c.b16 %v1526, %v1522
      %v2475 = vpack.c.b16 %v1531, %v1527
      %v2476 = vpack.c.b16 %v1532, %v1528
      %v2477 = vpack.c.b16 %v1533, %v1529
      %v2478 = vpack.c.b16 %v1534, %v1530
      %v2479 = vpack.c.b16 %v1539, %v1535
      %v2480 = vpack.c.b16 %v1540, %v1536
      %v2481 = vpack.c.b16 %v1541, %v1537
      %v2482 = vpack.c.b16 %v1542, %v1538
      %v2483 = vpack.c.b16 %v1547, %v1543
      %v2484 = vpack.c.b16 %v1548, %v1544
      %v2485 = vpack.c.b16 %v1549, %v1545
      %v2486 = vpack.c.b16 %v1550, %v1546
      %v2487 = vpack.c.b16 %v1555, %v1551
      %v2488 = vpack.c.b16 %v1556, %v1552
      %v2489 = vpack.c.b16 %v1557, %v1553
      %v2490 = vpack.c.b16 %v1558, %v1554
      %v2491 = vpack.c.b16 %v1563, %v1559
      %v2492 = vpack.c.b16 %v1564, %v1560
      %v2493 = vpack.c.b16 %v1565, %v1561
      %v2494 = vpack.c.b16 %v1566, %v1562
      %v2495 = vpack.c.b16 %v1571, %v1567
      %v2496 = vpack.c.b16 %v1572, %v1568
      %v2497 = vpack.c.b16 %v1573, %v1569
      %v2498 = vpack.c.b16 %v1574, %v1570
      %v2499 = vpack.c.b16 %v1579, %v1575
      %v2500 = vpack.c.b16 %v1580, %v1576
      %v2501 = vpack.c.b16 %v1581, %v1577
      %v2502 = vpack.c.b16 %v1582, %v1578
      %v2503 = vpack.c.b16 %v1587, %v1583
      %v2504 = vpack.c.b16 %v1588, %v1584
      %v2505 = vpack.c.b16 %v1589, %v1585
      %v2506 = vpack.c.b16 %v1590, %v1586
      %v2507 = vpack.c.b16 %v1595, %v1591
      %v2508 = vpack.c.b16 %v1596, %v1592
      %v2509 = vpack.c.b16 %v1597, %v1593
      %v2510 = vpack.c.b16 %v1598, %v1594
      %v2511 = vpack.c.b16 %v1603, %v1599
      %v2512 = vpack.c.b16 %v1604, %v1600
      %v2513 = vpack.c.b16 %v1605, %v1601
      %v2514 = vpack.c.b16 %v1606, %v1602
      %v2515 = vpack.c.b16 %v1611, %v1607
      %v2516 = vpack.c.b16 %v1612, %v1608
      %v2517 = vpack.c.b16 %v1613, %v1609
      %v2518 = vpack.c.b16 %v1614, %v1610
      %v2519 = vpack.c.b16 %v1619, %v1615
      %v2520 = vpack.c.b16 %v1620, %v1616
      %v2521 = vpack.c.b16 %v1621, %v1617
      %v2522 = vpack.c.b16 %v1622, %v1618
      %v2523 = vpack.c.b16 %v1627, %v1623
      %v2524 = vpack.c.b16 %v1628, %v1624
      %v2525 = vpack.c.b16 %v1629, %v1625
      %v2526 = vpack.c.b16 %v1630, %v1626
      %v2527 = vpack.c.b16 %v1635, %v1631
      %v2528 = vpack.c.b16 %v1636, %v1632
      %v2529 = vpack.c.b16 %v1637, %v1633
      %v2530 = vpack.c.b16 %v1638, %v1634
      %v2531 = vpack.c.b16 %v1643, %v1639
      %v2532 = vpack.c.b16 %v1644, %v1640
      %v2533 = vpack.c.b16 %v1645, %v1641
      %v2534 = vpack.c.b16 %v1646, %v1642
      %v2535 = vpack.c.b16 %v1651, %v1647
      %v2536 = vpack.c.b16 %v1652, %v1648
      %v2537 = vpack.c.b16 %v1653, %v1649
      %v2538 = vpack.c.b16 %v1654, %v1650
      %v2539 = vpack.c.b16 %v1659, %v1655
      %v2540 = vpack.c.b16 %v1660, %v1656
      %v2541 = vpack.c.b16 %v1661, %v1657
      %v2542 = vpack.c.b16 %v1662, %v1658
      %v2543 = vpack.c.b16 %v1667, %v1663
      %v2544 = vpack.c.b16 %v1668, %v1664
      %v2545 = vpack.c.b16 %v1669, %v1665
      %v2546 = vpack.c.b16 %v1670, %v1666
      %v2547 = vpack.c.b16 %v1675, %v1671
      %v2548 = vpack.c.b16 %v1676, %v1672
      %v2549 = vpack.c.b16 %v1677, %v1673
      %v2550 = vpack.c.b16 %v1678, %v1674
      %v2551 = vpack.c.b16 %v1683, %v1679
      %v2552 = vpack.c.b16 %v1684, %v1680
      %v2553 = vpack.c.b16 %v1685, %v1681
      %v2554 = vpack.c.b16 %v1686, %v1682
      %v2555 = vpack.c.b16 %v1691, %v1687
      %v2556 = vpack.c.b16 %v1692, %v1688
      %v2557 = vpack.c.b16 %v1693, %v1689
      %v2558 = vpack.c.b16 %v1694, %v1690
      %v2559 = vpack.c.b16 %v1699, %v1695
      %v2560 = vpack.c.b16 %v1700, %v1696
      %v2561 = vpack.c.b16 %v1701, %v1697
      %v2562 = vpack.c.b16 %v1702, %v1698
      %v2563 = vpack.c.b16 %v1707, %v1703
      %v2564 = vpack.c.b16 %v1708, %v1704
      %v2565 = vpack.c.b16 %v1709, %v1705
      %v2566 = vpack.c.b16 %v1710, %v1706
      %v2567 = vpack.c.b16 %v1715, %v1711
      %v2568 = vpack.c.b16 %v1716, %v1712
      %v2569 = vpack.c.b16 %v1717, %v1713
      %v2570 = vpack.c.b16 %v1718, %v1714
      %v2571 = vpack.c.b16 %v1723, %v1719
      %v2572 = vpack.c.b16 %v1724, %v1720
      %v2573 = vpack.c.b16 %v1725, %v1721
      %v2574 = vpack.c.b16 %v1726, %v1722
      %v2575 = vpack.c.b16 %v1731, %v1727
      %v2576 = vpack.c.b16 %v1732, %v1728
      %v2577 = vpack.c.b16 %v1733, %v1729
      %v2578 = vpack.c.b16 %v1734, %v1730
      %v2579 = vpack.c.b16 %v1739, %v1735
      %v2580 = vpack.c.b16 %v1740, %v1736
      %v2581 = vpack.c.b16 %v1741, %v1737
      %v2582 = vpack.c.b16 %v1742, %v1738
      %v2583 = vpack.c.b16 %v1747, %v1743
      %v2584 = vpack.c.b16 %v1748, %v1744
      %v2585 = vpack.c.b16 %v1749, %v1745
      %v2586 = vpack.c.b16 %v1750, %v1746
      %v2587 = vpack.c.b16 %v1755, %v1751
      %v2588 = vpack.c.b16 %v1756, %v1752
      %v2589 = vpack.c.b16 %v1757, %v1753
      %v2590 = vpack.c.b16 %v1758, %v1754
      %v2591 = vpack.c.b16 %v1763, %v1759
      %v2592 = vpack.c.b16 %v1764, %v1760
      %v2593 = vpack.c.b16 %v1765, %v1761
      %v2594 = vpack.c.b16 %v1766, %v1762
      %v2595 = vpack.c.b16 %v1771, %v1767
      %v2596 = vpack.c.b16 %v1772, %v1768
      %v2597 = vpack.c.b16 %v1773, %v1769
      %v2598 = vpack.c.b16 %v1774, %v1770
      %v2599 = vpack.c.b16 %v1779, %v1775
      %v2600 = vpack.c.b16 %v1780, %v1776
      %v2601 = vpack.c.b16 %v1781, %v1777
      %v2602 = vpack.c.b16 %v1782, %v1778
      %v2603 = vpack.c.b16 %v1787, %v1783
      %v2604 = vpack.c.b16 %v1788, %v1784
      %v2605 = vpack.c.b16 %v1789, %v1785
      %v2606 = vpack.c.b16 %v1790, %v1786
      %v2607 = vpack.c.b16 %v1795, %v1791
      %v2608 = vpack.c.b16 %v1796, %v1792
      %v2609 = vpack.c.b16 %v1797, %v1793
      %v2610 = vpack.c.b16 %v1798, %v1794
      %v2611 = vpack.c.b16 %v1803, %v1799
      %v2612 = vpack.c.b16 %v1804, %v1800
      %v2613 = vpack.c.b16 %v1805, %v1801
      %v2614 = vpack.c.b16 %v1806, %v1802
      %v2615 = vpack.c.b16 %v1811, %v1807
      %v2616 = vpack.c.b16 %v1812, %v1808
      %v2617 = vpack.c.b16 %v1813, %v1809
      %v2618 = vpack.c.b16 %v1814, %v1810
      %v2619 = vpack.c.b16 %v1819, %v1815
      %v2620 = vpack.c.b16 %v1820, %v1816
      %v2621 = vpack.c.b16 %v1821, %v1817
      %v2622 = vpack.c.b16 %v1822, %v1818
      %v2623 = vpack.c.b16 %v1827, %v1823
      %v2624 = vpack.c.b16 %v1828, %v1824
      %v2625 = vpack.c.b16 %v1829, %v1825
      %v2626 = vpack.c.b16 %v1830, %v1826
      %v2627 = vpack.c.b16 %v1835, %v1831
      %v2628 = vpack.c.b16 %v1836, %v1832
      %v2629 = vpack.c.b16 %v1837, %v1833
      %v2630 = vpack.c.b16 %v1838, %v1834
      %v2631 = vpack.c.b16 %v1843, %v1839
      %v2632 = vpack.c.b16 %v1844, %v1840
      %v2633 = vpack.c.b16 %v1845, %v1841
      %v2634 = vpack.c.b16 %v1846, %v1842
      %v2635 = vpack.c.b16 %v1851, %v1847
      %v2636 = vpack.c.b16 %v1852, %v1848
      %v2637 = vpack.c.b16 %v1853, %v1849
      %v2638 = vpack.c.b16 %v1854, %v1850
      %v2639 = vpack.c.b16 %v1859, %v1855
      %v2640 = vpack.c.b16 %v1860, %v1856
      %v2641 = vpack.c.b16 %v1861, %v1857
      %v2642 = vpack.c.b16 %v1862, %v1858
      %v2643 = vpack.c.b16 %v1867, %v1863
      %v2644 = vpack.c.b16 %v1868, %v1864
      %v2645 = vpack.c.b16 %v1869, %v1865
      %v2646 = vpack.c.b16 %v1870, %v1866
      %v2647 = vpack.c.b16 %v1875, %v1871
      %v2648 = vpack.c.b16 %v1876, %v1872
      %v2649 = vpack.c.b16 %v1877, %v1873
      %v2650 = vpack.c.b16 %v1878, %v1874
      %v2651 = vpack.c.b16 %v1883, %v1879
      %v2652 = vpack.c.b16 %v1884, %v1880
      %v2653 = vpack.c.b16 %v1885, %v1881
      %v2654 = vpack.c.b16 %v1886, %v1882
      %v2655 = vpack.c.b16 %v1891, %v1887
      %v2656 = vpack.c.b16 %v1892, %v1888
      %v2657 = vpack.c.b16 %v1893, %v1889
      %v2658 = vpack.c.b16 %v1894, %v1890
      %v2659 = vpack.c.b16 %v1899, %v1895
      %v2660 = vpack.c.b16 %v1900, %v1896
      %v2661 = vpack.c.b16 %v1901, %v1897
      %v2662 = vpack.c.b16 %v1902, %v1898
      %v2663 = vpack.c.b16 %v1907, %v1903
      %v2664 = vpack.c.b16 %v1908, %v1904
      %v2665 = vpack.c.b16 %v1909, %v1905
      %v2666 = vpack.c.b16 %v1910, %v1906
      %v2667 = vpack.c.b16 %v1915, %v1911
      %v2668 = vpack.c.b16 %v1916, %v1912
      %v2669 = vpack.c.b16 %v1917, %v1913
      %v2670 = vpack.c.b16 %v1918, %v1914
      %v2671 = vpack.c.b16 %v1923, %v1919
      %v2672 = vpack.c.b16 %v1924, %v1920
      %v2673 = vpack.c.b16 %v1925, %v1921
      %v2674 = vpack.c.b16 %v1926, %v1922
      %v2675 = vpack.c.b16 %v1931, %v1927
      %v2676 = vpack.c.b16 %v1932, %v1928
      %v2677 = vpack.c.b16 %v1933, %v1929
      %v2678 = vpack.c.b16 %v1934, %v1930
      %v2679 = vpack.c.b16 %v1939, %v1935
      %v2680 = vpack.c.b16 %v1940, %v1936
      %v2681 = vpack.c.b16 %v1941, %v1937
      %v2682 = vpack.c.b16 %v1942, %v1938
      %v2683 = vpack.c.b16 %v1947, %v1943
      %v2684 = vpack.c.b16 %v1948, %v1944
      %v2685 = vpack.c.b16 %v1949, %v1945
      %v2686 = vpack.c.b16 %v1950, %v1946
      %v2687 = vpack.c.b16 %v1955, %v1951
      %v2688 = vpack.c.b16 %v1956, %v1952
      %v2689 = vpack.c.b16 %v1957, %v1953
      %v2690 = vpack.c.b16 %v1958, %v1954
      %v2691 = vpack.c.b16 %v1963, %v1959
      %v2692 = vpack.c.b16 %v1964, %v1960
      %v2693 = vpack.c.b16 %v1965, %v1961
      %v2694 = vpack.c.b16 %v1966, %v1962
      %v2695 = vpack.c.b16 %v1971, %v1967
      %v2696 = vpack.c.b16 %v1972, %v1968
      %v2697 = vpack.c.b16 %v1973, %v1969
      %v2698 = vpack.c.b16 %v1974, %v1970
      %v2699 = vpack.c.b16 %v1979, %v1975
      %v2700 = vpack.c.b16 %v1980, %v1976
      %v2701 = vpack.c.b16 %v1981, %v1977
      %v2702 = vpack.c.b16 %v1982, %v1978
      %v2703 = vpack.c.b16 %v1987, %v1983
      %v2704 = vpack.c.b16 %v1988, %v1984
      %v2705 = vpack.c.b16 %v1989, %v1985
      %v2706 = vpack.c.b16 %v1990, %v1986
      %v2707 = vpack.c.b16 %v1995, %v1991
      %v2708 = vpack.c.b16 %v1996, %v1992
      %v2709 = vpack.c.b16 %v1997, %v1993
      %v2710 = vpack.c.b16 %v1998, %v1994
      %v2711 = vpack.c.b16 %v2003, %v1999
      %v2712 = vpack.c.b16 %v2004, %v2000
      %v2713 = vpack.c.b16 %v2005, %v2001
      %v2714 = vpack.c.b16 %v2006, %v2002
      %v2715 = vpack.c.b16 %v2011, %v2007
      %v2716 = vpack.c.b16 %v2012, %v2008
      %v2717 = vpack.c.b16 %v2013, %v2009
      %v2718 = vpack.c.b16 %v2014, %v2010
      %v2719 = vpack.c.b16 %v2019, %v2015
      %v2720 = vpack.c.b16 %v2020, %v2016
      %v2721 = vpack.c.b16 %v2021, %v2017
      %v2722 = vpack.c.b16 %v2022, %v2018
      %v2723 = vpack.c.b16 %v2027, %v2023
      %v2724 = vpack.c.b16 %v2028, %v2024
      %v2725 = vpack.c.b16 %v2029, %v2025
      %v2726 = vpack.c.b16 %v2030, %v2026
      %v2727 = vpack.c.b16 %v2035, %v2031
      %v2728 = vpack.c.b16 %v2036, %v2032
      %v2729 = vpack.c.b16 %v2037, %v2033
      %v2730 = vpack.c.b16 %v2038, %v2034
      %v2731 = vpack.c.b16 %v2043, %v2039
      %v2732 = vpack.c.b16 %v2044, %v2040
      %v2733 = vpack.c.b16 %v2045, %v2041
      %v2734 = vpack.c.b16 %v2046, %v2042
      %v2735 = vpack.c.b16 %v2051, %v2047
      %v2736 = vpack.c.b16 %v2052, %v2048
      %v2737 = vpack.c.b16 %v2053, %v2049
      %v2738 = vpack.c.b16 %v2054, %v2050
      %v2739 = vpack.c.b16 %v2059, %v2055
      %v2740 = vpack.c.b16 %v2060, %v2056
      %v2741 = vpack.c.b16 %v2061, %v2057
      %v2742 = vpack.c.b16 %v2062, %v2058
      %v2743 = vpack.c.b16 %v2067, %v2063
      %v2744 = vpack.c.b16 %v2068, %v2064
      %v2745 = vpack.c.b16 %v2069, %v2065
      %v2746 = vpack.c.b16 %v2070, %v2066
      %v2747 = vpack.c.b16 %v2075, %v2071
      %v2748 = vpack.c.b16 %v2076, %v2072
      %v2749 = vpack.c.b16 %v2077, %v2073
      %v2750 = vpack.c.b16 %v2078, %v2074
      %v2751 = vpack.c.b16 %v2083, %v2079
      %v2752 = vpack.c.b16 %v2084, %v2080
      %v2753 = vpack.c.b16 %v2085, %v2081
      %v2754 = vpack.c.b16 %v2086, %v2082
      %v2755 = vpack.c.b16 %v2091, %v2087
      %v2756 = vpack.c.b16 %v2092, %v2088
      %v2757 = vpack.c.b16 %v2093, %v2089
      %v2758 = vpack.c.b16 %v2094, %v2090
      %v2759 = vpack.c.b16 %v2099, %v2095
      %v2760 = vpack.c.b16 %v2100, %v2096
      %v2761 = vpack.c.b16 %v2101, %v2097
      %v2762 = vpack.c.b16 %v2102, %v2098
      %v2763 = vpack.c.b16 %v2107, %v2103
      %v2764 = vpack.c.b16 %v2108, %v2104
      %v2765 = vpack.c.b16 %v2109, %v2105
      %v2766 = vpack.c.b16 %v2110, %v2106
      %v2767 = vpack.c.b16 %v2115, %v2111
      %v2768 = vpack.c.b16 %v2116, %v2112
      %v2769 = vpack.c.b16 %v2117, %v2113
      %v2770 = vpack.c.b16 %v2118, %v2114
      %v2771 = vpack.c.b16 %v2123, %v2119
      %v2772 = vpack.c.b16 %v2124, %v2120
      %v2773 = vpack.c.b16 %v2125, %v2121
      %v2774 = vpack.c.b16 %v2126, %v2122
      %v2775 = vpack.c.b16 %v2131, %v2127
      %v2776 = vpack.c.b16 %v2132, %v2128
      %v2777 = vpack.c.b16 %v2133, %v2129
      %v2778 = vpack.c.b16 %v2134, %v2130
      %v2779 = vpack.c.b16 %v2139, %v2135
      %v2780 = vpack.c.b16 %v2140, %v2136
      %v2781 = vpack.c.b16 %v2141, %v2137
      %v2782 = vpack.c.b16 %v2142, %v2138
      %v2783 = vpack.c.b16 %v2147, %v2143
      %v2784 = vpack.c.b16 %v2148, %v2144
      %v2785 = vpack.c.b16 %v2149, %v2145
      %v2786 = vpack.c.b16 %v2150, %v2146
      %v2787 = vpack.c.b16 %v2155, %v2151
      %v2788 = vpack.c.b16 %v2156, %v2152
      %v2789 = vpack.c.b16 %v2157, %v2153
      %v2790 = vpack.c.b16 %v2158, %v2154
      %v2791 = vpack.c.b16 %v2163, %v2159
      %v2792 = vpack.c.b16 %v2164, %v2160
      %v2793 = vpack.c.b16 %v2165, %v2161
      %v2794 = vpack.c.b16 %v2166, %v2162
      %v2795 = vpack.c.b16 %v2171, %v2167
      %v2796 = vpack.c.b16 %v2172, %v2168
      %v2797 = vpack.c.b16 %v2173, %v2169
      %v2798 = vpack.c.b16 %v2174, %v2170
      %v2799 = vpack.c.b16 %v2179, %v2175
      %v2800 = vpack.c.b16 %v2180, %v2176
      %v2801 = vpack.c.b16 %v2181, %v2177
      %v2802 = vpack.c.b16 %v2182, %v2178
      %v2803 = vpack.c.b16 %v2187, %v2183
      %v2804 = vpack.c.b16 %v2188, %v2184
      %v2805 = vpack.c.b16 %v2189, %v2185
      %v2806 = vpack.c.b16 %v2190, %v2186
      %v2807 = vpack.c.b16 %v2195, %v2191
      %v2808 = vpack.c.b16 %v2196, %v2192
      %v2809 = vpack.c.b16 %v2197, %v2193
      %v2810 = vpack.c.b16 %v2198, %v2194
      %v2811 = vpack.c.b16 %v2203, %v2199
      %v2812 = vpack.c.b16 %v2204, %v2200
      %v2813 = vpack.c.b16 %v2205, %v2201
      %v2814 = vpack.c.b16 %v2206, %v2202
      %v2815 = vpack.c.b16 %v2211, %v2207
      %v2816 = vpack.c.b16 %v2212, %v2208
      %v2817 = vpack.c.b16 %v2213, %v2209
      %v2818 = vpack.c.b16 %v2214, %v2210
      %v2819 = vpack.c.b16 %v2219, %v2215
      %v2820 = vpack.c.b16 %v2220, %v2216
      %v2821 = vpack.c.b16 %v2221, %v2217
      %v2822 = vpack.c.b16 %v2222, %v2218
      %v2823 = vpack.c.b16 %v2227, %v2223
      %v2824 = vpack.c.b16 %v2228, %v2224
      %v2825 = vpack.c.b16 %v2229, %v2225
      %v2826 = vpack.c.b16 %v2230, %v2226
      %v2827 = vpack.c.b16 %v2235, %v2231
      %v2828 = vpack.c.b16 %v2236, %v2232
      %v2829 = vpack.c.b16 %v2237, %v2233
      %v2830 = vpack.c.b16 %v2238, %v2234
      %v2831 = vpack.c.b16 %v2243, %v2239
      %v2832 = vpack.c.b16 %v2244, %v2240
      %v2833 = vpack.c.b16 %v2245, %v2241
      %v2834 = vpack.c.b16 %v2246, %v2242
      %v2835 = vpack.c.b16 %v2251, %v2247
      %v2836 = vpack.c.b16 %v2252, %v2248
      %v2837 = vpack.c.b16 %v2253, %v2249
      %v2838 = vpack.c.b16 %v2254, %v2250
      %v2839 = vpack.c.b16 %v2259, %v2255
      %v2840 = vpack.c.b16 %v2260, %v2256
      %v2841 = vpack.c.b16 %v2261, %v2257
      %v2842 = vpack.c.b16 %v2262, %v2258
      %v2843 = vpack.c.b16 %v2267, %v2263
      %v2844 = vpack.c.b16 %v2268, %v2264
      %v2845 = vpack.c.b16 %v2269, %v2265
      %v2846 = vpack.c.b16 %v2270, %v2266
      %v2847 = vpack.c.b16 %v2275, %v2271
      %v2848 = vpack.c.b16 %v2276, %v2272
      %v2849 = vpack.c.b16 %v2277, %v2273
      %v2850 = vpack.c.b16 %v2278, %v2274
      %v2851 = vpack.c.b16 %v2283, %v2279
      %v2852 = vpack.c.b16 %v2284, %v2280
      %v2853 = vpack.c.b16 %v2285, %v2281
      %v2854 = vpack.c.b16 %v2286, %v2282
      %v2855 = vpack.c.b16 %v2291, %v2287
      %v2856 = vpack.c.b16 %v2292, %v2288
      %v2857 = vpack.c.b16 %v2293, %v2289
      %v2858 = vpack.c.b16 %v2294, %v2290
      %v2859 = vpack.c.b16 %v2299, %v2295
      %v2860 = vpack.c.b16 %v2300, %v2296
      %v2861 = vpack.c.b16 %v2301, %v2297
      %v2862 = vpack.c.b16 %v2302, %v2298
      %v2863 = vpack.c.b16 %v2307, %v2303
      %v2864 = vpack.c.b16 %v2308, %v2304
      %v2865 = vpack.c.b16 %v2309, %v2305
      %v2866 = vpack.c.b16 %v2310, %v2306
      %v2867 = vpack.c.b16 %v2315, %v2311
      %v2868 = vpack.c.b16 %v2316, %v2312
      %v2869 = vpack.c.b16 %v2317, %v2313
      %v2870 = vpack.c.b16 %v2318, %v2314
      %v2871 = vpack.c.b16 %v2323, %v2319
      %v2872 = vpack.c.b16 %v2324, %v2320
      %v2873 = vpack.c.b16 %v2325, %v2321
      %v2874 = vpack.c.b16 %v2326, %v2322
      %v2875 = vpack.c.b16 %v2331, %v2327
      %v2876 = vpack.c.b16 %v2332, %v2328
      %v2877 = vpack.c.b16 %v2333, %v2329
      %v2878 = vpack.c.b16 %v2334, %v2330
      %v2879 = vpack.c.b16 %v2339, %v2335
      %v2880 = vpack.c.b16 %v2340, %v2336
      %v2881 = vpack.c.b16 %v2341, %v2337
      %v2882 = vpack.c.b16 %v2342, %v2338
      %v2883 = vpack.c.b16 %v2347, %v2343
      %v2884 = vpack.c.b16 %v2348, %v2344
      %v2885 = vpack.c.b16 %v2349, %v2345
      %v2886 = vpack.c.b16 %v2350, %v2346
      %v2887 = vpack.c.b16 %v2355, %v2351
      %v2888 = vpack.c.b16 %v2356, %v2352
      %v2889 = vpack.c.b16 %v2357, %v2353
      %v2890 = vpack.c.b16 %v2358, %v2354
      %v2891 = vpack.c.b16 %v2363, %v2359
      %v2892 = vpack.c.b16 %v2364, %v2360
      %v2893 = vpack.c.b16 %v2365, %v2361
      %v2894 = vpack.c.b16 %v2366, %v2362
      %v2895 = vpack.c.b16 %v2371, %v2367
      %v2896 = vpack.c.b16 %v2372, %v2368
      %v2897 = vpack.c.b16 %v2373, %v2369
      %v2898 = vpack.c.b16 %v2374, %v2370
      %v2899 = vpack.c.b16 %v2379, %v2375
      %v2900 = vpack.c.b16 %v2380, %v2376
      %v2901 = vpack.c.b16 %v2381, %v2377
      %v2902 = vpack.c.b16 %v2382, %v2378
      %v2903 = vpack.c.b16 %v2387, %v2383
      %v2904 = vpack.c.b16 %v2388, %v2384
      %v2905 = vpack.c.b16 %v2389, %v2385
      %v2906 = vpack.c.b16 %v2390, %v2386
      %v2907 = vpack.c.b16 %v2395, %v2391
      %v2908 = vpack.c.b16 %v2396, %v2392
      %v2909 = vpack.c.b16 %v2397, %v2393
      %v2910 = vpack.c.b16 %v2398, %v2394
      %3423 = vmatpush.bf16.msra.mxu0 %v2427
      %3424 = vmatpush.bf16.msra.mxu0 %v2423
      %3425 = vmatpush.bf16.msra.mxu0 %v2419
      %3426 = vmatpush.bf16.msra.mxu0 %v2415
      %3427 = vmatpush.bf16.msra.mxu0 %v2411
      %3428 = vmatpush.bf16.msra.mxu0 %v2407
      %3429 = vmatpush.bf16.msra.mxu0 %v2403
      %3430 = vmatpush.bf16.msra.mxu0 %v2399
      %3431 = vmatmul.bf16.gmra.mxu0 %v831
      %v3432 = vpop.f32.mrf.mxu0
      %v3433 = vadd.f32 %v799, %v3432
      %v3434 = vpop.f32.mrf.mxu0
      %3435 = vdwg.mxu0
      %3436 = vmatpush.bf16.msra.mxu0 %v2459
      %3437 = vmatpush.bf16.msra.mxu0 %v2455
      %3438 = vmatpush.bf16.msra.mxu0 %v2451
      %3439 = vmatpush.bf16.msra.mxu0 %v2447
      %3440 = vmatpush.bf16.msra.mxu0 %v2443
      %3441 = vmatpush.bf16.msra.mxu0 %v2439
      %3442 = vmatpush.bf16.msra.mxu0 %v2435
      %3443 = vmatpush.bf16.msra.mxu0 %v2431
      %3444 = vmatmul.bf16.gmra.mxu0 %v832
      %v3445 = vpop.f32.mrf.mxu0
      %v3446 = vadd.f32 %v3433, %v3445
      %v3447 = vpop.f32.mrf.mxu0
      %3448 = vdwg.mxu0
      %3449 = vmatpush.bf16.msra.mxu0 %v2491
      %3450 = vmatpush.bf16.msra.mxu0 %v2487
      %3451 = vmatpush.bf16.msra.mxu0 %v2483
      %3452 = vmatpush.bf16.msra.mxu0 %v2479
      %3453 = vmatpush.bf16.msra.mxu0 %v2475
      %3454 = vmatpush.bf16.msra.mxu0 %v2471
      %3455 = vmatpush.bf16.msra.mxu0 %v2467
      %3456 = vmatpush.bf16.msra.mxu0 %v2463
      %3457 = vmatmul.bf16.gmra.mxu0 %v833
      %v3458 = vpop.f32.mrf.mxu0
      %v3459 = vadd.f32 %v3446, %v3458
      %v3460 = vpop.f32.mrf.mxu0
      %3461 = vdwg.mxu0
      %3462 = vmatpush.bf16.msra.mxu0 %v2523
      %3463 = vmatpush.bf16.msra.mxu0 %v2519
      %3464 = vmatpush.bf16.msra.mxu0 %v2515
      %3465 = vmatpush.bf16.msra.mxu0 %v2511
      %3466 = vmatpush.bf16.msra.mxu0 %v2507
      %3467 = vmatpush.bf16.msra.mxu0 %v2503
      %3468 = vmatpush.bf16.msra.mxu0 %v2499
      %3469 = vmatpush.bf16.msra.mxu0 %v2495
      %3470 = vmatmul.bf16.gmra.mxu0 %v834
      %v3471 = vpop.f32.mrf.mxu0
      %v3472 = vadd.f32 %v3459, %v3471
      %v3473 = vpop.f32.mrf.mxu0
      %3474 = vdwg.mxu0
      %3475 = vmatpush.bf16.msra.mxu0 %v2555
      %3476 = vmatpush.bf16.msra.mxu0 %v2551
      %3477 = vmatpush.bf16.msra.mxu0 %v2547
      %3478 = vmatpush.bf16.msra.mxu0 %v2543
      %3479 = vmatpush.bf16.msra.mxu0 %v2539
      %3480 = vmatpush.bf16.msra.mxu0 %v2535
      %3481 = vmatpush.bf16.msra.mxu0 %v2531
      %3482 = vmatpush.bf16.msra.mxu0 %v2527
      %3483 = vmatmul.bf16.gmra.mxu0 %v835
      %v3484 = vpop.f32.mrf.mxu0
      %v3485 = vadd.f32 %v3472, %v3484
      %v3486 = vpop.f32.mrf.mxu0
      %3487 = vdwg.mxu0
      %3488 = vmatpush.bf16.msra.mxu0 %v2587
      %3489 = vmatpush.bf16.msra.mxu0 %v2583
      %3490 = vmatpush.bf16.msra.mxu0 %v2579
      %3491 = vmatpush.bf16.msra.mxu0 %v2575
      %3492 = vmatpush.bf16.msra.mxu0 %v2571
      %3493 = vmatpush.bf16.msra.mxu0 %v2567
      %3494 = vmatpush.bf16.msra.mxu0 %v2563
      %3495 = vmatpush.bf16.msra.mxu0 %v2559
      %3496 = vmatmul.bf16.gmra.mxu0 %v836
      %v3497 = vpop.f32.mrf.mxu0
      %v3498 = vadd.f32 %v3485, %v3497
      %v3499 = vpop.f32.mrf.mxu0
      %3500 = vdwg.mxu0
      %3501 = vmatpush.bf16.msra.mxu0 %v2619
      %3502 = vmatpush.bf16.msra.mxu0 %v2615
      %3503 = vmatpush.bf16.msra.mxu0 %v2611
      %3504 = vmatpush.bf16.msra.mxu0 %v2607
      %3505 = vmatpush.bf16.msra.mxu0 %v2603
      %3506 = vmatpush.bf16.msra.mxu0 %v2599
      %3507 = vmatpush.bf16.msra.mxu0 %v2595
      %3508 = vmatpush.bf16.msra.mxu0 %v2591
      %3509 = vmatmul.bf16.gmra.mxu0 %v837
      %v3510 = vpop.f32.mrf.mxu0
      %v3511 = vadd.f32 %v3498, %v3510
      %v3512 = vpop.f32.mrf.mxu0
      %3513 = vdwg.mxu0
      %3514 = vmatpush.bf16.msra.mxu0 %v2651
      %3515 = vmatpush.bf16.msra.mxu0 %v2647
      %3516 = vmatpush.bf16.msra.mxu0 %v2643
      %3517 = vmatpush.bf16.msra.mxu0 %v2639
      %3518 = vmatpush.bf16.msra.mxu0 %v2635
      %3519 = vmatpush.bf16.msra.mxu0 %v2631
      %3520 = vmatpush.bf16.msra.mxu0 %v2627
      %3521 = vmatpush.bf16.msra.mxu0 %v2623
      %3522 = vmatmul.bf16.gmra.mxu0 %v838
      %v3523 = vpop.f32.mrf.mxu0
      %v3524 = vadd.f32 %v3511, %v3523
      %v3525 = vpop.f32.mrf.mxu0
      %3526 = vdwg.mxu0
      %3527 = vmatpush.bf16.msra.mxu0 %v2683
      %3528 = vmatpush.bf16.msra.mxu0 %v2679
      %3529 = vmatpush.bf16.msra.mxu0 %v2675
      %3530 = vmatpush.bf16.msra.mxu0 %v2671
      %3531 = vmatpush.bf16.msra.mxu0 %v2667
      %3532 = vmatpush.bf16.msra.mxu0 %v2663
      %3533 = vmatpush.bf16.msra.mxu0 %v2659
      %3534 = vmatpush.bf16.msra.mxu0 %v2655
      %3535 = vmatmul.bf16.gmra.mxu0 %v839
      %v3536 = vpop.f32.mrf.mxu0
      %v3537 = vadd.f32 %v3524, %v3536
      %v3538 = vpop.f32.mrf.mxu0
      %3539 = vdwg.mxu0
      %3540 = vmatpush.bf16.msra.mxu0 %v2715
      %3541 = vmatpush.bf16.msra.mxu0 %v2711
      %3542 = vmatpush.bf16.msra.mxu0 %v2707
      %3543 = vmatpush.bf16.msra.mxu0 %v2703
      %3544 = vmatpush.bf16.msra.mxu0 %v2699
      %3545 = vmatpush.bf16.msra.mxu0 %v2695
      %3546 = vmatpush.bf16.msra.mxu0 %v2691
      %3547 = vmatpush.bf16.msra.mxu0 %v2687
      %3548 = vmatmul.bf16.gmra.mxu0 %v840
      %v3549 = vpop.f32.mrf.mxu0
      %v3550 = vadd.f32 %v3537, %v3549
      %v3551 = vpop.f32.mrf.mxu0
      %3552 = vdwg.mxu0
      %3553 = vmatpush.bf16.msra.mxu0 %v2747
      %3554 = vmatpush.bf16.msra.mxu0 %v2743
      %3555 = vmatpush.bf16.msra.mxu0 %v2739
      %3556 = vmatpush.bf16.msra.mxu0 %v2735
      %3557 = vmatpush.bf16.msra.mxu0 %v2731
      %3558 = vmatpush.bf16.msra.mxu0 %v2727
      %3559 = vmatpush.bf16.msra.mxu0 %v2723
      %3560 = vmatpush.bf16.msra.mxu0 %v2719
      %3561 = vmatmul.bf16.gmra.mxu0 %v841
      %v3562 = vpop.f32.mrf.mxu0
      %v3563 = vadd.f32 %v3550, %v3562
      %v3564 = vpop.f32.mrf.mxu0
      %3565 = vdwg.mxu0
      %3566 = vmatpush.bf16.msra.mxu0 %v2779
      %3567 = vmatpush.bf16.msra.mxu0 %v2775
      %3568 = vmatpush.bf16.msra.mxu0 %v2771
      %3569 = vmatpush.bf16.msra.mxu0 %v2767
      %3570 = vmatpush.bf16.msra.mxu0 %v2763
      %3571 = vmatpush.bf16.msra.mxu0 %v2759
      %3572 = vmatpush.bf16.msra.mxu0 %v2755
      %3573 = vmatpush.bf16.msra.mxu0 %v2751
      %3574 = vmatmul.bf16.gmra.mxu0 %v842
      %v3575 = vpop.f32.mrf.mxu0
      %v3576 = vadd.f32 %v3563, %v3575
      %v3577 = vpop.f32.mrf.mxu0
      %3578 = vdwg.mxu0
      %3579 = vmatpush.bf16.msra.mxu0 %v2811
      %3580 = vmatpush.bf16.msra.mxu0 %v2807
      %3581 = vmatpush.bf16.msra.mxu0 %v2803
      %3582 = vmatpush.bf16.msra.mxu0 %v2799
      %3583 = vmatpush.bf16.msra.mxu0 %v2795
      %3584 = vmatpush.bf16.msra.mxu0 %v2791
      %3585 = vmatpush.bf16.msra.mxu0 %v2787
      %3586 = vmatpush.bf16.msra.mxu0 %v2783
      %3587 = vmatmul.bf16.gmra.mxu0 %v843
      %v3588 = vpop.f32.mrf.mxu0
      %v3589 = vadd.f32 %v3576, %v3588
      %v3590 = vpop.f32.mrf.mxu0
      %3591 = vdwg.mxu0
      %3592 = vmatpush.bf16.msra.mxu0 %v2843
      %3593 = vmatpush.bf16.msra.mxu0 %v2839
      %3594 = vmatpush.bf16.msra.mxu0 %v2835
      %3595 = vmatpush.bf16.msra.mxu0 %v2831
      %3596 = vmatpush.bf16.msra.mxu0 %v2827
      %3597 = vmatpush.bf16.msra.mxu0 %v2823
      %3598 = vmatpush.bf16.msra.mxu0 %v2819
      %3599 = vmatpush.bf16.msra.mxu0 %v2815
      %3600 = vmatmul.bf16.gmra.mxu0 %v844
      %v3601 = vpop.f32.mrf.mxu0
      %v3602 = vadd.f32 %v3589, %v3601
      %v3603 = vpop.f32.mrf.mxu0
      %3604 = vdwg.mxu0
      %3605 = vmatpush.bf16.msra.mxu0 %v2875
      %3606 = vmatpush.bf16.msra.mxu0 %v2871
      %3607 = vmatpush.bf16.msra.mxu0 %v2867
      %3608 = vmatpush.bf16.msra.mxu0 %v2863
      %3609 = vmatpush.bf16.msra.mxu0 %v2859
      %3610 = vmatpush.bf16.msra.mxu0 %v2855
      %3611 = vmatpush.bf16.msra.mxu0 %v2851
      %3612 = vmatpush.bf16.msra.mxu0 %v2847
      %3613 = vmatmul.bf16.gmra.mxu0 %v845
      %v3614 = vpop.f32.mrf.mxu0
      %v3615 = vadd.f32 %v3602, %v3614
      %v3616 = vpop.f32.mrf.mxu0
      %3617 = vdwg.mxu0
      %3618 = vmatpush.bf16.msra.mxu0 %v2907
      %3619 = vmatpush.bf16.msra.mxu0 %v2903
      %3620 = vmatpush.bf16.msra.mxu0 %v2899
      %3621 = vmatpush.bf16.msra.mxu0 %v2895
      %3622 = vmatpush.bf16.msra.mxu0 %v2891
      %3623 = vmatpush.bf16.msra.mxu0 %v2887
      %3624 = vmatpush.bf16.msra.mxu0 %v2883
      %3625 = vmatpush.bf16.msra.mxu0 %v2879
      %3626 = vmatmul.bf16.gmra.mxu0 %v846
      %v3627 = vpop.f32.mrf.mxu0
      %v3628 = vadd.f32 %v3615, %v3627
      %v3629 = vpop.f32.mrf.mxu0
      %3630 = vdwg.mxu0
      %3631 = vmatpush.bf16.msra.mxu0 %v2428
      %3632 = vmatpush.bf16.msra.mxu0 %v2424
      %3633 = vmatpush.bf16.msra.mxu0 %v2420
      %3634 = vmatpush.bf16.msra.mxu0 %v2416
      %3635 = vmatpush.bf16.msra.mxu0 %v2412
      %3636 = vmatpush.bf16.msra.mxu0 %v2408
      %3637 = vmatpush.bf16.msra.mxu0 %v2404
      %3638 = vmatpush.bf16.msra.mxu0 %v2400
      %3639 = vmatmul.bf16.gmra.mxu0 %v831
      %v3640 = vpop.f32.mrf.mxu0
      %v3641 = vadd.f32 %v800, %v3640
      %v3642 = vpop.f32.mrf.mxu0
      %3643 = vdwg.mxu0
      %3644 = vmatpush.bf16.msra.mxu0 %v2460
      %3645 = vmatpush.bf16.msra.mxu0 %v2456
      %3646 = vmatpush.bf16.msra.mxu0 %v2452
      %3647 = vmatpush.bf16.msra.mxu0 %v2448
      %3648 = vmatpush.bf16.msra.mxu0 %v2444
      %3649 = vmatpush.bf16.msra.mxu0 %v2440
      %3650 = vmatpush.bf16.msra.mxu0 %v2436
      %3651 = vmatpush.bf16.msra.mxu0 %v2432
      %3652 = vmatmul.bf16.gmra.mxu0 %v832
      %v3653 = vpop.f32.mrf.mxu0
      %v3654 = vadd.f32 %v3641, %v3653
      %v3655 = vpop.f32.mrf.mxu0
      %3656 = vdwg.mxu0
      %3657 = vmatpush.bf16.msra.mxu0 %v2492
      %3658 = vmatpush.bf16.msra.mxu0 %v2488
      %3659 = vmatpush.bf16.msra.mxu0 %v2484
      %3660 = vmatpush.bf16.msra.mxu0 %v2480
      %3661 = vmatpush.bf16.msra.mxu0 %v2476
      %3662 = vmatpush.bf16.msra.mxu0 %v2472
      %3663 = vmatpush.bf16.msra.mxu0 %v2468
      %3664 = vmatpush.bf16.msra.mxu0 %v2464
      %3665 = vmatmul.bf16.gmra.mxu0 %v833
      %v3666 = vpop.f32.mrf.mxu0
      %v3667 = vadd.f32 %v3654, %v3666
      %v3668 = vpop.f32.mrf.mxu0
      %3669 = vdwg.mxu0
      %3670 = vmatpush.bf16.msra.mxu0 %v2524
      %3671 = vmatpush.bf16.msra.mxu0 %v2520
      %3672 = vmatpush.bf16.msra.mxu0 %v2516
      %3673 = vmatpush.bf16.msra.mxu0 %v2512
      %3674 = vmatpush.bf16.msra.mxu0 %v2508
      %3675 = vmatpush.bf16.msra.mxu0 %v2504
      %3676 = vmatpush.bf16.msra.mxu0 %v2500
      %3677 = vmatpush.bf16.msra.mxu0 %v2496
      %3678 = vmatmul.bf16.gmra.mxu0 %v834
      %v3679 = vpop.f32.mrf.mxu0
      %v3680 = vadd.f32 %v3667, %v3679
      %v3681 = vpop.f32.mrf.mxu0
      %3682 = vdwg.mxu0
      %3683 = vmatpush.bf16.msra.mxu0 %v2556
      %3684 = vmatpush.bf16.msra.mxu0 %v2552
      %3685 = vmatpush.bf16.msra.mxu0 %v2548
      %3686 = vmatpush.bf16.msra.mxu0 %v2544
      %3687 = vmatpush.bf16.msra.mxu0 %v2540
      %3688 = vmatpush.bf16.msra.mxu0 %v2536
      %3689 = vmatpush.bf16.msra.mxu0 %v2532
      %3690 = vmatpush.bf16.msra.mxu0 %v2528
      %3691 = vmatmul.bf16.gmra.mxu0 %v835
      %v3692 = vpop.f32.mrf.mxu0
      %v3693 = vadd.f32 %v3680, %v3692
      %v3694 = vpop.f32.mrf.mxu0
      %3695 = vdwg.mxu0
      %3696 = vmatpush.bf16.msra.mxu0 %v2588
      %3697 = vmatpush.bf16.msra.mxu0 %v2584
      %3698 = vmatpush.bf16.msra.mxu0 %v2580
      %3699 = vmatpush.bf16.msra.mxu0 %v2576
      %3700 = vmatpush.bf16.msra.mxu0 %v2572
      %3701 = vmatpush.bf16.msra.mxu0 %v2568
      %3702 = vmatpush.bf16.msra.mxu0 %v2564
      %3703 = vmatpush.bf16.msra.mxu0 %v2560
      %3704 = vmatmul.bf16.gmra.mxu0 %v836
      %v3705 = vpop.f32.mrf.mxu0
      %v3706 = vadd.f32 %v3693, %v3705
      %v3707 = vpop.f32.mrf.mxu0
      %3708 = vdwg.mxu0
      %3709 = vmatpush.bf16.msra.mxu0 %v2620
      %3710 = vmatpush.bf16.msra.mxu0 %v2616
      %3711 = vmatpush.bf16.msra.mxu0 %v2612
      %3712 = vmatpush.bf16.msra.mxu0 %v2608
      %3713 = vmatpush.bf16.msra.mxu0 %v2604
      %3714 = vmatpush.bf16.msra.mxu0 %v2600
      %3715 = vmatpush.bf16.msra.mxu0 %v2596
      %3716 = vmatpush.bf16.msra.mxu0 %v2592
      %3717 = vmatmul.bf16.gmra.mxu0 %v837
      %v3718 = vpop.f32.mrf.mxu0
      %v3719 = vadd.f32 %v3706, %v3718
      %v3720 = vpop.f32.mrf.mxu0
      %3721 = vdwg.mxu0
      %3722 = vmatpush.bf16.msra.mxu0 %v2652
      %3723 = vmatpush.bf16.msra.mxu0 %v2648
      %3724 = vmatpush.bf16.msra.mxu0 %v2644
      %3725 = vmatpush.bf16.msra.mxu0 %v2640
      %3726 = vmatpush.bf16.msra.mxu0 %v2636
      %3727 = vmatpush.bf16.msra.mxu0 %v2632
      %3728 = vmatpush.bf16.msra.mxu0 %v2628
      %3729 = vmatpush.bf16.msra.mxu0 %v2624
      %3730 = vmatmul.bf16.gmra.mxu0 %v838
      %v3731 = vpop.f32.mrf.mxu0
      %v3732 = vadd.f32 %v3719, %v3731
      %v3733 = vpop.f32.mrf.mxu0
      %3734 = vdwg.mxu0
      %3735 = vmatpush.bf16.msra.mxu0 %v2684
      %3736 = vmatpush.bf16.msra.mxu0 %v2680
      %3737 = vmatpush.bf16.msra.mxu0 %v2676
      %3738 = vmatpush.bf16.msra.mxu0 %v2672
      %3739 = vmatpush.bf16.msra.mxu0 %v2668
      %3740 = vmatpush.bf16.msra.mxu0 %v2664
      %3741 = vmatpush.bf16.msra.mxu0 %v2660
      %3742 = vmatpush.bf16.msra.mxu0 %v2656
      %3743 = vmatmul.bf16.gmra.mxu0 %v839
      %v3744 = vpop.f32.mrf.mxu0
      %v3745 = vadd.f32 %v3732, %v3744
      %v3746 = vpop.f32.mrf.mxu0
      %3747 = vdwg.mxu0
      %3748 = vmatpush.bf16.msra.mxu0 %v2716
      %3749 = vmatpush.bf16.msra.mxu0 %v2712
      %3750 = vmatpush.bf16.msra.mxu0 %v2708
      %3751 = vmatpush.bf16.msra.mxu0 %v2704
      %3752 = vmatpush.bf16.msra.mxu0 %v2700
      %3753 = vmatpush.bf16.msra.mxu0 %v2696
      %3754 = vmatpush.bf16.msra.mxu0 %v2692
      %3755 = vmatpush.bf16.msra.mxu0 %v2688
      %3756 = vmatmul.bf16.gmra.mxu0 %v840
      %v3757 = vpop.f32.mrf.mxu0
      %v3758 = vadd.f32 %v3745, %v3757
      %v3759 = vpop.f32.mrf.mxu0
      %3760 = vdwg.mxu0
      %3761 = vmatpush.bf16.msra.mxu0 %v2748
      %3762 = vmatpush.bf16.msra.mxu0 %v2744
      %3763 = vmatpush.bf16.msra.mxu0 %v2740
      %3764 = vmatpush.bf16.msra.mxu0 %v2736
      %3765 = vmatpush.bf16.msra.mxu0 %v2732
      %3766 = vmatpush.bf16.msra.mxu0 %v2728
      %3767 = vmatpush.bf16.msra.mxu0 %v2724
      %3768 = vmatpush.bf16.msra.mxu0 %v2720
      %3769 = vmatmul.bf16.gmra.mxu0 %v841
      %v3770 = vpop.f32.mrf.mxu0
      %v3771 = vadd.f32 %v3758, %v3770
      %v3772 = vpop.f32.mrf.mxu0
      %3773 = vdwg.mxu0
      %3774 = vmatpush.bf16.msra.mxu0 %v2780
      %3775 = vmatpush.bf16.msra.mxu0 %v2776
      %3776 = vmatpush.bf16.msra.mxu0 %v2772
      %3777 = vmatpush.bf16.msra.mxu0 %v2768
      %3778 = vmatpush.bf16.msra.mxu0 %v2764
      %3779 = vmatpush.bf16.msra.mxu0 %v2760
      %3780 = vmatpush.bf16.msra.mxu0 %v2756
      %3781 = vmatpush.bf16.msra.mxu0 %v2752
      %3782 = vmatmul.bf16.gmra.mxu0 %v842
      %v3783 = vpop.f32.mrf.mxu0
      %v3784 = vadd.f32 %v3771, %v3783
      %v3785 = vpop.f32.mrf.mxu0
      %3786 = vdwg.mxu0
      %3787 = vmatpush.bf16.msra.mxu0 %v2812
      %3788 = vmatpush.bf16.msra.mxu0 %v2808
      %3789 = vmatpush.bf16.msra.mxu0 %v2804
      %3790 = vmatpush.bf16.msra.mxu0 %v2800
      %3791 = vmatpush.bf16.msra.mxu0 %v2796
      %3792 = vmatpush.bf16.msra.mxu0 %v2792
      %3793 = vmatpush.bf16.msra.mxu0 %v2788
      %3794 = vmatpush.bf16.msra.mxu0 %v2784
      %3795 = vmatmul.bf16.gmra.mxu0 %v843
      %v3796 = vpop.f32.mrf.mxu0
      %v3797 = vadd.f32 %v3784, %v3796
      %v3798 = vpop.f32.mrf.mxu0
      %3799 = vdwg.mxu0
      %3800 = vmatpush.bf16.msra.mxu0 %v2844
      %3801 = vmatpush.bf16.msra.mxu0 %v2840
      %3802 = vmatpush.bf16.msra.mxu0 %v2836
      %3803 = vmatpush.bf16.msra.mxu0 %v2832
      %3804 = vmatpush.bf16.msra.mxu0 %v2828
      %3805 = vmatpush.bf16.msra.mxu0 %v2824
      %3806 = vmatpush.bf16.msra.mxu0 %v2820
      %3807 = vmatpush.bf16.msra.mxu0 %v2816
      %3808 = vmatmul.bf16.gmra.mxu0 %v844
      %v3809 = vpop.f32.mrf.mxu0
      %v3810 = vadd.f32 %v3797, %v3809
      %v3811 = vpop.f32.mrf.mxu0
      %3812 = vdwg.mxu0
      %3813 = vmatpush.bf16.msra.mxu0 %v2876
      %3814 = vmatpush.bf16.msra.mxu0 %v2872
      %3815 = vmatpush.bf16.msra.mxu0 %v2868
      %3816 = vmatpush.bf16.msra.mxu0 %v2864
      %3817 = vmatpush.bf16.msra.mxu0 %v2860
      %3818 = vmatpush.bf16.msra.mxu0 %v2856
      %3819 = vmatpush.bf16.msra.mxu0 %v2852
      %3820 = vmatpush.bf16.msra.mxu0 %v2848
      %3821 = vmatmul.bf16.gmra.mxu0 %v845
      %v3822 = vpop.f32.mrf.mxu0
      %v3823 = vadd.f32 %v3810, %v3822
      %v3824 = vpop.f32.mrf.mxu0
      %3825 = vdwg.mxu0
      %3826 = vmatpush.bf16.msra.mxu0 %v2908
      %3827 = vmatpush.bf16.msra.mxu0 %v2904
      %3828 = vmatpush.bf16.msra.mxu0 %v2900
      %3829 = vmatpush.bf16.msra.mxu0 %v2896
      %3830 = vmatpush.bf16.msra.mxu0 %v2892
      %3831 = vmatpush.bf16.msra.mxu0 %v2888
      %3832 = vmatpush.bf16.msra.mxu0 %v2884
      %3833 = vmatpush.bf16.msra.mxu0 %v2880
      %3834 = vmatmul.bf16.gmra.mxu0 %v846
      %v3835 = vpop.f32.mrf.mxu0
      %v3836 = vadd.f32 %v3823, %v3835
      %v3837 = vpop.f32.mrf.mxu0
      %3838 = vdwg.mxu0
      %3839 = vmatpush.bf16.msra.mxu0 %v2429
      %3840 = vmatpush.bf16.msra.mxu0 %v2425
      %3841 = vmatpush.bf16.msra.mxu0 %v2421
      %3842 = vmatpush.bf16.msra.mxu0 %v2417
      %3843 = vmatpush.bf16.msra.mxu0 %v2413
      %3844 = vmatpush.bf16.msra.mxu0 %v2409
      %3845 = vmatpush.bf16.msra.mxu0 %v2405
      %3846 = vmatpush.bf16.msra.mxu0 %v2401
      %3847 = vmatmul.bf16.gmra.mxu0 %v831
      %v3848 = vpop.f32.mrf.mxu0
      %v3849 = vadd.f32 %v801, %v3848
      %v3850 = vpop.f32.mrf.mxu0
      %3851 = vdwg.mxu0
      %3852 = vmatpush.bf16.msra.mxu0 %v2461
      %3853 = vmatpush.bf16.msra.mxu0 %v2457
      %3854 = vmatpush.bf16.msra.mxu0 %v2453
      %3855 = vmatpush.bf16.msra.mxu0 %v2449
      %3856 = vmatpush.bf16.msra.mxu0 %v2445
      %3857 = vmatpush.bf16.msra.mxu0 %v2441
      %3858 = vmatpush.bf16.msra.mxu0 %v2437
      %3859 = vmatpush.bf16.msra.mxu0 %v2433
      %3860 = vmatmul.bf16.gmra.mxu0 %v832
      %v3861 = vpop.f32.mrf.mxu0
      %v3862 = vadd.f32 %v3849, %v3861
      %v3863 = vpop.f32.mrf.mxu0
      %3864 = vdwg.mxu0
      %3865 = vmatpush.bf16.msra.mxu0 %v2493
      %3866 = vmatpush.bf16.msra.mxu0 %v2489
      %3867 = vmatpush.bf16.msra.mxu0 %v2485
      %3868 = vmatpush.bf16.msra.mxu0 %v2481
      %3869 = vmatpush.bf16.msra.mxu0 %v2477
      %3870 = vmatpush.bf16.msra.mxu0 %v2473
      %3871 = vmatpush.bf16.msra.mxu0 %v2469
      %3872 = vmatpush.bf16.msra.mxu0 %v2465
      %3873 = vmatmul.bf16.gmra.mxu0 %v833
      %v3874 = vpop.f32.mrf.mxu0
      %v3875 = vadd.f32 %v3862, %v3874
      %v3876 = vpop.f32.mrf.mxu0
      %3877 = vdwg.mxu0
      %3878 = vmatpush.bf16.msra.mxu0 %v2525
      %3879 = vmatpush.bf16.msra.mxu0 %v2521
      %3880 = vmatpush.bf16.msra.mxu0 %v2517
      %3881 = vmatpush.bf16.msra.mxu0 %v2513
      %3882 = vmatpush.bf16.msra.mxu0 %v2509
      %3883 = vmatpush.bf16.msra.mxu0 %v2505
      %3884 = vmatpush.bf16.msra.mxu0 %v2501
      %3885 = vmatpush.bf16.msra.mxu0 %v2497
      %3886 = vmatmul.bf16.gmra.mxu0 %v834
      %v3887 = vpop.f32.mrf.mxu0
      %v3888 = vadd.f32 %v3875, %v3887
      %v3889 = vpop.f32.mrf.mxu0
      %3890 = vdwg.mxu0
      %3891 = vmatpush.bf16.msra.mxu0 %v2557
      %3892 = vmatpush.bf16.msra.mxu0 %v2553
      %3893 = vmatpush.bf16.msra.mxu0 %v2549
      %3894 = vmatpush.bf16.msra.mxu0 %v2545
      %3895 = vmatpush.bf16.msra.mxu0 %v2541
      %3896 = vmatpush.bf16.msra.mxu0 %v2537
      %3897 = vmatpush.bf16.msra.mxu0 %v2533
      %3898 = vmatpush.bf16.msra.mxu0 %v2529
      %3899 = vmatmul.bf16.gmra.mxu0 %v835
      %v3900 = vpop.f32.mrf.mxu0
      %v3901 = vadd.f32 %v3888, %v3900
      %v3902 = vpop.f32.mrf.mxu0
      %3903 = vdwg.mxu0
      %3904 = vmatpush.bf16.msra.mxu0 %v2589
      %3905 = vmatpush.bf16.msra.mxu0 %v2585
      %3906 = vmatpush.bf16.msra.mxu0 %v2581
      %3907 = vmatpush.bf16.msra.mxu0 %v2577
      %3908 = vmatpush.bf16.msra.mxu0 %v2573
      %3909 = vmatpush.bf16.msra.mxu0 %v2569
      %3910 = vmatpush.bf16.msra.mxu0 %v2565
      %3911 = vmatpush.bf16.msra.mxu0 %v2561
      %3912 = vmatmul.bf16.gmra.mxu0 %v836
      %v3913 = vpop.f32.mrf.mxu0
      %v3914 = vadd.f32 %v3901, %v3913
      %v3915 = vpop.f32.mrf.mxu0
      %3916 = vdwg.mxu0
      %3917 = vmatpush.bf16.msra.mxu0 %v2621
      %3918 = vmatpush.bf16.msra.mxu0 %v2617
      %3919 = vmatpush.bf16.msra.mxu0 %v2613
      %3920 = vmatpush.bf16.msra.mxu0 %v2609
      %3921 = vmatpush.bf16.msra.mxu0 %v2605
      %3922 = vmatpush.bf16.msra.mxu0 %v2601
      %3923 = vmatpush.bf16.msra.mxu0 %v2597
      %3924 = vmatpush.bf16.msra.mxu0 %v2593
      %3925 = vmatmul.bf16.gmra.mxu0 %v837
      %v3926 = vpop.f32.mrf.mxu0
      %v3927 = vadd.f32 %v3914, %v3926
      %v3928 = vpop.f32.mrf.mxu0
      %3929 = vdwg.mxu0
      %3930 = vmatpush.bf16.msra.mxu0 %v2653
      %3931 = vmatpush.bf16.msra.mxu0 %v2649
      %3932 = vmatpush.bf16.msra.mxu0 %v2645
      %3933 = vmatpush.bf16.msra.mxu0 %v2641
      %3934 = vmatpush.bf16.msra.mxu0 %v2637
      %3935 = vmatpush.bf16.msra.mxu0 %v2633
      %3936 = vmatpush.bf16.msra.mxu0 %v2629
      %3937 = vmatpush.bf16.msra.mxu0 %v2625
      %3938 = vmatmul.bf16.gmra.mxu0 %v838
      %v3939 = vpop.f32.mrf.mxu0
      %v3940 = vadd.f32 %v3927, %v3939
      %v3941 = vpop.f32.mrf.mxu0
      %3942 = vdwg.mxu0
      %3943 = vmatpush.bf16.msra.mxu0 %v2685
      %3944 = vmatpush.bf16.msra.mxu0 %v2681
      %3945 = vmatpush.bf16.msra.mxu0 %v2677
      %3946 = vmatpush.bf16.msra.mxu0 %v2673
      %3947 = vmatpush.bf16.msra.mxu0 %v2669
      %3948 = vmatpush.bf16.msra.mxu0 %v2665
      %3949 = vmatpush.bf16.msra.mxu0 %v2661
      %3950 = vmatpush.bf16.msra.mxu0 %v2657
      %3951 = vmatmul.bf16.gmra.mxu0 %v839
      %v3952 = vpop.f32.mrf.mxu0
      %v3953 = vadd.f32 %v3940, %v3952
      %v3954 = vpop.f32.mrf.mxu0
      %3955 = vdwg.mxu0
      %3956 = vmatpush.bf16.msra.mxu0 %v2717
      %3957 = vmatpush.bf16.msra.mxu0 %v2713
      %3958 = vmatpush.bf16.msra.mxu0 %v2709
      %3959 = vmatpush.bf16.msra.mxu0 %v2705
      %3960 = vmatpush.bf16.msra.mxu0 %v2701
      %3961 = vmatpush.bf16.msra.mxu0 %v2697
      %3962 = vmatpush.bf16.msra.mxu0 %v2693
      %3963 = vmatpush.bf16.msra.mxu0 %v2689
      %3964 = vmatmul.bf16.gmra.mxu0 %v840
      %v3965 = vpop.f32.mrf.mxu0
      %v3966 = vadd.f32 %v3953, %v3965
      %v3967 = vpop.f32.mrf.mxu0
      %3968 = vdwg.mxu0
      %3969 = vmatpush.bf16.msra.mxu0 %v2749
      %3970 = vmatpush.bf16.msra.mxu0 %v2745
      %3971 = vmatpush.bf16.msra.mxu0 %v2741
      %3972 = vmatpush.bf16.msra.mxu0 %v2737
      %3973 = vmatpush.bf16.msra.mxu0 %v2733
      %3974 = vmatpush.bf16.msra.mxu0 %v2729
      %3975 = vmatpush.bf16.msra.mxu0 %v2725
      %3976 = vmatpush.bf16.msra.mxu0 %v2721
      %3977 = vmatmul.bf16.gmra.mxu0 %v841
      %v3978 = vpop.f32.mrf.mxu0
      %v3979 = vadd.f32 %v3966, %v3978
      %v3980 = vpop.f32.mrf.mxu0
      %3981 = vdwg.mxu0
      %3982 = vmatpush.bf16.msra.mxu0 %v2781
      %3983 = vmatpush.bf16.msra.mxu0 %v2777
      %3984 = vmatpush.bf16.msra.mxu0 %v2773
      %3985 = vmatpush.bf16.msra.mxu0 %v2769
      %3986 = vmatpush.bf16.msra.mxu0 %v2765
      %3987 = vmatpush.bf16.msra.mxu0 %v2761
      %3988 = vmatpush.bf16.msra.mxu0 %v2757
      %3989 = vmatpush.bf16.msra.mxu0 %v2753
      %3990 = vmatmul.bf16.gmra.mxu0 %v842
      %v3991 = vpop.f32.mrf.mxu0
      %v3992 = vadd.f32 %v3979, %v3991
      %v3993 = vpop.f32.mrf.mxu0
      %3994 = vdwg.mxu0
      %3995 = vmatpush.bf16.msra.mxu0 %v2813
      %3996 = vmatpush.bf16.msra.mxu0 %v2809
      %3997 = vmatpush.bf16.msra.mxu0 %v2805
      %3998 = vmatpush.bf16.msra.mxu0 %v2801
      %3999 = vmatpush.bf16.msra.mxu0 %v2797
      %4000 = vmatpush.bf16.msra.mxu0 %v2793
      %4001 = vmatpush.bf16.msra.mxu0 %v2789
      %4002 = vmatpush.bf16.msra.mxu0 %v2785
      %4003 = vmatmul.bf16.gmra.mxu0 %v843
      %v4004 = vpop.f32.mrf.mxu0
      %v4005 = vadd.f32 %v3992, %v4004
      %v4006 = vpop.f32.mrf.mxu0
      %4007 = vdwg.mxu0
      %4008 = vmatpush.bf16.msra.mxu0 %v2845
      %4009 = vmatpush.bf16.msra.mxu0 %v2841
      %4010 = vmatpush.bf16.msra.mxu0 %v2837
      %4011 = vmatpush.bf16.msra.mxu0 %v2833
      %4012 = vmatpush.bf16.msra.mxu0 %v2829
      %4013 = vmatpush.bf16.msra.mxu0 %v2825
      %4014 = vmatpush.bf16.msra.mxu0 %v2821
      %4015 = vmatpush.bf16.msra.mxu0 %v2817
      %4016 = vmatmul.bf16.gmra.mxu0 %v844
      %v4017 = vpop.f32.mrf.mxu0
      %v4018 = vadd.f32 %v4005, %v4017
      %v4019 = vpop.f32.mrf.mxu0
      %4020 = vdwg.mxu0
      %4021 = vmatpush.bf16.msra.mxu0 %v2877
      %4022 = vmatpush.bf16.msra.mxu0 %v2873
      %4023 = vmatpush.bf16.msra.mxu0 %v2869
      %4024 = vmatpush.bf16.msra.mxu0 %v2865
      %4025 = vmatpush.bf16.msra.mxu0 %v2861
      %4026 = vmatpush.bf16.msra.mxu0 %v2857
      %4027 = vmatpush.bf16.msra.mxu0 %v2853
      %4028 = vmatpush.bf16.msra.mxu0 %v2849
      %4029 = vmatmul.bf16.gmra.mxu0 %v845
      %v4030 = vpop.f32.mrf.mxu0
      %v4031 = vadd.f32 %v4018, %v4030
      %v4032 = vpop.f32.mrf.mxu0
      %4033 = vdwg.mxu0
      %4034 = vmatpush.bf16.msra.mxu0 %v2909
      %4035 = vmatpush.bf16.msra.mxu0 %v2905
      %4036 = vmatpush.bf16.msra.mxu0 %v2901
      %4037 = vmatpush.bf16.msra.mxu0 %v2897
      %4038 = vmatpush.bf16.msra.mxu0 %v2893
      %4039 = vmatpush.bf16.msra.mxu0 %v2889
      %4040 = vmatpush.bf16.msra.mxu0 %v2885
      %4041 = vmatpush.bf16.msra.mxu0 %v2881
      %4042 = vmatmul.bf16.gmra.mxu0 %v846
      %v4043 = vpop.f32.mrf.mxu0
      %v4044 = vadd.f32 %v4031, %v4043
      %v4045 = vpop.f32.mrf.mxu0
      %4046 = vdwg.mxu0
      %4047 = vmatpush.bf16.msra.mxu0 %v2430
      %4048 = vmatpush.bf16.msra.mxu0 %v2426
      %4049 = vmatpush.bf16.msra.mxu0 %v2422
      %4050 = vmatpush.bf16.msra.mxu0 %v2418
      %4051 = vmatpush.bf16.msra.mxu0 %v2414
      %4052 = vmatpush.bf16.msra.mxu0 %v2410
      %4053 = vmatpush.bf16.msra.mxu0 %v2406
      %4054 = vmatpush.bf16.msra.mxu0 %v2402
      %4055 = vmatmul.bf16.gmra.mxu0 %v831
      %v4056 = vpop.f32.mrf.mxu0
      %v4057 = vadd.f32 %v802, %v4056
      %v4058 = vpop.f32.mrf.mxu0
      %4059 = vdwg.mxu0
      %4060 = vmatpush.bf16.msra.mxu0 %v2462
      %4061 = vmatpush.bf16.msra.mxu0 %v2458
      %4062 = vmatpush.bf16.msra.mxu0 %v2454
      %4063 = vmatpush.bf16.msra.mxu0 %v2450
      %4064 = vmatpush.bf16.msra.mxu0 %v2446
      %4065 = vmatpush.bf16.msra.mxu0 %v2442
      %4066 = vmatpush.bf16.msra.mxu0 %v2438
      %4067 = vmatpush.bf16.msra.mxu0 %v2434
      %4068 = vmatmul.bf16.gmra.mxu0 %v832
      %v4069 = vpop.f32.mrf.mxu0
      %v4070 = vadd.f32 %v4057, %v4069
      %v4071 = vpop.f32.mrf.mxu0
      %4072 = vdwg.mxu0
      %4073 = vmatpush.bf16.msra.mxu0 %v2494
      %4074 = vmatpush.bf16.msra.mxu0 %v2490
      %4075 = vmatpush.bf16.msra.mxu0 %v2486
      %4076 = vmatpush.bf16.msra.mxu0 %v2482
      %4077 = vmatpush.bf16.msra.mxu0 %v2478
      %4078 = vmatpush.bf16.msra.mxu0 %v2474
      %4079 = vmatpush.bf16.msra.mxu0 %v2470
      %4080 = vmatpush.bf16.msra.mxu0 %v2466
      %4081 = vmatmul.bf16.gmra.mxu0 %v833
      %v4082 = vpop.f32.mrf.mxu0
      %v4083 = vadd.f32 %v4070, %v4082
      %v4084 = vpop.f32.mrf.mxu0
      %4085 = vdwg.mxu0
      %4086 = vmatpush.bf16.msra.mxu0 %v2526
      %4087 = vmatpush.bf16.msra.mxu0 %v2522
      %4088 = vmatpush.bf16.msra.mxu0 %v2518
      %4089 = vmatpush.bf16.msra.mxu0 %v2514
      %4090 = vmatpush.bf16.msra.mxu0 %v2510
      %4091 = vmatpush.bf16.msra.mxu0 %v2506
      %4092 = vmatpush.bf16.msra.mxu0 %v2502
      %4093 = vmatpush.bf16.msra.mxu0 %v2498
      %4094 = vmatmul.bf16.gmra.mxu0 %v834
      %v4095 = vpop.f32.mrf.mxu0
      %v4096 = vadd.f32 %v4083, %v4095
      %v4097 = vpop.f32.mrf.mxu0
      %4098 = vdwg.mxu0
      %4099 = vmatpush.bf16.msra.mxu0 %v2558
      %4100 = vmatpush.bf16.msra.mxu0 %v2554
      %4101 = vmatpush.bf16.msra.mxu0 %v2550
      %4102 = vmatpush.bf16.msra.mxu0 %v2546
      %4103 = vmatpush.bf16.msra.mxu0 %v2542
      %4104 = vmatpush.bf16.msra.mxu0 %v2538
      %4105 = vmatpush.bf16.msra.mxu0 %v2534
      %4106 = vmatpush.bf16.msra.mxu0 %v2530
      %4107 = vmatmul.bf16.gmra.mxu0 %v835
      %v4108 = vpop.f32.mrf.mxu0
      %v4109 = vadd.f32 %v4096, %v4108
      %v4110 = vpop.f32.mrf.mxu0
      %4111 = vdwg.mxu0
      %4112 = vmatpush.bf16.msra.mxu0 %v2590
      %4113 = vmatpush.bf16.msra.mxu0 %v2586
      %4114 = vmatpush.bf16.msra.mxu0 %v2582
      %4115 = vmatpush.bf16.msra.mxu0 %v2578
      %4116 = vmatpush.bf16.msra.mxu0 %v2574
      %4117 = vmatpush.bf16.msra.mxu0 %v2570
      %4118 = vmatpush.bf16.msra.mxu0 %v2566
      %4119 = vmatpush.bf16.msra.mxu0 %v2562
      %4120 = vmatmul.bf16.gmra.mxu0 %v836
      %v4121 = vpop.f32.mrf.mxu0
      %v4122 = vadd.f32 %v4109, %v4121
      %v4123 = vpop.f32.mrf.mxu0
      %4124 = vdwg.mxu0
      %4125 = vmatpush.bf16.msra.mxu0 %v2622
      %4126 = vmatpush.bf16.msra.mxu0 %v2618
      %4127 = vmatpush.bf16.msra.mxu0 %v2614
      %4128 = vmatpush.bf16.msra.mxu0 %v2610
      %4129 = vmatpush.bf16.msra.mxu0 %v2606
      %4130 = vmatpush.bf16.msra.mxu0 %v2602
      %4131 = vmatpush.bf16.msra.mxu0 %v2598
      %4132 = vmatpush.bf16.msra.mxu0 %v2594
      %4133 = vmatmul.bf16.gmra.mxu0 %v837
      %v4134 = vpop.f32.mrf.mxu0
      %v4135 = vadd.f32 %v4122, %v4134
      %v4136 = vpop.f32.mrf.mxu0
      %4137 = vdwg.mxu0
      %4138 = vmatpush.bf16.msra.mxu0 %v2654
      %4139 = vmatpush.bf16.msra.mxu0 %v2650
      %4140 = vmatpush.bf16.msra.mxu0 %v2646
      %4141 = vmatpush.bf16.msra.mxu0 %v2642
      %4142 = vmatpush.bf16.msra.mxu0 %v2638
      %4143 = vmatpush.bf16.msra.mxu0 %v2634
      %4144 = vmatpush.bf16.msra.mxu0 %v2630
      %4145 = vmatpush.bf16.msra.mxu0 %v2626
      %4146 = vmatmul.bf16.gmra.mxu0 %v838
      %v4147 = vpop.f32.mrf.mxu0
      %v4148 = vadd.f32 %v4135, %v4147
      %v4149 = vpop.f32.mrf.mxu0
      %4150 = vdwg.mxu0
      %4151 = vmatpush.bf16.msra.mxu0 %v2686
      %4152 = vmatpush.bf16.msra.mxu0 %v2682
      %4153 = vmatpush.bf16.msra.mxu0 %v2678
      %4154 = vmatpush.bf16.msra.mxu0 %v2674
      %4155 = vmatpush.bf16.msra.mxu0 %v2670
      %4156 = vmatpush.bf16.msra.mxu0 %v2666
      %4157 = vmatpush.bf16.msra.mxu0 %v2662
      %4158 = vmatpush.bf16.msra.mxu0 %v2658
      %4159 = vmatmul.bf16.gmra.mxu0 %v839
      %v4160 = vpop.f32.mrf.mxu0
      %v4161 = vadd.f32 %v4148, %v4160
      %v4162 = vpop.f32.mrf.mxu0
      %4163 = vdwg.mxu0
      %4164 = vmatpush.bf16.msra.mxu0 %v2718
      %4165 = vmatpush.bf16.msra.mxu0 %v2714
      %4166 = vmatpush.bf16.msra.mxu0 %v2710
      %4167 = vmatpush.bf16.msra.mxu0 %v2706
      %4168 = vmatpush.bf16.msra.mxu0 %v2702
      %4169 = vmatpush.bf16.msra.mxu0 %v2698
      %4170 = vmatpush.bf16.msra.mxu0 %v2694
      %4171 = vmatpush.bf16.msra.mxu0 %v2690
      %4172 = vmatmul.bf16.gmra.mxu0 %v840
      %v4173 = vpop.f32.mrf.mxu0
      %v4174 = vadd.f32 %v4161, %v4173
      %v4175 = vpop.f32.mrf.mxu0
      %4176 = vdwg.mxu0
      %4177 = vmatpush.bf16.msra.mxu0 %v2750
      %4178 = vmatpush.bf16.msra.mxu0 %v2746
      %4179 = vmatpush.bf16.msra.mxu0 %v2742
      %4180 = vmatpush.bf16.msra.mxu0 %v2738
      %4181 = vmatpush.bf16.msra.mxu0 %v2734
      %4182 = vmatpush.bf16.msra.mxu0 %v2730
      %4183 = vmatpush.bf16.msra.mxu0 %v2726
      %4184 = vmatpush.bf16.msra.mxu0 %v2722
      %4185 = vmatmul.bf16.gmra.mxu0 %v841
      %v4186 = vpop.f32.mrf.mxu0
      %v4187 = vadd.f32 %v4174, %v4186
      %v4188 = vpop.f32.mrf.mxu0
      %4189 = vdwg.mxu0
      %4190 = vmatpush.bf16.msra.mxu0 %v2782
      %4191 = vmatpush.bf16.msra.mxu0 %v2778
      %4192 = vmatpush.bf16.msra.mxu0 %v2774
      %4193 = vmatpush.bf16.msra.mxu0 %v2770
      %4194 = vmatpush.bf16.msra.mxu0 %v2766
      %4195 = vmatpush.bf16.msra.mxu0 %v2762
      %4196 = vmatpush.bf16.msra.mxu0 %v2758
      %4197 = vmatpush.bf16.msra.mxu0 %v2754
      %4198 = vmatmul.bf16.gmra.mxu0 %v842
      %v4199 = vpop.f32.mrf.mxu0
      %v4200 = vadd.f32 %v4187, %v4199
      %v4201 = vpop.f32.mrf.mxu0
      %4202 = vdwg.mxu0
      %4203 = vmatpush.bf16.msra.mxu0 %v2814
      %4204 = vmatpush.bf16.msra.mxu0 %v2810
      %4205 = vmatpush.bf16.msra.mxu0 %v2806
      %4206 = vmatpush.bf16.msra.mxu0 %v2802
      %4207 = vmatpush.bf16.msra.mxu0 %v2798
      %4208 = vmatpush.bf16.msra.mxu0 %v2794
      %4209 = vmatpush.bf16.msra.mxu0 %v2790
      %4210 = vmatpush.bf16.msra.mxu0 %v2786
      %4211 = vmatmul.bf16.gmra.mxu0 %v843
      %v4212 = vpop.f32.mrf.mxu0
      %v4213 = vadd.f32 %v4200, %v4212
      %v4214 = vpop.f32.mrf.mxu0
      %4215 = vdwg.mxu0
      %4216 = vmatpush.bf16.msra.mxu0 %v2846
      %4217 = vmatpush.bf16.msra.mxu0 %v2842
      %4218 = vmatpush.bf16.msra.mxu0 %v2838
      %4219 = vmatpush.bf16.msra.mxu0 %v2834
      %4220 = vmatpush.bf16.msra.mxu0 %v2830
      %4221 = vmatpush.bf16.msra.mxu0 %v2826
      %4222 = vmatpush.bf16.msra.mxu0 %v2822
      %4223 = vmatpush.bf16.msra.mxu0 %v2818
      %4224 = vmatmul.bf16.gmra.mxu0 %v844
      %v4225 = vpop.f32.mrf.mxu0
      %v4226 = vadd.f32 %v4213, %v4225
      %v4227 = vpop.f32.mrf.mxu0
      %4228 = vdwg.mxu0
      %4229 = vmatpush.bf16.msra.mxu0 %v2878
      %4230 = vmatpush.bf16.msra.mxu0 %v2874
      %4231 = vmatpush.bf16.msra.mxu0 %v2870
      %4232 = vmatpush.bf16.msra.mxu0 %v2866
      %4233 = vmatpush.bf16.msra.mxu0 %v2862
      %4234 = vmatpush.bf16.msra.mxu0 %v2858
      %4235 = vmatpush.bf16.msra.mxu0 %v2854
      %4236 = vmatpush.bf16.msra.mxu0 %v2850
      %4237 = vmatmul.bf16.gmra.mxu0 %v845
      %v4238 = vpop.f32.mrf.mxu0
      %v4239 = vadd.f32 %v4226, %v4238
      %v4240 = vpop.f32.mrf.mxu0
      %4241 = vdwg.mxu0
      %4242 = vmatpush.bf16.msra.mxu0 %v2910
      %4243 = vmatpush.bf16.msra.mxu0 %v2906
      %4244 = vmatpush.bf16.msra.mxu0 %v2902
      %4245 = vmatpush.bf16.msra.mxu0 %v2898
      %4246 = vmatpush.bf16.msra.mxu0 %v2894
      %4247 = vmatpush.bf16.msra.mxu0 %v2890
      %4248 = vmatpush.bf16.msra.mxu0 %v2886
      %4249 = vmatpush.bf16.msra.mxu0 %v2882
      %4250 = vmatmul.bf16.gmra.mxu0 %v846
      %v4251 = vpop.f32.mrf.mxu0
      %v4252 = vadd.f32 %v4239, %v4251
      %v4253 = vpop.f32.mrf.mxu0
      %4254 = vdwg.mxu0
      %vm4255 = vcmp.gt.f32.partialorder %v3628, 0.0
      %vm4256 = vcmp.gt.f32.partialorder %v3836, 0.0
      %vm4257 = vcmp.gt.f32.partialorder %v4044, 0.0
      %vm4258 = vcmp.gt.f32.partialorder %v4252, 0.0
      %v4259 = vmul.f32 %v3628, 0.01
      %v4260 = vmul.f32 %v3836, 0.01
      %v4261 = vmul.f32 %v4044, 0.01
      %v4262 = vmul.f32 %v4252, 0.01
      %v4263 = vsel %vm4255, %v3628, %v4259
      %v4264 = vsel %vm4256, %v3836, %v4260
      %v4265 = vsel %vm4257, %v4044, %v4261
      %v4266 = vsel %vm4258, %v4252, %v4262
      %v4267 = vpack.c.bf16 %v4264, %v4263
      %v4268 = vpack.c.bf16 %v4266, %v4265
      %4269 = vst [vmem:[%s267] sm:$0xff] %v4267
      %4270 = vst [vmem:[%s267 + $0x8] sm:$0xff] %v4268
      %v4271 = vrot.slane %v4263, 4
      %v4272 = vadd.f32 %v4263, %v4271
      %v4273 = vrot.slane %v4272, 2
      %v4274 = vadd.f32 %v4272, %v4273
      %v4275 = vrot.slane %v4274, 1
      %v4276 = vadd.f32 %v4274, %v4275
      %v4277 = vrot.slane %v4264, 4
      %v4278 = vadd.f32 %v4264, %v4277
      %v4279 = vrot.slane %v4278, 2
      %v4280 = vadd.f32 %v4278, %v4279
      %v4281 = vrot.slane %v4280, 1
      %v4282 = vadd.f32 %v4280, %v4281
      %v4283 = vrot.slane %v4265, 4
      %v4284 = vadd.f32 %v4265, %v4283
      %v4285 = vrot.slane %v4284, 2
      %v4286 = vadd.f32 %v4284, %v4285
      %v4287 = vrot.slane %v4286, 1
      %v4288 = vadd.f32 %v4286, %v4287
      %v4289 = vrot.slane %v4266, 4
      %v4290 = vadd.f32 %v4266, %v4289
      %v4291 = vrot.slane %v4290, 2
      %v4292 = vadd.f32 %v4290, %v4291
      %v4293 = vrot.slane %v4292, 1
      %v4294 = vadd.f32 %v4292, %v4293
      %v4295 = vmul.f32 %v4263, %v4263
      %v4296 = vmul.f32 %v4264, %v4264
      %v4297 = vmul.f32 %v4265, %v4265
      %v4298 = vmul.f32 %v4266, %v4266
      %v4299 = vrot.slane %v4295, 4
      %v4300 = vadd.f32 %v4295, %v4299
      %v4301 = vrot.slane %v4300, 2
      %v4302 = vadd.f32 %v4300, %v4301
      %v4303 = vrot.slane %v4302, 1
      %v4304 = vadd.f32 %v4302, %v4303
      %v4305 = vrot.slane %v4296, 4
      %v4306 = vadd.f32 %v4296, %v4305
      %v4307 = vrot.slane %v4306, 2
      %v4308 = vadd.f32 %v4306, %v4307
      %v4309 = vrot.slane %v4308, 1
      %v4310 = vadd.f32 %v4308, %v4309
      %v4311 = vrot.slane %v4297, 4
      %v4312 = vadd.f32 %v4297, %v4311
      %v4313 = vrot.slane %v4312, 2
      %v4314 = vadd.f32 %v4312, %v4313
      %v4315 = vrot.slane %v4314, 1
      %v4316 = vadd.f32 %v4314, %v4315
      %v4317 = vrot.slane %v4298, 4
      %v4318 = vadd.f32 %v4298, %v4317
      %v4319 = vrot.slane %v4318, 2
      %v4320 = vadd.f32 %v4318, %v4319
      %v4321 = vrot.slane %v4320, 1
      %v4322 = vadd.f32 %v4320, %v4321
      %vm4323 = vcmask 1040384
      %v4324 = vsel %vm4323, %v4276, %v4304
      %v4325 = vsel %vm4323, %v4282, %v4310
      %v4326 = vsel %vm4323, %v4288, %v4316
      %v4327 = vsel %vm4323, %v4294, %v4322
      %v4332 = vrot.slane %v4325, 6
      %v4333 = vrot.slane %v4326, 4
      %v4334 = vrot.slane %v4327, 2
      %vm4335 = vcmask 1041408
      %v4336 = vsel %vm4335, %v4324, %v4332
      %vm4337 = vcmask 1045508
      %v4338 = vsel %vm4337, %v4333, %v4334
      %vm4339 = vcmask 1043456
      %v4340 = vsel %vm4339, %v4336, %v4338
      %4342 = vst [vmem:[%s276] sm:$0xff] %v4340
      %p4343 = scmp.lt.s32.totalorder %s20, 3
      %s4344 = scalar_select %p4343, %s20, 3
      %p4345 = scmp.lt.s32.totalorder %s21, 0
      %s4346 = scalar_select %p4345, %s21, 0
      %s4347 = smul.addr %s4346, 4
      %s4348 = smul.addr %s4344, 4
      %s4349 = sadd.s32 %s4347, %s4348
      %s4350 = smul.addr %s4349, 4
      %s4351 = scalar_lea.vmem %s3, %s4350
      %p4352 = scmp.lt.s32.totalorder %s20, 3
      %s4353 = scalar_select %p4352, %s20, 3
      %p4354 = scmp.lt.s32.totalorder %s21, 0
      %s4355 = scalar_select %p4354, %s21, 0
      %s4356 = smul.addr %s4355, 4
      %s4357 = smul.addr %s4353, 4
      %s4358 = sadd.s32 %s4356, %s4357
      %s4359 = smul.addr %s4358, 2
      %s4360 = scalar_lea.vmem %s4, %s4359
      // Predicated region
      $region33: #{generator32_forward.4} parent=31 // pred_check
        %p4361 = pneg %p123
      $region34: #{generator32_forward.4} parent=31 // pred_check_branch
        %4363 = sbr.rel (%p4361) target = $region36
      $region35: #{generator32_forward.4} parent=31 // pred_region
        _
      $region36: #{generator32_forward.4} parent=31 // pred_fallthru
        _
      // Predicated region
      $region37: #{generator32_forward.4} parent=31 // pred_check
        %p4364 = pneg %p151
      $region38: #{generator32_forward.4} parent=31 // pred_check_branch
        %4366 = sbr.rel (%p4364) target = $region40
      $region39: #{generator32_forward.4} parent=31 // pred_region
        _
      $region40: #{generator32_forward.4} parent=31 // pred_fallthru
        _
    $region32: #{generator32_forward.4} parent=5 // pred_fallthru
      _
    %p4367 = scmp.le.s32.totalorder 2, %s11
    // Predicated region
    $region41: #{generator32_forward.4} parent=5 // pred_check
      %p4368 = pneg %p4367
    $region42: #{generator32_forward.4} parent=5 // pred_check_branch
      %4370 = sbr.rel (%p4368) target = $region44
    $region43: #{generator32_forward.4} parent=5 // pred_region
      %s4371 = ssub.s32 %s11, 2
      // Predicated region
      $region45: #{generator32_forward.4} parent=43 // pred_check
        %p4372 = pneg %p129
      $region46: #{generator32_forward.4} parent=43 // pred_check_branch
        %4374 = sbr.rel (%p4372) target = $region48
      $region47: #{generator32_forward.4} parent=43 // pred_region
        %p4375 = scmp.lt.s32.totalorder %s22, 3
        %s4376 = scalar_select %p4375, %s22, 3
        %p4377 = scmp.lt.s32.totalorder %s23, 0
        %s4378 = scalar_select %p4377, %s23, 0
        %s4379 = smul.addr %s4378, 4
        %s4380 = smul.addr %s4376, 4
        %s4381 = sadd.s32 %s4379, %s4380
        %s4382 = smul.addr %s4381, 4
        %s4383 = scalar_lea.vmem %s3, %s4382
      $region48: #{generator32_forward.4} parent=43 // pred_fallthru
        _
      // Predicated region
      $region49: #{generator32_forward.4} parent=43 // pred_check
        %p4384 = pneg %p157
      $region50: #{generator32_forward.4} parent=43 // pred_check_branch
        %4386 = sbr.rel (%p4384) target = $region52
      $region51: #{generator32_forward.4} parent=43 // pred_region
        %p4387 = scmp.lt.s32.totalorder %s22, 3
        %s4388 = scalar_select %p4387, %s22, 3
        %p4389 = scmp.lt.s32.totalorder %s23, 0
        %s4390 = scalar_select %p4389, %s23, 0
        %s4391 = smul.addr %s4390, 4
        %s4392 = smul.addr %s4388, 4
        %s4393 = sadd.s32 %s4391, %s4392
        %s4394 = smul.addr %s4393, 2
        %s4395 = scalar_lea.vmem %s4, %s4394
      $region52: #{generator32_forward.4} parent=43 // pred_fallthru
        _
    $region44: #{generator32_forward.4} parent=5 // pred_fallthru
      _
  $region6: #{generator32_forward.4} parent=0 // loop_footer
    %s15 = sadd.s32 1, %s11
  $region7: #{generator32_forward.4} parent=0 // loop_footer_branch
    %10 = sbr.rel target = $region3
  $region8: #{generator32_forward.4} parent=0 // loop_exit
    _

// kernel: generator32_forward.6
$region0: #{generator32_forward.6}
  #allocation0 [shape = 'u32[]', space=smem, size = 0x4, offset = 0x4, fixed_abs, tag = 'smem constant byte address 0x4 - core index']
  #allocation1 [shape = 'u32[72,128]{1,0:T(1,128)}', space=vmem, size = 0x9000, scoped, tag = 'internal scratch']
  %s0 = inlined_call_operand.vmem [shape: bf16[4,128,1024], index: 0, kind: input, shape index: {}]
  %s1 = inlined_call_operand.vmem [shape: bf16[4,1024,128], index: 1, kind: input, shape index: {}]
  %s2 = inlined_call_operand.vmem [shape: f32[1,128], index: 2, kind: input, shape index: {}]
  %s3 = inlined_call_operand.vmem [shape: bf16[4,128,128], index: 3, kind: output, shape index: {0}]
  %s4 = inlined_call_operand.vmem [shape: f32[4,1,2,128], index: 4, kind: output, shape index: {1}]
  %5 = xla_tuple %s3, %s4
  %s6 = sld [smem:[#allocation0]]
  $region53: #{generator32_forward.6} parent=0
    _
  %s8 = ssub.s32 1, %s6
  %s9 = scalar_select 0, %s8, %s6
  loop: start=0, step=1, limit=6
  $region2: #{generator32_forward.6} parent=0 // loop_pre_header
    _
  $region3: #{generator32_forward.6} parent=0 // loop_header
    %s11 = sphi 0, %s15
    %p12 = scmp.ge.s32.totalorder %s11, 6
    %s18 = sphi 0, %s30
    %s19 = sphi 0, %s26
    %s20 = sphi 0, %s18
    %s21 = sphi 0, %s19
    %s22 = sphi 0, %s20
    %s23 = sphi 0, %s21
    %s35 = sphi 0, %s37
    %s38 = sphi 0, %s35
    %s39 = sphi 0, %s38
    %s55 = sphi 0, %s39
    %s61 = sphi 0, %s63
    %s64 = sphi 0, %s61
    %s65 = sphi 0, %s64
    %s81 = sphi 0, %s65
    %s85 = sphi 0, %s85
    %s87 = sphi 0, %s85
    %s88 = sphi 0, %s87
    %s102 = sphi 0, %s88
    %s110 = sphi 0, %s112
    %s113 = sphi 0, %s110
    %s114 = sphi 0, %s113
    %s130 = sphi 0, %s114
    %s138 = sphi 0, %s140
    %s141 = sphi 0, %s138
    %s142 = sphi 0, %s141
    %s158 = sphi 0, %s142
  $region4: #{generator32_forward.6} parent=0 // loop_header_branch
    %14 = sbr.rel (%p12) target = $region8
  $region5: #{generator32_forward.6} parent=0 // loop_body
    %s16 = ssub.s32 %s11, 1
    %s17 = ssub.s32 %s11, 2
    %s24 = sadd.s32 1, %s19
    %p25 = scmp.ge.s32.totalorder %s24, 1
    %s26 = scalar_select %p25, 0, %s24
    %s27 = sadd.s32 1, %s18
    %s28 = scalar_select %p25, %s27, %s18
    %p29 = scmp.ge.s32.totalorder %s28, 4
    %s30 = scalar_select %p29, 0, %s28
    %s31 = ssub.s32 %s18, %s30
    %s32 = ssub.s32 %s19, %s26
    %s33 = sor.u32 %s31, %s32
    %p34 = scmp.eq.s32.totalorder %s33, 0
    %s36 = sadd.s32 %s35, 1
    %s37 = scalar_select %p34, %s35, %s36
    %p40 = pneg %p34
    %p41 = scmp.eq.s32.totalorder %s11, 3
    %p42 = por %p40, %p41
    %p43 = scmp.ne.s32.totalorder %s35, %s38
    %p44 = scmp.eq.s32.totalorder %s11, 0
    %p45 = por %p43, %p44
    %p46 = scmp.ne.s32.totalorder %s35, %s38
    %p47 = scmp.eq.s32.totalorder %s16, 3
    %p48 = por %p46, %p47
    %p49 = scmp.ne.s32.totalorder %s38, %s39
    %p50 = scmp.eq.s32.totalorder %s16, 0
    %p51 = por %p49, %p50
    %p52 = scmp.ne.s32.totalorder %s38, %s39
    %p53 = scmp.eq.s32.totalorder %s17, 3
    %p54 = por %p52, %p53
    %p56 = scmp.ne.s32.totalorder %s39, %s55
    %p57 = scmp.eq.s32.totalorder %s17, 0
    %p58 = por %p56, %p57
    %s59 = ssub.s32 %s18, %s30
    %p60 = scmp.eq.s32.totalorder %s59, 0
    %s62 = sadd.s32 %s61, 1
    %s63 = scalar_select %p60, %s61, %s62
    %p66 = pneg %p60
    %p67 = scmp.eq.s32.totalorder %s11, 3
    %p68 = por %p66, %p67
    %p69 = scmp.ne.s32.totalorder %s61, %s64
    %p70 = scmp.eq.s32.totalorder %s11, 0
    %p71 = por %p69, %p70
    %p72 = scmp.ne.s32.totalorder %s61, %s64
    %p73 = scmp.eq.s32.totalorder %s16, 3
    %p74 = por %p72, %p73
    %p75 = scmp.ne.s32.totalorder %s64, %s65
    %p76 = scmp.eq.s32.totalorder %s16, 0
    %p77 = por %p75, %p76
    %p78 = scmp.ne.s32.totalorder %s64, %s65
    %p79 = scmp.eq.s32.totalorder %s17, 3
    %p80 = por %p78, %p79
    %p82 = scmp.ne.s32.totalorder %s65, %s81
    %p83 = scmp.eq.s32.totalorder %s17, 0
    %p84 = por %p82, %p83
    %s86 = sadd.s32 %s85, 1
    %p89 = scmp.eq.s32.totalorder %s11, 3
    %p90 = scmp.ne.s32.totalorder %s85, %s87
    %p91 = scmp.eq.s32.totalorder %s11, 0
    %p92 = por %p90, %p91
    %p93 = scmp.ne.s32.totalorder %s85, %s87
    %p94 = scmp.eq.s32.totalorder %s16, 3
    %p95 = por %p93, %p94
    %p96 = scmp.ne.s32.totalorder %s87, %s88
    %p97 = scmp.eq.s32.totalorder %s16, 0
    %p98 = por %p96, %p97
    %p99 = scmp.ne.s32.totalorder %s87, %s88
    %p100 = scmp.eq.s32.totalorder %s17, 3
    %p101 = por %p99, %p100
    %p103 = scmp.ne.s32.totalorder %s88, %s102
    %p104 = scmp.eq.s32.totalorder %s17, 0
    %p105 = por %p103, %p104
    %s106 = ssub.s32 %s18, %s30
    %s107 = ssub.s32 %s19, %s26
    %s108 = sor.u32 %s106, %s107
    %p109 = scmp.eq.s32.totalorder %s108, 0
    %s111 = sadd.s32 %s110, 1
    %s112 = scalar_select %p109, %s110, %s111
    %p115 = pneg %p109
    %p116 = scmp.eq.s32.totalorder %s11, 3
    %p117 = por %p115, %p116
    %p118 = scmp.ne.s32.totalorder %s110, %s113
    %p119 = scmp.eq.s32.totalorder %s11, 0
    %p120 = por %p118, %p119
    %p121 = scmp.ne.s32.totalorder %s110, %s113
    %p122 = scmp.eq.s32.totalorder %s16, 3
    %p123 = por %p121, %p122
    %p124 = scmp.ne.s32.totalorder %s113, %s114
    %p125 = scmp.eq.s32.totalorder %s16, 0
    %p126 = por %p124, %p125
    %p127 = scmp.ne.s32.totalorder %s113, %s114
    %p128 = scmp.eq.s32.totalorder %s17, 3
    %p129 = por %p127, %p128
    %p131 = scmp.ne.s32.totalorder %s114, %s130
    %p132 = scmp.eq.s32.totalorder %s17, 0
    %p133 = por %p131, %p132
    %s134 = ssub.s32 %s18, %s30
    %s135 = ssub.s32 %s19, %s26
    %s136 = sor.u32 %s134, %s135
    %p137 = scmp.eq.s32.totalorder %s136, 0
    %s139 = sadd.s32 %s138, 1
    %s140 = scalar_select %p137, %s138, %s139
    %p143 = pneg %p137
    %p144 = scmp.eq.s32.totalorder %s11, 3
    %p145 = por %p143, %p144
    %p146 = scmp.ne.s32.totalorder %s138, %s141
    %p147 = scmp.eq.s32.totalorder %s11, 0
    %p148 = por %p146, %p147
    %p149 = scmp.ne.s32.totalorder %s138, %s141
    %p150 = scmp.eq.s32.totalorder %s16, 3
    %p151 = por %p149, %p150
    %p152 = scmp.ne.s32.totalorder %s141, %s142
    %p153 = scmp.eq.s32.totalorder %s16, 0
    %p154 = por %p152, %p153
    %p155 = scmp.ne.s32.totalorder %s141, %s142
    %p156 = scmp.eq.s32.totalorder %s17, 3
    %p157 = por %p155, %p156
    %p159 = scmp.ne.s32.totalorder %s142, %s158
    %p160 = scmp.eq.s32.totalorder %s17, 0
    %p161 = por %p159, %p160
    %p162 = scmp.le.s32.totalorder 1, %s11
    %p163 = scmp.lt.s32.totalorder %s11, 5
    %p164 = pnand %p162, %p163
    %p165 = pneg %p164
    // Predicated region
    $region9: #{generator32_forward.6} parent=5 // pred_check
      _
    $region10: #{generator32_forward.6} parent=5 // pred_check_branch
      %167 = sbr.rel (%p164) target = $region12
    $region11: #{generator32_forward.6} parent=5 // pred_region
      %s168 = ssub.s32 %s11, 1
      // Predicated region
      $region13: #{generator32_forward.6} parent=11 // pred_check
        %p169 = pneg %p98
      $region14: #{generator32_forward.6} parent=11 // pred_check_branch
        %171 = sbr.rel (%p169) target = $region16
      $region15: #{generator32_forward.6} parent=11 // pred_region
        _
      $region16: #{generator32_forward.6} parent=11 // pred_fallthru
        _
    $region12: #{generator32_forward.6} parent=5 // pred_fallthru
      _
    %p172 = scmp.lt.s32.totalorder %s11, 4
    // Predicated region
    $region17: #{generator32_forward.6} parent=5 // pred_check
      %p173 = pneg %p172
    $region18: #{generator32_forward.6} parent=5 // pred_check_branch
      %175 = sbr.rel (%p173) target = $region20
    $region19: #{generator32_forward.6} parent=5 // pred_region
      // Predicated region
      $region21: #{generator32_forward.6} parent=19 // pred_check
        %p176 = pneg %p45
      $region22: #{generator32_forward.6} parent=19 // pred_check_branch
        %178 = sbr.rel (%p176) target = $region24
      $region23: #{generator32_forward.6} parent=19 // pred_region
        %s179 = smul.u32 16, %s19
        %p180 = scmp.lt.s32.totalorder %s18, 3
        %s181 = scalar_select %p180, %s18, 3
        %p182 = scmp.lt.s32.totalorder %s179, 15
        %s183 = scalar_select %p182, %s179, 15
        %s184 = smul.addr %s183, 8
        %s185 = smul.addr %s181, 128
        %s186 = sadd.s32 %s184, %s185
        %s187 = smul.addr %s186, 4
        %s188 = scalar_lea.vmem %s0, %s187
        %s189 = smul.u32 16, %s19
      $region24: #{generator32_forward.6} parent=19 // pred_fallthru
        _
      // Predicated region
      $region25: #{generator32_forward.6} parent=19 // pred_check
        %p190 = pneg %p71
      $region26: #{generator32_forward.6} parent=19 // pred_check_branch
        %192 = sbr.rel (%p190) target = $region28
      $region27: #{generator32_forward.6} parent=19 // pred_region
        %p193 = scmp.lt.s32.totalorder %s18, 3
        %s194 = scalar_select %p193, %s18, 3
        %s195 = smul.addr %s194, 128
        %s196 = smul.addr %s195, 4
        %s197 = scalar_lea.vmem %s1, %s196
      $region28: #{generator32_forward.6} parent=19 // pred_fallthru
        _
    $region20: #{generator32_forward.6} parent=5 // pred_fallthru
      _
    %p198 = scmp.le.s32.totalorder 1, %s11
    %p199 = scmp.lt.s32.totalorder %s11, 5
    %p200 = pnand %p198, %p199
    %p201 = pneg %p200
    // Predicated region
    $region29: #{generator32_forward.6} parent=5 // pred_check
      _
    $region30: #{generator32_forward.6} parent=5 // pred_check_branch
      %203 = sbr.rel (%p200) target = $region32
    $region31: #{generator32_forward.6} parent=5 // pred_region
      %s204 = ssub.s32 %s11, 1
      %s205 = smul.u32 16, %s21
      %p206 = scmp.lt.s32.totalorder %s20, 3
      %s207 = scalar_select %p206, %s20, 3
      %p208 = scmp.lt.s32.totalorder %s205, 15
      %s209 = scalar_select %p208, %s205, 15
      %s210 = smul.addr %s209, 8
      %s211 = smul.addr %s207, 128
      %s212 = sadd.s32 %s210, %s211
      %s213 = smul.addr %s212, 4
      %s214 = scalar_lea.vmem %s0, %s213
      %p215 = pneg %p51
      %p216 = pneg %p48
      %p217 = scmp.lt.s32.totalorder %s20, 3
      %s218 = scalar_select %p217, %s20, 3
      %s219 = smul.addr %s218, 128
      %s220 = smul.addr %s219, 4
      %s221 = scalar_lea.vmem %s1, %s220
      %p222 = pneg %p77
      %p223 = pneg %p74
      %p224 = pneg %p98
      %p225 = pneg %p95
      %p226 = pneg %p126
      %p227 = pneg %p123
      %s228 = smul.u32 16, %s21
      %p229 = scmp.lt.s32.totalorder %s20, 3
      %s230 = scalar_select %p229, %s20, 3
      %p231 = scmp.lt.s32.totalorder %s228, 15
      %s232 = scalar_select %p231, %s228, 15
      %s233 = smul.addr %s230, 16
      %s234 = sadd.s32 %s232, %s233
      %s235 = smul.addr %s234, 4
      %s236 = scalar_lea.vmem %s3, %s235
      %p237 = pneg %p154
      %p238 = pneg %p151
      %p239 = scmp.lt.s32.totalorder %s20, 3
      %s240 = scalar_select %p239, %s20, 3
      %p241 = scmp.lt.s32.totalorder %s21, 0
      %s242 = scalar_select %p241, %s21, 0
      %s243 = sadd.s32 %s242, %s240
      %s244 = smul.addr %s243, 2
      %s245 = scalar_lea.vmem %s4, %s244
      %s246 = smul.u32 16, %s21
      %p247 = scmp.lt.s32.totalorder %s20, 3
      %s248 = scalar_select %p247, %s20, 3
      %p249 = scmp.lt.s32.totalorder %s246, 15
      %s250 = scalar_select %p249, %s246, 15
      %s251 = smul.addr %s250, 8
      %s252 = smul.addr %s248, 128
      %s253 = sadd.s32 %s251, %s252
      %s254 = smul.addr %s253, 4
      %s255 = scalar_lea.vmem %s0, %s254
      %s256 = smul.u32 16, %s21
      %p257 = scmp.lt.s32.totalorder %s20, 3
      %s258 = scalar_select %p257, %s20, 3
      %s259 = smul.addr %s258, 128
      %s260 = smul.addr %s259, 4
      %s261 = scalar_lea.vmem %s1, %s260
      %s262 = smul.u32 16, %s21
      %p263 = scmp.lt.s32.totalorder %s20, 3
      %s264 = scalar_select %p263, %s20, 3
      %p265 = scmp.lt.s32.totalorder %s262, 15
      %s266 = scalar_select %p265, %s262, 15
      %s267 = smul.addr %s264, 16
      %s268 = sadd.s32 %s266, %s267
      %s269 = smul.addr %s268, 4
      %s270 = scalar_lea.vmem %s3, %s269
      %s271 = smul.u32 16, %s21
      %p272 = scmp.lt.s32.totalorder %s20, 3
      %s273 = scalar_select %p272, %s20, 3
      %p274 = scmp.lt.s32.totalorder %s21, 0
      %s275 = scalar_select %p274, %s21, 0
      %s276 = sadd.s32 %s275, %s273
      %s277 = smul.addr %s276, 2
      %s278 = scalar_lea.vmem %s4, %s277
      %v279 = vld [vmem:[%s255] sm:$0xff]
      %v280 = vld [vmem:[%s255 + $0x8] sm:$0xff]
      %v281 = vld [vmem:[%s255 + $0x10] sm:$0xff]
      %v282 = vld [vmem:[%s255 + $0x18] sm:$0xff]
      %v283 = vld [vmem:[%s255 + $0x20] sm:$0xff]
      %v284 = vld [vmem:[%s255 + $0x28] sm:$0xff]
      %v285 = vld [vmem:[%s255 + $0x30] sm:$0xff]
      %v286 = vld [vmem:[%s255 + $0x38] sm:$0xff]
      %v287 = vld [vmem:[%s255 + $0x40] sm:$0xff]
      %v288 = vld [vmem:[%s255 + $0x48] sm:$0xff]
      %v289 = vld [vmem:[%s255 + $0x50] sm:$0xff]
      %v290 = vld [vmem:[%s255 + $0x58] sm:$0xff]
      %v291 = vld [vmem:[%s255 + $0x60] sm:$0xff]
      %v292 = vld [vmem:[%s255 + $0x68] sm:$0xff]
      %v293 = vld [vmem:[%s255 + $0x70] sm:$0xff]
      %v294 = vld [vmem:[%s255 + $0x78] sm:$0xff]
      %v295 = vld [vmem:[%s255 + $0x80] sm:$0xff]
      %v296 = vld [vmem:[%s255 + $0x88] sm:$0xff]
      %v297 = vld [vmem:[%s255 + $0x90] sm:$0xff]
      %v298 = vld [vmem:[%s255 + $0x98] sm:$0xff]
      %v299 = vld [vmem:[%s255 + $0xa0] sm:$0xff]
      %v300 = vld [vmem:[%s255 + $0xa8] sm:$0xff]
      %v301 = vld [vmem:[%s255 + $0xb0] sm:$0xff]
      %v302 = vld [vmem:[%s255 + $0xb8] sm:$0xff]
      %v303 = vld [vmem:[%s255 + $0xc0] sm:$0xff]
      %v304 = vld [vmem:[%s255 + $0xc8] sm:$0xff]
      %v305 = vld [vmem:[%s255 + $0xd0] sm:$0xff]
      %v306 = vld [vmem:[%s255 + $0xd8] sm:$0xff]
      %v307 = vld [vmem:[%s255 + $0xe0] sm:$0xff]
      %v308 = vld [vmem:[%s255 + $0xe8] sm:$0xff]
      %v309 = vld [vmem:[%s255 + $0xf0] sm:$0xff]
      %v310 = vld [vmem:[%s255 + $0xf8] sm:$0xff]
      %v311 = vld [vmem:[%s255 + $0x100] sm:$0xff]
      %v312 = vld [vmem:[%s255 + $0x108] sm:$0xff]
      %v313 = vld [vmem:[%s255 + $0x110] sm:$0xff]
      %v314 = vld [vmem:[%s255 + $0x118] sm:$0xff]
      %v315 = vld [vmem:[%s255 + $0x120] sm:$0xff]
      %v316 = vld [vmem:[%s255 + $0x128] sm:$0xff]
      %v317 = vld [vmem:[%s255 + $0x130] sm:$0xff]
      %v318 = vld [vmem:[%s255 + $0x138] sm:$0xff]
      %v319 = vld [vmem:[%s255 + $0x140] sm:$0xff]
      %v320 = vld [vmem:[%s255 + $0x148] sm:$0xff]
      %v321 = vld [vmem:[%s255 + $0x150] sm:$0xff]
      %v322 = vld [vmem:[%s255 + $0x158] sm:$0xff]
      %v323 = vld [vmem:[%s255 + $0x160] sm:$0xff]
      %v324 = vld [vmem:[%s255 + $0x168] sm:$0xff]
      %v325 = vld [vmem:[%s255 + $0x170] sm:$0xff]
      %v326 = vld [vmem:[%s255 + $0x178] sm:$0xff]
      %v327 = vld [vmem:[%s255 + $0x180] sm:$0xff]
      %v328 = vld [vmem:[%s255 + $0x188] sm:$0xff]
      %v329 = vld [vmem:[%s255 + $0x190] sm:$0xff]
      %v330 = vld [vmem:[%s255 + $0x198] sm:$0xff]
      %v331 = vld [vmem:[%s255 + $0x1a0] sm:$0xff]
      %v332 = vld [vmem:[%s255 + $0x1a8] sm:$0xff]
      %v333 = vld [vmem:[%s255 + $0x1b0] sm:$0xff]
      %v334 = vld [vmem:[%s255 + $0x1b8] sm:$0xff]
      %v335 = vld [vmem:[%s255 + $0x1c0] sm:$0xff]
      %v336 = vld [vmem:[%s255 + $0x1c8] sm:$0xff]
      %v337 = vld [vmem:[%s255 + $0x1d0] sm:$0xff]
      %v338 = vld [vmem:[%s255 + $0x1d8] sm:$0xff]
      %v339 = vld [vmem:[%s255 + $0x1e0] sm:$0xff]
      %v340 = vld [vmem:[%s255 + $0x1e8] sm:$0xff]
      %v341 = vld [vmem:[%s255 + $0x1f0] sm:$0xff]
      %v342 = vld [vmem:[%s255 + $0x1f8] sm:$0xff]
      %v343 = vld [vmem:[%s261] sm:$0xf]
      %v344 = vld [vmem:[%s261 + $0x4] sm:$0xf]
      %v345 = vld [vmem:[%s261 + $0x8] sm:$0xf]
      %v346 = vld [vmem:[%s261 + $0xc] sm:$0xf]
      %v347 = vld [vmem:[%s261 + $0x10] sm:$0xf]
      %v348 = vld [vmem:[%s261 + $0x14] sm:$0xf]
      %v349 = vld [vmem:[%s261 + $0x18] sm:$0xf]
      %v350 = vld [vmem:[%s261 + $0x1c] sm:$0xf]
      %v351 = vld [vmem:[%s261 + $0x20] sm:$0xf]
      %v352 = vld [vmem:[%s261 + $0x24] sm:$0xf]
      %v353 = vld [vmem:[%s261 + $0x28] sm:$0xf]
      %v354 = vld [vmem:[%s261 + $0x2c] sm:$0xf]
      %v355 = vld [vmem:[%s261 + $0x30] sm:$0xf]
      %v356 = vld [vmem:[%s261 + $0x34] sm:$0xf]
      %v357 = vld [vmem:[%s261 + $0x38] sm:$0xf]
      %v358 = vld [vmem:[%s261 + $0x3c] sm:$0xf]
      %v359 = vld [vmem:[%s261 + $0x40] sm:$0xf]
      %v360 = vld [vmem:[%s261 + $0x44] sm:$0xf]
      %v361 = vld [vmem:[%s261 + $0x48] sm:$0xf]
      %v362 = vld [vmem:[%s261 + $0x4c] sm:$0xf]
      %v363 = vld [vmem:[%s261 + $0x50] sm:$0xf]
      %v364 = vld [vmem:[%s261 + $0x54] sm:$0xf]
      %v365 = vld [vmem:[%s261 + $0x58] sm:$0xf]
      %v366 = vld [vmem:[%s261 + $0x5c] sm:$0xf]
      %v367 = vld [vmem:[%s261 + $0x60] sm:$0xf]
      %v368 = vld [vmem:[%s261 + $0x64] sm:$0xf]
      %v369 = vld [vmem:[%s261 + $0x68] sm:$0xf]
      %v370 = vld [vmem:[%s261 + $0x6c] sm:$0xf]
      %v371 = vld [vmem:[%s261 + $0x70] sm:$0xf]
      %v372 = vld [vmem:[%s261 + $0x74] sm:$0xf]
      %v373 = vld [vmem:[%s261 + $0x78] sm:$0xf]
      %v374 = vld [vmem:[%s261 + $0x7c] sm:$0xf]
      %v375 = vld [vmem:[%s261 + $0x80] sm:$0xf]
      %v376 = vld [vmem:[%s261 + $0x84] sm:$0xf]
      %v377 = vld [vmem:[%s261 + $0x88] sm:$0xf]
      %v378 = vld [vmem:[%s261 + $0x8c] sm:$0xf]
      %v379 = vld [vmem:[%s261 + $0x90] sm:$0xf]
      %v380 = vld [vmem:[%s261 + $0x94] sm:$0xf]
      %v381 = vld [vmem:[%s261 + $0x98] sm:$0xf]
      %v382 = vld [vmem:[%s261 + $0x9c] sm:$0xf]
      %v383 = vld [vmem:[%s261 + $0xa0] sm:$0xf]
      %v384 = vld [vmem:[%s261 + $0xa4] sm:$0xf]
      %v385 = vld [vmem:[%s261 + $0xa8] sm:$0xf]
      %v386 = vld [vmem:[%s261 + $0xac] sm:$0xf]
      %v387 = vld [vmem:[%s261 + $0xb0] sm:$0xf]
      %v388 = vld [vmem:[%s261 + $0xb4] sm:$0xf]
      %v389 = vld [vmem:[%s261 + $0xb8] sm:$0xf]
      %v390 = vld [vmem:[%s261 + $0xbc] sm:$0xf]
      %v391 = vld [vmem:[%s261 + $0xc0] sm:$0xf]
      %v392 = vld [vmem:[%s261 + $0xc4] sm:$0xf]
      %v393 = vld [vmem:[%s261 + $0xc8] sm:$0xf]
      %v394 = vld [vmem:[%s261 + $0xcc] sm:$0xf]
      %v395 = vld [vmem:[%s261 + $0xd0] sm:$0xf]
      %v396 = vld [vmem:[%s261 + $0xd4] sm:$0xf]
      %v397 = vld [vmem:[%s261 + $0xd8] sm:$0xf]
      %v398 = vld [vmem:[%s261 + $0xdc] sm:$0xf]
      %v399 = vld [vmem:[%s261 + $0xe0] sm:$0xf]
      %v400 = vld [vmem:[%s261 + $0xe4] sm:$0xf]
      %v401 = vld [vmem:[%s261 + $0xe8] sm:$0xf]
      %v402 = vld [vmem:[%s261 + $0xec] sm:$0xf]
      %v403 = vld [vmem:[%s261 + $0xf0] sm:$0xf]
      %v404 = vld [vmem:[%s261 + $0xf4] sm:$0xf]
      %v405 = vld [vmem:[%s261 + $0xf8] sm:$0xf]
      %v406 = vld [vmem:[%s261 + $0xfc] sm:$0xf]
      %v407 = vld [vmem:[%s261 + $0x100] sm:$0xf]
      %v408 = vld [vmem:[%s261 + $0x104] sm:$0xf]
      %v409 = vld [vmem:[%s261 + $0x108] sm:$0xf]
      %v410 = vld [vmem:[%s261 + $0x10c] sm:$0xf]
      %v411 = vld [vmem:[%s261 + $0x110] sm:$0xf]
      %v412 = vld [vmem:[%s261 + $0x114] sm:$0xf]
      %v413 = vld [vmem:[%s261 + $0x118] sm:$0xf]
      %v414 = vld [vmem:[%s261 + $0x11c] sm:$0xf]
      %v415 = vld [vmem:[%s261 + $0x120] sm:$0xf]
      %v416 = vld [vmem:[%s261 + $0x124] sm:$0xf]
      %v417 = vld [vmem:[%s261 + $0x128] sm:$0xf]
      %v418 = vld [vmem:[%s261 + $0x12c] sm:$0xf]
      %v419 = vld [vmem:[%s261 + $0x130] sm:$0xf]
      %v420 = vld [vmem:[%s261 + $0x134] sm:$0xf]
      %v421 = vld [vmem:[%s261 + $0x138] sm:$0xf]
      %v422 = vld [vmem:[%s261 + $0x13c] sm:$0xf]
      %v423 = vld [vmem:[%s261 + $0x140] sm:$0xf]
      %v424 = vld [vmem:[%s261 + $0x144] sm:$0xf]
      %v425 = vld [vmem:[%s261 + $0x148] sm:$0xf]
      %v426 = vld [vmem:[%s261 + $0x14c] sm:$0xf]
      %v427 = vld [vmem:[%s261 + $0x150] sm:$0xf]
      %v428 = vld [vmem:[%s261 + $0x154] sm:$0xf]
      %v429 = vld [vmem:[%s261 + $0x158] sm:$0xf]
      %v430 = vld [vmem:[%s261 + $0x15c] sm:$0xf]
      %v431 = vld [vmem:[%s261 + $0x160] sm:$0xf]
      %v432 = vld [vmem:[%s261 + $0x164] sm:$0xf]
      %v433 = vld [vmem:[%s261 + $0x168] sm:$0xf]
      %v434 = vld [vmem:[%s261 + $0x16c] sm:$0xf]
      %v435 = vld [vmem:[%s261 + $0x170] sm:$0xf]
      %v436 = vld [vmem:[%s261 + $0x174] sm:$0xf]
      %v437 = vld [vmem:[%s261 + $0x178] sm:$0xf]
      %v438 = vld [vmem:[%s261 + $0x17c] sm:$0xf]
      %v439 = vld [vmem:[%s261 + $0x180] sm:$0xf]
      %v440 = vld [vmem:[%s261 + $0x184] sm:$0xf]
      %v441 = vld [vmem:[%s261 + $0x188] sm:$0xf]
      %v442 = vld [vmem:[%s261 + $0x18c] sm:$0xf]
      %v443 = vld [vmem:[%s261 + $0x190] sm:$0xf]
      %v444 = vld [vmem:[%s261 + $0x194] sm:$0xf]
      %v445 = vld [vmem:[%s261 + $0x198] sm:$0xf]
      %v446 = vld [vmem:[%s261 + $0x19c] sm:$0xf]
      %v447 = vld [vmem:[%s261 + $0x1a0] sm:$0xf]
      %v448 = vld [vmem:[%s261 + $0x1a4] sm:$0xf]
      %v449 = vld [vmem:[%s261 + $0x1a8] sm:$0xf]
      %v450 = vld [vmem:[%s261 + $0x1ac] sm:$0xf]
      %v451 = vld [vmem:[%s261 + $0x1b0] sm:$0xf]
      %v452 = vld [vmem:[%s261 + $0x1b4] sm:$0xf]
      %v453 = vld [vmem:[%s261 + $0x1b8] sm:$0xf]
      %v454 = vld [vmem:[%s261 + $0x1bc] sm:$0xf]
      %v455 = vld [vmem:[%s261 + $0x1c0] sm:$0xf]
      %v456 = vld [vmem:[%s261 + $0x1c4] sm:$0xf]
      %v457 = vld [vmem:[%s261 + $0x1c8] sm:$0xf]
      %v458 = vld [vmem:[%s261 + $0x1cc] sm:$0xf]
      %v459 = vld [vmem:[%s261 + $0x1d0] sm:$0xf]
      %v460 = vld [vmem:[%s261 + $0x1d4] sm:$0xf]
      %v461 = vld [vmem:[%s261 + $0x1d8] sm:$0xf]
      %v462 = vld [vmem:[%s261 + $0x1dc] sm:$0xf]
      %v463 = vld [vmem:[%s261 + $0x1e0] sm:$0xf]
      %v464 = vld [vmem:[%s261 + $0x1e4] sm:$0xf]
      %v465 = vld [vmem:[%s261 + $0x1e8] sm:$0xf]
      %v466 = vld [vmem:[%s261 + $0x1ec] sm:$0xf]
      %v467 = vld [vmem:[%s261 + $0x1f0] sm:$0xf]
      %v468 = vld [vmem:[%s261 + $0x1f4] sm:$0xf]
      %v469 = vld [vmem:[%s261 + $0x1f8] sm:$0xf]
      %v470 = vld [vmem:[%s261 + $0x1fc] sm:$0xf]
      %v471 = vld [vmem:[%s2] sm:$0x1]
      %v473 = vperm.slane %v471, 0
      %v539 = vunpack.c.l.b16 %v279
      %v540 = vunpack.c.h.b16 %v279
      %v541 = vunpack.c.l.b16 %v280
      %v542 = vunpack.c.h.b16 %v280
      %v543 = vunpack.c.l.b16 %v281
      %v544 = vunpack.c.h.b16 %v281
      %v545 = vunpack.c.l.b16 %v282
      %v546 = vunpack.c.h.b16 %v282
      %v547 = vunpack.c.l.b16 %v283
      %v548 = vunpack.c.h.b16 %v283
      %v549 = vunpack.c.l.b16 %v284
      %v550 = vunpack.c.h.b16 %v284
      %v551 = vunpack.c.l.b16 %v285
      %v552 = vunpack.c.h.b16 %v285
      %v553 = vunpack.c.l.b16 %v286
      %v554 = vunpack.c.h.b16 %v286
      %v555 = vunpack.c.l.b16 %v287
      %v556 = vunpack.c.h.b16 %v287
      %v557 = vunpack.c.l.b16 %v288
      %v558 = vunpack.c.h.b16 %v288
      %v559 = vunpack.c.l.b16 %v289
      %v560 = vunpack.c.h.b16 %v289
      %v561 = vunpack.c.l.b16 %v290
      %v562 = vunpack.c.h.b16 %v290
      %v563 = vunpack.c.l.b16 %v291
      %v564 = vunpack.c.h.b16 %v291
      %v565 = vunpack.c.l.b16 %v292
      %v566 = vunpack.c.h.b16 %v292
      %v567 = vunpack.c.l.b16 %v293
      %v568 = vunpack.c.h.b16 %v293
      %v569 = vunpack.c.l.b16 %v294
      %v570 = vunpack.c.h.b16 %v294
      %v571 = vunpack.c.l.b16 %v295
      %v572 = vunpack.c.h.b16 %v295
      %v573 = vunpack.c.l.b16 %v296
      %v574 = vunpack.c.h.b16 %v296
      %v575 = vunpack.c.l.b16 %v297
      %v576 = vunpack.c.h.b16 %v297
      %v577 = vunpack.c.l.b16 %v298
      %v578 = vunpack.c.h.b16 %v298
      %v579 = vunpack.c.l.b16 %v299
      %v580 = vunpack.c.h.b16 %v299
      %v581 = vunpack.c.l.b16 %v300
      %v582 = vunpack.c.h.b16 %v300
      %v583 = vunpack.c.l.b16 %v301
      %v584 = vunpack.c.h.b16 %v301
      %v585 = vunpack.c.l.b16 %v302
      %v586 = vunpack.c.h.b16 %v302
      %v587 = vunpack.c.l.b16 %v303
      %v588 = vunpack.c.h.b16 %v303
      %v589 = vunpack.c.l.b16 %v304
      %v590 = vunpack.c.h.b16 %v304
      %v591 = vunpack.c.l.b16 %v305
      %v592 = vunpack.c.h.b16 %v305
      %v593 = vunpack.c.l.b16 %v306
      %v594 = vunpack.c.h.b16 %v306
      %v595 = vunpack.c.l.b16 %v307
      %v596 = vunpack.c.h.b16 %v307
      %v597 = vunpack.c.l.b16 %v308
      %v598 = vunpack.c.h.b16 %v308
      %v599 = vunpack.c.l.b16 %v309
      %v600 = vunpack.c.h.b16 %v309
      %v601 = vunpack.c.l.b16 %v310
      %v602 = vunpack.c.h.b16 %v310
      %v603 = vunpack.c.l.b16 %v311
      %v604 = vunpack.c.h.b16 %v311
      %v605 = vunpack.c.l.b16 %v312
      %v606 = vunpack.c.h.b16 %v312
      %v607 = vunpack.c.l.b16 %v313
      %v608 = vunpack.c.h.b16 %v313
      %v609 = vunpack.c.l.b16 %v314
      %v610 = vunpack.c.h.b16 %v314
      %v611 = vunpack.c.l.b16 %v315
      %v612 = vunpack.c.h.b16 %v315
      %v613 = vunpack.c.l.b16 %v316
      %v614 = vunpack.c.h.b16 %v316
      %v615 = vunpack.c.l.b16 %v317
      %v616 = vunpack.c.h.b16 %v317
      %v617 = vunpack.c.l.b16 %v318
      %v618 = vunpack.c.h.b16 %v318
      %v619 = vunpack.c.l.b16 %v319
      %v620 = vunpack.c.h.b16 %v319
      %v621 = vunpack.c.l.b16 %v320
      %v622 = vunpack.c.h.b16 %v320
      %v623 = vunpack.c.l.b16 %v321
      %v624 = vunpack.c.h.b16 %v321
      %v625 = vunpack.c.l.b16 %v322
      %v626 = vunpack.c.h.b16 %v322
      %v627 = vunpack.c.l.b16 %v323
      %v628 = vunpack.c.h.b16 %v323
      %v629 = vunpack.c.l.b16 %v324
      %v630 = vunpack.c.h.b16 %v324
      %v631 = vunpack.c.l.b16 %v325
      %v632 = vunpack.c.h.b16 %v325
      %v633 = vunpack.c.l.b16 %v326
      %v634 = vunpack.c.h.b16 %v326
      %v635 = vunpack.c.l.b16 %v327
      %v636 = vunpack.c.h.b16 %v327
      %v637 = vunpack.c.l.b16 %v328
      %v638 = vunpack.c.h.b16 %v328
      %v639 = vunpack.c.l.b16 %v329
      %v640 = vunpack.c.h.b16 %v329
      %v641 = vunpack.c.l.b16 %v330
      %v642 = vunpack.c.h.b16 %v330
      %v643 = vunpack.c.l.b16 %v331
      %v644 = vunpack.c.h.b16 %v331
      %v645 = vunpack.c.l.b16 %v332
      %v646 = vunpack.c.h.b16 %v332
      %v647 = vunpack.c.l.b16 %v333
      %v648 = vunpack.c.h.b16 %v333
      %v649 = vunpack.c.l.b16 %v334
      %v650 = vunpack.c.h.b16 %v334
      %v651 = vunpack.c.l.b16 %v335
      %v652 = vunpack.c.h.b16 %v335
      %v653 = vunpack.c.l.b16 %v336
      %v654 = vunpack.c.h.b16 %v336
      %v655 = vunpack.c.l.b16 %v337
      %v656 = vunpack.c.h.b16 %v337
      %v657 = vunpack.c.l.b16 %v338
      %v658 = vunpack.c.h.b16 %v338
      %v659 = vunpack.c.l.b16 %v339
      %v660 = vunpack.c.h.b16 %v339
      %v661 = vunpack.c.l.b16 %v340
      %v662 = vunpack.c.h.b16 %v340
      %v663 = vunpack.c.l.b16 %v341
      %v664 = vunpack.c.h.b16 %v341
      %v665 = vunpack.c.l.b16 %v342
      %v666 = vunpack.c.h.b16 %v342
      %v667 = vpack.c.b16 %v547, %v539
      %v668 = vpack.c.b16 %v548, %v540
      %v669 = vpack.c.b16 %v549, %v541
      %v670 = vpack.c.b16 %v550, %v542
      %v671 = vpack.c.b16 %v551, %v543
      %v672 = vpack.c.b16 %v552, %v544
      %v673 = vpack.c.b16 %v553, %v545
      %v674 = vpack.c.b16 %v554, %v546
      %v675 = vpack.c.b16 %v563, %v555
      %v676 = vpack.c.b16 %v564, %v556
      %v677 = vpack.c.b16 %v565, %v557
      %v678 = vpack.c.b16 %v566, %v558
      %v679 = vpack.c.b16 %v567, %v559
      %v680 = vpack.c.b16 %v568, %v560
      %v681 = vpack.c.b16 %v569, %v561
      %v682 = vpack.c.b16 %v570, %v562
      %v683 = vpack.c.b16 %v579, %v571
      %v684 = vpack.c.b16 %v580, %v572
      %v685 = vpack.c.b16 %v581, %v573
      %v686 = vpack.c.b16 %v582, %v574
      %v687 = vpack.c.b16 %v583, %v575
      %v688 = vpack.c.b16 %v584, %v576
      %v689 = vpack.c.b16 %v585, %v577
      %v690 = vpack.c.b16 %v586, %v578
      %v691 = vpack.c.b16 %v595, %v587
      %v692 = vpack.c.b16 %v596, %v588
      %v693 = vpack.c.b16 %v597, %v589
      %v694 = vpack.c.b16 %v598, %v590
      %v695 = vpack.c.b16 %v599, %v591
      %v696 = vpack.c.b16 %v600, %v592
      %v697 = vpack.c.b16 %v601, %v593
      %v698 = vpack.c.b16 %v602, %v594
      %v699 = vpack.c.b16 %v611, %v603
      %v700 = vpack.c.b16 %v612, %v604
      %v701 = vpack.c.b16 %v613, %v605
      %v702 = vpack.c.b16 %v614, %v606
      %v703 = vpack.c.b16 %v615, %v607
      %v704 = vpack.c.b16 %v616, %v608
      %v705 = vpack.c.b16 %v617, %v609
      %v706 = vpack.c.b16 %v618, %v610
      %v707 = vpack.c.b16 %v627, %v619
      %v708 = vpack.c.b16 %v628, %v620
      %v709 = vpack.c.b16 %v629, %v621
      %v710 = vpack.c.b16 %v630, %v622
      %v711 = vpack.c.b16 %v631, %v623
      %v712 = vpack.c.b16 %v632, %v624
      %v713 = vpack.c.b16 %v633, %v625
      %v714 = vpack.c.b16 %v634, %v626
      %v715 = vpack.c.b16 %v643, %v635
      %v716 = vpack.c.b16 %v644, %v636
      %v717 = vpack.c.b16 %v645, %v637
      %v718 = vpack.c.b16 %v646, %v638
      %v719 = vpack.c.b16 %v647, %v639
      %v720 = vpack.c.b16 %v648, %v640
      %v721 = vpack.c.b16 %v649, %v641
      %v722 = vpack.c.b16 %v650, %v642
      %v723 = vpack.c.b16 %v659, %v651
      %v724 = vpack.c.b16 %v660, %v652
      %v725 = vpack.c.b16 %v661, %v653
      %v726 = vpack.c.b16 %v662, %v654
      %v727 = vpack.c.b16 %v663, %v655
      %v728 = vpack.c.b16 %v664, %v656
      %v729 = vpack.c.b16 %v665, %v657
      %v730 = vpack.c.b16 %v666, %v658
      %v923 = vunpack.c.l.b16 %v343
      %v924 = vunpack.c.l.b16 %v344
      %v925 = vunpack.c.l.b16 %v345
      %v926 = vunpack.c.l.b16 %v346
      %v927 = vunpack.c.l.b16 %v347
      %v928 = vunpack.c.l.b16 %v348
      %v929 = vunpack.c.l.b16 %v349
      %v930 = vunpack.c.l.b16 %v350
      %v931 = vunpack.c.l.b16 %v351
      %v932 = vunpack.c.l.b16 %v352
      %v933 = vunpack.c.l.b16 %v353
      %v934 = vunpack.c.l.b16 %v354
      %v935 = vunpack.c.l.b16 %v355
      %v936 = vunpack.c.l.b16 %v356
      %v937 = vunpack.c.l.b16 %v357
      %v938 = vunpack.c.l.b16 %v358
      %v939 = vunpack.c.l.b16 %v359
      %v940 = vunpack.c.l.b16 %v360
      %v941 = vunpack.c.l.b16 %v361
      %v942 = vunpack.c.l.b16 %v362
      %v943 = vunpack.c.l.b16 %v363
      %v944 = vunpack.c.l.b16 %v364
      %v945 = vunpack.c.l.b16 %v365
      %v946 = vunpack.c.l.b16 %v366
      %v947 = vunpack.c.l.b16 %v367
      %v948 = vunpack.c.l.b16 %v368
      %v949 = vunpack.c.l.b16 %v369
      %v950 = vunpack.c.l.b16 %v370
      %v951 = vunpack.c.l.b16 %v371
      %v952 = vunpack.c.l.b16 %v372
      %v953 = vunpack.c.l.b16 %v373
      %v954 = vunpack.c.l.b16 %v374
      %v955 = vunpack.c.l.b16 %v375
      %v956 = vunpack.c.l.b16 %v376
      %v957 = vunpack.c.l.b16 %v377
      %v958 = vunpack.c.l.b16 %v378
      %v959 = vunpack.c.l.b16 %v379
      %v960 = vunpack.c.l.b16 %v380
      %v961 = vunpack.c.l.b16 %v381
      %v962 = vunpack.c.l.b16 %v382
      %v963 = vunpack.c.l.b16 %v383
      %v964 = vunpack.c.l.b16 %v384
      %v965 = vunpack.c.l.b16 %v385
      %v966 = vunpack.c.l.b16 %v386
      %v967 = vunpack.c.l.b16 %v387
      %v968 = vunpack.c.l.b16 %v388
      %v969 = vunpack.c.l.b16 %v389
      %v970 = vunpack.c.l.b16 %v390
      %v971 = vunpack.c.l.b16 %v391
      %v972 = vunpack.c.l.b16 %v392
      %v973 = vunpack.c.l.b16 %v393
      %v974 = vunpack.c.l.b16 %v394
      %v975 = vunpack.c.l.b16 %v395
      %v976 = vunpack.c.l.b16 %v396
      %v977 = vunpack.c.l.b16 %v397
      %v978 = vunpack.c.l.b16 %v398
      %v979 = vunpack.c.l.b16 %v399
      %v980 = vunpack.c.l.b16 %v400
      %v981 = vunpack.c.l.b16 %v401
      %v982 = vunpack.c.l.b16 %v402
      %v983 = vunpack.c.l.b16 %v403
      %v984 = vunpack.c.l.b16 %v404
      %v985 = vunpack.c.l.b16 %v405
      %v986 = vunpack.c.l.b16 %v406
      %v987 = vunpack.c.l.b16 %v407
      %v988 = vunpack.c.l.b16 %v408
      %v989 = vunpack.c.l.b16 %v409
      %v990 = vunpack.c.l.b16 %v410
      %v991 = vunpack.c.l.b16 %v411
      %v992 = vunpack.c.l.b16 %v412
      %v993 = vunpack.c.l.b16 %v413
      %v994 = vunpack.c.l.b16 %v414
      %v995 = vunpack.c.l.b16 %v415
      %v996 = vunpack.c.l.b16 %v416
      %v997 = vunpack.c.l.b16 %v417
      %v998 = vunpack.c.l.b16 %v418
      %v999 = vunpack.c.l.b16 %v419
      %v1000 = vunpack.c.l.b16 %v420
      %v1001 = vunpack.c.l.b16 %v421
      %v1002 = vunpack.c.l.b16 %v422
      %v1003 = vunpack.c.l.b16 %v423
      %v1004 = vunpack.c.l.b16 %v424
      %v1005 = vunpack.c.l.b16 %v425
      %v1006 = vunpack.c.l.b16 %v426
      %v1007 = vunpack.c.l.b16 %v427
      %v1008 = vunpack.c.l.b16 %v428
      %v1009 = vunpack.c.l.b16 %v429
      %v1010 = vunpack.c.l.b16 %v430
      %v1011 = vunpack.c.l.b16 %v431
      %v1012 = vunpack.c.l.b16 %v432
      %v1013 = vunpack.c.l.b16 %v433
      %v1014 = vunpack.c.l.b16 %v434
      %v1015 = vunpack.c.l.b16 %v435
      %v1016 = vunpack.c.l.b16 %v436
      %v1017 = vunpack.c.l.b16 %v437
      %v1018 = vunpack.c.l.b16 %v438
      %v1019 = vunpack.c.l.b16 %v439
      %v1020 = vunpack.c.l.b16 %v440
      %v1021 = vunpack.c.l.b16 %v441
      %v1022 = vunpack.c.l.b16 %v442
      %v1023 = vunpack.c.l.b16 %v443
      %v1024 = vunpack.c.l.b16 %v444
      %v1025 = vunpack.c.l.b16 %v445
      %v1026 = vunpack.c.l.b16 %v446
      %v1027 = vunpack.c.l.b16 %v447
      %v1028 = vunpack.c.l.b16 %v448
      %v1029 = vunpack.c.l.b16 %v449
      %v1030 = vunpack.c.l.b16 %v450
      %v1031 = vunpack.c.l.b16 %v451
      %v1032 = vunpack.c.l.b16 %v452
      %v1033 = vunpack.c.l.b16 %v453
      %v1034 = vunpack.c.l.b16 %v454
      %v1035 = vunpack.c.l.b16 %v455
      %v1036 = vunpack.c.l.b16 %v456
      %v1037 = vunpack.c.l.b16 %v457
      %v1038 = vunpack.c.l.b16 %v458
      %v1039 = vunpack.c.l.b16 %v459
      %v1040 = vunpack.c.l.b16 %v460
      %v1041 = vunpack.c.l.b16 %v461
      %v1042 = vunpack.c.l.b16 %v462
      %v1043 = vunpack.c.l.b16 %v463
      %v1044 = vunpack.c.l.b16 %v464
      %v1045 = vunpack.c.l.b16 %v465
      %v1046 = vunpack.c.l.b16 %v466
      %v1047 = vunpack.c.l.b16 %v467
      %v1048 = vunpack.c.l.b16 %v468
      %v1049 = vunpack.c.l.b16 %v469
      %v1050 = vunpack.c.l.b16 %v470
      %v1051 = vpack.c.b16 %v924, %v923
      %v1052 = vpack.c.b16 %v926, %v925
      %v1053 = vpack.c.b16 %v928, %v927
      %v1054 = vpack.c.b16 %v930, %v929
      %v1055 = vpack.c.b16 %v932, %v931
      %v1056 = vpack.c.b16 %v934, %v933
      %v1057 = vpack.c.b16 %v936, %v935
      %v1058 = vpack.c.b16 %v938, %v937
      %v1059 = vpack.c.b16 %v940, %v939
      %v1060 = vpack.c.b16 %v942, %v941
      %v1061 = vpack.c.b16 %v944, %v943
      %v1062 = vpack.c.b16 %v946, %v945
      %v1063 = vpack.c.b16 %v948, %v947
      %v1064 = vpack.c.b16 %v950, %v949
      %v1065 = vpack.c.b16 %v952, %v951
      %v1066 = vpack.c.b16 %v954, %v953
      %v1067 = vpack.c.b16 %v956, %v955
      %v1068 = vpack.c.b16 %v958, %v957
      %v1069 = vpack.c.b16 %v960, %v959
      %v1070 = vpack.c.b16 %v962, %v961
      %v1071 = vpack.c.b16 %v964, %v963
      %v1072 = vpack.c.b16 %v966, %v965
      %v1073 = vpack.c.b16 %v968, %v967
      %v1074 = vpack.c.b16 %v970, %v969
      %v1075 = vpack.c.b16 %v972, %v971
      %v1076 = vpack.c.b16 %v974, %v973
      %v1077 = vpack.c.b16 %v976, %v975
      %v1078 = vpack.c.b16 %v978, %v977
      %v1079 = vpack.c.b16 %v980, %v979
      %v1080 = vpack.c.b16 %v982, %v981
      %v1081 = vpack.c.b16 %v984, %v983
      %v1082 = vpack.c.b16 %v986, %v985
      %v1083 = vpack.c.b16 %v988, %v987
      %v1084 = vpack.c.b16 %v990, %v989
      %v1085 = vpack.c.b16 %v992, %v991
      %v1086 = vpack.c.b16 %v994, %v993
      %v1087 = vpack.c.b16 %v996, %v995
      %v1088 = vpack.c.b16 %v998, %v997
      %v1089 = vpack.c.b16 %v1000, %v999
      %v1090 = vpack.c.b16 %v1002, %v1001
      %v1091 = vpack.c.b16 %v1004, %v1003
      %v1092 = vpack.c.b16 %v1006, %v1005
      %v1093 = vpack.c.b16 %v1008, %v1007
      %v1094 = vpack.c.b16 %v1010, %v1009
      %v1095 = vpack.c.b16 %v1012, %v1011
      %v1096 = vpack.c.b16 %v1014, %v1013
      %v1097 = vpack.c.b16 %v1016, %v1015
      %v1098 = vpack.c.b16 %v1018, %v1017
      %v1099 = vpack.c.b16 %v1020, %v1019
      %v1100 = vpack.c.b16 %v1022, %v1021
      %v1101 = vpack.c.b16 %v1024, %v1023
      %v1102 = vpack.c.b16 %v1026, %v1025
      %v1103 = vpack.c.b16 %v1028, %v1027
      %v1104 = vpack.c.b16 %v1030, %v1029
      %v1105 = vpack.c.b16 %v1032, %v1031
      %v1106 = vpack.c.b16 %v1034, %v1033
      %v1107 = vpack.c.b16 %v1036, %v1035
      %v1108 = vpack.c.b16 %v1038, %v1037
      %v1109 = vpack.c.b16 %v1040, %v1039
      %v1110 = vpack.c.b16 %v1042, %v1041
      %v1111 = vpack.c.b16 %v1044, %v1043
      %v1112 = vpack.c.b16 %v1046, %v1045
      %v1113 = vpack.c.b16 %v1048, %v1047
      %v1114 = vpack.c.b16 %v1050, %v1049
      %1179 = vmatpush.bf16.msra.mxu0 %v1058
      %1180 = vmatpush.bf16.msra.mxu0 %v1057
      %1181 = vmatpush.bf16.msra.mxu0 %v1056
      %1182 = vmatpush.bf16.msra.mxu0 %v1055
      %1183 = vmatpush.bf16.msra.mxu0 %v1054
      %1184 = vmatpush.bf16.msra.mxu0 %v1053
      %1185 = vmatpush.bf16.msra.mxu0 %v1052
      %1186 = vmatpush.bf16.msra.mxu0 %v1051
      %1187 = vmatmul.bf16.gmra.mxu0 %v667
      %v1188 = vpop.f32.mrf.mxu0
      %v1189 = vadd.f32 %v473, %v1188
      %v1190 = vpop.f32.mrf.mxu0
      %v1191 = vadd.f32 %v473, %v1190
      %1192 = vmatmul.bf16.gmra.mxu0 %v675
      %v1193 = vpop.f32.mrf.mxu0
      %v1194 = vadd.f32 %v473, %v1193
      %v1195 = vpop.f32.mrf.mxu0
      %v1196 = vadd.f32 %v473, %v1195
      %1197 = vmatmul.bf16.gmra.mxu0 %v683
      %v1198 = vpop.f32.mrf.mxu0
      %v1199 = vadd.f32 %v473, %v1198
      %v1200 = vpop.f32.mrf.mxu0
      %v1201 = vadd.f32 %v473, %v1200
      %1202 = vmatmul.bf16.gmra.mxu0 %v691
      %v1203 = vpop.f32.mrf.mxu0
      %v1204 = vadd.f32 %v473, %v1203
      %v1205 = vpop.f32.mrf.mxu0
      %v1206 = vadd.f32 %v473, %v1205
      %1207 = vmatmul.bf16.gmra.mxu0 %v699
      %v1208 = vpop.f32.mrf.mxu0
      %v1209 = vadd.f32 %v473, %v1208
      %v1210 = vpop.f32.mrf.mxu0
      %v1211 = vadd.f32 %v473, %v1210
      %1212 = vmatmul.bf16.gmra.mxu0 %v707
      %v1213 = vpop.f32.mrf.mxu0
      %v1214 = vadd.f32 %v473, %v1213
      %v1215 = vpop.f32.mrf.mxu0
      %v1216 = vadd.f32 %v473, %v1215
      %1217 = vmatmul.bf16.gmra.mxu0 %v715
      %v1218 = vpop.f32.mrf.mxu0
      %v1219 = vadd.f32 %v473, %v1218
      %v1220 = vpop.f32.mrf.mxu0
      %v1221 = vadd.f32 %v473, %v1220
      %1222 = vmatmul.bf16.gmra.mxu0 %v723
      %v1223 = vpop.f32.mrf.mxu0
      %v1224 = vadd.f32 %v473, %v1223
      %v1225 = vpop.f32.mrf.mxu0
      %v1226 = vadd.f32 %v473, %v1225
      %1227 = vdwg.mxu0
      %1228 = vmatpush.bf16.msra.mxu0 %v1066
      %1229 = vmatpush.bf16.msra.mxu0 %v1065
      %1230 = vmatpush.bf16.msra.mxu0 %v1064
      %1231 = vmatpush.bf16.msra.mxu0 %v1063
      %1232 = vmatpush.bf16.msra.mxu0 %v1062
      %1233 = vmatpush.bf16.msra.mxu0 %v1061
      %1234 = vmatpush.bf16.msra.mxu0 %v1060
      %1235 = vmatpush.bf16.msra.mxu0 %v1059
      %1236 = vmatmul.bf16.gmra.mxu0 %v668
      %v1237 = vpop.f32.mrf.mxu0
      %v1238 = vadd.f32 %v1189, %v1237
      %v1239 = vpop.f32.mrf.mxu0
      %v1240 = vadd.f32 %v1191, %v1239
      %1241 = vmatmul.bf16.gmra.mxu0 %v676
      %v1242 = vpop.f32.mrf.mxu0
      %v1243 = vadd.f32 %v1194, %v1242
      %v1244 = vpop.f32.mrf.mxu0
      %v1245 = vadd.f32 %v1196, %v1244
      %1246 = vmatmul.bf16.gmra.mxu0 %v684
      %v1247 = vpop.f32.mrf.mxu0
      %v1248 = vadd.f32 %v1199, %v1247
      %v1249 = vpop.f32.mrf.mxu0
      %v1250 = vadd.f32 %v1201, %v1249
      %1251 = vmatmul.bf16.gmra.mxu0 %v692
      %v1252 = vpop.f32.mrf.mxu0
      %v1253 = vadd.f32 %v1204, %v1252
      %v1254 = vpop.f32.mrf.mxu0
      %v1255 = vadd.f32 %v1206, %v1254
      %1256 = vmatmul.bf16.gmra.mxu0 %v700
      %v1257 = vpop.f32.mrf.mxu0
      %v1258 = vadd.f32 %v1209, %v1257
      %v1259 = vpop.f32.mrf.mxu0
      %v1260 = vadd.f32 %v1211, %v1259
      %1261 = vmatmul.bf16.gmra.mxu0 %v708
      %v1262 = vpop.f32.mrf.mxu0
      %v1263 = vadd.f32 %v1214, %v1262
      %v1264 = vpop.f32.mrf.mxu0
      %v1265 = vadd.f32 %v1216, %v1264
      %1266 = vmatmul.bf16.gmra.mxu0 %v716
      %v1267 = vpop.f32.mrf.mxu0
      %v1268 = vadd.f32 %v1219, %v1267
      %v1269 = vpop.f32.mrf.mxu0
      %v1270 = vadd.f32 %v1221, %v1269
      %1271 = vmatmul.bf16.gmra.mxu0 %v724
      %v1272 = vpop.f32.mrf.mxu0
      %v1273 = vadd.f32 %v1224, %v1272
      %v1274 = vpop.f32.mrf.mxu0
      %v1275 = vadd.f32 %v1226, %v1274
      %1276 = vdwg.mxu0
      %1277 = vmatpush.bf16.msra.mxu0 %v1074
      %1278 = vmatpush.bf16.msra.mxu0 %v1073
      %1279 = vmatpush.bf16.msra.mxu0 %v1072
      %1280 = vmatpush.bf16.msra.mxu0 %v1071
      %1281 = vmatpush.bf16.msra.mxu0 %v1070
      %1282 = vmatpush.bf16.msra.mxu0 %v1069
      %1283 = vmatpush.bf16.msra.mxu0 %v1068
      %1284 = vmatpush.bf16.msra.mxu0 %v1067
      %1285 = vmatmul.bf16.gmra.mxu0 %v669
      %v1286 = vpop.f32.mrf.mxu0
      %v1287 = vadd.f32 %v1238, %v1286
      %v1288 = vpop.f32.mrf.mxu0
      %v1289 = vadd.f32 %v1240, %v1288
      %1290 = vmatmul.bf16.gmra.mxu0 %v677
      %v1291 = vpop.f32.mrf.mxu0
      %v1292 = vadd.f32 %v1243, %v1291
      %v1293 = vpop.f32.mrf.mxu0
      %v1294 = vadd.f32 %v1245, %v1293
      %1295 = vmatmul.bf16.gmra.mxu0 %v685
      %v1296 = vpop.f32.mrf.mxu0
      %v1297 = vadd.f32 %v1248, %v1296
      %v1298 = vpop.f32.mrf.mxu0
      %v1299 = vadd.f32 %v1250, %v1298
      %1300 = vmatmul.bf16.gmra.mxu0 %v693
      %v1301 = vpop.f32.mrf.mxu0
      %v1302 = vadd.f32 %v1253, %v1301
      %v1303 = vpop.f32.mrf.mxu0
      %v1304 = vadd.f32 %v1255, %v1303
      %1305 = vmatmul.bf16.gmra.mxu0 %v701
      %v1306 = vpop.f32.mrf.mxu0
      %v1307 = vadd.f32 %v1258, %v1306
      %v1308 = vpop.f32.mrf.mxu0
      %v1309 = vadd.f32 %v1260, %v1308
      %1310 = vmatmul.bf16.gmra.mxu0 %v709
      %v1311 = vpop.f32.mrf.mxu0
      %v1312 = vadd.f32 %v1263, %v1311
      %v1313 = vpop.f32.mrf.mxu0
      %v1314 = vadd.f32 %v1265, %v1313
      %1315 = vmatmul.bf16.gmra.mxu0 %v717
      %v1316 = vpop.f32.mrf.mxu0
      %v1317 = vadd.f32 %v1268, %v1316
      %v1318 = vpop.f32.mrf.mxu0
      %v1319 = vadd.f32 %v1270, %v1318
      %1320 = vmatmul.bf16.gmra.mxu0 %v725
      %v1321 = vpop.f32.mrf.mxu0
      %v1322 = vadd.f32 %v1273, %v1321
      %v1323 = vpop.f32.mrf.mxu0
      %v1324 = vadd.f32 %v1275, %v1323
      %1325 = vdwg.mxu0
      %1326 = vmatpush.bf16.msra.mxu0 %v1082
      %1327 = vmatpush.bf16.msra.mxu0 %v1081
      %1328 = vmatpush.bf16.msra.mxu0 %v1080
      %1329 = vmatpush.bf16.msra.mxu0 %v1079
      %1330 = vmatpush.bf16.msra.mxu0 %v1078
      %1331 = vmatpush.bf16.msra.mxu0 %v1077
      %1332 = vmatpush.bf16.msra.mxu0 %v1076
      %1333 = vmatpush.bf16.msra.mxu0 %v1075
      %1334 = vmatmul.bf16.gmra.mxu0 %v670
      %v1335 = vpop.f32.mrf.mxu0
      %v1336 = vadd.f32 %v1287, %v1335
      %v1337 = vpop.f32.mrf.mxu0
      %v1338 = vadd.f32 %v1289, %v1337
      %1339 = vmatmul.bf16.gmra.mxu0 %v678
      %v1340 = vpop.f32.mrf.mxu0
      %v1341 = vadd.f32 %v1292, %v1340
      %v1342 = vpop.f32.mrf.mxu0
      %v1343 = vadd.f32 %v1294, %v1342
      %1344 = vmatmul.bf16.gmra.mxu0 %v686
      %v1345 = vpop.f32.mrf.mxu0
      %v1346 = vadd.f32 %v1297, %v1345
      %v1347 = vpop.f32.mrf.mxu0
      %v1348 = vadd.f32 %v1299, %v1347
      %1349 = vmatmul.bf16.gmra.mxu0 %v694
      %v1350 = vpop.f32.mrf.mxu0
      %v1351 = vadd.f32 %v1302, %v1350
      %v1352 = vpop.f32.mrf.mxu0
      %v1353 = vadd.f32 %v1304, %v1352
      %1354 = vmatmul.bf16.gmra.mxu0 %v702
      %v1355 = vpop.f32.mrf.mxu0
      %v1356 = vadd.f32 %v1307, %v1355
      %v1357 = vpop.f32.mrf.mxu0
      %v1358 = vadd.f32 %v1309, %v1357
      %1359 = vmatmul.bf16.gmra.mxu0 %v710
      %v1360 = vpop.f32.mrf.mxu0
      %v1361 = vadd.f32 %v1312, %v1360
      %v1362 = vpop.f32.mrf.mxu0
      %v1363 = vadd.f32 %v1314, %v1362
      %1364 = vmatmul.bf16.gmra.mxu0 %v718
      %v1365 = vpop.f32.mrf.mxu0
      %v1366 = vadd.f32 %v1317, %v1365
      %v1367 = vpop.f32.mrf.mxu0
      %v1368 = vadd.f32 %v1319, %v1367
      %1369 = vmatmul.bf16.gmra.mxu0 %v726
      %v1370 = vpop.f32.mrf.mxu0
      %v1371 = vadd.f32 %v1322, %v1370
      %v1372 = vpop.f32.mrf.mxu0
      %v1373 = vadd.f32 %v1324, %v1372
      %1374 = vdwg.mxu0
      %1375 = vmatpush.bf16.msra.mxu0 %v1090
      %1376 = vmatpush.bf16.msra.mxu0 %v1089
      %1377 = vmatpush.bf16.msra.mxu0 %v1088
      %1378 = vmatpush.bf16.msra.mxu0 %v1087
      %1379 = vmatpush.bf16.msra.mxu0 %v1086
      %1380 = vmatpush.bf16.msra.mxu0 %v1085
      %1381 = vmatpush.bf16.msra.mxu0 %v1084
      %1382 = vmatpush.bf16.msra.mxu0 %v1083
      %1383 = vmatmul.bf16.gmra.mxu0 %v671
      %v1384 = vpop.f32.mrf.mxu0
      %v1385 = vadd.f32 %v1336, %v1384
      %v1386 = vpop.f32.mrf.mxu0
      %v1387 = vadd.f32 %v1338, %v1386
      %1388 = vmatmul.bf16.gmra.mxu0 %v679
      %v1389 = vpop.f32.mrf.mxu0
      %v1390 = vadd.f32 %v1341, %v1389
      %v1391 = vpop.f32.mrf.mxu0
      %v1392 = vadd.f32 %v1343, %v1391
      %1393 = vmatmul.bf16.gmra.mxu0 %v687
      %v1394 = vpop.f32.mrf.mxu0
      %v1395 = vadd.f32 %v1346, %v1394
      %v1396 = vpop.f32.mrf.mxu0
      %v1397 = vadd.f32 %v1348, %v1396
      %1398 = vmatmul.bf16.gmra.mxu0 %v695
      %v1399 = vpop.f32.mrf.mxu0
      %v1400 = vadd.f32 %v1351, %v1399
      %v1401 = vpop.f32.mrf.mxu0
      %v1402 = vadd.f32 %v1353, %v1401
      %1403 = vmatmul.bf16.gmra.mxu0 %v703
      %v1404 = vpop.f32.mrf.mxu0
      %v1405 = vadd.f32 %v1356, %v1404
      %v1406 = vpop.f32.mrf.mxu0
      %v1407 = vadd.f32 %v1358, %v1406
      %1408 = vmatmul.bf16.gmra.mxu0 %v711
      %v1409 = vpop.f32.mrf.mxu0
      %v1410 = vadd.f32 %v1361, %v1409
      %v1411 = vpop.f32.mrf.mxu0
      %v1412 = vadd.f32 %v1363, %v1411
      %1413 = vmatmul.bf16.gmra.mxu0 %v719
      %v1414 = vpop.f32.mrf.mxu0
      %v1415 = vadd.f32 %v1366, %v1414
      %v1416 = vpop.f32.mrf.mxu0
      %v1417 = vadd.f32 %v1368, %v1416
      %1418 = vmatmul.bf16.gmra.mxu0 %v727
      %v1419 = vpop.f32.mrf.mxu0
      %v1420 = vadd.f32 %v1371, %v1419
      %v1421 = vpop.f32.mrf.mxu0
      %v1422 = vadd.f32 %v1373, %v1421
      %1423 = vdwg.mxu0
      %1424 = vmatpush.bf16.msra.mxu0 %v1098
      %1425 = vmatpush.bf16.msra.mxu0 %v1097
      %1426 = vmatpush.bf16.msra.mxu0 %v1096
      %1427 = vmatpush.bf16.msra.mxu0 %v1095
      %1428 = vmatpush.bf16.msra.mxu0 %v1094
      %1429 = vmatpush.bf16.msra.mxu0 %v1093
      %1430 = vmatpush.bf16.msra.mxu0 %v1092
      %1431 = vmatpush.bf16.msra.mxu0 %v1091
      %1432 = vmatmul.bf16.gmra.mxu0 %v672
      %v1433 = vpop.f32.mrf.mxu0
      %v1434 = vadd.f32 %v1385, %v1433
      %v1435 = vpop.f32.mrf.mxu0
      %v1436 = vadd.f32 %v1387, %v1435
      %1437 = vmatmul.bf16.gmra.mxu0 %v680
      %v1438 = vpop.f32.mrf.mxu0
      %v1439 = vadd.f32 %v1390, %v1438
      %v1440 = vpop.f32.mrf.mxu0
      %v1441 = vadd.f32 %v1392, %v1440
      %1442 = vmatmul.bf16.gmra.mxu0 %v688
      %v1443 = vpop.f32.mrf.mxu0
      %v1444 = vadd.f32 %v1395, %v1443
      %v1445 = vpop.f32.mrf.mxu0
      %v1446 = vadd.f32 %v1397, %v1445
      %1447 = vmatmul.bf16.gmra.mxu0 %v696
      %v1448 = vpop.f32.mrf.mxu0
      %v1449 = vadd.f32 %v1400, %v1448
      %v1450 = vpop.f32.mrf.mxu0
      %v1451 = vadd.f32 %v1402, %v1450
      %1452 = vmatmul.bf16.gmra.mxu0 %v704
      %v1453 = vpop.f32.mrf.mxu0
      %v1454 = vadd.f32 %v1405, %v1453
      %v1455 = vpop.f32.mrf.mxu0
      %v1456 = vadd.f32 %v1407, %v1455
      %1457 = vmatmul.bf16.gmra.mxu0 %v712
      %v1458 = vpop.f32.mrf.mxu0
      %v1459 = vadd.f32 %v1410, %v1458
      %v1460 = vpop.f32.mrf.mxu0
      %v1461 = vadd.f32 %v1412, %v1460
      %1462 = vmatmul.bf16.gmra.mxu0 %v720
      %v1463 = vpop.f32.mrf.mxu0
      %v1464 = vadd.f32 %v1415, %v1463
      %v1465 = vpop.f32.mrf.mxu0
      %v1466 = vadd.f32 %v1417, %v1465
      %1467 = vmatmul.bf16.gmra.mxu0 %v728
      %v1468 = vpop.f32.mrf.mxu0
      %v1469 = vadd.f32 %v1420, %v1468
      %v1470 = vpop.f32.mrf.mxu0
      %v1471 = vadd.f32 %v1422, %v1470
      %1472 = vdwg.mxu0
      %1473 = vmatpush.bf16.msra.mxu0 %v1106
      %1474 = vmatpush.bf16.msra.mxu0 %v1105
      %1475 = vmatpush.bf16.msra.mxu0 %v1104
      %1476 = vmatpush.bf16.msra.mxu0 %v1103
      %1477 = vmatpush.bf16.msra.mxu0 %v1102
      %1478 = vmatpush.bf16.msra.mxu0 %v1101
      %1479 = vmatpush.bf16.msra.mxu0 %v1100
      %1480 = vmatpush.bf16.msra.mxu0 %v1099
      %1481 = vmatmul.bf16.gmra.mxu0 %v673
      %v1482 = vpop.f32.mrf.mxu0
      %v1483 = vadd.f32 %v1434, %v1482
      %v1484 = vpop.f32.mrf.mxu0
      %v1485 = vadd.f32 %v1436, %v1484
      %1486 = vmatmul.bf16.gmra.mxu0 %v681
      %v1487 = vpop.f32.mrf.mxu0
      %v1488 = vadd.f32 %v1439, %v1487
      %v1489 = vpop.f32.mrf.mxu0
      %v1490 = vadd.f32 %v1441, %v1489
      %1491 = vmatmul.bf16.gmra.mxu0 %v689
      %v1492 = vpop.f32.mrf.mxu0
      %v1493 = vadd.f32 %v1444, %v1492
      %v1494 = vpop.f32.mrf.mxu0
      %v1495 = vadd.f32 %v1446, %v1494
      %1496 = vmatmul.bf16.gmra.mxu0 %v697
      %v1497 = vpop.f32.mrf.mxu0
      %v1498 = vadd.f32 %v1449, %v1497
      %v1499 = vpop.f32.mrf.mxu0
      %v1500 = vadd.f32 %v1451, %v1499
      %1501 = vmatmul.bf16.gmra.mxu0 %v705
      %v1502 = vpop.f32.mrf.mxu0
      %v1503 = vadd.f32 %v1454, %v1502
      %v1504 = vpop.f32.mrf.mxu0
      %v1505 = vadd.f32 %v1456, %v1504
      %1506 = vmatmul.bf16.gmra.mxu0 %v713
      %v1507 = vpop.f32.mrf.mxu0
      %v1508 = vadd.f32 %v1459, %v1507
      %v1509 = vpop.f32.mrf.mxu0
      %v1510 = vadd.f32 %v1461, %v1509
      %1511 = vmatmul.bf16.gmra.mxu0 %v721
      %v1512 = vpop.f32.mrf.mxu0
      %v1513 = vadd.f32 %v1464, %v1512
      %v1514 = vpop.f32.mrf.mxu0
      %v1515 = vadd.f32 %v1466, %v1514
      %1516 = vmatmul.bf16.gmra.mxu0 %v729
      %v1517 = vpop.f32.mrf.mxu0
      %v1518 = vadd.f32 %v1469, %v1517
      %v1519 = vpop.f32.mrf.mxu0
      %v1520 = vadd.f32 %v1471, %v1519
      %1521 = vdwg.mxu0
      %1522 = vmatpush.bf16.msra.mxu0 %v1114
      %1523 = vmatpush.bf16.msra.mxu0 %v1113
      %1524 = vmatpush.bf16.msra.mxu0 %v1112
      %1525 = vmatpush.bf16.msra.mxu0 %v1111
      %1526 = vmatpush.bf16.msra.mxu0 %v1110
      %1527 = vmatpush.bf16.msra.mxu0 %v1109
      %1528 = vmatpush.bf16.msra.mxu0 %v1108
      %1529 = vmatpush.bf16.msra.mxu0 %v1107
      %1530 = vmatmul.bf16.gmra.mxu0 %v674
      %v1531 = vpop.f32.mrf.mxu0
      %v1532 = vadd.f32 %v1483, %v1531
      %v1533 = vpop.f32.mrf.mxu0
      %v1534 = vadd.f32 %v1485, %v1533
      %1535 = vmatmul.bf16.gmra.mxu0 %v682
      %v1536 = vpop.f32.mrf.mxu0
      %v1537 = vadd.f32 %v1488, %v1536
      %v1538 = vpop.f32.mrf.mxu0
      %v1539 = vadd.f32 %v1490, %v1538
      %1540 = vmatmul.bf16.gmra.mxu0 %v690
      %v1541 = vpop.f32.mrf.mxu0
      %v1542 = vadd.f32 %v1493, %v1541
      %v1543 = vpop.f32.mrf.mxu0
      %v1544 = vadd.f32 %v1495, %v1543
      %1545 = vmatmul.bf16.gmra.mxu0 %v698
      %v1546 = vpop.f32.mrf.mxu0
      %v1547 = vadd.f32 %v1498, %v1546
      %v1548 = vpop.f32.mrf.mxu0
      %v1549 = vadd.f32 %v1500, %v1548
      %1550 = vmatmul.bf16.gmra.mxu0 %v706
      %v1551 = vpop.f32.mrf.mxu0
      %v1552 = vadd.f32 %v1503, %v1551
      %v1553 = vpop.f32.mrf.mxu0
      %v1554 = vadd.f32 %v1505, %v1553
      %1555 = vmatmul.bf16.gmra.mxu0 %v714
      %v1556 = vpop.f32.mrf.mxu0
      %v1557 = vadd.f32 %v1508, %v1556
      %v1558 = vpop.f32.mrf.mxu0
      %v1559 = vadd.f32 %v1510, %v1558
      %1560 = vmatmul.bf16.gmra.mxu0 %v722
      %v1561 = vpop.f32.mrf.mxu0
      %v1562 = vadd.f32 %v1513, %v1561
      %v1563 = vpop.f32.mrf.mxu0
      %v1564 = vadd.f32 %v1515, %v1563
      %1565 = vmatmul.bf16.gmra.mxu0 %v730
      %v1566 = vpop.f32.mrf.mxu0
      %v1567 = vadd.f32 %v1518, %v1566
      %v1568 = vpop.f32.mrf.mxu0
      %v1569 = vadd.f32 %v1520, %v1568
      %1570 = vdwg.mxu0
      %vm1571 = vcmp.gt.f32.partialorder %v1532, 0.0
      %vm1572 = vcmp.gt.f32.partialorder %v1534, 0.0
      %vm1573 = vcmp.gt.f32.partialorder %v1537, 0.0
      %vm1574 = vcmp.gt.f32.partialorder %v1539, 0.0
      %vm1575 = vcmp.gt.f32.partialorder %v1542, 0.0
      %vm1576 = vcmp.gt.f32.partialorder %v1544, 0.0
      %vm1577 = vcmp.gt.f32.partialorder %v1547, 0.0
      %vm1578 = vcmp.gt.f32.partialorder %v1549, 0.0
      %vm1579 = vcmp.gt.f32.partialorder %v1552, 0.0
      %vm1580 = vcmp.gt.f32.partialorder %v1554, 0.0
      %vm1581 = vcmp.gt.f32.partialorder %v1557, 0.0
      %vm1582 = vcmp.gt.f32.partialorder %v1559, 0.0
      %vm1583 = vcmp.gt.f32.partialorder %v1562, 0.0
      %vm1584 = vcmp.gt.f32.partialorder %v1564, 0.0
      %vm1585 = vcmp.gt.f32.partialorder %v1567, 0.0
      %vm1586 = vcmp.gt.f32.partialorder %v1569, 0.0
      %v1587 = vmul.f32 %v1532, 0.01
      %v1588 = vmul.f32 %v1534, 0.01
      %v1589 = vmul.f32 %v1537, 0.01
      %v1590 = vmul.f32 %v1539, 0.01
      %v1591 = vmul.f32 %v1542, 0.01
      %v1592 = vmul.f32 %v1544, 0.01
      %v1593 = vmul.f32 %v1547, 0.01
      %v1594 = vmul.f32 %v1549, 0.01
      %v1595 = vmul.f32 %v1552, 0.01
      %v1596 = vmul.f32 %v1554, 0.01
      %v1597 = vmul.f32 %v1557, 0.01
      %v1598 = vmul.f32 %v1559, 0.01
      %v1599 = vmul.f32 %v1562, 0.01
      %v1600 = vmul.f32 %v1564, 0.01
      %v1601 = vmul.f32 %v1567, 0.01
      %v1602 = vmul.f32 %v1569, 0.01
      %v1603 = vsel %vm1571, %v1532, %v1587
      %v1604 = vsel %vm1572, %v1534, %v1588
      %v1605 = vsel %vm1573, %v1537, %v1589
      %v1606 = vsel %vm1574, %v1539, %v1590
      %v1607 = vsel %vm1575, %v1542, %v1591
      %v1608 = vsel %vm1576, %v1544, %v1592
      %v1609 = vsel %vm1577, %v1547, %v1593
      %v1610 = vsel %vm1578, %v1549, %v1594
      %v1611 = vsel %vm1579, %v1552, %v1595
      %v1612 = vsel %vm1580, %v1554, %v1596
      %v1613 = vsel %vm1581, %v1557, %v1597
      %v1614 = vsel %vm1582, %v1559, %v1598
      %v1615 = vsel %vm1583, %v1562, %v1599
      %v1616 = vsel %vm1584, %v1564, %v1600
      %v1617 = vsel %vm1585, %v1567, %v1601
      %v1618 = vsel %vm1586, %v1569, %v1602
      %v1619 = vpack.c.bf16 %v1603, %v1603
      %v1620 = vpack.c.bf16 %v1604, %v1604
      %v1621 = vpack.c.bf16 %v1605, %v1605
      %v1622 = vpack.c.bf16 %v1606, %v1606
      %v1623 = vpack.c.bf16 %v1607, %v1607
      %v1624 = vpack.c.bf16 %v1608, %v1608
      %v1625 = vpack.c.bf16 %v1609, %v1609
      %v1626 = vpack.c.bf16 %v1610, %v1610
      %v1627 = vpack.c.bf16 %v1611, %v1611
      %v1628 = vpack.c.bf16 %v1612, %v1612
      %v1629 = vpack.c.bf16 %v1613, %v1613
      %v1630 = vpack.c.bf16 %v1614, %v1614
      %v1631 = vpack.c.bf16 %v1615, %v1615
      %v1632 = vpack.c.bf16 %v1616, %v1616
      %v1633 = vpack.c.bf16 %v1617, %v1617
      %v1634 = vpack.c.bf16 %v1618, %v1618
      %1635 = vst [vmem:[%s270] sm:$0xf] %v1619
      %1636 = vst [vmem:[%s270 + $0x4] sm:$0xf] %v1620
      %1637 = vst [vmem:[%s270 + $0x8] sm:$0xf] %v1621
      %1638 = vst [vmem:[%s270 + $0xc] sm:$0xf] %v1622
      %1639 = vst [vmem:[%s270 + $0x10] sm:$0xf] %v1623
      %1640 = vst [vmem:[%s270 + $0x14] sm:$0xf] %v1624
      %1641 = vst [vmem:[%s270 + $0x18] sm:$0xf] %v1625
      %1642 = vst [vmem:[%s270 + $0x1c] sm:$0xf] %v1626
      %1643 = vst [vmem:[%s270 + $0x20] sm:$0xf] %v1627
      %1644 = vst [vmem:[%s270 + $0x24] sm:$0xf] %v1628
      %1645 = vst [vmem:[%s270 + $0x28] sm:$0xf] %v1629
      %1646 = vst [vmem:[%s270 + $0x2c] sm:$0xf] %v1630
      %1647 = vst [vmem:[%s270 + $0x30] sm:$0xf] %v1631
      %1648 = vst [vmem:[%s270 + $0x34] sm:$0xf] %v1632
      %1649 = vst [vmem:[%s270 + $0x38] sm:$0xf] %v1633
      %1650 = vst [vmem:[%s270 + $0x3c] sm:$0xf] %v1634
      %v1651 = vadd.f32 %v1603, %v1604
      %v1652 = vadd.f32 %v1651, %v1605
      %v1653 = vadd.f32 %v1652, %v1606
      %v1654 = vadd.f32 %v1653, %v1607
      %v1655 = vadd.f32 %v1654, %v1608
      %v1656 = vadd.f32 %v1655, %v1609
      %v1657 = vadd.f32 %v1656, %v1610
      %v1658 = vadd.f32 %v1657, %v1611
      %v1659 = vadd.f32 %v1658, %v1612
      %v1660 = vadd.f32 %v1659, %v1613
      %v1661 = vadd.f32 %v1660, %v1614
      %v1662 = vadd.f32 %v1661, %v1615
      %v1663 = vadd.f32 %v1662, %v1616
      %v1664 = vadd.f32 %v1663, %v1617
      %v1665 = vadd.f32 %v1664, %v1618
      %v1666 = vrot.slane %v1665, 4
      %v1667 = vadd.f32 %v1665, %v1666
      %v1668 = vrot.slane %v1667, 2
      %v1669 = vadd.f32 %v1667, %v1668
      %v1670 = vrot.slane %v1669, 1
      %v1671 = vadd.f32 %v1669, %v1670
      %v1672 = vmul.f32 %v1603, %v1603
      %v1673 = vmul.f32 %v1604, %v1604
      %v1674 = vmul.f32 %v1605, %v1605
      %v1675 = vmul.f32 %v1606, %v1606
      %v1676 = vmul.f32 %v1607, %v1607
      %v1677 = vmul.f32 %v1608, %v1608
      %v1678 = vmul.f32 %v1609, %v1609
      %v1679 = vmul.f32 %v1610, %v1610
      %v1680 = vmul.f32 %v1611, %v1611
      %v1681 = vmul.f32 %v1612, %v1612
      %v1682 = vmul.f32 %v1613, %v1613
      %v1683 = vmul.f32 %v1614, %v1614
      %v1684 = vmul.f32 %v1615, %v1615
      %v1685 = vmul.f32 %v1616, %v1616
      %v1686 = vmul.f32 %v1617, %v1617
      %v1687 = vmul.f32 %v1618, %v1618
      %v1688 = vadd.f32 %v1672, %v1673
      %v1689 = vadd.f32 %v1688, %v1674
      %v1690 = vadd.f32 %v1689, %v1675
      %v1691 = vadd.f32 %v1690, %v1676
      %v1692 = vadd.f32 %v1691, %v1677
      %v1693 = vadd.f32 %v1692, %v1678
      %v1694 = vadd.f32 %v1693, %v1679
      %v1695 = vadd.f32 %v1694, %v1680
      %v1696 = vadd.f32 %v1695, %v1681
      %v1697 = vadd.f32 %v1696, %v1682
      %v1698 = vadd.f32 %v1697, %v1683
      %v1699 = vadd.f32 %v1698, %v1684
      %v1700 = vadd.f32 %v1699, %v1685
      %v1701 = vadd.f32 %v1700, %v1686
      %v1702 = vadd.f32 %v1701, %v1687
      %v1703 = vrot.slane %v1702, 4
      %v1704 = vadd.f32 %v1702, %v1703
      %v1705 = vrot.slane %v1704, 2
      %v1706 = vadd.f32 %v1704, %v1705
      %v1707 = vrot.slane %v1706, 1
      %v1708 = vadd.f32 %v1706, %v1707
      %vm1709 = vcmask 1040384
      %v1710 = vsel %vm1709, %v1671, %v1708
      %1711 = vst [vmem:[%s278] sm:$0x3] %v1710
      %s1712 = smul.u32 16, %s21
      %p1713 = scmp.lt.s32.totalorder %s20, 3
      %s1714 = scalar_select %p1713, %s20, 3
      %p1715 = scmp.lt.s32.totalorder %s1712, 15
      %s1716 = scalar_select %p1715, %s1712, 15
      %s1717 = smul.addr %s1714, 16
      %s1718 = sadd.s32 %s1716, %s1717
      %s1719 = smul.addr %s1718, 4
      %s1720 = scalar_lea.vmem %s3, %s1719
      %p1721 = scmp.lt.s32.totalorder %s20, 3
      %s1722 = scalar_select %p1721, %s20, 3
      %p1723 = scmp.lt.s32.totalorder %s21, 0
      %s1724 = scalar_select %p1723, %s21, 0
      %s1725 = sadd.s32 %s1724, %s1722
      %s1726 = smul.addr %s1725, 2
      %s1727 = scalar_lea.vmem %s4, %s1726
      // Predicated region
      $region33: #{generator32_forward.6} parent=31 // pred_check
        %p1728 = pneg %p123
      $region34: #{generator32_forward.6} parent=31 // pred_check_branch
        %1730 = sbr.rel (%p1728) target = $region36
      $region35: #{generator32_forward.6} parent=31 // pred_region
        %s1731 = smul.u32 16, %s21
      $region36: #{generator32_forward.6} parent=31 // pred_fallthru
        _
      // Predicated region
      $region37: #{generator32_forward.6} parent=31 // pred_check
        %p1732 = pneg %p151
      $region38: #{generator32_forward.6} parent=31 // pred_check_branch
        %1734 = sbr.rel (%p1732) target = $region40
      $region39: #{generator32_forward.6} parent=31 // pred_region
        _
      $region40: #{generator32_forward.6} parent=31 // pred_fallthru
        _
    $region32: #{generator32_forward.6} parent=5 // pred_fallthru
      _
    %p1735 = scmp.le.s32.totalorder 2, %s11
    // Predicated region
    $region41: #{generator32_forward.6} parent=5 // pred_check
      %p1736 = pneg %p1735
    $region42: #{generator32_forward.6} parent=5 // pred_check_branch
      %1738 = sbr.rel (%p1736) target = $region44
    $region43: #{generator32_forward.6} parent=5 // pred_region
      %s1739 = ssub.s32 %s11, 2
      // Predicated region
      $region45: #{generator32_forward.6} parent=43 // pred_check
        %p1740 = pneg %p129
      $region46: #{generator32_forward.6} parent=43 // pred_check_branch
        %1742 = sbr.rel (%p1740) target = $region48
      $region47: #{generator32_forward.6} parent=43 // pred_region
        %s1743 = smul.u32 16, %s23
        %p1744 = scmp.lt.s32.totalorder %s22, 3
        %s1745 = scalar_select %p1744, %s22, 3
        %p1746 = scmp.lt.s32.totalorder %s1743, 15
        %s1747 = scalar_select %p1746, %s1743, 15
        %s1748 = smul.addr %s1745, 16
        %s1749 = sadd.s32 %s1747, %s1748
        %s1750 = smul.addr %s1749, 4
        %s1751 = scalar_lea.vmem %s3, %s1750
      $region48: #{generator32_forward.6} parent=43 // pred_fallthru
        _
      // Predicated region
      $region49: #{generator32_forward.6} parent=43 // pred_check
        %p1752 = pneg %p157
      $region50: #{generator32_forward.6} parent=43 // pred_check_branch
        %1754 = sbr.rel (%p1752) target = $region52
      $region51: #{generator32_forward.6} parent=43 // pred_region
        %p1755 = scmp.lt.s32.totalorder %s22, 3
        %s1756 = scalar_select %p1755, %s22, 3
        %p1757 = scmp.lt.s32.totalorder %s23, 0
        %s1758 = scalar_select %p1757, %s23, 0
        %s1759 = sadd.s32 %s1758, %s1756
        %s1760 = smul.addr %s1759, 2
        %s1761 = scalar_lea.vmem %s4, %s1760
      $region52: #{generator32_forward.6} parent=43 // pred_fallthru
        _
    $region44: #{generator32_forward.6} parent=5 // pred_fallthru
      _
  $region6: #{generator32_forward.6} parent=0 // loop_footer
    %s15 = sadd.s32 1, %s11
  $region7: #{generator32_forward.6} parent=0 // loop_footer_branch
    %10 = sbr.rel target = $region3
  $region8: #{generator32_forward.6} parent=0 // loop_exit
    _

// kernel: generator32_forward.7
$region0: #{generator32_forward.7}
  #allocation0 [shape = 'u32[]', space=smem, size = 0x4, offset = 0x4, fixed_abs, tag = 'smem constant byte address 0x4 - core index']
  #allocation1 [shape = 'u32[72,128]{1,0:T(1,128)}', space=vmem, size = 0x9000, scoped, tag = 'internal scratch']
  %s0 = inlined_call_operand.vmem [shape: bf16[4,512,512], index: 0, kind: input, shape index: {}]
  %s1 = inlined_call_operand.vmem [shape: bf16[4,512,8], index: 1, kind: input, shape index: {}]
  %s2 = inlined_call_operand.vmem [shape: f32[1,8], index: 2, kind: input, shape index: {}]
  %s3 = inlined_call_operand.vmem [shape: bf16[4,512,8], index: 3, kind: output, shape index: {}]
  %s4 = sld [smem:[#allocation0]]
  $region45: #{generator32_forward.7} parent=0
    _
  %s6 = ssub.s32 1, %s4
  %s7 = scalar_select 0, %s6, %s4
  loop: start=0, step=1, limit=6
  $region2: #{generator32_forward.7} parent=0 // loop_pre_header
    _
  $region3: #{generator32_forward.7} parent=0 // loop_header
    %s9 = sphi 0, %s13
    %p10 = scmp.ge.s32.totalorder %s9, 6
    %s16 = sphi 0, %s28
    %s17 = sphi 0, %s24
    %s18 = sphi 0, %s16
    %s19 = sphi 0, %s17
    %s20 = sphi 0, %s18
    %s21 = sphi 0, %s19
    %s33 = sphi 0, %s35
    %s36 = sphi 0, %s33
    %s37 = sphi 0, %s36
    %s53 = sphi 0, %s37
    %s59 = sphi 0, %s61
    %s62 = sphi 0, %s59
    %s63 = sphi 0, %s62
    %s79 = sphi 0, %s63
    %s83 = sphi 0, %s83
    %s85 = sphi 0, %s83
    %s86 = sphi 0, %s85
    %s100 = sphi 0, %s86
    %s108 = sphi 0, %s110
    %s111 = sphi 0, %s108
    %s112 = sphi 0, %s111
    %s128 = sphi 0, %s112
  $region4: #{generator32_forward.7} parent=0 // loop_header_branch
    %12 = sbr.rel (%p10) target = $region8
  $region5: #{generator32_forward.7} parent=0 // loop_body
    %s14 = ssub.s32 %s9, 1
    %s15 = ssub.s32 %s9, 2
    %s22 = sadd.s32 1, %s17
    %p23 = scmp.ge.s32.totalorder %s22, 1
    %s24 = scalar_select %p23, 0, %s22
    %s25 = sadd.s32 1, %s16
    %s26 = scalar_select %p23, %s25, %s16
    %p27 = scmp.ge.s32.totalorder %s26, 4
    %s28 = scalar_select %p27, 0, %s26
    %s29 = ssub.s32 %s16, %s28
    %s30 = ssub.s32 %s17, %s24
    %s31 = sor.u32 %s29, %s30
    %p32 = scmp.eq.s32.totalorder %s31, 0
    %s34 = sadd.s32 %s33, 1
    %s35 = scalar_select %p32, %s33, %s34
    %p38 = pneg %p32
    %p39 = scmp.eq.s32.totalorder %s9, 3
    %p40 = por %p38, %p39
    %p41 = scmp.ne.s32.totalorder %s33, %s36
    %p42 = scmp.eq.s32.totalorder %s9, 0
    %p43 = por %p41, %p42
    %p44 = scmp.ne.s32.totalorder %s33, %s36
    %p45 = scmp.eq.s32.totalorder %s14, 3
    %p46 = por %p44, %p45
    %p47 = scmp.ne.s32.totalorder %s36, %s37
    %p48 = scmp.eq.s32.totalorder %s14, 0
    %p49 = por %p47, %p48
    %p50 = scmp.ne.s32.totalorder %s36, %s37
    %p51 = scmp.eq.s32.totalorder %s15, 3
    %p52 = por %p50, %p51
    %p54 = scmp.ne.s32.totalorder %s37, %s53
    %p55 = scmp.eq.s32.totalorder %s15, 0
    %p56 = por %p54, %p55
    %s57 = ssub.s32 %s16, %s28
    %p58 = scmp.eq.s32.totalorder %s57, 0
    %s60 = sadd.s32 %s59, 1
    %s61 = scalar_select %p58, %s59, %s60
    %p64 = pneg %p58
    %p65 = scmp.eq.s32.totalorder %s9, 3
    %p66 = por %p64, %p65
    %p67 = scmp.ne.s32.totalorder %s59, %s62
    %p68 = scmp.eq.s32.totalorder %s9, 0
    %p69 = por %p67, %p68
    %p70 = scmp.ne.s32.totalorder %s59, %s62
    %p71 = scmp.eq.s32.totalorder %s14, 3
    %p72 = por %p70, %p71
    %p73 = scmp.ne.s32.totalorder %s62, %s63
    %p74 = scmp.eq.s32.totalorder %s14, 0
    %p75 = por %p73, %p74
    %p76 = scmp.ne.s32.totalorder %s62, %s63
    %p77 = scmp.eq.s32.totalorder %s15, 3
    %p78 = por %p76, %p77
    %p80 = scmp.ne.s32.totalorder %s63, %s79
    %p81 = scmp.eq.s32.totalorder %s15, 0
    %p82 = por %p80, %p81
    %s84 = sadd.s32 %s83, 1
    %p87 = scmp.eq.s32.totalorder %s9, 3
    %p88 = scmp.ne.s32.totalorder %s83, %s85
    %p89 = scmp.eq.s32.totalorder %s9, 0
    %p90 = por %p88, %p89
    %p91 = scmp.ne.s32.totalorder %s83, %s85
    %p92 = scmp.eq.s32.totalorder %s14, 3
    %p93 = por %p91, %p92
    %p94 = scmp.ne.s32.totalorder %s85, %s86
    %p95 = scmp.eq.s32.totalorder %s14, 0
    %p96 = por %p94, %p95
    %p97 = scmp.ne.s32.totalorder %s85, %s86
    %p98 = scmp.eq.s32.totalorder %s15, 3
    %p99 = por %p97, %p98
    %p101 = scmp.ne.s32.totalorder %s86, %s100
    %p102 = scmp.eq.s32.totalorder %s15, 0
    %p103 = por %p101, %p102
    %s104 = ssub.s32 %s16, %s28
    %s105 = ssub.s32 %s17, %s24
    %s106 = sor.u32 %s104, %s105
    %p107 = scmp.eq.s32.totalorder %s106, 0
    %s109 = sadd.s32 %s108, 1
    %s110 = scalar_select %p107, %s108, %s109
    %p113 = pneg %p107
    %p114 = scmp.eq.s32.totalorder %s9, 3
    %p115 = por %p113, %p114
    %p116 = scmp.ne.s32.totalorder %s108, %s111
    %p117 = scmp.eq.s32.totalorder %s9, 0
    %p118 = por %p116, %p117
    %p119 = scmp.ne.s32.totalorder %s108, %s111
    %p120 = scmp.eq.s32.totalorder %s14, 3
    %p121 = por %p119, %p120
    %p122 = scmp.ne.s32.totalorder %s111, %s112
    %p123 = scmp.eq.s32.totalorder %s14, 0
    %p124 = por %p122, %p123
    %p125 = scmp.ne.s32.totalorder %s111, %s112
    %p126 = scmp.eq.s32.totalorder %s15, 3
    %p127 = por %p125, %p126
    %p129 = scmp.ne.s32.totalorder %s112, %s128
    %p130 = scmp.eq.s32.totalorder %s15, 0
    %p131 = por %p129, %p130
    %p132 = scmp.le.s32.totalorder 1, %s9
    %p133 = scmp.lt.s32.totalorder %s9, 5
    %p134 = pnand %p132, %p133
    %p135 = pneg %p134
    // Predicated region
    $region9: #{generator32_forward.7} parent=5 // pred_check
      _
    $region10: #{generator32_forward.7} parent=5 // pred_check_branch
      %137 = sbr.rel (%p134) target = $region12
    $region11: #{generator32_forward.7} parent=5 // pred_region
      %s138 = ssub.s32 %s9, 1
      // Predicated region
      $region13: #{generator32_forward.7} parent=11 // pred_check
        %p139 = pneg %p96
      $region14: #{generator32_forward.7} parent=11 // pred_check_branch
        %141 = sbr.rel (%p139) target = $region16
      $region15: #{generator32_forward.7} parent=11 // pred_region
        _
      $region16: #{generator32_forward.7} parent=11 // pred_fallthru
        _
    $region12: #{generator32_forward.7} parent=5 // pred_fallthru
      _
    %p142 = scmp.lt.s32.totalorder %s9, 4
    // Predicated region
    $region17: #{generator32_forward.7} parent=5 // pred_check
      %p143 = pneg %p142
    $region18: #{generator32_forward.7} parent=5 // pred_check_branch
      %145 = sbr.rel (%p143) target = $region20
    $region19: #{generator32_forward.7} parent=5 // pred_region
      // Predicated region
      $region21: #{generator32_forward.7} parent=19 // pred_check
        %p146 = pneg %p43
      $region22: #{generator32_forward.7} parent=19 // pred_check_branch
        %148 = sbr.rel (%p146) target = $region24
      $region23: #{generator32_forward.7} parent=19 // pred_region
        %s149 = smul.u32 64, %s17
        %p150 = scmp.lt.s32.totalorder %s16, 3
        %s151 = scalar_select %p150, %s16, 3
        %p152 = scmp.lt.s32.totalorder %s149, 63
        %s153 = scalar_select %p152, %s149, 63
        %s154 = smul.addr %s153, 4
        %s155 = smul.addr %s151, 256
        %s156 = sadd.s32 %s154, %s155
        %s157 = smul.addr %s156, 4
        %s158 = scalar_lea.vmem %s0, %s157
        %s159 = smul.u32 64, %s17
      $region24: #{generator32_forward.7} parent=19 // pred_fallthru
        _
      // Predicated region
      $region25: #{generator32_forward.7} parent=19 // pred_check
        %p160 = pneg %p69
      $region26: #{generator32_forward.7} parent=19 // pred_check_branch
        %162 = sbr.rel (%p160) target = $region28
      $region27: #{generator32_forward.7} parent=19 // pred_region
        %p163 = scmp.lt.s32.totalorder %s16, 3
        %s164 = scalar_select %p163, %s16, 3
        %s165 = smul.addr %s164, 64
        %s166 = smul.addr %s165, 4
        %s167 = scalar_lea.vmem %s1, %s166
      $region28: #{generator32_forward.7} parent=19 // pred_fallthru
        _
    $region20: #{generator32_forward.7} parent=5 // pred_fallthru
      _
    %p168 = scmp.le.s32.totalorder 1, %s9
    %p169 = scmp.lt.s32.totalorder %s9, 5
    %p170 = pnand %p168, %p169
    %p171 = pneg %p170
    // Predicated region
    $region29: #{generator32_forward.7} parent=5 // pred_check
      _
    $region30: #{generator32_forward.7} parent=5 // pred_check_branch
      %173 = sbr.rel (%p170) target = $region32
    $region31: #{generator32_forward.7} parent=5 // pred_region
      %s174 = ssub.s32 %s9, 1
      %s175 = smul.u32 64, %s19
      %p176 = scmp.lt.s32.totalorder %s18, 3
      %s177 = scalar_select %p176, %s18, 3
      %p178 = scmp.lt.s32.totalorder %s175, 63
      %s179 = scalar_select %p178, %s175, 63
      %s180 = smul.addr %s179, 4
      %s181 = smul.addr %s177, 256
      %s182 = sadd.s32 %s180, %s181
      %s183 = smul.addr %s182, 4
      %s184 = scalar_lea.vmem %s0, %s183
      %p185 = pneg %p49
      %p186 = pneg %p46
      %p187 = scmp.lt.s32.totalorder %s18, 3
      %s188 = scalar_select %p187, %s18, 3
      %s189 = smul.addr %s188, 64
      %s190 = smul.addr %s189, 4
      %s191 = scalar_lea.vmem %s1, %s190
      %p192 = pneg %p75
      %p193 = pneg %p72
      %p194 = pneg %p96
      %p195 = pneg %p93
      %p196 = pneg %p124
      %p197 = pneg %p121
      %s198 = smul.u32 64, %s19
      %p199 = scmp.lt.s32.totalorder %s18, 3
      %s200 = scalar_select %p199, %s18, 3
      %p201 = scmp.lt.s32.totalorder %s198, 63
      %s202 = scalar_select %p201, %s198, 63
      %s203 = smul.addr %s200, 64
      %s204 = sadd.s32 %s202, %s203
      %s205 = smul.addr %s204, 4
      %s206 = scalar_lea.vmem %s3, %s205
      %s207 = smul.u32 64, %s19
      %p208 = scmp.lt.s32.totalorder %s18, 3
      %s209 = scalar_select %p208, %s18, 3
      %p210 = scmp.lt.s32.totalorder %s207, 63
      %s211 = scalar_select %p210, %s207, 63
      %s212 = smul.addr %s211, 4
      %s213 = smul.addr %s209, 256
      %s214 = sadd.s32 %s212, %s213
      %s215 = smul.addr %s214, 4
      %s216 = scalar_lea.vmem %s0, %s215
      %s217 = smul.u32 64, %s19
      %p218 = scmp.lt.s32.totalorder %s18, 3
      %s219 = scalar_select %p218, %s18, 3
      %s220 = smul.addr %s219, 64
      %s221 = smul.addr %s220, 4
      %s222 = scalar_lea.vmem %s1, %s221
      %s223 = smul.u32 64, %s19
      %p224 = scmp.lt.s32.totalorder %s18, 3
      %s225 = scalar_select %p224, %s18, 3
      %p226 = scmp.lt.s32.totalorder %s223, 63
      %s227 = scalar_select %p226, %s223, 63
      %s228 = smul.addr %s225, 64
      %s229 = sadd.s32 %s227, %s228
      %s230 = smul.addr %s229, 4
      %s231 = scalar_lea.vmem %s3, %s230
      %s232 = smul.u32 64, %s19
      %v233 = vld [vmem:[%s216] sm:$0xff]
      %v234 = vld [vmem:[%s216 + $0x8] sm:$0xff]
      %v235 = vld [vmem:[%s216 + $0x10] sm:$0xff]
      %v236 = vld [vmem:[%s216 + $0x18] sm:$0xff]
      %v237 = vld [vmem:[%s216 + $0x20] sm:$0xff]
      %v238 = vld [vmem:[%s216 + $0x28] sm:$0xff]
      %v239 = vld [vmem:[%s216 + $0x30] sm:$0xff]
      %v240 = vld [vmem:[%s216 + $0x38] sm:$0xff]
      %v241 = vld [vmem:[%s216 + $0x40] sm:$0xff]
      %v242 = vld [vmem:[%s216 + $0x48] sm:$0xff]
      %v243 = vld [vmem:[%s216 + $0x50] sm:$0xff]
      %v244 = vld [vmem:[%s216 + $0x58] sm:$0xff]
      %v245 = vld [vmem:[%s216 + $0x60] sm:$0xff]
      %v246 = vld [vmem:[%s216 + $0x68] sm:$0xff]
      %v247 = vld [vmem:[%s216 + $0x70] sm:$0xff]
      %v248 = vld [vmem:[%s216 + $0x78] sm:$0xff]
      %v249 = vld [vmem:[%s216 + $0x80] sm:$0xff]
      %v250 = vld [vmem:[%s216 + $0x88] sm:$0xff]
      %v251 = vld [vmem:[%s216 + $0x90] sm:$0xff]
      %v252 = vld [vmem:[%s216 + $0x98] sm:$0xff]
      %v253 = vld [vmem:[%s216 + $0xa0] sm:$0xff]
      %v254 = vld [vmem:[%s216 + $0xa8] sm:$0xff]
      %v255 = vld [vmem:[%s216 + $0xb0] sm:$0xff]
      %v256 = vld [vmem:[%s216 + $0xb8] sm:$0xff]
      %v257 = vld [vmem:[%s216 + $0xc0] sm:$0xff]
      %v258 = vld [vmem:[%s216 + $0xc8] sm:$0xff]
      %v259 = vld [vmem:[%s216 + $0xd0] sm:$0xff]
      %v260 = vld [vmem:[%s216 + $0xd8] sm:$0xff]
      %v261 = vld [vmem:[%s216 + $0xe0] sm:$0xff]
      %v262 = vld [vmem:[%s216 + $0xe8] sm:$0xff]
      %v263 = vld [vmem:[%s216 + $0xf0] sm:$0xff]
      %v264 = vld [vmem:[%s216 + $0xf8] sm:$0xff]
      %v265 = vld [vmem:[%s216 + $0x100] sm:$0xff]
      %v266 = vld [vmem:[%s216 + $0x108] sm:$0xff]
      %v267 = vld [vmem:[%s216 + $0x110] sm:$0xff]
      %v268 = vld [vmem:[%s216 + $0x118] sm:$0xff]
      %v269 = vld [vmem:[%s216 + $0x120] sm:$0xff]
      %v270 = vld [vmem:[%s216 + $0x128] sm:$0xff]
      %v271 = vld [vmem:[%s216 + $0x130] sm:$0xff]
      %v272 = vld [vmem:[%s216 + $0x138] sm:$0xff]
      %v273 = vld [vmem:[%s216 + $0x140] sm:$0xff]
      %v274 = vld [vmem:[%s216 + $0x148] sm:$0xff]
      %v275 = vld [vmem:[%s216 + $0x150] sm:$0xff]
      %v276 = vld [vmem:[%s216 + $0x158] sm:$0xff]
      %v277 = vld [vmem:[%s216 + $0x160] sm:$0xff]
      %v278 = vld [vmem:[%s216 + $0x168] sm:$0xff]
      %v279 = vld [vmem:[%s216 + $0x170] sm:$0xff]
      %v280 = vld [vmem:[%s216 + $0x178] sm:$0xff]
      %v281 = vld [vmem:[%s216 + $0x180] sm:$0xff]
      %v282 = vld [vmem:[%s216 + $0x188] sm:$0xff]
      %v283 = vld [vmem:[%s216 + $0x190] sm:$0xff]
      %v284 = vld [vmem:[%s216 + $0x198] sm:$0xff]
      %v285 = vld [vmem:[%s216 + $0x1a0] sm:$0xff]
      %v286 = vld [vmem:[%s216 + $0x1a8] sm:$0xff]
      %v287 = vld [vmem:[%s216 + $0x1b0] sm:$0xff]
      %v288 = vld [vmem:[%s216 + $0x1b8] sm:$0xff]
      %v289 = vld [vmem:[%s216 + $0x1c0] sm:$0xff]
      %v290 = vld [vmem:[%s216 + $0x1c8] sm:$0xff]
      %v291 = vld [vmem:[%s216 + $0x1d0] sm:$0xff]
      %v292 = vld [vmem:[%s216 + $0x1d8] sm:$0xff]
      %v293 = vld [vmem:[%s216 + $0x1e0] sm:$0xff]
      %v294 = vld [vmem:[%s216 + $0x1e8] sm:$0xff]
      %v295 = vld [vmem:[%s216 + $0x1f0] sm:$0xff]
      %v296 = vld [vmem:[%s216 + $0x1f8] sm:$0xff]
      %v297 = vld [vmem:[%s216 + $0x200] sm:$0xff]
      %v298 = vld [vmem:[%s216 + $0x208] sm:$0xff]
      %v299 = vld [vmem:[%s216 + $0x210] sm:$0xff]
      %v300 = vld [vmem:[%s216 + $0x218] sm:$0xff]
      %v301 = vld [vmem:[%s216 + $0x220] sm:$0xff]
      %v302 = vld [vmem:[%s216 + $0x228] sm:$0xff]
      %v303 = vld [vmem:[%s216 + $0x230] sm:$0xff]
      %v304 = vld [vmem:[%s216 + $0x238] sm:$0xff]
      %v305 = vld [vmem:[%s216 + $0x240] sm:$0xff]
      %v306 = vld [vmem:[%s216 + $0x248] sm:$0xff]
      %v307 = vld [vmem:[%s216 + $0x250] sm:$0xff]
      %v308 = vld [vmem:[%s216 + $0x258] sm:$0xff]
      %v309 = vld [vmem:[%s216 + $0x260] sm:$0xff]
      %v310 = vld [vmem:[%s216 + $0x268] sm:$0xff]
      %v311 = vld [vmem:[%s216 + $0x270] sm:$0xff]
      %v312 = vld [vmem:[%s216 + $0x278] sm:$0xff]
      %v313 = vld [vmem:[%s216 + $0x280] sm:$0xff]
      %v314 = vld [vmem:[%s216 + $0x288] sm:$0xff]
      %v315 = vld [vmem:[%s216 + $0x290] sm:$0xff]
      %v316 = vld [vmem:[%s216 + $0x298] sm:$0xff]
      %v317 = vld [vmem:[%s216 + $0x2a0] sm:$0xff]
      %v318 = vld [vmem:[%s216 + $0x2a8] sm:$0xff]
      %v319 = vld [vmem:[%s216 + $0x2b0] sm:$0xff]
      %v320 = vld [vmem:[%s216 + $0x2b8] sm:$0xff]
      %v321 = vld [vmem:[%s216 + $0x2c0] sm:$0xff]
      %v322 = vld [vmem:[%s216 + $0x2c8] sm:$0xff]
      %v323 = vld [vmem:[%s216 + $0x2d0] sm:$0xff]
      %v324 = vld [vmem:[%s216 + $0x2d8] sm:$0xff]
      %v325 = vld [vmem:[%s216 + $0x2e0] sm:$0xff]
      %v326 = vld [vmem:[%s216 + $0x2e8] sm:$0xff]
      %v327 = vld [vmem:[%s216 + $0x2f0] sm:$0xff]
      %v328 = vld [vmem:[%s216 + $0x2f8] sm:$0xff]
      %v329 = vld [vmem:[%s216 + $0x300] sm:$0xff]
      %v330 = vld [vmem:[%s216 + $0x308] sm:$0xff]
      %v331 = vld [vmem:[%s216 + $0x310] sm:$0xff]
      %v332 = vld [vmem:[%s216 + $0x318] sm:$0xff]
      %v333 = vld [vmem:[%s216 + $0x320] sm:$0xff]
      %v334 = vld [vmem:[%s216 + $0x328] sm:$0xff]
      %v335 = vld [vmem:[%s216 + $0x330] sm:$0xff]
      %v336 = vld [vmem:[%s216 + $0x338] sm:$0xff]
      %v337 = vld [vmem:[%s216 + $0x340] sm:$0xff]
      %v338 = vld [vmem:[%s216 + $0x348] sm:$0xff]
      %v339 = vld [vmem:[%s216 + $0x350] sm:$0xff]
      %v340 = vld [vmem:[%s216 + $0x358] sm:$0xff]
      %v341 = vld [vmem:[%s216 + $0x360] sm:$0xff]
      %v342 = vld [vmem:[%s216 + $0x368] sm:$0xff]
      %v343 = vld [vmem:[%s216 + $0x370] sm:$0xff]
      %v344 = vld [vmem:[%s216 + $0x378] sm:$0xff]
      %v345 = vld [vmem:[%s216 + $0x380] sm:$0xff]
      %v346 = vld [vmem:[%s216 + $0x388] sm:$0xff]
      %v347 = vld [vmem:[%s216 + $0x390] sm:$0xff]
      %v348 = vld [vmem:[%s216 + $0x398] sm:$0xff]
      %v349 = vld [vmem:[%s216 + $0x3a0] sm:$0xff]
      %v350 = vld [vmem:[%s216 + $0x3a8] sm:$0xff]
      %v351 = vld [vmem:[%s216 + $0x3b0] sm:$0xff]
      %v352 = vld [vmem:[%s216 + $0x3b8] sm:$0xff]
      %v353 = vld [vmem:[%s216 + $0x3c0] sm:$0xff]
      %v354 = vld [vmem:[%s216 + $0x3c8] sm:$0xff]
      %v355 = vld [vmem:[%s216 + $0x3d0] sm:$0xff]
      %v356 = vld [vmem:[%s216 + $0x3d8] sm:$0xff]
      %v357 = vld [vmem:[%s216 + $0x3e0] sm:$0xff]
      %v358 = vld [vmem:[%s216 + $0x3e8] sm:$0xff]
      %v359 = vld [vmem:[%s216 + $0x3f0] sm:$0xff]
      %v360 = vld [vmem:[%s216 + $0x3f8] sm:$0xff]
      %v361 = vld [vmem:[%s222] sm:$0xf]
      %v362 = vld [vmem:[%s222 + $0x4] sm:$0xf]
      %v363 = vld [vmem:[%s222 + $0x8] sm:$0xf]
      %v364 = vld [vmem:[%s222 + $0xc] sm:$0xf]
      %v365 = vld [vmem:[%s222 + $0x10] sm:$0xf]
      %v366 = vld [vmem:[%s222 + $0x14] sm:$0xf]
      %v367 = vld [vmem:[%s222 + $0x18] sm:$0xf]
      %v368 = vld [vmem:[%s222 + $0x1c] sm:$0xf]
      %v369 = vld [vmem:[%s222 + $0x20] sm:$0xf]
      %v370 = vld [vmem:[%s222 + $0x24] sm:$0xf]
      %v371 = vld [vmem:[%s222 + $0x28] sm:$0xf]
      %v372 = vld [vmem:[%s222 + $0x2c] sm:$0xf]
      %v373 = vld [vmem:[%s222 + $0x30] sm:$0xf]
      %v374 = vld [vmem:[%s222 + $0x34] sm:$0xf]
      %v375 = vld [vmem:[%s222 + $0x38] sm:$0xf]
      %v376 = vld [vmem:[%s222 + $0x3c] sm:$0xf]
      %v377 = vld [vmem:[%s222 + $0x40] sm:$0xf]
      %v378 = vld [vmem:[%s222 + $0x44] sm:$0xf]
      %v379 = vld [vmem:[%s222 + $0x48] sm:$0xf]
      %v380 = vld [vmem:[%s222 + $0x4c] sm:$0xf]
      %v381 = vld [vmem:[%s222 + $0x50] sm:$0xf]
      %v382 = vld [vmem:[%s222 + $0x54] sm:$0xf]
      %v383 = vld [vmem:[%s222 + $0x58] sm:$0xf]
      %v384 = vld [vmem:[%s222 + $0x5c] sm:$0xf]
      %v385 = vld [vmem:[%s222 + $0x60] sm:$0xf]
      %v386 = vld [vmem:[%s222 + $0x64] sm:$0xf]
      %v387 = vld [vmem:[%s222 + $0x68] sm:$0xf]
      %v388 = vld [vmem:[%s222 + $0x6c] sm:$0xf]
      %v389 = vld [vmem:[%s222 + $0x70] sm:$0xf]
      %v390 = vld [vmem:[%s222 + $0x74] sm:$0xf]
      %v391 = vld [vmem:[%s222 + $0x78] sm:$0xf]
      %v392 = vld [vmem:[%s222 + $0x7c] sm:$0xf]
      %v393 = vld [vmem:[%s222 + $0x80] sm:$0xf]
      %v394 = vld [vmem:[%s222 + $0x84] sm:$0xf]
      %v395 = vld [vmem:[%s222 + $0x88] sm:$0xf]
      %v396 = vld [vmem:[%s222 + $0x8c] sm:$0xf]
      %v397 = vld [vmem:[%s222 + $0x90] sm:$0xf]
      %v398 = vld [vmem:[%s222 + $0x94] sm:$0xf]
      %v399 = vld [vmem:[%s222 + $0x98] sm:$0xf]
      %v400 = vld [vmem:[%s222 + $0x9c] sm:$0xf]
      %v401 = vld [vmem:[%s222 + $0xa0] sm:$0xf]
      %v402 = vld [vmem:[%s222 + $0xa4] sm:$0xf]
      %v403 = vld [vmem:[%s222 + $0xa8] sm:$0xf]
      %v404 = vld [vmem:[%s222 + $0xac] sm:$0xf]
      %v405 = vld [vmem:[%s222 + $0xb0] sm:$0xf]
      %v406 = vld [vmem:[%s222 + $0xb4] sm:$0xf]
      %v407 = vld [vmem:[%s222 + $0xb8] sm:$0xf]
      %v408 = vld [vmem:[%s222 + $0xbc] sm:$0xf]
      %v409 = vld [vmem:[%s222 + $0xc0] sm:$0xf]
      %v410 = vld [vmem:[%s222 + $0xc4] sm:$0xf]
      %v411 = vld [vmem:[%s222 + $0xc8] sm:$0xf]
      %v412 = vld [vmem:[%s222 + $0xcc] sm:$0xf]
      %v413 = vld [vmem:[%s222 + $0xd0] sm:$0xf]
      %v414 = vld [vmem:[%s222 + $0xd4] sm:$0xf]
      %v415 = vld [vmem:[%s222 + $0xd8] sm:$0xf]
      %v416 = vld [vmem:[%s222 + $0xdc] sm:$0xf]
      %v417 = vld [vmem:[%s222 + $0xe0] sm:$0xf]
      %v418 = vld [vmem:[%s222 + $0xe4] sm:$0xf]
      %v419 = vld [vmem:[%s222 + $0xe8] sm:$0xf]
      %v420 = vld [vmem:[%s222 + $0xec] sm:$0xf]
      %v421 = vld [vmem:[%s222 + $0xf0] sm:$0xf]
      %v422 = vld [vmem:[%s222 + $0xf4] sm:$0xf]
      %v423 = vld [vmem:[%s222 + $0xf8] sm:$0xf]
      %v424 = vld [vmem:[%s222 + $0xfc] sm:$0xf]
      %v425 = vld [vmem:[%s2] sm:$0x1]
      %v427 = vperm.slane %v425, 0
      %v557 = vunpack.c.l.b16 %v233
      %v558 = vunpack.c.h.b16 %v233
      %v559 = vunpack.c.l.b16 %v234
      %v560 = vunpack.c.h.b16 %v234
      %v561 = vunpack.c.l.b16 %v235
      %v562 = vunpack.c.h.b16 %v235
      %v563 = vunpack.c.l.b16 %v236
      %v564 = vunpack.c.h.b16 %v236
      %v565 = vunpack.c.l.b16 %v237
      %v566 = vunpack.c.h.b16 %v237
      %v567 = vunpack.c.l.b16 %v238
      %v568 = vunpack.c.h.b16 %v238
      %v569 = vunpack.c.l.b16 %v239
      %v570 = vunpack.c.h.b16 %v239
      %v571 = vunpack.c.l.b16 %v240
      %v572 = vunpack.c.h.b16 %v240
      %v573 = vunpack.c.l.b16 %v241
      %v574 = vunpack.c.h.b16 %v241
      %v575 = vunpack.c.l.b16 %v242
      %v576 = vunpack.c.h.b16 %v242
      %v577 = vunpack.c.l.b16 %v243
      %v578 = vunpack.c.h.b16 %v243
      %v579 = vunpack.c.l.b16 %v244
      %v580 = vunpack.c.h.b16 %v244
      %v581 = vunpack.c.l.b16 %v245
      %v582 = vunpack.c.h.b16 %v245
      %v583 = vunpack.c.l.b16 %v246
      %v584 = vunpack.c.h.b16 %v246
      %v585 = vunpack.c.l.b16 %v247
      %v586 = vunpack.c.h.b16 %v247
      %v587 = vunpack.c.l.b16 %v248
      %v588 = vunpack.c.h.b16 %v248
      %v589 = vunpack.c.l.b16 %v249
      %v590 = vunpack.c.h.b16 %v249
      %v591 = vunpack.c.l.b16 %v250
      %v592 = vunpack.c.h.b16 %v250
      %v593 = vunpack.c.l.b16 %v251
      %v594 = vunpack.c.h.b16 %v251
      %v595 = vunpack.c.l.b16 %v252
      %v596 = vunpack.c.h.b16 %v252
      %v597 = vunpack.c.l.b16 %v253
      %v598 = vunpack.c.h.b16 %v253
      %v599 = vunpack.c.l.b16 %v254
      %v600 = vunpack.c.h.b16 %v254
      %v601 = vunpack.c.l.b16 %v255
      %v602 = vunpack.c.h.b16 %v255
      %v603 = vunpack.c.l.b16 %v256
      %v604 = vunpack.c.h.b16 %v256
      %v605 = vunpack.c.l.b16 %v257
      %v606 = vunpack.c.h.b16 %v257
      %v607 = vunpack.c.l.b16 %v258
      %v608 = vunpack.c.h.b16 %v258
      %v609 = vunpack.c.l.b16 %v259
      %v610 = vunpack.c.h.b16 %v259
      %v611 = vunpack.c.l.b16 %v260
      %v612 = vunpack.c.h.b16 %v260
      %v613 = vunpack.c.l.b16 %v261
      %v614 = vunpack.c.h.b16 %v261
      %v615 = vunpack.c.l.b16 %v262
      %v616 = vunpack.c.h.b16 %v262
      %v617 = vunpack.c.l.b16 %v263
      %v618 = vunpack.c.h.b16 %v263
      %v619 = vunpack.c.l.b16 %v264
      %v620 = vunpack.c.h.b16 %v264
      %v621 = vunpack.c.l.b16 %v265
      %v622 = vunpack.c.h.b16 %v265
      %v623 = vunpack.c.l.b16 %v266
      %v624 = vunpack.c.h.b16 %v266
      %v625 = vunpack.c.l.b16 %v267
      %v626 = vunpack.c.h.b16 %v267
      %v627 = vunpack.c.l.b16 %v268
      %v628 = vunpack.c.h.b16 %v268
      %v629 = vunpack.c.l.b16 %v269
      %v630 = vunpack.c.h.b16 %v269
      %v631 = vunpack.c.l.b16 %v270
      %v632 = vunpack.c.h.b16 %v270
      %v633 = vunpack.c.l.b16 %v271
      %v634 = vunpack.c.h.b16 %v271
      %v635 = vunpack.c.l.b16 %v272
      %v636 = vunpack.c.h.b16 %v272
      %v637 = vunpack.c.l.b16 %v273
      %v638 = vunpack.c.h.b16 %v273
      %v639 = vunpack.c.l.b16 %v274
      %v640 = vunpack.c.h.b16 %v274
      %v641 = vunpack.c.l.b16 %v275
      %v642 = vunpack.c.h.b16 %v275
      %v643 = vunpack.c.l.b16 %v276
      %v644 = vunpack.c.h.b16 %v276
      %v645 = vunpack.c.l.b16 %v277
      %v646 = vunpack.c.h.b16 %v277
      %v647 = vunpack.c.l.b16 %v278
      %v648 = vunpack.c.h.b16 %v278
      %v649 = vunpack.c.l.b16 %v279
      %v650 = vunpack.c.h.b16 %v279
      %v651 = vunpack.c.l.b16 %v280
      %v652 = vunpack.c.h.b16 %v280
      %v653 = vunpack.c.l.b16 %v281
      %v654 = vunpack.c.h.b16 %v281
      %v655 = vunpack.c.l.b16 %v282
      %v656 = vunpack.c.h.b16 %v282
      %v657 = vunpack.c.l.b16 %v283
      %v658 = vunpack.c.h.b16 %v283
      %v659 = vunpack.c.l.b16 %v284
      %v660 = vunpack.c.h.b16 %v284
      %v661 = vunpack.c.l.b16 %v285
      %v662 = vunpack.c.h.b16 %v285
      %v663 = vunpack.c.l.b16 %v286
      %v664 = vunpack.c.h.b16 %v286
      %v665 = vunpack.c.l.b16 %v287
      %v666 = vunpack.c.h.b16 %v287
      %v667 = vunpack.c.l.b16 %v288
      %v668 = vunpack.c.h.b16 %v288
      %v669 = vunpack.c.l.b16 %v289
      %v670 = vunpack.c.h.b16 %v289
      %v671 = vunpack.c.l.b16 %v290
      %v672 = vunpack.c.h.b16 %v290
      %v673 = vunpack.c.l.b16 %v291
      %v674 = vunpack.c.h.b16 %v291
      %v675 = vunpack.c.l.b16 %v292
      %v676 = vunpack.c.h.b16 %v292
      %v677 = vunpack.c.l.b16 %v293
      %v678 = vunpack.c.h.b16 %v293
      %v679 = vunpack.c.l.b16 %v294
      %v680 = vunpack.c.h.b16 %v294
      %v681 = vunpack.c.l.b16 %v295
      %v682 = vunpack.c.h.b16 %v295
      %v683 = vunpack.c.l.b16 %v296
      %v684 = vunpack.c.h.b16 %v296
      %v685 = vunpack.c.l.b16 %v297
      %v686 = vunpack.c.h.b16 %v297
      %v687 = vunpack.c.l.b16 %v298
      %v688 = vunpack.c.h.b16 %v298
      %v689 = vunpack.c.l.b16 %v299
      %v690 = vunpack.c.h.b16 %v299
      %v691 = vunpack.c.l.b16 %v300
      %v692 = vunpack.c.h.b16 %v300
      %v693 = vunpack.c.l.b16 %v301
      %v694 = vunpack.c.h.b16 %v301
      %v695 = vunpack.c.l.b16 %v302
      %v696 = vunpack.c.h.b16 %v302
      %v697 = vunpack.c.l.b16 %v303
      %v698 = vunpack.c.h.b16 %v303
      %v699 = vunpack.c.l.b16 %v304
      %v700 = vunpack.c.h.b16 %v304
      %v701 = vunpack.c.l.b16 %v305
      %v702 = vunpack.c.h.b16 %v305
      %v703 = vunpack.c.l.b16 %v306
      %v704 = vunpack.c.h.b16 %v306
      %v705 = vunpack.c.l.b16 %v307
      %v706 = vunpack.c.h.b16 %v307
      %v707 = vunpack.c.l.b16 %v308
      %v708 = vunpack.c.h.b16 %v308
      %v709 = vunpack.c.l.b16 %v309
      %v710 = vunpack.c.h.b16 %v309
      %v711 = vunpack.c.l.b16 %v310
      %v712 = vunpack.c.h.b16 %v310
      %v713 = vunpack.c.l.b16 %v311
      %v714 = vunpack.c.h.b16 %v311
      %v715 = vunpack.c.l.b16 %v312
      %v716 = vunpack.c.h.b16 %v312
      %v717 = vunpack.c.l.b16 %v313
      %v718 = vunpack.c.h.b16 %v313
      %v719 = vunpack.c.l.b16 %v314
      %v720 = vunpack.c.h.b16 %v314
      %v721 = vunpack.c.l.b16 %v315
      %v722 = vunpack.c.h.b16 %v315
      %v723 = vunpack.c.l.b16 %v316
      %v724 = vunpack.c.h.b16 %v316
      %v725 = vunpack.c.l.b16 %v317
      %v726 = vunpack.c.h.b16 %v317
      %v727 = vunpack.c.l.b16 %v318
      %v728 = vunpack.c.h.b16 %v318
      %v729 = vunpack.c.l.b16 %v319
      %v730 = vunpack.c.h.b16 %v319
      %v731 = vunpack.c.l.b16 %v320
      %v732 = vunpack.c.h.b16 %v320
      %v733 = vunpack.c.l.b16 %v321
      %v734 = vunpack.c.h.b16 %v321
      %v735 = vunpack.c.l.b16 %v322
      %v736 = vunpack.c.h.b16 %v322
      %v737 = vunpack.c.l.b16 %v323
      %v738 = vunpack.c.h.b16 %v323
      %v739 = vunpack.c.l.b16 %v324
      %v740 = vunpack.c.h.b16 %v324
      %v741 = vunpack.c.l.b16 %v325
      %v742 = vunpack.c.h.b16 %v325
      %v743 = vunpack.c.l.b16 %v326
      %v744 = vunpack.c.h.b16 %v326
      %v745 = vunpack.c.l.b16 %v327
      %v746 = vunpack.c.h.b16 %v327
      %v747 = vunpack.c.l.b16 %v328
      %v748 = vunpack.c.h.b16 %v328
      %v749 = vunpack.c.l.b16 %v329
      %v750 = vunpack.c.h.b16 %v329
      %v751 = vunpack.c.l.b16 %v330
      %v752 = vunpack.c.h.b16 %v330
      %v753 = vunpack.c.l.b16 %v331
      %v754 = vunpack.c.h.b16 %v331
      %v755 = vunpack.c.l.b16 %v332
      %v756 = vunpack.c.h.b16 %v332
      %v757 = vunpack.c.l.b16 %v333
      %v758 = vunpack.c.h.b16 %v333
      %v759 = vunpack.c.l.b16 %v334
      %v760 = vunpack.c.h.b16 %v334
      %v761 = vunpack.c.l.b16 %v335
      %v762 = vunpack.c.h.b16 %v335
      %v763 = vunpack.c.l.b16 %v336
      %v764 = vunpack.c.h.b16 %v336
      %v765 = vunpack.c.l.b16 %v337
      %v766 = vunpack.c.h.b16 %v337
      %v767 = vunpack.c.l.b16 %v338
      %v768 = vunpack.c.h.b16 %v338
      %v769 = vunpack.c.l.b16 %v339
      %v770 = vunpack.c.h.b16 %v339
      %v771 = vunpack.c.l.b16 %v340
      %v772 = vunpack.c.h.b16 %v340
      %v773 = vunpack.c.l.b16 %v341
      %v774 = vunpack.c.h.b16 %v341
      %v775 = vunpack.c.l.b16 %v342
      %v776 = vunpack.c.h.b16 %v342
      %v777 = vunpack.c.l.b16 %v343
      %v778 = vunpack.c.h.b16 %v343
      %v779 = vunpack.c.l.b16 %v344
      %v780 = vunpack.c.h.b16 %v344
      %v781 = vunpack.c.l.b16 %v345
      %v782 = vunpack.c.h.b16 %v345
      %v783 = vunpack.c.l.b16 %v346
      %v784 = vunpack.c.h.b16 %v346
      %v785 = vunpack.c.l.b16 %v347
      %v786 = vunpack.c.h.b16 %v347
      %v787 = vunpack.c.l.b16 %v348
      %v788 = vunpack.c.h.b16 %v348
      %v789 = vunpack.c.l.b16 %v349
      %v790 = vunpack.c.h.b16 %v349
      %v791 = vunpack.c.l.b16 %v350
      %v792 = vunpack.c.h.b16 %v350
      %v793 = vunpack.c.l.b16 %v351
      %v794 = vunpack.c.h.b16 %v351
      %v795 = vunpack.c.l.b16 %v352
      %v796 = vunpack.c.h.b16 %v352
      %v797 = vunpack.c.l.b16 %v353
      %v798 = vunpack.c.h.b16 %v353
      %v799 = vunpack.c.l.b16 %v354
      %v800 = vunpack.c.h.b16 %v354
      %v801 = vunpack.c.l.b16 %v355
      %v802 = vunpack.c.h.b16 %v355
      %v803 = vunpack.c.l.b16 %v356
      %v804 = vunpack.c.h.b16 %v356
      %v805 = vunpack.c.l.b16 %v357
      %v806 = vunpack.c.h.b16 %v357
      %v807 = vunpack.c.l.b16 %v358
      %v808 = vunpack.c.h.b16 %v358
      %v809 = vunpack.c.l.b16 %v359
      %v810 = vunpack.c.h.b16 %v359
      %v811 = vunpack.c.l.b16 %v360
      %v812 = vunpack.c.h.b16 %v360
      %v813 = vpack.c.b16 %v561, %v557
      %v814 = vpack.c.b16 %v562, %v558
      %v815 = vpack.c.b16 %v563, %v559
      %v816 = vpack.c.b16 %v564, %v560
      %v817 = vpack.c.b16 %v569, %v565
      %v818 = vpack.c.b16 %v570, %v566
      %v819 = vpack.c.b16 %v571, %v567
      %v820 = vpack.c.b16 %v572, %v568
      %v821 = vpack.c.b16 %v577, %v573
      %v822 = vpack.c.b16 %v578, %v574
      %v823 = vpack.c.b16 %v579, %v575
      %v824 = vpack.c.b16 %v580, %v576
      %v825 = vpack.c.b16 %v585, %v581
      %v826 = vpack.c.b16 %v586, %v582
      %v827 = vpack.c.b16 %v587, %v583
      %v828 = vpack.c.b16 %v588, %v584
      %v829 = vpack.c.b16 %v593, %v589
      %v830 = vpack.c.b16 %v594, %v590
      %v831 = vpack.c.b16 %v595, %v591
      %v832 = vpack.c.b16 %v596, %v592
      %v833 = vpack.c.b16 %v601, %v597
      %v834 = vpack.c.b16 %v602, %v598
      %v835 = vpack.c.b16 %v603, %v599
      %v836 = vpack.c.b16 %v604, %v600
      %v837 = vpack.c.b16 %v609, %v605
      %v838 = vpack.c.b16 %v610, %v606
      %v839 = vpack.c.b16 %v611, %v607
      %v840 = vpack.c.b16 %v612, %v608
      %v841 = vpack.c.b16 %v617, %v613
      %v842 = vpack.c.b16 %v618, %v614
      %v843 = vpack.c.b16 %v619, %v615
      %v844 = vpack.c.b16 %v620, %v616
      %v845 = vpack.c.b16 %v625, %v621
      %v846 = vpack.c.b16 %v626, %v622
      %v847 = vpack.c.b16 %v627, %v623
      %v848 = vpack.c.b16 %v628, %v624
      %v849 = vpack.c.b16 %v633, %v629
      %v850 = vpack.c.b16 %v634, %v630
      %v851 = vpack.c.b16 %v635, %v631
      %v852 = vpack.c.b16 %v636, %v632
      %v853 = vpack.c.b16 %v641, %v637
      %v854 = vpack.c.b16 %v642, %v638
      %v855 = vpack.c.b16 %v643, %v639
      %v856 = vpack.c.b16 %v644, %v640
      %v857 = vpack.c.b16 %v649, %v645
      %v858 = vpack.c.b16 %v650, %v646
      %v859 = vpack.c.b16 %v651, %v647
      %v860 = vpack.c.b16 %v652, %v648
      %v861 = vpack.c.b16 %v657, %v653
      %v862 = vpack.c.b16 %v658, %v654
      %v863 = vpack.c.b16 %v659, %v655
      %v864 = vpack.c.b16 %v660, %v656
      %v865 = vpack.c.b16 %v665, %v661
      %v866 = vpack.c.b16 %v666, %v662
      %v867 = vpack.c.b16 %v667, %v663
      %v868 = vpack.c.b16 %v668, %v664
      %v869 = vpack.c.b16 %v673, %v669
      %v870 = vpack.c.b16 %v674, %v670
      %v871 = vpack.c.b16 %v675, %v671
      %v872 = vpack.c.b16 %v676, %v672
      %v873 = vpack.c.b16 %v681, %v677
      %v874 = vpack.c.b16 %v682, %v678
      %v875 = vpack.c.b16 %v683, %v679
      %v876 = vpack.c.b16 %v684, %v680
      %v877 = vpack.c.b16 %v689, %v685
      %v878 = vpack.c.b16 %v690, %v686
      %v879 = vpack.c.b16 %v691, %v687
      %v880 = vpack.c.b16 %v692, %v688
      %v881 = vpack.c.b16 %v697, %v693
      %v882 = vpack.c.b16 %v698, %v694
      %v883 = vpack.c.b16 %v699, %v695
      %v884 = vpack.c.b16 %v700, %v696
      %v885 = vpack.c.b16 %v705, %v701
      %v886 = vpack.c.b16 %v706, %v702
      %v887 = vpack.c.b16 %v707, %v703
      %v888 = vpack.c.b16 %v708, %v704
      %v889 = vpack.c.b16 %v713, %v709
      %v890 = vpack.c.b16 %v714, %v710
      %v891 = vpack.c.b16 %v715, %v711
      %v892 = vpack.c.b16 %v716, %v712
      %v893 = vpack.c.b16 %v721, %v717
      %v894 = vpack.c.b16 %v722, %v718
      %v895 = vpack.c.b16 %v723, %v719
      %v896 = vpack.c.b16 %v724, %v720
      %v897 = vpack.c.b16 %v729, %v725
      %v898 = vpack.c.b16 %v730, %v726
      %v899 = vpack.c.b16 %v731, %v727
      %v900 = vpack.c.b16 %v732, %v728
      %v901 = vpack.c.b16 %v737, %v733
      %v902 = vpack.c.b16 %v738, %v734
      %v903 = vpack.c.b16 %v739, %v735
      %v904 = vpack.c.b16 %v740, %v736
      %v905 = vpack.c.b16 %v745, %v741
      %v906 = vpack.c.b16 %v746, %v742
      %v907 = vpack.c.b16 %v747, %v743
      %v908 = vpack.c.b16 %v748, %v744
      %v909 = vpack.c.b16 %v753, %v749
      %v910 = vpack.c.b16 %v754, %v750
      %v911 = vpack.c.b16 %v755, %v751
      %v912 = vpack.c.b16 %v756, %v752
      %v913 = vpack.c.b16 %v761, %v757
      %v914 = vpack.c.b16 %v762, %v758
      %v915 = vpack.c.b16 %v763, %v759
      %v916 = vpack.c.b16 %v764, %v760
      %v917 = vpack.c.b16 %v769, %v765
      %v918 = vpack.c.b16 %v770, %v766
      %v919 = vpack.c.b16 %v771, %v767
      %v920 = vpack.c.b16 %v772, %v768
      %v921 = vpack.c.b16 %v777, %v773
      %v922 = vpack.c.b16 %v778, %v774
      %v923 = vpack.c.b16 %v779, %v775
      %v924 = vpack.c.b16 %v780, %v776
      %v925 = vpack.c.b16 %v785, %v781
      %v926 = vpack.c.b16 %v786, %v782
      %v927 = vpack.c.b16 %v787, %v783
      %v928 = vpack.c.b16 %v788, %v784
      %v929 = vpack.c.b16 %v793, %v789
      %v930 = vpack.c.b16 %v794, %v790
      %v931 = vpack.c.b16 %v795, %v791
      %v932 = vpack.c.b16 %v796, %v792
      %v933 = vpack.c.b16 %v801, %v797
      %v934 = vpack.c.b16 %v802, %v798
      %v935 = vpack.c.b16 %v803, %v799
      %v936 = vpack.c.b16 %v804, %v800
      %v937 = vpack.c.b16 %v809, %v805
      %v938 = vpack.c.b16 %v810, %v806
      %v939 = vpack.c.b16 %v811, %v807
      %v940 = vpack.c.b16 %v812, %v808
      %v1133 = vunpack.c.l.b16 %v361
      %v1134 = vunpack.c.l.b16 %v362
      %v1135 = vunpack.c.l.b16 %v363
      %v1136 = vunpack.c.l.b16 %v364
      %v1137 = vunpack.c.l.b16 %v365
      %v1138 = vunpack.c.l.b16 %v366
      %v1139 = vunpack.c.l.b16 %v367
      %v1140 = vunpack.c.l.b16 %v368
      %v1141 = vunpack.c.l.b16 %v369
      %v1142 = vunpack.c.l.b16 %v370
      %v1143 = vunpack.c.l.b16 %v371
      %v1144 = vunpack.c.l.b16 %v372
      %v1145 = vunpack.c.l.b16 %v373
      %v1146 = vunpack.c.l.b16 %v374
      %v1147 = vunpack.c.l.b16 %v375
      %v1148 = vunpack.c.l.b16 %v376
      %v1149 = vunpack.c.l.b16 %v377
      %v1150 = vunpack.c.l.b16 %v378
      %v1151 = vunpack.c.l.b16 %v379
      %v1152 = vunpack.c.l.b16 %v380
      %v1153 = vunpack.c.l.b16 %v381
      %v1154 = vunpack.c.l.b16 %v382
      %v1155 = vunpack.c.l.b16 %v383
      %v1156 = vunpack.c.l.b16 %v384
      %v1157 = vunpack.c.l.b16 %v385
      %v1158 = vunpack.c.l.b16 %v386
      %v1159 = vunpack.c.l.b16 %v387
      %v1160 = vunpack.c.l.b16 %v388
      %v1161 = vunpack.c.l.b16 %v389
      %v1162 = vunpack.c.l.b16 %v390
      %v1163 = vunpack.c.l.b16 %v391
      %v1164 = vunpack.c.l.b16 %v392
      %v1165 = vunpack.c.l.b16 %v393
      %v1166 = vunpack.c.l.b16 %v394
      %v1167 = vunpack.c.l.b16 %v395
      %v1168 = vunpack.c.l.b16 %v396
      %v1169 = vunpack.c.l.b16 %v397
      %v1170 = vunpack.c.l.b16 %v398
      %v1171 = vunpack.c.l.b16 %v399
      %v1172 = vunpack.c.l.b16 %v400
      %v1173 = vunpack.c.l.b16 %v401
      %v1174 = vunpack.c.l.b16 %v402
      %v1175 = vunpack.c.l.b16 %v403
      %v1176 = vunpack.c.l.b16 %v404
      %v1177 = vunpack.c.l.b16 %v405
      %v1178 = vunpack.c.l.b16 %v406
      %v1179 = vunpack.c.l.b16 %v407
      %v1180 = vunpack.c.l.b16 %v408
      %v1181 = vunpack.c.l.b16 %v409
      %v1182 = vunpack.c.l.b16 %v410
      %v1183 = vunpack.c.l.b16 %v411
      %v1184 = vunpack.c.l.b16 %v412
      %v1185 = vunpack.c.l.b16 %v413
      %v1186 = vunpack.c.l.b16 %v414
      %v1187 = vunpack.c.l.b16 %v415
      %v1188 = vunpack.c.l.b16 %v416
      %v1189 = vunpack.c.l.b16 %v417
      %v1190 = vunpack.c.l.b16 %v418
      %v1191 = vunpack.c.l.b16 %v419
      %v1192 = vunpack.c.l.b16 %v420
      %v1193 = vunpack.c.l.b16 %v421
      %v1194 = vunpack.c.l.b16 %v422
      %v1195 = vunpack.c.l.b16 %v423
      %v1196 = vunpack.c.l.b16 %v424
      %v1197 = vpack.c.b16 %v1134, %v1133
      %v1198 = vpack.c.b16 %v1136, %v1135
      %v1199 = vpack.c.b16 %v1138, %v1137
      %v1200 = vpack.c.b16 %v1140, %v1139
      %v1201 = vpack.c.b16 %v1142, %v1141
      %v1202 = vpack.c.b16 %v1144, %v1143
      %v1203 = vpack.c.b16 %v1146, %v1145
      %v1204 = vpack.c.b16 %v1148, %v1147
      %v1205 = vpack.c.b16 %v1150, %v1149
      %v1206 = vpack.c.b16 %v1152, %v1151
      %v1207 = vpack.c.b16 %v1154, %v1153
      %v1208 = vpack.c.b16 %v1156, %v1155
      %v1209 = vpack.c.b16 %v1158, %v1157
      %v1210 = vpack.c.b16 %v1160, %v1159
      %v1211 = vpack.c.b16 %v1162, %v1161
      %v1212 = vpack.c.b16 %v1164, %v1163
      %v1213 = vpack.c.b16 %v1166, %v1165
      %v1214 = vpack.c.b16 %v1168, %v1167
      %v1215 = vpack.c.b16 %v1170, %v1169
      %v1216 = vpack.c.b16 %v1172, %v1171
      %v1217 = vpack.c.b16 %v1174, %v1173
      %v1218 = vpack.c.b16 %v1176, %v1175
      %v1219 = vpack.c.b16 %v1178, %v1177
      %v1220 = vpack.c.b16 %v1180, %v1179
      %v1221 = vpack.c.b16 %v1182, %v1181
      %v1222 = vpack.c.b16 %v1184, %v1183
      %v1223 = vpack.c.b16 %v1186, %v1185
      %v1224 = vpack.c.b16 %v1188, %v1187
      %v1225 = vpack.c.b16 %v1190, %v1189
      %v1226 = vpack.c.b16 %v1192, %v1191
      %v1227 = vpack.c.b16 %v1194, %v1193
      %v1228 = vpack.c.b16 %v1196, %v1195
      %1261 = vmatpush.bf16.msra.mxu0 %v1204
      %1262 = vmatpush.bf16.msra.mxu0 %v1203
      %1263 = vmatpush.bf16.msra.mxu0 %v1202
      %1264 = vmatpush.bf16.msra.mxu0 %v1201
      %1265 = vmatpush.bf16.msra.mxu0 %v1200
      %1266 = vmatpush.bf16.msra.mxu0 %v1199
      %1267 = vmatpush.bf16.msra.mxu0 %v1198
      %1268 = vmatpush.bf16.msra.mxu0 %v1197
      %1269 = vmatmul.bf16.gmra.mxu0 %v813
      %v1270 = vpop.f32.mrf.mxu0
      %v1271 = vadd.f32 %v427, %v1270
      %v1272 = vpop.f32.mrf.mxu0
      %v1273 = vadd.f32 %v427, %v1272
      %1274 = vmatmul.bf16.gmra.mxu0 %v817
      %v1275 = vpop.f32.mrf.mxu0
      %v1276 = vadd.f32 %v427, %v1275
      %v1277 = vpop.f32.mrf.mxu0
      %v1278 = vadd.f32 %v427, %v1277
      %1279 = vmatmul.bf16.gmra.mxu0 %v821
      %v1280 = vpop.f32.mrf.mxu0
      %v1281 = vadd.f32 %v427, %v1280
      %v1282 = vpop.f32.mrf.mxu0
      %v1283 = vadd.f32 %v427, %v1282
      %1284 = vmatmul.bf16.gmra.mxu0 %v825
      %v1285 = vpop.f32.mrf.mxu0
      %v1286 = vadd.f32 %v427, %v1285
      %v1287 = vpop.f32.mrf.mxu0
      %v1288 = vadd.f32 %v427, %v1287
      %1289 = vmatmul.bf16.gmra.mxu0 %v829
      %v1290 = vpop.f32.mrf.mxu0
      %v1291 = vadd.f32 %v427, %v1290
      %v1292 = vpop.f32.mrf.mxu0
      %v1293 = vadd.f32 %v427, %v1292
      %1294 = vmatmul.bf16.gmra.mxu0 %v833
      %v1295 = vpop.f32.mrf.mxu0
      %v1296 = vadd.f32 %v427, %v1295
      %v1297 = vpop.f32.mrf.mxu0
      %v1298 = vadd.f32 %v427, %v1297
      %1299 = vmatmul.bf16.gmra.mxu0 %v837
      %v1300 = vpop.f32.mrf.mxu0
      %v1301 = vadd.f32 %v427, %v1300
      %v1302 = vpop.f32.mrf.mxu0
      %v1303 = vadd.f32 %v427, %v1302
      %1304 = vmatmul.bf16.gmra.mxu0 %v841
      %v1305 = vpop.f32.mrf.mxu0
      %v1306 = vadd.f32 %v427, %v1305
      %v1307 = vpop.f32.mrf.mxu0
      %v1308 = vadd.f32 %v427, %v1307
      %1309 = vmatmul.bf16.gmra.mxu0 %v845
      %v1310 = vpop.f32.mrf.mxu0
      %v1311 = vadd.f32 %v427, %v1310
      %v1312 = vpop.f32.mrf.mxu0
      %v1313 = vadd.f32 %v427, %v1312
      %1314 = vmatmul.bf16.gmra.mxu0 %v849
      %v1315 = vpop.f32.mrf.mxu0
      %v1316 = vadd.f32 %v427, %v1315
      %v1317 = vpop.f32.mrf.mxu0
      %v1318 = vadd.f32 %v427, %v1317
      %1319 = vmatmul.bf16.gmra.mxu0 %v853
      %v1320 = vpop.f32.mrf.mxu0
      %v1321 = vadd.f32 %v427, %v1320
      %v1322 = vpop.f32.mrf.mxu0
      %v1323 = vadd.f32 %v427, %v1322
      %1324 = vmatmul.bf16.gmra.mxu0 %v857
      %v1325 = vpop.f32.mrf.mxu0
      %v1326 = vadd.f32 %v427, %v1325
      %v1327 = vpop.f32.mrf.mxu0
      %v1328 = vadd.f32 %v427, %v1327
      %1329 = vmatmul.bf16.gmra.mxu0 %v861
      %v1330 = vpop.f32.mrf.mxu0
      %v1331 = vadd.f32 %v427, %v1330
      %v1332 = vpop.f32.mrf.mxu0
      %v1333 = vadd.f32 %v427, %v1332
      %1334 = vmatmul.bf16.gmra.mxu0 %v865
      %v1335 = vpop.f32.mrf.mxu0
      %v1336 = vadd.f32 %v427, %v1335
      %v1337 = vpop.f32.mrf.mxu0
      %v1338 = vadd.f32 %v427, %v1337
      %1339 = vmatmul.bf16.gmra.mxu0 %v869
      %v1340 = vpop.f32.mrf.mxu0
      %v1341 = vadd.f32 %v427, %v1340
      %v1342 = vpop.f32.mrf.mxu0
      %v1343 = vadd.f32 %v427, %v1342
      %1344 = vmatmul.bf16.gmra.mxu0 %v873
      %v1345 = vpop.f32.mrf.mxu0
      %v1346 = vadd.f32 %v427, %v1345
      %v1347 = vpop.f32.mrf.mxu0
      %v1348 = vadd.f32 %v427, %v1347
      %1349 = vmatmul.bf16.gmra.mxu0 %v877
      %v1350 = vpop.f32.mrf.mxu0
      %v1351 = vadd.f32 %v427, %v1350
      %v1352 = vpop.f32.mrf.mxu0
      %v1353 = vadd.f32 %v427, %v1352
      %1354 = vmatmul.bf16.gmra.mxu0 %v881
      %v1355 = vpop.f32.mrf.mxu0
      %v1356 = vadd.f32 %v427, %v1355
      %v1357 = vpop.f32.mrf.mxu0
      %v1358 = vadd.f32 %v427, %v1357
      %1359 = vmatmul.bf16.gmra.mxu0 %v885
      %v1360 = vpop.f32.mrf.mxu0
      %v1361 = vadd.f32 %v427, %v1360
      %v1362 = vpop.f32.mrf.mxu0
      %v1363 = vadd.f32 %v427, %v1362
      %1364 = vmatmul.bf16.gmra.mxu0 %v889
      %v1365 = vpop.f32.mrf.mxu0
      %v1366 = vadd.f32 %v427, %v1365
      %v1367 = vpop.f32.mrf.mxu0
      %v1368 = vadd.f32 %v427, %v1367
      %1369 = vmatmul.bf16.gmra.mxu0 %v893
      %v1370 = vpop.f32.mrf.mxu0
      %v1371 = vadd.f32 %v427, %v1370
      %v1372 = vpop.f32.mrf.mxu0
      %v1373 = vadd.f32 %v427, %v1372
      %1374 = vmatmul.bf16.gmra.mxu0 %v897
      %v1375 = vpop.f32.mrf.mxu0
      %v1376 = vadd.f32 %v427, %v1375
      %v1377 = vpop.f32.mrf.mxu0
      %v1378 = vadd.f32 %v427, %v1377
      %1379 = vmatmul.bf16.gmra.mxu0 %v901
      %v1380 = vpop.f32.mrf.mxu0
      %v1381 = vadd.f32 %v427, %v1380
      %v1382 = vpop.f32.mrf.mxu0
      %v1383 = vadd.f32 %v427, %v1382
      %1384 = vmatmul.bf16.gmra.mxu0 %v905
      %v1385 = vpop.f32.mrf.mxu0
      %v1386 = vadd.f32 %v427, %v1385
      %v1387 = vpop.f32.mrf.mxu0
      %v1388 = vadd.f32 %v427, %v1387
      %1389 = vmatmul.bf16.gmra.mxu0 %v909
      %v1390 = vpop.f32.mrf.mxu0
      %v1391 = vadd.f32 %v427, %v1390
      %v1392 = vpop.f32.mrf.mxu0
      %v1393 = vadd.f32 %v427, %v1392
      %1394 = vmatmul.bf16.gmra.mxu0 %v913
      %v1395 = vpop.f32.mrf.mxu0
      %v1396 = vadd.f32 %v427, %v1395
      %v1397 = vpop.f32.mrf.mxu0
      %v1398 = vadd.f32 %v427, %v1397
      %1399 = vmatmul.bf16.gmra.mxu0 %v917
      %v1400 = vpop.f32.mrf.mxu0
      %v1401 = vadd.f32 %v427, %v1400
      %v1402 = vpop.f32.mrf.mxu0
      %v1403 = vadd.f32 %v427, %v1402
      %1404 = vmatmul.bf16.gmra.mxu0 %v921
      %v1405 = vpop.f32.mrf.mxu0
      %v1406 = vadd.f32 %v427, %v1405
      %v1407 = vpop.f32.mrf.mxu0
      %v1408 = vadd.f32 %v427, %v1407
      %1409 = vmatmul.bf16.gmra.mxu0 %v925
      %v1410 = vpop.f32.mrf.mxu0
      %v1411 = vadd.f32 %v427, %v1410
      %v1412 = vpop.f32.mrf.mxu0
      %v1413 = vadd.f32 %v427, %v1412
      %1414 = vmatmul.bf16.gmra.mxu0 %v929
      %v1415 = vpop.f32.mrf.mxu0
      %v1416 = vadd.f32 %v427, %v1415
      %v1417 = vpop.f32.mrf.mxu0
      %v1418 = vadd.f32 %v427, %v1417
      %1419 = vmatmul.bf16.gmra.mxu0 %v933
      %v1420 = vpop.f32.mrf.mxu0
      %v1421 = vadd.f32 %v427, %v1420
      %v1422 = vpop.f32.mrf.mxu0
      %v1423 = vadd.f32 %v427, %v1422
      %1424 = vmatmul.bf16.gmra.mxu0 %v937
      %v1425 = vpop.f32.mrf.mxu0
      %v1426 = vadd.f32 %v427, %v1425
      %v1427 = vpop.f32.mrf.mxu0
      %v1428 = vadd.f32 %v427, %v1427
      %1429 = vdwg.mxu0
      %1430 = vmatpush.bf16.msra.mxu0 %v1212
      %1431 = vmatpush.bf16.msra.mxu0 %v1211
      %1432 = vmatpush.bf16.msra.mxu0 %v1210
      %1433 = vmatpush.bf16.msra.mxu0 %v1209
      %1434 = vmatpush.bf16.msra.mxu0 %v1208
      %1435 = vmatpush.bf16.msra.mxu0 %v1207
      %1436 = vmatpush.bf16.msra.mxu0 %v1206
      %1437 = vmatpush.bf16.msra.mxu0 %v1205
      %1438 = vmatmul.bf16.gmra.mxu0 %v814
      %v1439 = vpop.f32.mrf.mxu0
      %v1440 = vadd.f32 %v1271, %v1439
      %v1441 = vpop.f32.mrf.mxu0
      %v1442 = vadd.f32 %v1273, %v1441
      %1443 = vmatmul.bf16.gmra.mxu0 %v818
      %v1444 = vpop.f32.mrf.mxu0
      %v1445 = vadd.f32 %v1276, %v1444
      %v1446 = vpop.f32.mrf.mxu0
      %v1447 = vadd.f32 %v1278, %v1446
      %1448 = vmatmul.bf16.gmra.mxu0 %v822
      %v1449 = vpop.f32.mrf.mxu0
      %v1450 = vadd.f32 %v1281, %v1449
      %v1451 = vpop.f32.mrf.mxu0
      %v1452 = vadd.f32 %v1283, %v1451
      %1453 = vmatmul.bf16.gmra.mxu0 %v826
      %v1454 = vpop.f32.mrf.mxu0
      %v1455 = vadd.f32 %v1286, %v1454
      %v1456 = vpop.f32.mrf.mxu0
      %v1457 = vadd.f32 %v1288, %v1456
      %1458 = vmatmul.bf16.gmra.mxu0 %v830
      %v1459 = vpop.f32.mrf.mxu0
      %v1460 = vadd.f32 %v1291, %v1459
      %v1461 = vpop.f32.mrf.mxu0
      %v1462 = vadd.f32 %v1293, %v1461
      %1463 = vmatmul.bf16.gmra.mxu0 %v834
      %v1464 = vpop.f32.mrf.mxu0
      %v1465 = vadd.f32 %v1296, %v1464
      %v1466 = vpop.f32.mrf.mxu0
      %v1467 = vadd.f32 %v1298, %v1466
      %1468 = vmatmul.bf16.gmra.mxu0 %v838
      %v1469 = vpop.f32.mrf.mxu0
      %v1470 = vadd.f32 %v1301, %v1469
      %v1471 = vpop.f32.mrf.mxu0
      %v1472 = vadd.f32 %v1303, %v1471
      %1473 = vmatmul.bf16.gmra.mxu0 %v842
      %v1474 = vpop.f32.mrf.mxu0
      %v1475 = vadd.f32 %v1306, %v1474
      %v1476 = vpop.f32.mrf.mxu0
      %v1477 = vadd.f32 %v1308, %v1476
      %1478 = vmatmul.bf16.gmra.mxu0 %v846
      %v1479 = vpop.f32.mrf.mxu0
      %v1480 = vadd.f32 %v1311, %v1479
      %v1481 = vpop.f32.mrf.mxu0
      %v1482 = vadd.f32 %v1313, %v1481
      %1483 = vmatmul.bf16.gmra.mxu0 %v850
      %v1484 = vpop.f32.mrf.mxu0
      %v1485 = vadd.f32 %v1316, %v1484
      %v1486 = vpop.f32.mrf.mxu0
      %v1487 = vadd.f32 %v1318, %v1486
      %1488 = vmatmul.bf16.gmra.mxu0 %v854
      %v1489 = vpop.f32.mrf.mxu0
      %v1490 = vadd.f32 %v1321, %v1489
      %v1491 = vpop.f32.mrf.mxu0
      %v1492 = vadd.f32 %v1323, %v1491
      %1493 = vmatmul.bf16.gmra.mxu0 %v858
      %v1494 = vpop.f32.mrf.mxu0
      %v1495 = vadd.f32 %v1326, %v1494
      %v1496 = vpop.f32.mrf.mxu0
      %v1497 = vadd.f32 %v1328, %v1496
      %1498 = vmatmul.bf16.gmra.mxu0 %v862
      %v1499 = vpop.f32.mrf.mxu0
      %v1500 = vadd.f32 %v1331, %v1499
      %v1501 = vpop.f32.mrf.mxu0
      %v1502 = vadd.f32 %v1333, %v1501
      %1503 = vmatmul.bf16.gmra.mxu0 %v866
      %v1504 = vpop.f32.mrf.mxu0
      %v1505 = vadd.f32 %v1336, %v1504
      %v1506 = vpop.f32.mrf.mxu0
      %v1507 = vadd.f32 %v1338, %v1506
      %1508 = vmatmul.bf16.gmra.mxu0 %v870
      %v1509 = vpop.f32.mrf.mxu0
      %v1510 = vadd.f32 %v1341, %v1509
      %v1511 = vpop.f32.mrf.mxu0
      %v1512 = vadd.f32 %v1343, %v1511
      %1513 = vmatmul.bf16.gmra.mxu0 %v874
      %v1514 = vpop.f32.mrf.mxu0
      %v1515 = vadd.f32 %v1346, %v1514
      %v1516 = vpop.f32.mrf.mxu0
      %v1517 = vadd.f32 %v1348, %v1516
      %1518 = vmatmul.bf16.gmra.mxu0 %v878
      %v1519 = vpop.f32.mrf.mxu0
      %v1520 = vadd.f32 %v1351, %v1519
      %v1521 = vpop.f32.mrf.mxu0
      %v1522 = vadd.f32 %v1353, %v1521
      %1523 = vmatmul.bf16.gmra.mxu0 %v882
      %v1524 = vpop.f32.mrf.mxu0
      %v1525 = vadd.f32 %v1356, %v1524
      %v1526 = vpop.f32.mrf.mxu0
      %v1527 = vadd.f32 %v1358, %v1526
      %1528 = vmatmul.bf16.gmra.mxu0 %v886
      %v1529 = vpop.f32.mrf.mxu0
      %v1530 = vadd.f32 %v1361, %v1529
      %v1531 = vpop.f32.mrf.mxu0
      %v1532 = vadd.f32 %v1363, %v1531
      %1533 = vmatmul.bf16.gmra.mxu0 %v890
      %v1534 = vpop.f32.mrf.mxu0
      %v1535 = vadd.f32 %v1366, %v1534
      %v1536 = vpop.f32.mrf.mxu0
      %v1537 = vadd.f32 %v1368, %v1536
      %1538 = vmatmul.bf16.gmra.mxu0 %v894
      %v1539 = vpop.f32.mrf.mxu0
      %v1540 = vadd.f32 %v1371, %v1539
      %v1541 = vpop.f32.mrf.mxu0
      %v1542 = vadd.f32 %v1373, %v1541
      %1543 = vmatmul.bf16.gmra.mxu0 %v898
      %v1544 = vpop.f32.mrf.mxu0
      %v1545 = vadd.f32 %v1376, %v1544
      %v1546 = vpop.f32.mrf.mxu0
      %v1547 = vadd.f32 %v1378, %v1546
      %1548 = vmatmul.bf16.gmra.mxu0 %v902
      %v1549 = vpop.f32.mrf.mxu0
      %v1550 = vadd.f32 %v1381, %v1549
      %v1551 = vpop.f32.mrf.mxu0
      %v1552 = vadd.f32 %v1383, %v1551
      %1553 = vmatmul.bf16.gmra.mxu0 %v906
      %v1554 = vpop.f32.mrf.mxu0
      %v1555 = vadd.f32 %v1386, %v1554
      %v1556 = vpop.f32.mrf.mxu0
      %v1557 = vadd.f32 %v1388, %v1556
      %1558 = vmatmul.bf16.gmra.mxu0 %v910
      %v1559 = vpop.f32.mrf.mxu0
      %v1560 = vadd.f32 %v1391, %v1559
      %v1561 = vpop.f32.mrf.mxu0
      %v1562 = vadd.f32 %v1393, %v1561
      %1563 = vmatmul.bf16.gmra.mxu0 %v914
      %v1564 = vpop.f32.mrf.mxu0
      %v1565 = vadd.f32 %v1396, %v1564
      %v1566 = vpop.f32.mrf.mxu0
      %v1567 = vadd.f32 %v1398, %v1566
      %1568 = vmatmul.bf16.gmra.mxu0 %v918
      %v1569 = vpop.f32.mrf.mxu0
      %v1570 = vadd.f32 %v1401, %v1569
      %v1571 = vpop.f32.mrf.mxu0
      %v1572 = vadd.f32 %v1403, %v1571
      %1573 = vmatmul.bf16.gmra.mxu0 %v922
      %v1574 = vpop.f32.mrf.mxu0
      %v1575 = vadd.f32 %v1406, %v1574
      %v1576 = vpop.f32.mrf.mxu0
      %v1577 = vadd.f32 %v1408, %v1576
      %1578 = vmatmul.bf16.gmra.mxu0 %v926
      %v1579 = vpop.f32.mrf.mxu0
      %v1580 = vadd.f32 %v1411, %v1579
      %v1581 = vpop.f32.mrf.mxu0
      %v1582 = vadd.f32 %v1413, %v1581
      %1583 = vmatmul.bf16.gmra.mxu0 %v930
      %v1584 = vpop.f32.mrf.mxu0
      %v1585 = vadd.f32 %v1416, %v1584
      %v1586 = vpop.f32.mrf.mxu0
      %v1587 = vadd.f32 %v1418, %v1586
      %1588 = vmatmul.bf16.gmra.mxu0 %v934
      %v1589 = vpop.f32.mrf.mxu0
      %v1590 = vadd.f32 %v1421, %v1589
      %v1591 = vpop.f32.mrf.mxu0
      %v1592 = vadd.f32 %v1423, %v1591
      %1593 = vmatmul.bf16.gmra.mxu0 %v938
      %v1594 = vpop.f32.mrf.mxu0
      %v1595 = vadd.f32 %v1426, %v1594
      %v1596 = vpop.f32.mrf.mxu0
      %v1597 = vadd.f32 %v1428, %v1596
      %1598 = vdwg.mxu0
      %1599 = vmatpush.bf16.msra.mxu0 %v1220
      %1600 = vmatpush.bf16.msra.mxu0 %v1219
      %1601 = vmatpush.bf16.msra.mxu0 %v1218
      %1602 = vmatpush.bf16.msra.mxu0 %v1217
      %1603 = vmatpush.bf16.msra.mxu0 %v1216
      %1604 = vmatpush.bf16.msra.mxu0 %v1215
      %1605 = vmatpush.bf16.msra.mxu0 %v1214
      %1606 = vmatpush.bf16.msra.mxu0 %v1213
      %1607 = vmatmul.bf16.gmra.mxu0 %v815
      %v1608 = vpop.f32.mrf.mxu0
      %v1609 = vadd.f32 %v1440, %v1608
      %v1610 = vpop.f32.mrf.mxu0
      %v1611 = vadd.f32 %v1442, %v1610
      %1612 = vmatmul.bf16.gmra.mxu0 %v819
      %v1613 = vpop.f32.mrf.mxu0
      %v1614 = vadd.f32 %v1445, %v1613
      %v1615 = vpop.f32.mrf.mxu0
      %v1616 = vadd.f32 %v1447, %v1615
      %1617 = vmatmul.bf16.gmra.mxu0 %v823
      %v1618 = vpop.f32.mrf.mxu0
      %v1619 = vadd.f32 %v1450, %v1618
      %v1620 = vpop.f32.mrf.mxu0
      %v1621 = vadd.f32 %v1452, %v1620
      %1622 = vmatmul.bf16.gmra.mxu0 %v827
      %v1623 = vpop.f32.mrf.mxu0
      %v1624 = vadd.f32 %v1455, %v1623
      %v1625 = vpop.f32.mrf.mxu0
      %v1626 = vadd.f32 %v1457, %v1625
      %1627 = vmatmul.bf16.gmra.mxu0 %v831
      %v1628 = vpop.f32.mrf.mxu0
      %v1629 = vadd.f32 %v1460, %v1628
      %v1630 = vpop.f32.mrf.mxu0
      %v1631 = vadd.f32 %v1462, %v1630
      %1632 = vmatmul.bf16.gmra.mxu0 %v835
      %v1633 = vpop.f32.mrf.mxu0
      %v1634 = vadd.f32 %v1465, %v1633
      %v1635 = vpop.f32.mrf.mxu0
      %v1636 = vadd.f32 %v1467, %v1635
      %1637 = vmatmul.bf16.gmra.mxu0 %v839
      %v1638 = vpop.f32.mrf.mxu0
      %v1639 = vadd.f32 %v1470, %v1638
      %v1640 = vpop.f32.mrf.mxu0
      %v1641 = vadd.f32 %v1472, %v1640
      %1642 = vmatmul.bf16.gmra.mxu0 %v843
      %v1643 = vpop.f32.mrf.mxu0
      %v1644 = vadd.f32 %v1475, %v1643
      %v1645 = vpop.f32.mrf.mxu0
      %v1646 = vadd.f32 %v1477, %v1645
      %1647 = vmatmul.bf16.gmra.mxu0 %v847
      %v1648 = vpop.f32.mrf.mxu0
      %v1649 = vadd.f32 %v1480, %v1648
      %v1650 = vpop.f32.mrf.mxu0
      %v1651 = vadd.f32 %v1482, %v1650
      %1652 = vmatmul.bf16.gmra.mxu0 %v851
      %v1653 = vpop.f32.mrf.mxu0
      %v1654 = vadd.f32 %v1485, %v1653
      %v1655 = vpop.f32.mrf.mxu0
      %v1656 = vadd.f32 %v1487, %v1655
      %1657 = vmatmul.bf16.gmra.mxu0 %v855
      %v1658 = vpop.f32.mrf.mxu0
      %v1659 = vadd.f32 %v1490, %v1658
      %v1660 = vpop.f32.mrf.mxu0
      %v1661 = vadd.f32 %v1492, %v1660
      %1662 = vmatmul.bf16.gmra.mxu0 %v859
      %v1663 = vpop.f32.mrf.mxu0
      %v1664 = vadd.f32 %v1495, %v1663
      %v1665 = vpop.f32.mrf.mxu0
      %v1666 = vadd.f32 %v1497, %v1665
      %1667 = vmatmul.bf16.gmra.mxu0 %v863
      %v1668 = vpop.f32.mrf.mxu0
      %v1669 = vadd.f32 %v1500, %v1668
      %v1670 = vpop.f32.mrf.mxu0
      %v1671 = vadd.f32 %v1502, %v1670
      %1672 = vmatmul.bf16.gmra.mxu0 %v867
      %v1673 = vpop.f32.mrf.mxu0
      %v1674 = vadd.f32 %v1505, %v1673
      %v1675 = vpop.f32.mrf.mxu0
      %v1676 = vadd.f32 %v1507, %v1675
      %1677 = vmatmul.bf16.gmra.mxu0 %v871
      %v1678 = vpop.f32.mrf.mxu0
      %v1679 = vadd.f32 %v1510, %v1678
      %v1680 = vpop.f32.mrf.mxu0
      %v1681 = vadd.f32 %v1512, %v1680
      %1682 = vmatmul.bf16.gmra.mxu0 %v875
      %v1683 = vpop.f32.mrf.mxu0
      %v1684 = vadd.f32 %v1515, %v1683
      %v1685 = vpop.f32.mrf.mxu0
      %v1686 = vadd.f32 %v1517, %v1685
      %1687 = vmatmul.bf16.gmra.mxu0 %v879
      %v1688 = vpop.f32.mrf.mxu0
      %v1689 = vadd.f32 %v1520, %v1688
      %v1690 = vpop.f32.mrf.mxu0
      %v1691 = vadd.f32 %v1522, %v1690
      %1692 = vmatmul.bf16.gmra.mxu0 %v883
      %v1693 = vpop.f32.mrf.mxu0
      %v1694 = vadd.f32 %v1525, %v1693
      %v1695 = vpop.f32.mrf.mxu0
      %v1696 = vadd.f32 %v1527, %v1695
      %1697 = vmatmul.bf16.gmra.mxu0 %v887
      %v1698 = vpop.f32.mrf.mxu0
      %v1699 = vadd.f32 %v1530, %v1698
      %v1700 = vpop.f32.mrf.mxu0
      %v1701 = vadd.f32 %v1532, %v1700
      %1702 = vmatmul.bf16.gmra.mxu0 %v891
      %v1703 = vpop.f32.mrf.mxu0
      %v1704 = vadd.f32 %v1535, %v1703
      %v1705 = vpop.f32.mrf.mxu0
      %v1706 = vadd.f32 %v1537, %v1705
      %1707 = vmatmul.bf16.gmra.mxu0 %v895
      %v1708 = vpop.f32.mrf.mxu0
      %v1709 = vadd.f32 %v1540, %v1708
      %v1710 = vpop.f32.mrf.mxu0
      %v1711 = vadd.f32 %v1542, %v1710
      %1712 = vmatmul.bf16.gmra.mxu0 %v899
      %v1713 = vpop.f32.mrf.mxu0
      %v1714 = vadd.f32 %v1545, %v1713
      %v1715 = vpop.f32.mrf.mxu0
      %v1716 = vadd.f32 %v1547, %v1715
      %1717 = vmatmul.bf16.gmra.mxu0 %v903
      %v1718 = vpop.f32.mrf.mxu0
      %v1719 = vadd.f32 %v1550, %v1718
      %v1720 = vpop.f32.mrf.mxu0
      %v1721 = vadd.f32 %v1552, %v1720
      %1722 = vmatmul.bf16.gmra.mxu0 %v907
      %v1723 = vpop.f32.mrf.mxu0
      %v1724 = vadd.f32 %v1555, %v1723
      %v1725 = vpop.f32.mrf.mxu0
      %v1726 = vadd.f32 %v1557, %v1725
      %1727 = vmatmul.bf16.gmra.mxu0 %v911
      %v1728 = vpop.f32.mrf.mxu0
      %v1729 = vadd.f32 %v1560, %v1728
      %v1730 = vpop.f32.mrf.mxu0
      %v1731 = vadd.f32 %v1562, %v1730
      %1732 = vmatmul.bf16.gmra.mxu0 %v915
      %v1733 = vpop.f32.mrf.mxu0
      %v1734 = vadd.f32 %v1565, %v1733
      %v1735 = vpop.f32.mrf.mxu0
      %v1736 = vadd.f32 %v1567, %v1735
      %1737 = vmatmul.bf16.gmra.mxu0 %v919
      %v1738 = vpop.f32.mrf.mxu0
      %v1739 = vadd.f32 %v1570, %v1738
      %v1740 = vpop.f32.mrf.mxu0
      %v1741 = vadd.f32 %v1572, %v1740
      %1742 = vmatmul.bf16.gmra.mxu0 %v923
      %v1743 = vpop.f32.mrf.mxu0
      %v1744 = vadd.f32 %v1575, %v1743
      %v1745 = vpop.f32.mrf.mxu0
      %v1746 = vadd.f32 %v1577, %v1745
      %1747 = vmatmul.bf16.gmra.mxu0 %v927
      %v1748 = vpop.f32.mrf.mxu0
      %v1749 = vadd.f32 %v1580, %v1748
      %v1750 = vpop.f32.mrf.mxu0
      %v1751 = vadd.f32 %v1582, %v1750
      %1752 = vmatmul.bf16.gmra.mxu0 %v931
      %v1753 = vpop.f32.mrf.mxu0
      %v1754 = vadd.f32 %v1585, %v1753
      %v1755 = vpop.f32.mrf.mxu0
      %v1756 = vadd.f32 %v1587, %v1755
      %1757 = vmatmul.bf16.gmra.mxu0 %v935
      %v1758 = vpop.f32.mrf.mxu0
      %v1759 = vadd.f32 %v1590, %v1758
      %v1760 = vpop.f32.mrf.mxu0
      %v1761 = vadd.f32 %v1592, %v1760
      %1762 = vmatmul.bf16.gmra.mxu0 %v939
      %v1763 = vpop.f32.mrf.mxu0
      %v1764 = vadd.f32 %v1595, %v1763
      %v1765 = vpop.f32.mrf.mxu0
      %v1766 = vadd.f32 %v1597, %v1765
      %1767 = vdwg.mxu0
      %1768 = vmatpush.bf16.msra.mxu0 %v1228
      %1769 = vmatpush.bf16.msra.mxu0 %v1227
      %1770 = vmatpush.bf16.msra.mxu0 %v1226
      %1771 = vmatpush.bf16.msra.mxu0 %v1225
      %1772 = vmatpush.bf16.msra.mxu0 %v1224
      %1773 = vmatpush.bf16.msra.mxu0 %v1223
      %1774 = vmatpush.bf16.msra.mxu0 %v1222
      %1775 = vmatpush.bf16.msra.mxu0 %v1221
      %1776 = vmatmul.bf16.gmra.mxu0 %v816
      %v1777 = vpop.f32.mrf.mxu0
      %v1778 = vadd.f32 %v1609, %v1777
      %v1779 = vpop.f32.mrf.mxu0
      %v1780 = vadd.f32 %v1611, %v1779
      %1781 = vmatmul.bf16.gmra.mxu0 %v820
      %v1782 = vpop.f32.mrf.mxu0
      %v1783 = vadd.f32 %v1614, %v1782
      %v1784 = vpop.f32.mrf.mxu0
      %v1785 = vadd.f32 %v1616, %v1784
      %1786 = vmatmul.bf16.gmra.mxu0 %v824
      %v1787 = vpop.f32.mrf.mxu0
      %v1788 = vadd.f32 %v1619, %v1787
      %v1789 = vpop.f32.mrf.mxu0
      %v1790 = vadd.f32 %v1621, %v1789
      %1791 = vmatmul.bf16.gmra.mxu0 %v828
      %v1792 = vpop.f32.mrf.mxu0
      %v1793 = vadd.f32 %v1624, %v1792
      %v1794 = vpop.f32.mrf.mxu0
      %v1795 = vadd.f32 %v1626, %v1794
      %1796 = vmatmul.bf16.gmra.mxu0 %v832
      %v1797 = vpop.f32.mrf.mxu0
      %v1798 = vadd.f32 %v1629, %v1797
      %v1799 = vpop.f32.mrf.mxu0
      %v1800 = vadd.f32 %v1631, %v1799
      %1801 = vmatmul.bf16.gmra.mxu0 %v836
      %v1802 = vpop.f32.mrf.mxu0
      %v1803 = vadd.f32 %v1634, %v1802
      %v1804 = vpop.f32.mrf.mxu0
      %v1805 = vadd.f32 %v1636, %v1804
      %1806 = vmatmul.bf16.gmra.mxu0 %v840
      %v1807 = vpop.f32.mrf.mxu0
      %v1808 = vadd.f32 %v1639, %v1807
      %v1809 = vpop.f32.mrf.mxu0
      %v1810 = vadd.f32 %v1641, %v1809
      %1811 = vmatmul.bf16.gmra.mxu0 %v844
      %v1812 = vpop.f32.mrf.mxu0
      %v1813 = vadd.f32 %v1644, %v1812
      %v1814 = vpop.f32.mrf.mxu0
      %v1815 = vadd.f32 %v1646, %v1814
      %1816 = vmatmul.bf16.gmra.mxu0 %v848
      %v1817 = vpop.f32.mrf.mxu0
      %v1818 = vadd.f32 %v1649, %v1817
      %v1819 = vpop.f32.mrf.mxu0
      %v1820 = vadd.f32 %v1651, %v1819
      %1821 = vmatmul.bf16.gmra.mxu0 %v852
      %v1822 = vpop.f32.mrf.mxu0
      %v1823 = vadd.f32 %v1654, %v1822
      %v1824 = vpop.f32.mrf.mxu0
      %v1825 = vadd.f32 %v1656, %v1824
      %1826 = vmatmul.bf16.gmra.mxu0 %v856
      %v1827 = vpop.f32.mrf.mxu0
      %v1828 = vadd.f32 %v1659, %v1827
      %v1829 = vpop.f32.mrf.mxu0
      %v1830 = vadd.f32 %v1661, %v1829
      %1831 = vmatmul.bf16.gmra.mxu0 %v860
      %v1832 = vpop.f32.mrf.mxu0
      %v1833 = vadd.f32 %v1664, %v1832
      %v1834 = vpop.f32.mrf.mxu0
      %v1835 = vadd.f32 %v1666, %v1834
      %1836 = vmatmul.bf16.gmra.mxu0 %v864
      %v1837 = vpop.f32.mrf.mxu0
      %v1838 = vadd.f32 %v1669, %v1837
      %v1839 = vpop.f32.mrf.mxu0
      %v1840 = vadd.f32 %v1671, %v1839
      %1841 = vmatmul.bf16.gmra.mxu0 %v868
      %v1842 = vpop.f32.mrf.mxu0
      %v1843 = vadd.f32 %v1674, %v1842
      %v1844 = vpop.f32.mrf.mxu0
      %v1845 = vadd.f32 %v1676, %v1844
      %1846 = vmatmul.bf16.gmra.mxu0 %v872
      %v1847 = vpop.f32.mrf.mxu0
      %v1848 = vadd.f32 %v1679, %v1847
      %v1849 = vpop.f32.mrf.mxu0
      %v1850 = vadd.f32 %v1681, %v1849
      %1851 = vmatmul.bf16.gmra.mxu0 %v876
      %v1852 = vpop.f32.mrf.mxu0
      %v1853 = vadd.f32 %v1684, %v1852
      %v1854 = vpop.f32.mrf.mxu0
      %v1855 = vadd.f32 %v1686, %v1854
      %1856 = vmatmul.bf16.gmra.mxu0 %v880
      %v1857 = vpop.f32.mrf.mxu0
      %v1858 = vadd.f32 %v1689, %v1857
      %v1859 = vpop.f32.mrf.mxu0
      %v1860 = vadd.f32 %v1691, %v1859
      %1861 = vmatmul.bf16.gmra.mxu0 %v884
      %v1862 = vpop.f32.mrf.mxu0
      %v1863 = vadd.f32 %v1694, %v1862
      %v1864 = vpop.f32.mrf.mxu0
      %v1865 = vadd.f32 %v1696, %v1864
      %1866 = vmatmul.bf16.gmra.mxu0 %v888
      %v1867 = vpop.f32.mrf.mxu0
      %v1868 = vadd.f32 %v1699, %v1867
      %v1869 = vpop.f32.mrf.mxu0
      %v1870 = vadd.f32 %v1701, %v1869
      %1871 = vmatmul.bf16.gmra.mxu0 %v892
      %v1872 = vpop.f32.mrf.mxu0
      %v1873 = vadd.f32 %v1704, %v1872
      %v1874 = vpop.f32.mrf.mxu0
      %v1875 = vadd.f32 %v1706, %v1874
      %1876 = vmatmul.bf16.gmra.mxu0 %v896
      %v1877 = vpop.f32.mrf.mxu0
      %v1878 = vadd.f32 %v1709, %v1877
      %v1879 = vpop.f32.mrf.mxu0
      %v1880 = vadd.f32 %v1711, %v1879
      %1881 = vmatmul.bf16.gmra.mxu0 %v900
      %v1882 = vpop.f32.mrf.mxu0
      %v1883 = vadd.f32 %v1714, %v1882
      %v1884 = vpop.f32.mrf.mxu0
      %v1885 = vadd.f32 %v1716, %v1884
      %1886 = vmatmul.bf16.gmra.mxu0 %v904
      %v1887 = vpop.f32.mrf.mxu0
      %v1888 = vadd.f32 %v1719, %v1887
      %v1889 = vpop.f32.mrf.mxu0
      %v1890 = vadd.f32 %v1721, %v1889
      %1891 = vmatmul.bf16.gmra.mxu0 %v908
      %v1892 = vpop.f32.mrf.mxu0
      %v1893 = vadd.f32 %v1724, %v1892
      %v1894 = vpop.f32.mrf.mxu0
      %v1895 = vadd.f32 %v1726, %v1894
      %1896 = vmatmul.bf16.gmra.mxu0 %v912
      %v1897 = vpop.f32.mrf.mxu0
      %v1898 = vadd.f32 %v1729, %v1897
      %v1899 = vpop.f32.mrf.mxu0
      %v1900 = vadd.f32 %v1731, %v1899
      %1901 = vmatmul.bf16.gmra.mxu0 %v916
      %v1902 = vpop.f32.mrf.mxu0
      %v1903 = vadd.f32 %v1734, %v1902
      %v1904 = vpop.f32.mrf.mxu0
      %v1905 = vadd.f32 %v1736, %v1904
      %1906 = vmatmul.bf16.gmra.mxu0 %v920
      %v1907 = vpop.f32.mrf.mxu0
      %v1908 = vadd.f32 %v1739, %v1907
      %v1909 = vpop.f32.mrf.mxu0
      %v1910 = vadd.f32 %v1741, %v1909
      %1911 = vmatmul.bf16.gmra.mxu0 %v924
      %v1912 = vpop.f32.mrf.mxu0
      %v1913 = vadd.f32 %v1744, %v1912
      %v1914 = vpop.f32.mrf.mxu0
      %v1915 = vadd.f32 %v1746, %v1914
      %1916 = vmatmul.bf16.gmra.mxu0 %v928
      %v1917 = vpop.f32.mrf.mxu0
      %v1918 = vadd.f32 %v1749, %v1917
      %v1919 = vpop.f32.mrf.mxu0
      %v1920 = vadd.f32 %v1751, %v1919
      %1921 = vmatmul.bf16.gmra.mxu0 %v932
      %v1922 = vpop.f32.mrf.mxu0
      %v1923 = vadd.f32 %v1754, %v1922
      %v1924 = vpop.f32.mrf.mxu0
      %v1925 = vadd.f32 %v1756, %v1924
      %1926 = vmatmul.bf16.gmra.mxu0 %v936
      %v1927 = vpop.f32.mrf.mxu0
      %v1928 = vadd.f32 %v1759, %v1927
      %v1929 = vpop.f32.mrf.mxu0
      %v1930 = vadd.f32 %v1761, %v1929
      %1931 = vmatmul.bf16.gmra.mxu0 %v940
      %v1932 = vpop.f32.mrf.mxu0
      %v1933 = vadd.f32 %v1764, %v1932
      %v1934 = vpop.f32.mrf.mxu0
      %v1935 = vadd.f32 %v1766, %v1934
      %1936 = vdwg.mxu0
      %v1937 = vsub.f32 0.0, %v1778
      %v1938 = vsub.f32 0.0, %v1780
      %v1939 = vsub.f32 0.0, %v1783
      %v1940 = vsub.f32 0.0, %v1785
      %v1941 = vsub.f32 0.0, %v1788
      %v1942 = vsub.f32 0.0, %v1790
      %v1943 = vsub.f32 0.0, %v1793
      %v1944 = vsub.f32 0.0, %v1795
      %v1945 = vsub.f32 0.0, %v1798
      %v1946 = vsub.f32 0.0, %v1800
      %v1947 = vsub.f32 0.0, %v1803
      %v1948 = vsub.f32 0.0, %v1805
      %v1949 = vsub.f32 0.0, %v1808
      %v1950 = vsub.f32 0.0, %v1810
      %v1951 = vsub.f32 0.0, %v1813
      %v1952 = vsub.f32 0.0, %v1815
      %v1953 = vsub.f32 0.0, %v1818
      %v1954 = vsub.f32 0.0, %v1820
      %v1955 = vsub.f32 0.0, %v1823
      %v1956 = vsub.f32 0.0, %v1825
      %v1957 = vsub.f32 0.0, %v1828
      %v1958 = vsub.f32 0.0, %v1830
      %v1959 = vsub.f32 0.0, %v1833
      %v1960 = vsub.f32 0.0, %v1835
      %v1961 = vsub.f32 0.0, %v1838
      %v1962 = vsub.f32 0.0, %v1840
      %v1963 = vsub.f32 0.0, %v1843
      %v1964 = vsub.f32 0.0, %v1845
      %v1965 = vsub.f32 0.0, %v1848
      %v1966 = vsub.f32 0.0, %v1850
      %v1967 = vsub.f32 0.0, %v1853
      %v1968 = vsub.f32 0.0, %v1855
      %v1969 = vsub.f32 0.0, %v1858
      %v1970 = vsub.f32 0.0, %v1860
      %v1971 = vsub.f32 0.0, %v1863
      %v1972 = vsub.f32 0.0, %v1865
      %v1973 = vsub.f32 0.0, %v1868
      %v1974 = vsub.f32 0.0, %v1870
      %v1975 = vsub.f32 0.0, %v1873
      %v1976 = vsub.f32 0.0, %v1875
      %v1977 = vsub.f32 0.0, %v1878
      %v1978 = vsub.f32 0.0, %v1880
      %v1979 = vsub.f32 0.0, %v1883
      %v1980 = vsub.f32 0.0, %v1885
      %v1981 = vsub.f32 0.0, %v1888
      %v1982 = vsub.f32 0.0, %v1890
      %v1983 = vsub.f32 0.0, %v1893
      %v1984 = vsub.f32 0.0, %v1895
      %v1985 = vsub.f32 0.0, %v1898
      %v1986 = vsub.f32 0.0, %v1900
      %v1987 = vsub.f32 0.0, %v1903
      %v1988 = vsub.f32 0.0, %v1905
      %v1989 = vsub.f32 0.0, %v1908
      %v1990 = vsub.f32 0.0, %v1910
      %v1991 = vsub.f32 0.0, %v1913
      %v1992 = vsub.f32 0.0, %v1915
      %v1993 = vsub.f32 0.0, %v1918
      %v1994 = vsub.f32 0.0, %v1920
      %v1995 = vsub.f32 0.0, %v1923
      %v1996 = vsub.f32 0.0, %v1925
      %v1997 = vsub.f32 0.0, %v1928
      %v1998 = vsub.f32 0.0, %v1930
      %v1999 = vsub.f32 0.0, %v1933
      %v2000 = vsub.f32 0.0, %v1935
      %v2001 = vmul.f32 %v1937, 1.442695
      %v2002 = vpow.pop %v2001
      %v2003 = vmul.f32 %v1938, 1.442695
      %v2004 = vpow.pop %v2003
      %v2005 = vmul.f32 %v1939, 1.442695
      %v2006 = vpow.pop %v2005
      %v2007 = vmul.f32 %v1940, 1.442695
      %v2008 = vpow.pop %v2007
      %v2009 = vmul.f32 %v1941, 1.442695
      %v2010 = vpow.pop %v2009
      %v2011 = vmul.f32 %v1942, 1.442695
      %v2012 = vpow.pop %v2011
      %v2013 = vmul.f32 %v1943, 1.442695
      %v2014 = vpow.pop %v2013
      %v2015 = vmul.f32 %v1944, 1.442695
      %v2016 = vpow.pop %v2015
      %v2017 = vmul.f32 %v1945, 1.442695
      %v2018 = vpow.pop %v2017
      %v2019 = vmul.f32 %v1946, 1.442695
      %v2020 = vpow.pop %v2019
      %v2021 = vmul.f32 %v1947, 1.442695
      %v2022 = vpow.pop %v2021
      %v2023 = vmul.f32 %v1948, 1.442695
      %v2024 = vpow.pop %v2023
      %v2025 = vmul.f32 %v1949, 1.442695
      %v2026 = vpow.pop %v2025
      %v2027 = vmul.f32 %v1950, 1.442695
      %v2028 = vpow.pop %v2027
      %v2029 = vmul.f32 %v1951, 1.442695
      %v2030 = vpow.pop %v2029
      %v2031 = vmul.f32 %v1952, 1.442695
      %v2032 = vpow.pop %v2031
      %v2033 = vmul.f32 %v1953, 1.442695
      %v2034 = vpow.pop %v2033
      %v2035 = vmul.f32 %v1954, 1.442695
      %v2036 = vpow.pop %v2035
      %v2037 = vmul.f32 %v1955, 1.442695
      %v2038 = vpow.pop %v2037
      %v2039 = vmul.f32 %v1956, 1.442695
      %v2040 = vpow.pop %v2039
      %v2041 = vmul.f32 %v1957, 1.442695
      %v2042 = vpow.pop %v2041
      %v2043 = vmul.f32 %v1958, 1.442695
      %v2044 = vpow.pop %v2043
      %v2045 = vmul.f32 %v1959, 1.442695
      %v2046 = vpow.pop %v2045
      %v2047 = vmul.f32 %v1960, 1.442695
      %v2048 = vpow.pop %v2047
      %v2049 = vmul.f32 %v1961, 1.442695
      %v2050 = vpow.pop %v2049
      %v2051 = vmul.f32 %v1962, 1.442695
      %v2052 = vpow.pop %v2051
      %v2053 = vmul.f32 %v1963, 1.442695
      %v2054 = vpow.pop %v2053
      %v2055 = vmul.f32 %v1964, 1.442695
      %v2056 = vpow.pop %v2055
      %v2057 = vmul.f32 %v1965, 1.442695
      %v2058 = vpow.pop %v2057
      %v2059 = vmul.f32 %v1966, 1.442695
      %v2060 = vpow.pop %v2059
      %v2061 = vmul.f32 %v1967, 1.442695
      %v2062 = vpow.pop %v2061
      %v2063 = vmul.f32 %v1968, 1.442695
      %v2064 = vpow.pop %v2063
      %v2065 = vmul.f32 %v1969, 1.442695
      %v2066 = vpow.pop %v2065
      %v2067 = vmul.f32 %v1970, 1.442695
      %v2068 = vpow.pop %v2067
      %v2069 = vmul.f32 %v1971, 1.442695
      %v2070 = vpow.pop %v2069
      %v2071 = vmul.f32 %v1972, 1.442695
      %v2072 = vpow.pop %v2071
      %v2073 = vmul.f32 %v1973, 1.442695
      %v2074 = vpow.pop %v2073
      %v2075 = vmul.f32 %v1974, 1.442695
      %v2076 = vpow.pop %v2075
      %v2077 = vmul.f32 %v1975, 1.442695
      %v2078 = vpow.pop %v2077
      %v2079 = vmul.f32 %v1976, 1.442695
      %v2080 = vpow.pop %v2079
      %v2081 = vmul.f32 %v1977, 1.442695
      %v2082 = vpow.pop %v2081
      %v2083 = vmul.f32 %v1978, 1.442695
      %v2084 = vpow.pop %v2083
      %v2085 = vmul.f32 %v1979, 1.442695
      %v2086 = vpow.pop %v2085
      %v2087 = vmul.f32 %v1980, 1.442695
      %v2088 = vpow.pop %v2087
      %v2089 = vmul.f32 %v1981, 1.442695
      %v2090 = vpow.pop %v2089
      %v2091 = vmul.f32 %v1982, 1.442695
      %v2092 = vpow.pop %v2091
      %v2093 = vmul.f32 %v1983, 1.442695
      %v2094 = vpow.pop %v2093
      %v2095 = vmul.f32 %v1984, 1.442695
      %v2096 = vpow.pop %v2095
      %v2097 = vmul.f32 %v1985, 1.442695
      %v2098 = vpow.pop %v2097
      %v2099 = vmul.f32 %v1986, 1.442695
      %v2100 = vpow.pop %v2099
      %v2101 = vmul.f32 %v1987, 1.442695
      %v2102 = vpow.pop %v2101
      %v2103 = vmul.f32 %v1988, 1.442695
      %v2104 = vpow.pop %v2103
      %v2105 = vmul.f32 %v1989, 1.442695
      %v2106 = vpow.pop %v2105
      %v2107 = vmul.f32 %v1990, 1.442695
      %v2108 = vpow.pop %v2107
      %v2109 = vmul.f32 %v1991, 1.442695
      %v2110 = vpow.pop %v2109
      %v2111 = vmul.f32 %v1992, 1.442695
      %v2112 = vpow.pop %v2111
      %v2113 = vmul.f32 %v1993, 1.442695
      %v2114 = vpow.pop %v2113
      %v2115 = vmul.f32 %v1994, 1.442695
      %v2116 = vpow.pop %v2115
      %v2117 = vmul.f32 %v1995, 1.442695
      %v2118 = vpow.pop %v2117
      %v2119 = vmul.f32 %v1996, 1.442695
      %v2120 = vpow.pop %v2119
      %v2121 = vmul.f32 %v1997, 1.442695
      %v2122 = vpow.pop %v2121
      %v2123 = vmul.f32 %v1998, 1.442695
      %v2124 = vpow.pop %v2123
      %v2125 = vmul.f32 %v1999, 1.442695
      %v2126 = vpow.pop %v2125
      %v2127 = vmul.f32 %v2000, 1.442695
      %v2128 = vpow.pop %v2127
      %v2129 = vadd.f32 %v2002, 1.0
      %v2130 = vadd.f32 %v2004, 1.0
      %v2131 = vadd.f32 %v2006, 1.0
      %v2132 = vadd.f32 %v2008, 1.0
      %v2133 = vadd.f32 %v2010, 1.0
      %v2134 = vadd.f32 %v2012, 1.0
      %v2135 = vadd.f32 %v2014, 1.0
      %v2136 = vadd.f32 %v2016, 1.0
      %v2137 = vadd.f32 %v2018, 1.0
      %v2138 = vadd.f32 %v2020, 1.0
      %v2139 = vadd.f32 %v2022, 1.0
      %v2140 = vadd.f32 %v2024, 1.0
      %v2141 = vadd.f32 %v2026, 1.0
      %v2142 = vadd.f32 %v2028, 1.0
      %v2143 = vadd.f32 %v2030, 1.0
      %v2144 = vadd.f32 %v2032, 1.0
      %v2145 = vadd.f32 %v2034, 1.0
      %v2146 = vadd.f32 %v2036, 1.0
      %v2147 = vadd.f32 %v2038, 1.0
      %v2148 = vadd.f32 %v2040, 1.0
      %v2149 = vadd.f32 %v2042, 1.0
      %v2150 = vadd.f32 %v2044, 1.0
      %v2151 = vadd.f32 %v2046, 1.0
      %v2152 = vadd.f32 %v2048, 1.0
      %v2153 = vadd.f32 %v2050, 1.0
      %v2154 = vadd.f32 %v2052, 1.0
      %v2155 = vadd.f32 %v2054, 1.0
      %v2156 = vadd.f32 %v2056, 1.0
      %v2157 = vadd.f32 %v2058, 1.0
      %v2158 = vadd.f32 %v2060, 1.0
      %v2159 = vadd.f32 %v2062, 1.0
      %v2160 = vadd.f32 %v2064, 1.0
      %v2161 = vadd.f32 %v2066, 1.0
      %v2162 = vadd.f32 %v2068, 1.0
      %v2163 = vadd.f32 %v2070, 1.0
      %v2164 = vadd.f32 %v2072, 1.0
      %v2165 = vadd.f32 %v2074, 1.0
      %v2166 = vadd.f32 %v2076, 1.0
      %v2167 = vadd.f32 %v2078, 1.0
      %v2168 = vadd.f32 %v2080, 1.0
      %v2169 = vadd.f32 %v2082, 1.0
      %v2170 = vadd.f32 %v2084, 1.0
      %v2171 = vadd.f32 %v2086, 1.0
      %v2172 = vadd.f32 %v2088, 1.0
      %v2173 = vadd.f32 %v2090, 1.0
      %v2174 = vadd.f32 %v2092, 1.0
      %v2175 = vadd.f32 %v2094, 1.0
      %v2176 = vadd.f32 %v2096, 1.0
      %v2177 = vadd.f32 %v2098, 1.0
      %v2178 = vadd.f32 %v2100, 1.0
      %v2179 = vadd.f32 %v2102, 1.0
      %v2180 = vadd.f32 %v2104, 1.0
      %v2181 = vadd.f32 %v2106, 1.0
      %v2182 = vadd.f32 %v2108, 1.0
      %v2183 = vadd.f32 %v2110, 1.0
      %v2184 = vadd.f32 %v2112, 1.0
      %v2185 = vadd.f32 %v2114, 1.0
      %v2186 = vadd.f32 %v2116, 1.0
      %v2187 = vadd.f32 %v2118, 1.0
      %v2188 = vadd.f32 %v2120, 1.0
      %v2189 = vadd.f32 %v2122, 1.0
      %v2190 = vadd.f32 %v2124, 1.0
      %v2191 = vadd.f32 %v2126, 1.0
      %v2192 = vadd.f32 %v2128, 1.0
      %v2193 = vrcp.pop %v2129
      %v2194 = vmul.f32 %v2129, %v2193
      %v2195 = vsub.f32 1.0, %v2194
      %v2196 = vmul.f32 %v2193, %v2195
      %v2197 = vadd.f32 %v2193, %v2196
      %vm2198 = vweird.f32 %v2129
      %vm2199 = vweird.f32 %v2193
      %vm2200 = vmor %vm2198, %vm2199
      %v2201 = vsel %vm2200, %v2193, %v2197
      %v2202 = vand.u32 2147483647, %v2129
      %vm2203 = vcmp.eq.f32.partialorder %v2202, 8.507059e+37
      %v2204 = vand.u32 %v2129, 2147483648
      %v2205 = vor.u32 1.1754944e-38, %v2204
      %v2206 = vsel %vm2203, %v2205, %v2201
      %v2207 = vmul.f32 1.0, %v2206
      %v2208 = vrcp.pop %v2130
      %v2209 = vmul.f32 %v2130, %v2208
      %v2210 = vsub.f32 1.0, %v2209
      %v2211 = vmul.f32 %v2208, %v2210
      %v2212 = vadd.f32 %v2208, %v2211
      %vm2213 = vweird.f32 %v2130
      %vm2214 = vweird.f32 %v2208
      %vm2215 = vmor %vm2213, %vm2214
      %v2216 = vsel %vm2215, %v2208, %v2212
      %v2217 = vand.u32 2147483647, %v2130
      %vm2218 = vcmp.eq.f32.partialorder %v2217, 8.507059e+37
      %v2219 = vand.u32 %v2130, 2147483648
      %v2220 = vor.u32 1.1754944e-38, %v2219
      %v2221 = vsel %vm2218, %v2220, %v2216
      %v2222 = vmul.f32 1.0, %v2221
      %v2223 = vrcp.pop %v2131
      %v2224 = vmul.f32 %v2131, %v2223
      %v2225 = vsub.f32 1.0, %v2224
      %v2226 = vmul.f32 %v2223, %v2225
      %v2227 = vadd.f32 %v2223, %v2226
      %vm2228 = vweird.f32 %v2131
      %vm2229 = vweird.f32 %v2223
      %vm2230 = vmor %vm2228, %vm2229
      %v2231 = vsel %vm2230, %v2223, %v2227
      %v2232 = vand.u32 2147483647, %v2131
      %vm2233 = vcmp.eq.f32.partialorder %v2232, 8.507059e+37
      %v2234 = vand.u32 %v2131, 2147483648
      %v2235 = vor.u32 1.1754944e-38, %v2234
      %v2236 = vsel %vm2233, %v2235, %v2231
      %v2237 = vmul.f32 1.0, %v2236
      %v2238 = vrcp.pop %v2132
      %v2239 = vmul.f32 %v2132, %v2238
      %v2240 = vsub.f32 1.0, %v2239
      %v2241 = vmul.f32 %v2238, %v2240
      %v2242 = vadd.f32 %v2238, %v2241
      %vm2243 = vweird.f32 %v2132
      %vm2244 = vweird.f32 %v2238
      %vm2245 = vmor %vm2243, %vm2244
      %v2246 = vsel %vm2245, %v2238, %v2242
      %v2247 = vand.u32 2147483647, %v2132
      %vm2248 = vcmp.eq.f32.partialorder %v2247, 8.507059e+37
      %v2249 = vand.u32 %v2132, 2147483648
      %v2250 = vor.u32 1.1754944e-38, %v2249
      %v2251 = vsel %vm2248, %v2250, %v2246
      %v2252 = vmul.f32 1.0, %v2251
      %v2253 = vrcp.pop %v2133
      %v2254 = vmul.f32 %v2133, %v2253
      %v2255 = vsub.f32 1.0, %v2254
      %v2256 = vmul.f32 %v2253, %v2255
      %v2257 = vadd.f32 %v2253, %v2256
      %vm2258 = vweird.f32 %v2133
      %vm2259 = vweird.f32 %v2253
      %vm2260 = vmor %vm2258, %vm2259
      %v2261 = vsel %vm2260, %v2253, %v2257
      %v2262 = vand.u32 2147483647, %v2133
      %vm2263 = vcmp.eq.f32.partialorder %v2262, 8.507059e+37
      %v2264 = vand.u32 %v2133, 2147483648
      %v2265 = vor.u32 1.1754944e-38, %v2264
      %v2266 = vsel %vm2263, %v2265, %v2261
      %v2267 = vmul.f32 1.0, %v2266
      %v2268 = vrcp.pop %v2134
      %v2269 = vmul.f32 %v2134, %v2268
      %v2270 = vsub.f32 1.0, %v2269
      %v2271 = vmul.f32 %v2268, %v2270
      %v2272 = vadd.f32 %v2268, %v2271
      %vm2273 = vweird.f32 %v2134
      %vm2274 = vweird.f32 %v2268
      %vm2275 = vmor %vm2273, %vm2274
      %v2276 = vsel %vm2275, %v2268, %v2272
      %v2277 = vand.u32 2147483647, %v2134
      %vm2278 = vcmp.eq.f32.partialorder %v2277, 8.507059e+37
      %v2279 = vand.u32 %v2134, 2147483648
      %v2280 = vor.u32 1.1754944e-38, %v2279
      %v2281 = vsel %vm2278, %v2280, %v2276
      %v2282 = vmul.f32 1.0, %v2281
      %v2283 = vrcp.pop %v2135
      %v2284 = vmul.f32 %v2135, %v2283
      %v2285 = vsub.f32 1.0, %v2284
      %v2286 = vmul.f32 %v2283, %v2285
      %v2287 = vadd.f32 %v2283, %v2286
      %vm2288 = vweird.f32 %v2135
      %vm2289 = vweird.f32 %v2283
      %vm2290 = vmor %vm2288, %vm2289
      %v2291 = vsel %vm2290, %v2283, %v2287
      %v2292 = vand.u32 2147483647, %v2135
      %vm2293 = vcmp.eq.f32.partialorder %v2292, 8.507059e+37
      %v2294 = vand.u32 %v2135, 2147483648
      %v2295 = vor.u32 1.1754944e-38, %v2294
      %v2296 = vsel %vm2293, %v2295, %v2291
      %v2297 = vmul.f32 1.0, %v2296
      %v2298 = vrcp.pop %v2136
      %v2299 = vmul.f32 %v2136, %v2298
      %v2300 = vsub.f32 1.0, %v2299
      %v2301 = vmul.f32 %v2298, %v2300
      %v2302 = vadd.f32 %v2298, %v2301
      %vm2303 = vweird.f32 %v2136
      %vm2304 = vweird.f32 %v2298
      %vm2305 = vmor %vm2303, %vm2304
      %v2306 = vsel %vm2305, %v2298, %v2302
      %v2307 = vand.u32 2147483647, %v2136
      %vm2308 = vcmp.eq.f32.partialorder %v2307, 8.507059e+37
      %v2309 = vand.u32 %v2136, 2147483648
      %v2310 = vor.u32 1.1754944e-38, %v2309
      %v2311 = vsel %vm2308, %v2310, %v2306
      %v2312 = vmul.f32 1.0, %v2311
      %v2313 = vrcp.pop %v2137
      %v2314 = vmul.f32 %v2137, %v2313
      %v2315 = vsub.f32 1.0, %v2314
      %v2316 = vmul.f32 %v2313, %v2315
      %v2317 = vadd.f32 %v2313, %v2316
      %vm2318 = vweird.f32 %v2137
      %vm2319 = vweird.f32 %v2313
      %vm2320 = vmor %vm2318, %vm2319
      %v2321 = vsel %vm2320, %v2313, %v2317
      %v2322 = vand.u32 2147483647, %v2137
      %vm2323 = vcmp.eq.f32.partialorder %v2322, 8.507059e+37
      %v2324 = vand.u32 %v2137, 2147483648
      %v2325 = vor.u32 1.1754944e-38, %v2324
      %v2326 = vsel %vm2323, %v2325, %v2321
      %v2327 = vmul.f32 1.0, %v2326
      %v2328 = vrcp.pop %v2138
      %v2329 = vmul.f32 %v2138, %v2328
      %v2330 = vsub.f32 1.0, %v2329
      %v2331 = vmul.f32 %v2328, %v2330
      %v2332 = vadd.f32 %v2328, %v2331
      %vm2333 = vweird.f32 %v2138
      %vm2334 = vweird.f32 %v2328
      %vm2335 = vmor %vm2333, %vm2334
      %v2336 = vsel %vm2335, %v2328, %v2332
      %v2337 = vand.u32 2147483647, %v2138
      %vm2338 = vcmp.eq.f32.partialorder %v2337, 8.507059e+37
      %v2339 = vand.u32 %v2138, 2147483648
      %v2340 = vor.u32 1.1754944e-38, %v2339
      %v2341 = vsel %vm2338, %v2340, %v2336
      %v2342 = vmul.f32 1.0, %v2341
      %v2343 = vrcp.pop %v2139
      %v2344 = vmul.f32 %v2139, %v2343
      %v2345 = vsub.f32 1.0, %v2344
      %v2346 = vmul.f32 %v2343, %v2345
      %v2347 = vadd.f32 %v2343, %v2346
      %vm2348 = vweird.f32 %v2139
      %vm2349 = vweird.f32 %v2343
      %vm2350 = vmor %vm2348, %vm2349
      %v2351 = vsel %vm2350, %v2343, %v2347
      %v2352 = vand.u32 2147483647, %v2139
      %vm2353 = vcmp.eq.f32.partialorder %v2352, 8.507059e+37
      %v2354 = vand.u32 %v2139, 2147483648
      %v2355 = vor.u32 1.1754944e-38, %v2354
      %v2356 = vsel %vm2353, %v2355, %v2351
      %v2357 = vmul.f32 1.0, %v2356
      %v2358 = vrcp.pop %v2140
      %v2359 = vmul.f32 %v2140, %v2358
      %v2360 = vsub.f32 1.0, %v2359
      %v2361 = vmul.f32 %v2358, %v2360
      %v2362 = vadd.f32 %v2358, %v2361
      %vm2363 = vweird.f32 %v2140
      %vm2364 = vweird.f32 %v2358
      %vm2365 = vmor %vm2363, %vm2364
      %v2366 = vsel %vm2365, %v2358, %v2362
      %v2367 = vand.u32 2147483647, %v2140
      %vm2368 = vcmp.eq.f32.partialorder %v2367, 8.507059e+37
      %v2369 = vand.u32 %v2140, 2147483648
      %v2370 = vor.u32 1.1754944e-38, %v2369
      %v2371 = vsel %vm2368, %v2370, %v2366
      %v2372 = vmul.f32 1.0, %v2371
      %v2373 = vrcp.pop %v2141
      %v2374 = vmul.f32 %v2141, %v2373
      %v2375 = vsub.f32 1.0, %v2374
      %v2376 = vmul.f32 %v2373, %v2375
      %v2377 = vadd.f32 %v2373, %v2376
      %vm2378 = vweird.f32 %v2141
      %vm2379 = vweird.f32 %v2373
      %vm2380 = vmor %vm2378, %vm2379
      %v2381 = vsel %vm2380, %v2373, %v2377
      %v2382 = vand.u32 2147483647, %v2141
      %vm2383 = vcmp.eq.f32.partialorder %v2382, 8.507059e+37
      %v2384 = vand.u32 %v2141, 2147483648
      %v2385 = vor.u32 1.1754944e-38, %v2384
      %v2386 = vsel %vm2383, %v2385, %v2381
      %v2387 = vmul.f32 1.0, %v2386
      %v2388 = vrcp.pop %v2142
      %v2389 = vmul.f32 %v2142, %v2388
      %v2390 = vsub.f32 1.0, %v2389
      %v2391 = vmul.f32 %v2388, %v2390
      %v2392 = vadd.f32 %v2388, %v2391
      %vm2393 = vweird.f32 %v2142
      %vm2394 = vweird.f32 %v2388
      %vm2395 = vmor %vm2393, %vm2394
      %v2396 = vsel %vm2395, %v2388, %v2392
      %v2397 = vand.u32 2147483647, %v2142
      %vm2398 = vcmp.eq.f32.partialorder %v2397, 8.507059e+37
      %v2399 = vand.u32 %v2142, 2147483648
      %v2400 = vor.u32 1.1754944e-38, %v2399
      %v2401 = vsel %vm2398, %v2400, %v2396
      %v2402 = vmul.f32 1.0, %v2401
      %v2403 = vrcp.pop %v2143
      %v2404 = vmul.f32 %v2143, %v2403
      %v2405 = vsub.f32 1.0, %v2404
      %v2406 = vmul.f32 %v2403, %v2405
      %v2407 = vadd.f32 %v2403, %v2406
      %vm2408 = vweird.f32 %v2143
      %vm2409 = vweird.f32 %v2403
      %vm2410 = vmor %vm2408, %vm2409
      %v2411 = vsel %vm2410, %v2403, %v2407
      %v2412 = vand.u32 2147483647, %v2143
      %vm2413 = vcmp.eq.f32.partialorder %v2412, 8.507059e+37
      %v2414 = vand.u32 %v2143, 2147483648
      %v2415 = vor.u32 1.1754944e-38, %v2414
      %v2416 = vsel %vm2413, %v2415, %v2411
      %v2417 = vmul.f32 1.0, %v2416
      %v2418 = vrcp.pop %v2144
      %v2419 = vmul.f32 %v2144, %v2418
      %v2420 = vsub.f32 1.0, %v2419
      %v2421 = vmul.f32 %v2418, %v2420
      %v2422 = vadd.f32 %v2418, %v2421
      %vm2423 = vweird.f32 %v2144
      %vm2424 = vweird.f32 %v2418
      %vm2425 = vmor %vm2423, %vm2424
      %v2426 = vsel %vm2425, %v2418, %v2422
      %v2427 = vand.u32 2147483647, %v2144
      %vm2428 = vcmp.eq.f32.partialorder %v2427, 8.507059e+37
      %v2429 = vand.u32 %v2144, 2147483648
      %v2430 = vor.u32 1.1754944e-38, %v2429
      %v2431 = vsel %vm2428, %v2430, %v2426
      %v2432 = vmul.f32 1.0, %v2431
      %v2433 = vrcp.pop %v2145
      %v2434 = vmul.f32 %v2145, %v2433
      %v2435 = vsub.f32 1.0, %v2434
      %v2436 = vmul.f32 %v2433, %v2435
      %v2437 = vadd.f32 %v2433, %v2436
      %vm2438 = vweird.f32 %v2145
      %vm2439 = vweird.f32 %v2433
      %vm2440 = vmor %vm2438, %vm2439
      %v2441 = vsel %vm2440, %v2433, %v2437
      %v2442 = vand.u32 2147483647, %v2145
      %vm2443 = vcmp.eq.f32.partialorder %v2442, 8.507059e+37
      %v2444 = vand.u32 %v2145, 2147483648
      %v2445 = vor.u32 1.1754944e-38, %v2444
      %v2446 = vsel %vm2443, %v2445, %v2441
      %v2447 = vmul.f32 1.0, %v2446
      %v2448 = vrcp.pop %v2146
      %v2449 = vmul.f32 %v2146, %v2448
      %v2450 = vsub.f32 1.0, %v2449
      %v2451 = vmul.f32 %v2448, %v2450
      %v2452 = vadd.f32 %v2448, %v2451
      %vm2453 = vweird.f32 %v2146
      %vm2454 = vweird.f32 %v2448
      %vm2455 = vmor %vm2453, %vm2454
      %v2456 = vsel %vm2455, %v2448, %v2452
      %v2457 = vand.u32 2147483647, %v2146
      %vm2458 = vcmp.eq.f32.partialorder %v2457, 8.507059e+37
      %v2459 = vand.u32 %v2146, 2147483648
      %v2460 = vor.u32 1.1754944e-38, %v2459
      %v2461 = vsel %vm2458, %v2460, %v2456
      %v2462 = vmul.f32 1.0, %v2461
      %v2463 = vrcp.pop %v2147
      %v2464 = vmul.f32 %v2147, %v2463
      %v2465 = vsub.f32 1.0, %v2464
      %v2466 = vmul.f32 %v2463, %v2465
      %v2467 = vadd.f32 %v2463, %v2466
      %vm2468 = vweird.f32 %v2147
      %vm2469 = vweird.f32 %v2463
      %vm2470 = vmor %vm2468, %vm2469
      %v2471 = vsel %vm2470, %v2463, %v2467
      %v2472 = vand.u32 2147483647, %v2147
      %vm2473 = vcmp.eq.f32.partialorder %v2472, 8.507059e+37
      %v2474 = vand.u32 %v2147, 2147483648
      %v2475 = vor.u32 1.1754944e-38, %v2474
      %v2476 = vsel %vm2473, %v2475, %v2471
      %v2477 = vmul.f32 1.0, %v2476
      %v2478 = vrcp.pop %v2148
      %v2479 = vmul.f32 %v2148, %v2478
      %v2480 = vsub.f32 1.0, %v2479
      %v2481 = vmul.f32 %v2478, %v2480
      %v2482 = vadd.f32 %v2478, %v2481
      %vm2483 = vweird.f32 %v2148
      %vm2484 = vweird.f32 %v2478
      %vm2485 = vmor %vm2483, %vm2484
      %v2486 = vsel %vm2485, %v2478, %v2482
      %v2487 = vand.u32 2147483647, %v2148
      %vm2488 = vcmp.eq.f32.partialorder %v2487, 8.507059e+37
      %v2489 = vand.u32 %v2148, 2147483648
      %v2490 = vor.u32 1.1754944e-38, %v2489
      %v2491 = vsel %vm2488, %v2490, %v2486
      %v2492 = vmul.f32 1.0, %v2491
      %v2493 = vrcp.pop %v2149
      %v2494 = vmul.f32 %v2149, %v2493
      %v2495 = vsub.f32 1.0, %v2494
      %v2496 = vmul.f32 %v2493, %v2495
      %v2497 = vadd.f32 %v2493, %v2496
      %vm2498 = vweird.f32 %v2149
      %vm2499 = vweird.f32 %v2493
      %vm2500 = vmor %vm2498, %vm2499
      %v2501 = vsel %vm2500, %v2493, %v2497
      %v2502 = vand.u32 2147483647, %v2149
      %vm2503 = vcmp.eq.f32.partialorder %v2502, 8.507059e+37
      %v2504 = vand.u32 %v2149, 2147483648
      %v2505 = vor.u32 1.1754944e-38, %v2504
      %v2506 = vsel %vm2503, %v2505, %v2501
      %v2507 = vmul.f32 1.0, %v2506
      %v2508 = vrcp.pop %v2150
      %v2509 = vmul.f32 %v2150, %v2508
      %v2510 = vsub.f32 1.0, %v2509
      %v2511 = vmul.f32 %v2508, %v2510
      %v2512 = vadd.f32 %v2508, %v2511
      %vm2513 = vweird.f32 %v2150
      %vm2514 = vweird.f32 %v2508
      %vm2515 = vmor %vm2513, %vm2514
      %v2516 = vsel %vm2515, %v2508, %v2512
      %v2517 = vand.u32 2147483647, %v2150
      %vm2518 = vcmp.eq.f32.partialorder %v2517, 8.507059e+37
      %v2519 = vand.u32 %v2150, 2147483648
      %v2520 = vor.u32 1.1754944e-38, %v2519
      %v2521 = vsel %vm2518, %v2520, %v2516
      %v2522 = vmul.f32 1.0, %v2521
      %v2523 = vrcp.pop %v2151
      %v2524 = vmul.f32 %v2151, %v2523
      %v2525 = vsub.f32 1.0, %v2524
      %v2526 = vmul.f32 %v2523, %v2525
      %v2527 = vadd.f32 %v2523, %v2526
      %vm2528 = vweird.f32 %v2151
      %vm2529 = vweird.f32 %v2523
      %vm2530 = vmor %vm2528, %vm2529
      %v2531 = vsel %vm2530, %v2523, %v2527
      %v2532 = vand.u32 2147483647, %v2151
      %vm2533 = vcmp.eq.f32.partialorder %v2532, 8.507059e+37
      %v2534 = vand.u32 %v2151, 2147483648
      %v2535 = vor.u32 1.1754944e-38, %v2534
      %v2536 = vsel %vm2533, %v2535, %v2531
      %v2537 = vmul.f32 1.0, %v2536
      %v2538 = vrcp.pop %v2152
      %v2539 = vmul.f32 %v2152, %v2538
      %v2540 = vsub.f32 1.0, %v2539
      %v2541 = vmul.f32 %v2538, %v2540
      %v2542 = vadd.f32 %v2538, %v2541
      %vm2543 = vweird.f32 %v2152
      %vm2544 = vweird.f32 %v2538
      %vm2545 = vmor %vm2543, %vm2544
      %v2546 = vsel %vm2545, %v2538, %v2542
      %v2547 = vand.u32 2147483647, %v2152
      %vm2548 = vcmp.eq.f32.partialorder %v2547, 8.507059e+37
      %v2549 = vand.u32 %v2152, 2147483648
      %v2550 = vor.u32 1.1754944e-38, %v2549
      %v2551 = vsel %vm2548, %v2550, %v2546
      %v2552 = vmul.f32 1.0, %v2551
      %v2553 = vrcp.pop %v2153
      %v2554 = vmul.f32 %v2153, %v2553
      %v2555 = vsub.f32 1.0, %v2554
      %v2556 = vmul.f32 %v2553, %v2555
      %v2557 = vadd.f32 %v2553, %v2556
      %vm2558 = vweird.f32 %v2153
      %vm2559 = vweird.f32 %v2553
      %vm2560 = vmor %vm2558, %vm2559
      %v2561 = vsel %vm2560, %v2553, %v2557
      %v2562 = vand.u32 2147483647, %v2153
      %vm2563 = vcmp.eq.f32.partialorder %v2562, 8.507059e+37
      %v2564 = vand.u32 %v2153, 2147483648
      %v2565 = vor.u32 1.1754944e-38, %v2564
      %v2566 = vsel %vm2563, %v2565, %v2561
      %v2567 = vmul.f32 1.0, %v2566
      %v2568 = vrcp.pop %v2154
      %v2569 = vmul.f32 %v2154, %v2568
      %v2570 = vsub.f32 1.0, %v2569
      %v2571 = vmul.f32 %v2568, %v2570
      %v2572 = vadd.f32 %v2568, %v2571
      %vm2573 = vweird.f32 %v2154
      %vm2574 = vweird.f32 %v2568
      %vm2575 = vmor %vm2573, %vm2574
      %v2576 = vsel %vm2575, %v2568, %v2572
      %v2577 = vand.u32 2147483647, %v2154
      %vm2578 = vcmp.eq.f32.partialorder %v2577, 8.507059e+37
      %v2579 = vand.u32 %v2154, 2147483648
      %v2580 = vor.u32 1.1754944e-38, %v2579
      %v2581 = vsel %vm2578, %v2580, %v2576
      %v2582 = vmul.f32 1.0, %v2581
      %v2583 = vrcp.pop %v2155
      %v2584 = vmul.f32 %v2155, %v2583
      %v2585 = vsub.f32 1.0, %v2584
      %v2586 = vmul.f32 %v2583, %v2585
      %v2587 = vadd.f32 %v2583, %v2586
      %vm2588 = vweird.f32 %v2155
      %vm2589 = vweird.f32 %v2583
      %vm2590 = vmor %vm2588, %vm2589
      %v2591 = vsel %vm2590, %v2583, %v2587
      %v2592 = vand.u32 2147483647, %v2155
      %vm2593 = vcmp.eq.f32.partialorder %v2592, 8.507059e+37
      %v2594 = vand.u32 %v2155, 2147483648
      %v2595 = vor.u32 1.1754944e-38, %v2594
      %v2596 = vsel %vm2593, %v2595, %v2591
      %v2597 = vmul.f32 1.0, %v2596
      %v2598 = vrcp.pop %v2156
      %v2599 = vmul.f32 %v2156, %v2598
      %v2600 = vsub.f32 1.0, %v2599
      %v2601 = vmul.f32 %v2598, %v2600
      %v2602 = vadd.f32 %v2598, %v2601
      %vm2603 = vweird.f32 %v2156
      %vm2604 = vweird.f32 %v2598
      %vm2605 = vmor %vm2603, %vm2604
      %v2606 = vsel %vm2605, %v2598, %v2602
      %v2607 = vand.u32 2147483647, %v2156
      %vm2608 = vcmp.eq.f32.partialorder %v2607, 8.507059e+37
      %v2609 = vand.u32 %v2156, 2147483648
      %v2610 = vor.u32 1.1754944e-38, %v2609
      %v2611 = vsel %vm2608, %v2610, %v2606
      %v2612 = vmul.f32 1.0, %v2611
      %v2613 = vrcp.pop %v2157
      %v2614 = vmul.f32 %v2157, %v2613
      %v2615 = vsub.f32 1.0, %v2614
      %v2616 = vmul.f32 %v2613, %v2615
      %v2617 = vadd.f32 %v2613, %v2616
      %vm2618 = vweird.f32 %v2157
      %vm2619 = vweird.f32 %v2613
      %vm2620 = vmor %vm2618, %vm2619
      %v2621 = vsel %vm2620, %v2613, %v2617
      %v2622 = vand.u32 2147483647, %v2157
      %vm2623 = vcmp.eq.f32.partialorder %v2622, 8.507059e+37
      %v2624 = vand.u32 %v2157, 2147483648
      %v2625 = vor.u32 1.1754944e-38, %v2624
      %v2626 = vsel %vm2623, %v2625, %v2621
      %v2627 = vmul.f32 1.0, %v2626
      %v2628 = vrcp.pop %v2158
      %v2629 = vmul.f32 %v2158, %v2628
      %v2630 = vsub.f32 1.0, %v2629
      %v2631 = vmul.f32 %v2628, %v2630
      %v2632 = vadd.f32 %v2628, %v2631
      %vm2633 = vweird.f32 %v2158
      %vm2634 = vweird.f32 %v2628
      %vm2635 = vmor %vm2633, %vm2634
      %v2636 = vsel %vm2635, %v2628, %v2632
      %v2637 = vand.u32 2147483647, %v2158
      %vm2638 = vcmp.eq.f32.partialorder %v2637, 8.507059e+37
      %v2639 = vand.u32 %v2158, 2147483648
      %v2640 = vor.u32 1.1754944e-38, %v2639
      %v2641 = vsel %vm2638, %v2640, %v2636
      %v2642 = vmul.f32 1.0, %v2641
      %v2643 = vrcp.pop %v2159
      %v2644 = vmul.f32 %v2159, %v2643
      %v2645 = vsub.f32 1.0, %v2644
      %v2646 = vmul.f32 %v2643, %v2645
      %v2647 = vadd.f32 %v2643, %v2646
      %vm2648 = vweird.f32 %v2159
      %vm2649 = vweird.f32 %v2643
      %vm2650 = vmor %vm2648, %vm2649
      %v2651 = vsel %vm2650, %v2643, %v2647
      %v2652 = vand.u32 2147483647, %v2159
      %vm2653 = vcmp.eq.f32.partialorder %v2652, 8.507059e+37
      %v2654 = vand.u32 %v2159, 2147483648
      %v2655 = vor.u32 1.1754944e-38, %v2654
      %v2656 = vsel %vm2653, %v2655, %v2651
      %v2657 = vmul.f32 1.0, %v2656
      %v2658 = vrcp.pop %v2160
      %v2659 = vmul.f32 %v2160, %v2658
      %v2660 = vsub.f32 1.0, %v2659
      %v2661 = vmul.f32 %v2658, %v2660
      %v2662 = vadd.f32 %v2658, %v2661
      %vm2663 = vweird.f32 %v2160
      %vm2664 = vweird.f32 %v2658
      %vm2665 = vmor %vm2663, %vm2664
      %v2666 = vsel %vm2665, %v2658, %v2662
      %v2667 = vand.u32 2147483647, %v2160
      %vm2668 = vcmp.eq.f32.partialorder %v2667, 8.507059e+37
      %v2669 = vand.u32 %v2160, 2147483648
      %v2670 = vor.u32 1.1754944e-38, %v2669
      %v2671 = vsel %vm2668, %v2670, %v2666
      %v2672 = vmul.f32 1.0, %v2671
      %v2673 = vrcp.pop %v2161
      %v2674 = vmul.f32 %v2161, %v2673
      %v2675 = vsub.f32 1.0, %v2674
      %v2676 = vmul.f32 %v2673, %v2675
      %v2677 = vadd.f32 %v2673, %v2676
      %vm2678 = vweird.f32 %v2161
      %vm2679 = vweird.f32 %v2673
      %vm2680 = vmor %vm2678, %vm2679
      %v2681 = vsel %vm2680, %v2673, %v2677
      %v2682 = vand.u32 2147483647, %v2161
      %vm2683 = vcmp.eq.f32.partialorder %v2682, 8.507059e+37
      %v2684 = vand.u32 %v2161, 2147483648
      %v2685 = vor.u32 1.1754944e-38, %v2684
      %v2686 = vsel %vm2683, %v2685, %v2681
      %v2687 = vmul.f32 1.0, %v2686
      %v2688 = vrcp.pop %v2162
      %v2689 = vmul.f32 %v2162, %v2688
      %v2690 = vsub.f32 1.0, %v2689
      %v2691 = vmul.f32 %v2688, %v2690
      %v2692 = vadd.f32 %v2688, %v2691
      %vm2693 = vweird.f32 %v2162
      %vm2694 = vweird.f32 %v2688
      %vm2695 = vmor %vm2693, %vm2694
      %v2696 = vsel %vm2695, %v2688, %v2692
      %v2697 = vand.u32 2147483647, %v2162
      %vm2698 = vcmp.eq.f32.partialorder %v2697, 8.507059e+37
      %v2699 = vand.u32 %v2162, 2147483648
      %v2700 = vor.u32 1.1754944e-38, %v2699
      %v2701 = vsel %vm2698, %v2700, %v2696
      %v2702 = vmul.f32 1.0, %v2701
      %v2703 = vrcp.pop %v2163
      %v2704 = vmul.f32 %v2163, %v2703
      %v2705 = vsub.f32 1.0, %v2704
      %v2706 = vmul.f32 %v2703, %v2705
      %v2707 = vadd.f32 %v2703, %v2706
      %vm2708 = vweird.f32 %v2163
      %vm2709 = vweird.f32 %v2703
      %vm2710 = vmor %vm2708, %vm2709
      %v2711 = vsel %vm2710, %v2703, %v2707
      %v2712 = vand.u32 2147483647, %v2163
      %vm2713 = vcmp.eq.f32.partialorder %v2712, 8.507059e+37
      %v2714 = vand.u32 %v2163, 2147483648
      %v2715 = vor.u32 1.1754944e-38, %v2714
      %v2716 = vsel %vm2713, %v2715, %v2711
      %v2717 = vmul.f32 1.0, %v2716
      %v2718 = vrcp.pop %v2164
      %v2719 = vmul.f32 %v2164, %v2718
      %v2720 = vsub.f32 1.0, %v2719
      %v2721 = vmul.f32 %v2718, %v2720
      %v2722 = vadd.f32 %v2718, %v2721
      %vm2723 = vweird.f32 %v2164
      %vm2724 = vweird.f32 %v2718
      %vm2725 = vmor %vm2723, %vm2724
      %v2726 = vsel %vm2725, %v2718, %v2722
      %v2727 = vand.u32 2147483647, %v2164
      %vm2728 = vcmp.eq.f32.partialorder %v2727, 8.507059e+37
      %v2729 = vand.u32 %v2164, 2147483648
      %v2730 = vor.u32 1.1754944e-38, %v2729
      %v2731 = vsel %vm2728, %v2730, %v2726
      %v2732 = vmul.f32 1.0, %v2731
      %v2733 = vrcp.pop %v2165
      %v2734 = vmul.f32 %v2165, %v2733
      %v2735 = vsub.f32 1.0, %v2734
      %v2736 = vmul.f32 %v2733, %v2735
      %v2737 = vadd.f32 %v2733, %v2736
      %vm2738 = vweird.f32 %v2165
      %vm2739 = vweird.f32 %v2733
      %vm2740 = vmor %vm2738, %vm2739
      %v2741 = vsel %vm2740, %v2733, %v2737
      %v2742 = vand.u32 2147483647, %v2165
      %vm2743 = vcmp.eq.f32.partialorder %v2742, 8.507059e+37
      %v2744 = vand.u32 %v2165, 2147483648
      %v2745 = vor.u32 1.1754944e-38, %v2744
      %v2746 = vsel %vm2743, %v2745, %v2741
      %v2747 = vmul.f32 1.0, %v2746
      %v2748 = vrcp.pop %v2166
      %v2749 = vmul.f32 %v2166, %v2748
      %v2750 = vsub.f32 1.0, %v2749
      %v2751 = vmul.f32 %v2748, %v2750
      %v2752 = vadd.f32 %v2748, %v2751
      %vm2753 = vweird.f32 %v2166
      %vm2754 = vweird.f32 %v2748
      %vm2755 = vmor %vm2753, %vm2754
      %v2756 = vsel %vm2755, %v2748, %v2752
      %v2757 = vand.u32 2147483647, %v2166
      %vm2758 = vcmp.eq.f32.partialorder %v2757, 8.507059e+37
      %v2759 = vand.u32 %v2166, 2147483648
      %v2760 = vor.u32 1.1754944e-38, %v2759
      %v2761 = vsel %vm2758, %v2760, %v2756
      %v2762 = vmul.f32 1.0, %v2761
      %v2763 = vrcp.pop %v2167
      %v2764 = vmul.f32 %v2167, %v2763
      %v2765 = vsub.f32 1.0, %v2764
      %v2766 = vmul.f32 %v2763, %v2765
      %v2767 = vadd.f32 %v2763, %v2766
      %vm2768 = vweird.f32 %v2167
      %vm2769 = vweird.f32 %v2763
      %vm2770 = vmor %vm2768, %vm2769
      %v2771 = vsel %vm2770, %v2763, %v2767
      %v2772 = vand.u32 2147483647, %v2167
      %vm2773 = vcmp.eq.f32.partialorder %v2772, 8.507059e+37
      %v2774 = vand.u32 %v2167, 2147483648
      %v2775 = vor.u32 1.1754944e-38, %v2774
      %v2776 = vsel %vm2773, %v2775, %v2771
      %v2777 = vmul.f32 1.0, %v2776
      %v2778 = vrcp.pop %v2168
      %v2779 = vmul.f32 %v2168, %v2778
      %v2780 = vsub.f32 1.0, %v2779
      %v2781 = vmul.f32 %v2778, %v2780
      %v2782 = vadd.f32 %v2778, %v2781
      %vm2783 = vweird.f32 %v2168
      %vm2784 = vweird.f32 %v2778
      %vm2785 = vmor %vm2783, %vm2784
      %v2786 = vsel %vm2785, %v2778, %v2782
      %v2787 = vand.u32 2147483647, %v2168
      %vm2788 = vcmp.eq.f32.partialorder %v2787, 8.507059e+37
      %v2789 = vand.u32 %v2168, 2147483648
      %v2790 = vor.u32 1.1754944e-38, %v2789
      %v2791 = vsel %vm2788, %v2790, %v2786
      %v2792 = vmul.f32 1.0, %v2791
      %v2793 = vrcp.pop %v2169
      %v2794 = vmul.f32 %v2169, %v2793
      %v2795 = vsub.f32 1.0, %v2794
      %v2796 = vmul.f32 %v2793, %v2795
      %v2797 = vadd.f32 %v2793, %v2796
      %vm2798 = vweird.f32 %v2169
      %vm2799 = vweird.f32 %v2793
      %vm2800 = vmor %vm2798, %vm2799
      %v2801 = vsel %vm2800, %v2793, %v2797
      %v2802 = vand.u32 2147483647, %v2169
      %vm2803 = vcmp.eq.f32.partialorder %v2802, 8.507059e+37
      %v2804 = vand.u32 %v2169, 2147483648
      %v2805 = vor.u32 1.1754944e-38, %v2804
      %v2806 = vsel %vm2803, %v2805, %v2801
      %v2807 = vmul.f32 1.0, %v2806
      %v2808 = vrcp.pop %v2170
      %v2809 = vmul.f32 %v2170, %v2808
      %v2810 = vsub.f32 1.0, %v2809
      %v2811 = vmul.f32 %v2808, %v2810
      %v2812 = vadd.f32 %v2808, %v2811
      %vm2813 = vweird.f32 %v2170
      %vm2814 = vweird.f32 %v2808
      %vm2815 = vmor %vm2813, %vm2814
      %v2816 = vsel %vm2815, %v2808, %v2812
      %v2817 = vand.u32 2147483647, %v2170
      %vm2818 = vcmp.eq.f32.partialorder %v2817, 8.507059e+37
      %v2819 = vand.u32 %v2170, 2147483648
      %v2820 = vor.u32 1.1754944e-38, %v2819
      %v2821 = vsel %vm2818, %v2820, %v2816
      %v2822 = vmul.f32 1.0, %v2821
      %v2823 = vrcp.pop %v2171
      %v2824 = vmul.f32 %v2171, %v2823
      %v2825 = vsub.f32 1.0, %v2824
      %v2826 = vmul.f32 %v2823, %v2825
      %v2827 = vadd.f32 %v2823, %v2826
      %vm2828 = vweird.f32 %v2171
      %vm2829 = vweird.f32 %v2823
      %vm2830 = vmor %vm2828, %vm2829
      %v2831 = vsel %vm2830, %v2823, %v2827
      %v2832 = vand.u32 2147483647, %v2171
      %vm2833 = vcmp.eq.f32.partialorder %v2832, 8.507059e+37
      %v2834 = vand.u32 %v2171, 2147483648
      %v2835 = vor.u32 1.1754944e-38, %v2834
      %v2836 = vsel %vm2833, %v2835, %v2831
      %v2837 = vmul.f32 1.0, %v2836
      %v2838 = vrcp.pop %v2172
      %v2839 = vmul.f32 %v2172, %v2838
      %v2840 = vsub.f32 1.0, %v2839
      %v2841 = vmul.f32 %v2838, %v2840
      %v2842 = vadd.f32 %v2838, %v2841
      %vm2843 = vweird.f32 %v2172
      %vm2844 = vweird.f32 %v2838
      %vm2845 = vmor %vm2843, %vm2844
      %v2846 = vsel %vm2845, %v2838, %v2842
      %v2847 = vand.u32 2147483647, %v2172
      %vm2848 = vcmp.eq.f32.partialorder %v2847, 8.507059e+37
      %v2849 = vand.u32 %v2172, 2147483648
      %v2850 = vor.u32 1.1754944e-38, %v2849
      %v2851 = vsel %vm2848, %v2850, %v2846
      %v2852 = vmul.f32 1.0, %v2851
      %v2853 = vrcp.pop %v2173
      %v2854 = vmul.f32 %v2173, %v2853
      %v2855 = vsub.f32 1.0, %v2854
      %v2856 = vmul.f32 %v2853, %v2855
      %v2857 = vadd.f32 %v2853, %v2856
      %vm2858 = vweird.f32 %v2173
      %vm2859 = vweird.f32 %v2853
      %vm2860 = vmor %vm2858, %vm2859
      %v2861 = vsel %vm2860, %v2853, %v2857
      %v2862 = vand.u32 2147483647, %v2173
      %vm2863 = vcmp.eq.f32.partialorder %v2862, 8.507059e+37
      %v2864 = vand.u32 %v2173, 2147483648
      %v2865 = vor.u32 1.1754944e-38, %v2864
      %v2866 = vsel %vm2863, %v2865, %v2861
      %v2867 = vmul.f32 1.0, %v2866
      %v2868 = vrcp.pop %v2174
      %v2869 = vmul.f32 %v2174, %v2868
      %v2870 = vsub.f32 1.0, %v2869
      %v2871 = vmul.f32 %v2868, %v2870
      %v2872 = vadd.f32 %v2868, %v2871
      %vm2873 = vweird.f32 %v2174
      %vm2874 = vweird.f32 %v2868
      %vm2875 = vmor %vm2873, %vm2874
      %v2876 = vsel %vm2875, %v2868, %v2872
      %v2877 = vand.u32 2147483647, %v2174
      %vm2878 = vcmp.eq.f32.partialorder %v2877, 8.507059e+37
      %v2879 = vand.u32 %v2174, 2147483648
      %v2880 = vor.u32 1.1754944e-38, %v2879
      %v2881 = vsel %vm2878, %v2880, %v2876
      %v2882 = vmul.f32 1.0, %v2881
      %v2883 = vrcp.pop %v2175
      %v2884 = vmul.f32 %v2175, %v2883
      %v2885 = vsub.f32 1.0, %v2884
      %v2886 = vmul.f32 %v2883, %v2885
      %v2887 = vadd.f32 %v2883, %v2886
      %vm2888 = vweird.f32 %v2175
      %vm2889 = vweird.f32 %v2883
      %vm2890 = vmor %vm2888, %vm2889
      %v2891 = vsel %vm2890, %v2883, %v2887
      %v2892 = vand.u32 2147483647, %v2175
      %vm2893 = vcmp.eq.f32.partialorder %v2892, 8.507059e+37
      %v2894 = vand.u32 %v2175, 2147483648
      %v2895 = vor.u32 1.1754944e-38, %v2894
      %v2896 = vsel %vm2893, %v2895, %v2891
      %v2897 = vmul.f32 1.0, %v2896
      %v2898 = vrcp.pop %v2176
      %v2899 = vmul.f32 %v2176, %v2898
      %v2900 = vsub.f32 1.0, %v2899
      %v2901 = vmul.f32 %v2898, %v2900
      %v2902 = vadd.f32 %v2898, %v2901
      %vm2903 = vweird.f32 %v2176
      %vm2904 = vweird.f32 %v2898
      %vm2905 = vmor %vm2903, %vm2904
      %v2906 = vsel %vm2905, %v2898, %v2902
      %v2907 = vand.u32 2147483647, %v2176
      %vm2908 = vcmp.eq.f32.partialorder %v2907, 8.507059e+37
      %v2909 = vand.u32 %v2176, 2147483648
      %v2910 = vor.u32 1.1754944e-38, %v2909
      %v2911 = vsel %vm2908, %v2910, %v2906
      %v2912 = vmul.f32 1.0, %v2911
      %v2913 = vrcp.pop %v2177
      %v2914 = vmul.f32 %v2177, %v2913
      %v2915 = vsub.f32 1.0, %v2914
      %v2916 = vmul.f32 %v2913, %v2915
      %v2917 = vadd.f32 %v2913, %v2916
      %vm2918 = vweird.f32 %v2177
      %vm2919 = vweird.f32 %v2913
      %vm2920 = vmor %vm2918, %vm2919
      %v2921 = vsel %vm2920, %v2913, %v2917
      %v2922 = vand.u32 2147483647, %v2177
      %vm2923 = vcmp.eq.f32.partialorder %v2922, 8.507059e+37
      %v2924 = vand.u32 %v2177, 2147483648
      %v2925 = vor.u32 1.1754944e-38, %v2924
      %v2926 = vsel %vm2923, %v2925, %v2921
      %v2927 = vmul.f32 1.0, %v2926
      %v2928 = vrcp.pop %v2178
      %v2929 = vmul.f32 %v2178, %v2928
      %v2930 = vsub.f32 1.0, %v2929
      %v2931 = vmul.f32 %v2928, %v2930
      %v2932 = vadd.f32 %v2928, %v2931
      %vm2933 = vweird.f32 %v2178
      %vm2934 = vweird.f32 %v2928
      %vm2935 = vmor %vm2933, %vm2934
      %v2936 = vsel %vm2935, %v2928, %v2932
      %v2937 = vand.u32 2147483647, %v2178
      %vm2938 = vcmp.eq.f32.partialorder %v2937, 8.507059e+37
      %v2939 = vand.u32 %v2178, 2147483648
      %v2940 = vor.u32 1.1754944e-38, %v2939
      %v2941 = vsel %vm2938, %v2940, %v2936
      %v2942 = vmul.f32 1.0, %v2941
      %v2943 = vrcp.pop %v2179
      %v2944 = vmul.f32 %v2179, %v2943
      %v2945 = vsub.f32 1.0, %v2944
      %v2946 = vmul.f32 %v2943, %v2945
      %v2947 = vadd.f32 %v2943, %v2946
      %vm2948 = vweird.f32 %v2179
      %vm2949 = vweird.f32 %v2943
      %vm2950 = vmor %vm2948, %vm2949
      %v2951 = vsel %vm2950, %v2943, %v2947
      %v2952 = vand.u32 2147483647, %v2179
      %vm2953 = vcmp.eq.f32.partialorder %v2952, 8.507059e+37
      %v2954 = vand.u32 %v2179, 2147483648
      %v2955 = vor.u32 1.1754944e-38, %v2954
      %v2956 = vsel %vm2953, %v2955, %v2951
      %v2957 = vmul.f32 1.0, %v2956
      %v2958 = vrcp.pop %v2180
      %v2959 = vmul.f32 %v2180, %v2958
      %v2960 = vsub.f32 1.0, %v2959
      %v2961 = vmul.f32 %v2958, %v2960
      %v2962 = vadd.f32 %v2958, %v2961
      %vm2963 = vweird.f32 %v2180
      %vm2964 = vweird.f32 %v2958
      %vm2965 = vmor %vm2963, %vm2964
      %v2966 = vsel %vm2965, %v2958, %v2962
      %v2967 = vand.u32 2147483647, %v2180
      %vm2968 = vcmp.eq.f32.partialorder %v2967, 8.507059e+37
      %v2969 = vand.u32 %v2180, 2147483648
      %v2970 = vor.u32 1.1754944e-38, %v2969
      %v2971 = vsel %vm2968, %v2970, %v2966
      %v2972 = vmul.f32 1.0, %v2971
      %v2973 = vrcp.pop %v2181
      %v2974 = vmul.f32 %v2181, %v2973
      %v2975 = vsub.f32 1.0, %v2974
      %v2976 = vmul.f32 %v2973, %v2975
      %v2977 = vadd.f32 %v2973, %v2976
      %vm2978 = vweird.f32 %v2181
      %vm2979 = vweird.f32 %v2973
      %vm2980 = vmor %vm2978, %vm2979
      %v2981 = vsel %vm2980, %v2973, %v2977
      %v2982 = vand.u32 2147483647, %v2181
      %vm2983 = vcmp.eq.f32.partialorder %v2982, 8.507059e+37
      %v2984 = vand.u32 %v2181, 2147483648
      %v2985 = vor.u32 1.1754944e-38, %v2984
      %v2986 = vsel %vm2983, %v2985, %v2981
      %v2987 = vmul.f32 1.0, %v2986
      %v2988 = vrcp.pop %v2182
      %v2989 = vmul.f32 %v2182, %v2988
      %v2990 = vsub.f32 1.0, %v2989
      %v2991 = vmul.f32 %v2988, %v2990
      %v2992 = vadd.f32 %v2988, %v2991
      %vm2993 = vweird.f32 %v2182
      %vm2994 = vweird.f32 %v2988
      %vm2995 = vmor %vm2993, %vm2994
      %v2996 = vsel %vm2995, %v2988, %v2992
      %v2997 = vand.u32 2147483647, %v2182
      %vm2998 = vcmp.eq.f32.partialorder %v2997, 8.507059e+37
      %v2999 = vand.u32 %v2182, 2147483648
      %v3000 = vor.u32 1.1754944e-38, %v2999
      %v3001 = vsel %vm2998, %v3000, %v2996
      %v3002 = vmul.f32 1.0, %v3001
      %v3003 = vrcp.pop %v2183
      %v3004 = vmul.f32 %v2183, %v3003
      %v3005 = vsub.f32 1.0, %v3004
      %v3006 = vmul.f32 %v3003, %v3005
      %v3007 = vadd.f32 %v3003, %v3006
      %vm3008 = vweird.f32 %v2183
      %vm3009 = vweird.f32 %v3003
      %vm3010 = vmor %vm3008, %vm3009
      %v3011 = vsel %vm3010, %v3003, %v3007
      %v3012 = vand.u32 2147483647, %v2183
      %vm3013 = vcmp.eq.f32.partialorder %v3012, 8.507059e+37
      %v3014 = vand.u32 %v2183, 2147483648
      %v3015 = vor.u32 1.1754944e-38, %v3014
      %v3016 = vsel %vm3013, %v3015, %v3011
      %v3017 = vmul.f32 1.0, %v3016
      %v3018 = vrcp.pop %v2184
      %v3019 = vmul.f32 %v2184, %v3018
      %v3020 = vsub.f32 1.0, %v3019
      %v3021 = vmul.f32 %v3018, %v3020
      %v3022 = vadd.f32 %v3018, %v3021
      %vm3023 = vweird.f32 %v2184
      %vm3024 = vweird.f32 %v3018
      %vm3025 = vmor %vm3023, %vm3024
      %v3026 = vsel %vm3025, %v3018, %v3022
      %v3027 = vand.u32 2147483647, %v2184
      %vm3028 = vcmp.eq.f32.partialorder %v3027, 8.507059e+37
      %v3029 = vand.u32 %v2184, 2147483648
      %v3030 = vor.u32 1.1754944e-38, %v3029
      %v3031 = vsel %vm3028, %v3030, %v3026
      %v3032 = vmul.f32 1.0, %v3031
      %v3033 = vrcp.pop %v2185
      %v3034 = vmul.f32 %v2185, %v3033
      %v3035 = vsub.f32 1.0, %v3034
      %v3036 = vmul.f32 %v3033, %v3035
      %v3037 = vadd.f32 %v3033, %v3036
      %vm3038 = vweird.f32 %v2185
      %vm3039 = vweird.f32 %v3033
      %vm3040 = vmor %vm3038, %vm3039
      %v3041 = vsel %vm3040, %v3033, %v3037
      %v3042 = vand.u32 2147483647, %v2185
      %vm3043 = vcmp.eq.f32.partialorder %v3042, 8.507059e+37
      %v3044 = vand.u32 %v2185, 2147483648
      %v3045 = vor.u32 1.1754944e-38, %v3044
      %v3046 = vsel %vm3043, %v3045, %v3041
      %v3047 = vmul.f32 1.0, %v3046
      %v3048 = vrcp.pop %v2186
      %v3049 = vmul.f32 %v2186, %v3048
      %v3050 = vsub.f32 1.0, %v3049
      %v3051 = vmul.f32 %v3048, %v3050
      %v3052 = vadd.f32 %v3048, %v3051
      %vm3053 = vweird.f32 %v2186
      %vm3054 = vweird.f32 %v3048
      %vm3055 = vmor %vm3053, %vm3054
      %v3056 = vsel %vm3055, %v3048, %v3052
      %v3057 = vand.u32 2147483647, %v2186
      %vm3058 = vcmp.eq.f32.partialorder %v3057, 8.507059e+37
      %v3059 = vand.u32 %v2186, 2147483648
      %v3060 = vor.u32 1.1754944e-38, %v3059
      %v3061 = vsel %vm3058, %v3060, %v3056
      %v3062 = vmul.f32 1.0, %v3061
      %v3063 = vrcp.pop %v2187
      %v3064 = vmul.f32 %v2187, %v3063
      %v3065 = vsub.f32 1.0, %v3064
      %v3066 = vmul.f32 %v3063, %v3065
      %v3067 = vadd.f32 %v3063, %v3066
      %vm3068 = vweird.f32 %v2187
      %vm3069 = vweird.f32 %v3063
      %vm3070 = vmor %vm3068, %vm3069
      %v3071 = vsel %vm3070, %v3063, %v3067
      %v3072 = vand.u32 2147483647, %v2187
      %vm3073 = vcmp.eq.f32.partialorder %v3072, 8.507059e+37
      %v3074 = vand.u32 %v2187, 2147483648
      %v3075 = vor.u32 1.1754944e-38, %v3074
      %v3076 = vsel %vm3073, %v3075, %v3071
      %v3077 = vmul.f32 1.0, %v3076
      %v3078 = vrcp.pop %v2188
      %v3079 = vmul.f32 %v2188, %v3078
      %v3080 = vsub.f32 1.0, %v3079
      %v3081 = vmul.f32 %v3078, %v3080
      %v3082 = vadd.f32 %v3078, %v3081
      %vm3083 = vweird.f32 %v2188
      %vm3084 = vweird.f32 %v3078
      %vm3085 = vmor %vm3083, %vm3084
      %v3086 = vsel %vm3085, %v3078, %v3082
      %v3087 = vand.u32 2147483647, %v2188
      %vm3088 = vcmp.eq.f32.partialorder %v3087, 8.507059e+37
      %v3089 = vand.u32 %v2188, 2147483648
      %v3090 = vor.u32 1.1754944e-38, %v3089
      %v3091 = vsel %vm3088, %v3090, %v3086
      %v3092 = vmul.f32 1.0, %v3091
      %v3093 = vrcp.pop %v2189
      %v3094 = vmul.f32 %v2189, %v3093
      %v3095 = vsub.f32 1.0, %v3094
      %v3096 = vmul.f32 %v3093, %v3095
      %v3097 = vadd.f32 %v3093, %v3096
      %vm3098 = vweird.f32 %v2189
      %vm3099 = vweird.f32 %v3093
      %vm3100 = vmor %vm3098, %vm3099
      %v3101 = vsel %vm3100, %v3093, %v3097
      %v3102 = vand.u32 2147483647, %v2189
      %vm3103 = vcmp.eq.f32.partialorder %v3102, 8.507059e+37
      %v3104 = vand.u32 %v2189, 2147483648
      %v3105 = vor.u32 1.1754944e-38, %v3104
      %v3106 = vsel %vm3103, %v3105, %v3101
      %v3107 = vmul.f32 1.0, %v3106
      %v3108 = vrcp.pop %v2190
      %v3109 = vmul.f32 %v2190, %v3108
      %v3110 = vsub.f32 1.0, %v3109
      %v3111 = vmul.f32 %v3108, %v3110
      %v3112 = vadd.f32 %v3108, %v3111
      %vm3113 = vweird.f32 %v2190
      %vm3114 = vweird.f32 %v3108
      %vm3115 = vmor %vm3113, %vm3114
      %v3116 = vsel %vm3115, %v3108, %v3112
      %v3117 = vand.u32 2147483647, %v2190
      %vm3118 = vcmp.eq.f32.partialorder %v3117, 8.507059e+37
      %v3119 = vand.u32 %v2190, 2147483648
      %v3120 = vor.u32 1.1754944e-38, %v3119
      %v3121 = vsel %vm3118, %v3120, %v3116
      %v3122 = vmul.f32 1.0, %v3121
      %v3123 = vrcp.pop %v2191
      %v3124 = vmul.f32 %v2191, %v3123
      %v3125 = vsub.f32 1.0, %v3124
      %v3126 = vmul.f32 %v3123, %v3125
      %v3127 = vadd.f32 %v3123, %v3126
      %vm3128 = vweird.f32 %v2191
      %vm3129 = vweird.f32 %v3123
      %vm3130 = vmor %vm3128, %vm3129
      %v3131 = vsel %vm3130, %v3123, %v3127
      %v3132 = vand.u32 2147483647, %v2191
      %vm3133 = vcmp.eq.f32.partialorder %v3132, 8.507059e+37
      %v3134 = vand.u32 %v2191, 2147483648
      %v3135 = vor.u32 1.1754944e-38, %v3134
      %v3136 = vsel %vm3133, %v3135, %v3131
      %v3137 = vmul.f32 1.0, %v3136
      %v3138 = vrcp.pop %v2192
      %v3139 = vmul.f32 %v2192, %v3138
      %v3140 = vsub.f32 1.0, %v3139
      %v3141 = vmul.f32 %v3138, %v3140
      %v3142 = vadd.f32 %v3138, %v3141
      %vm3143 = vweird.f32 %v2192
      %vm3144 = vweird.f32 %v3138
      %vm3145 = vmor %vm3143, %vm3144
      %v3146 = vsel %vm3145, %v3138, %v3142
      %v3147 = vand.u32 2147483647, %v2192
      %vm3148 = vcmp.eq.f32.partialorder %v3147, 8.507059e+37
      %v3149 = vand.u32 %v2192, 2147483648
      %v3150 = vor.u32 1.1754944e-38, %v3149
      %v3151 = vsel %vm3148, %v3150, %v3146
      %v3152 = vmul.f32 1.0, %v3151
      %v3153 = vpack.c.bf16 %v2207, %v2207
      %v3154 = vpack.c.bf16 %v2222, %v2222
      %v3155 = vpack.c.bf16 %v2237, %v2237
      %v3156 = vpack.c.bf16 %v2252, %v2252
      %v3157 = vpack.c.bf16 %v2267, %v2267
      %v3158 = vpack.c.bf16 %v2282, %v2282
      %v3159 = vpack.c.bf16 %v2297, %v2297
      %v3160 = vpack.c.bf16 %v2312, %v2312
      %v3161 = vpack.c.bf16 %v2327, %v2327
      %v3162 = vpack.c.bf16 %v2342, %v2342
      %v3163 = vpack.c.bf16 %v2357, %v2357
      %v3164 = vpack.c.bf16 %v2372, %v2372
      %v3165 = vpack.c.bf16 %v2387, %v2387
      %v3166 = vpack.c.bf16 %v2402, %v2402
      %v3167 = vpack.c.bf16 %v2417, %v2417
      %v3168 = vpack.c.bf16 %v2432, %v2432
      %v3169 = vpack.c.bf16 %v2447, %v2447
      %v3170 = vpack.c.bf16 %v2462, %v2462
      %v3171 = vpack.c.bf16 %v2477, %v2477
      %v3172 = vpack.c.bf16 %v2492, %v2492
      %v3173 = vpack.c.bf16 %v2507, %v2507
      %v3174 = vpack.c.bf16 %v2522, %v2522
      %v3175 = vpack.c.bf16 %v2537, %v2537
      %v3176 = vpack.c.bf16 %v2552, %v2552
      %v3177 = vpack.c.bf16 %v2567, %v2567
      %v3178 = vpack.c.bf16 %v2582, %v2582
      %v3179 = vpack.c.bf16 %v2597, %v2597
      %v3180 = vpack.c.bf16 %v2612, %v2612
      %v3181 = vpack.c.bf16 %v2627, %v2627
      %v3182 = vpack.c.bf16 %v2642, %v2642
      %v3183 = vpack.c.bf16 %v2657, %v2657
      %v3184 = vpack.c.bf16 %v2672, %v2672
      %v3185 = vpack.c.bf16 %v2687, %v2687
      %v3186 = vpack.c.bf16 %v2702, %v2702
      %v3187 = vpack.c.bf16 %v2717, %v2717
      %v3188 = vpack.c.bf16 %v2732, %v2732
      %v3189 = vpack.c.bf16 %v2747, %v2747
      %v3190 = vpack.c.bf16 %v2762, %v2762
      %v3191 = vpack.c.bf16 %v2777, %v2777
      %v3192 = vpack.c.bf16 %v2792, %v2792
      %v3193 = vpack.c.bf16 %v2807, %v2807
      %v3194 = vpack.c.bf16 %v2822, %v2822
      %v3195 = vpack.c.bf16 %v2837, %v2837
      %v3196 = vpack.c.bf16 %v2852, %v2852
      %v3197 = vpack.c.bf16 %v2867, %v2867
      %v3198 = vpack.c.bf16 %v2882, %v2882
      %v3199 = vpack.c.bf16 %v2897, %v2897
      %v3200 = vpack.c.bf16 %v2912, %v2912
      %v3201 = vpack.c.bf16 %v2927, %v2927
      %v3202 = vpack.c.bf16 %v2942, %v2942
      %v3203 = vpack.c.bf16 %v2957, %v2957
      %v3204 = vpack.c.bf16 %v2972, %v2972
      %v3205 = vpack.c.bf16 %v2987, %v2987
      %v3206 = vpack.c.bf16 %v3002, %v3002
      %v3207 = vpack.c.bf16 %v3017, %v3017
      %v3208 = vpack.c.bf16 %v3032, %v3032
      %v3209 = vpack.c.bf16 %v3047, %v3047
      %v3210 = vpack.c.bf16 %v3062, %v3062
      %v3211 = vpack.c.bf16 %v3077, %v3077
      %v3212 = vpack.c.bf16 %v3092, %v3092
      %v3213 = vpack.c.bf16 %v3107, %v3107
      %v3214 = vpack.c.bf16 %v3122, %v3122
      %v3215 = vpack.c.bf16 %v3137, %v3137
      %v3216 = vpack.c.bf16 %v3152, %v3152
      %vm3217 = vcmask 60416
      %3218 = vst.msk [vmem:[%s231] sm:$0xf] %vm3217, %v3153
      %3219 = vst.msk [vmem:[%s231 + $0x4] sm:$0xf] %vm3217, %v3154
      %3220 = vst.msk [vmem:[%s231 + $0x8] sm:$0xf] %vm3217, %v3155
      %3221 = vst.msk [vmem:[%s231 + $0xc] sm:$0xf] %vm3217, %v3156
      %3222 = vst.msk [vmem:[%s231 + $0x10] sm:$0xf] %vm3217, %v3157
      %3223 = vst.msk [vmem:[%s231 + $0x14] sm:$0xf] %vm3217, %v3158
      %3224 = vst.msk [vmem:[%s231 + $0x18] sm:$0xf] %vm3217, %v3159
      %3225 = vst.msk [vmem:[%s231 + $0x1c] sm:$0xf] %vm3217, %v3160
      %3226 = vst.msk [vmem:[%s231 + $0x20] sm:$0xf] %vm3217, %v3161
      %3227 = vst.msk [vmem:[%s231 + $0x24] sm:$0xf] %vm3217, %v3162
      %3228 = vst.msk [vmem:[%s231 + $0x28] sm:$0xf] %vm3217, %v3163
      %3229 = vst.msk [vmem:[%s231 + $0x2c] sm:$0xf] %vm3217, %v3164
      %3230 = vst.msk [vmem:[%s231 + $0x30] sm:$0xf] %vm3217, %v3165
      %3231 = vst.msk [vmem:[%s231 + $0x34] sm:$0xf] %vm3217, %v3166
      %3232 = vst.msk [vmem:[%s231 + $0x38] sm:$0xf] %vm3217, %v3167
      %3233 = vst.msk [vmem:[%s231 + $0x3c] sm:$0xf] %vm3217, %v3168
      %3234 = vst.msk [vmem:[%s231 + $0x40] sm:$0xf] %vm3217, %v3169
      %3235 = vst.msk [vmem:[%s231 + $0x44] sm:$0xf] %vm3217, %v3170
      %3236 = vst.msk [vmem:[%s231 + $0x48] sm:$0xf] %vm3217, %v3171
      %3237 = vst.msk [vmem:[%s231 + $0x4c] sm:$0xf] %vm3217, %v3172
      %3238 = vst.msk [vmem:[%s231 + $0x50] sm:$0xf] %vm3217, %v3173
      %3239 = vst.msk [vmem:[%s231 + $0x54] sm:$0xf] %vm3217, %v3174
      %3240 = vst.msk [vmem:[%s231 + $0x58] sm:$0xf] %vm3217, %v3175
      %3241 = vst.msk [vmem:[%s231 + $0x5c] sm:$0xf] %vm3217, %v3176
      %3242 = vst.msk [vmem:[%s231 + $0x60] sm:$0xf] %vm3217, %v3177
      %3243 = vst.msk [vmem:[%s231 + $0x64] sm:$0xf] %vm3217, %v3178
      %3244 = vst.msk [vmem:[%s231 + $0x68] sm:$0xf] %vm3217, %v3179
      %3245 = vst.msk [vmem:[%s231 + $0x6c] sm:$0xf] %vm3217, %v3180
      %3246 = vst.msk [vmem:[%s231 + $0x70] sm:$0xf] %vm3217, %v3181
      %3247 = vst.msk [vmem:[%s231 + $0x74] sm:$0xf] %vm3217, %v3182
      %3248 = vst.msk [vmem:[%s231 + $0x78] sm:$0xf] %vm3217, %v3183
      %3249 = vst.msk [vmem:[%s231 + $0x7c] sm:$0xf] %vm3217, %v3184
      %3250 = vst.msk [vmem:[%s231 + $0x80] sm:$0xf] %vm3217, %v3185
      %3251 = vst.msk [vmem:[%s231 + $0x84] sm:$0xf] %vm3217, %v3186
      %3252 = vst.msk [vmem:[%s231 + $0x88] sm:$0xf] %vm3217, %v3187
      %3253 = vst.msk [vmem:[%s231 + $0x8c] sm:$0xf] %vm3217, %v3188
      %3254 = vst.msk [vmem:[%s231 + $0x90] sm:$0xf] %vm3217, %v3189
      %3255 = vst.msk [vmem:[%s231 + $0x94] sm:$0xf] %vm3217, %v3190
      %3256 = vst.msk [vmem:[%s231 + $0x98] sm:$0xf] %vm3217, %v3191
      %3257 = vst.msk [vmem:[%s231 + $0x9c] sm:$0xf] %vm3217, %v3192
      %3258 = vst.msk [vmem:[%s231 + $0xa0] sm:$0xf] %vm3217, %v3193
      %3259 = vst.msk [vmem:[%s231 + $0xa4] sm:$0xf] %vm3217, %v3194
      %3260 = vst.msk [vmem:[%s231 + $0xa8] sm:$0xf] %vm3217, %v3195
      %3261 = vst.msk [vmem:[%s231 + $0xac] sm:$0xf] %vm3217, %v3196
      %3262 = vst.msk [vmem:[%s231 + $0xb0] sm:$0xf] %vm3217, %v3197
      %3263 = vst.msk [vmem:[%s231 + $0xb4] sm:$0xf] %vm3217, %v3198
      %3264 = vst.msk [vmem:[%s231 + $0xb8] sm:$0xf] %vm3217, %v3199
      %3265 = vst.msk [vmem:[%s231 + $0xbc] sm:$0xf] %vm3217, %v3200
      %3266 = vst.msk [vmem:[%s231 + $0xc0] sm:$0xf] %vm3217, %v3201
      %3267 = vst.msk [vmem:[%s231 + $0xc4] sm:$0xf] %vm3217, %v3202
      %3268 = vst.msk [vmem:[%s231 + $0xc8] sm:$0xf] %vm3217, %v3203
      %3269 = vst.msk [vmem:[%s231 + $0xcc] sm:$0xf] %vm3217, %v3204
      %3270 = vst.msk [vmem:[%s231 + $0xd0] sm:$0xf] %vm3217, %v3205
      %3271 = vst.msk [vmem:[%s231 + $0xd4] sm:$0xf] %vm3217, %v3206
      %3272 = vst.msk [vmem:[%s231 + $0xd8] sm:$0xf] %vm3217, %v3207
      %3273 = vst.msk [vmem:[%s231 + $0xdc] sm:$0xf] %vm3217, %v3208
      %3274 = vst.msk [vmem:[%s231 + $0xe0] sm:$0xf] %vm3217, %v3209
      %3275 = vst.msk [vmem:[%s231 + $0xe4] sm:$0xf] %vm3217, %v3210
      %3276 = vst.msk [vmem:[%s231 + $0xe8] sm:$0xf] %vm3217, %v3211
      %3277 = vst.msk [vmem:[%s231 + $0xec] sm:$0xf] %vm3217, %v3212
      %3278 = vst.msk [vmem:[%s231 + $0xf0] sm:$0xf] %vm3217, %v3213
      %3279 = vst.msk [vmem:[%s231 + $0xf4] sm:$0xf] %vm3217, %v3214
      %3280 = vst.msk [vmem:[%s231 + $0xf8] sm:$0xf] %vm3217, %v3215
      %3281 = vst.msk [vmem:[%s231 + $0xfc] sm:$0xf] %vm3217, %v3216
      %s3282 = smul.u32 64, %s19
      %p3283 = scmp.lt.s32.totalorder %s18, 3
      %s3284 = scalar_select %p3283, %s18, 3
      %p3285 = scmp.lt.s32.totalorder %s3282, 63
      %s3286 = scalar_select %p3285, %s3282, 63
      %s3287 = smul.addr %s3284, 64
      %s3288 = sadd.s32 %s3286, %s3287
      %s3289 = smul.addr %s3288, 4
      %s3290 = scalar_lea.vmem %s3, %s3289
      // Predicated region
      $region33: #{generator32_forward.7} parent=31 // pred_check
        %p3291 = pneg %p121
      $region34: #{generator32_forward.7} parent=31 // pred_check_branch
        %3293 = sbr.rel (%p3291) target = $region36
      $region35: #{generator32_forward.7} parent=31 // pred_region
        %s3294 = smul.u32 64, %s19
      $region36: #{generator32_forward.7} parent=31 // pred_fallthru
        _
    $region32: #{generator32_forward.7} parent=5 // pred_fallthru
      _
    %p3295 = scmp.le.s32.totalorder 2, %s9
    // Predicated region
    $region37: #{generator32_forward.7} parent=5 // pred_check
      %p3296 = pneg %p3295
    $region38: #{generator32_forward.7} parent=5 // pred_check_branch
      %3298 = sbr.rel (%p3296) target = $region40
    $region39: #{generator32_forward.7} parent=5 // pred_region
      %s3299 = ssub.s32 %s9, 2
      // Predicated region
      $region41: #{generator32_forward.7} parent=39 // pred_check
        %p3300 = pneg %p127
      $region42: #{generator32_forward.7} parent=39 // pred_check_branch
        %3302 = sbr.rel (%p3300) target = $region44
      $region43: #{generator32_forward.7} parent=39 // pred_region
        %s3303 = smul.u32 64, %s21
        %p3304 = scmp.lt.s32.totalorder %s20, 3
        %s3305 = scalar_select %p3304, %s20, 3
        %p3306 = scmp.lt.s32.totalorder %s3303, 63
        %s3307 = scalar_select %p3306, %s3303, 63
        %s3308 = smul.addr %s3305, 64
        %s3309 = sadd.s32 %s3307, %s3308
        %s3310 = smul.addr %s3309, 4
        %s3311 = scalar_lea.vmem %s3, %s3310
      $region44: #{generator32_forward.7} parent=39 // pred_fallthru
        _
    $region40: #{generator32_forward.7} parent=5 // pred_fallthru
      _
  $region6: #{generator32_forward.7} parent=0 // loop_footer
    %s13 = sadd.s32 1, %s9
  $region7: #{generator32_forward.7} parent=0 // loop_footer_branch
    %8 = sbr.rel target = $region3
  $region8: #{generator32_forward.7} parent=0 // loop_exit
    _

</llo_original>
